<compile_context>
chip_gen: v5e
topology: v5e:2x2
jax: 0.10.0
libtpu: 0.0.40
codegen_flags: <defaults>
</compile_context>

<pallas_src>
import functools

import jax
import jax.numpy as jnp
from jax import lax
from jax.experimental import pallas as pl
from jax.experimental.pallas import tpu as pltpu

FEATURE = 11
TIME_STEP = 24
INPUT_SIZE = FEATURE * TIME_STEP      # 264
HIDDEN = 33
NUM_LAYERS = 5
OUT_FEATURES = 1

# padded sizes (lane = 128, sublane = 8)
IN_PAD = 384                           # 264 -> 384
H_PAD = 128                            # 33  -> 128
G_PAD = 4 * H_PAD                      # 512
OUT_PAD = 128                          # 1   -> 128

# gate block order inside the padded gate dim: [i | f | o | g]
# (PyTorch stores [i | f | g | o]); new block p takes PyTorch block GATE_SRC[p]
GATE_SRC = (0, 1, 3, 2)


# -----------------------------------------------------------------------------
# Pallas kernel: whole stacked-LSTM forward + final linear, everything in VMEM.
# -----------------------------------------------------------------------------
def lstm_pollution_kernel(x_ref, wih0_ref, wihr_ref, whh_ref, b_ref,
                          wlin_ref, blin_ref, out_ref, gates_ref, seq_ref,
                          *, last_row):
    L = gates_ref.shape[0]
    N = gates_ref.shape[1]

    zeros = jnp.zeros((N, H_PAD), jnp.float32)

    def recurrence(layer):
        # hold this layer's recurrent weight (bf16) for the whole unrolled loop
        w_hh = whh_ref[layer]                                   # (H_PAD, G_PAD)

        def body(t, carry):
            h, c = carry
            g = gates_ref[t] + jnp.dot(h.astype(jnp.bfloat16), w_hh,
                                       preferred_element_type=jnp.float32)
            # gate layout [i | f | o | g]: one sigmoid over 3*H_PAD lanes
            ifo = jax.nn.sigmoid(g[:, :3 * H_PAD])
            i_g = ifo[:, 0 * H_PAD:1 * H_PAD]
            f_g = ifo[:, 1 * H_PAD:2 * H_PAD]
            o_g = ifo[:, 2 * H_PAD:3 * H_PAD]
            g_g = jnp.tanh(g[:, 3 * H_PAD:])
            c_new = f_g * c + i_g * g_g
            h_new = o_g * jnp.tanh(c_new)
            seq_ref[t] = h_new
            return h_new, c_new

        lax.fori_loop(0, L, body, (zeros, zeros), unroll=True)

    # ---- layer 0: hoisted input projection over the whole sequence ----
    # x_ref is (L*N, IN_PAD) bf16; bias folded into the batched matmul result.
    g0 = (jnp.dot(x_ref[...], wih0_ref[...],
                  preferred_element_type=jnp.float32) + b_ref[0])
    gates_ref[...] = g0.reshape(L, N, G_PAD)
    recurrence(0)

    # ---- layers 1..NUM_LAYERS-1: hoisted projection of previous layer's seq ----
    for l in range(1, NUM_LAYERS):
        seq_all = seq_ref[...].reshape(L * N, H_PAD).astype(jnp.bfloat16)
        gl = (jnp.dot(seq_all, wihr_ref[l - 1],
                      preferred_element_type=jnp.float32) + b_ref[l])
        gates_ref[...] = gl.reshape(L, N, G_PAD)
        recurrence(l)

    # ---- final linear on the single batch row used by out[:, -1] ----
    h_last = seq_ref[...][:, last_row, :]                       # (L, H_PAD) f32
    out = (jnp.dot(h_last.astype(jnp.bfloat16), wlin_ref[...],
                   preferred_element_type=jnp.float32) + blin_ref[...])
    out_ref[...] = out                                          # (L, OUT_PAD)


# -----------------------------------------------------------------------------
# Wrapper: padding + pallas_call
# -----------------------------------------------------------------------------
def lstm_pollution_forward(x, padded_params):
    L, N, _ = x.shape
    n_pad = max(8, ((N + 7) // 8) * 8)

    x_pad = jnp.zeros((L, n_pad, IN_PAD), jnp.float32)
    x_pad = x_pad.at[:, :N, :INPUT_SIZE].set(x.astype(jnp.float32))
    # flatten (L, n_pad) -> rows outside the kernel (free) and cast to bf16
    x_flat = x_pad.reshape(L * n_pad, IN_PAD).astype(jnp.bfloat16)

    wih0, wihr, whh, b, wlin, blin = padded_params

    kernel = functools.partial(lstm_pollution_kernel, last_row=N - 1)

    out_pad = pl.pallas_call(
        kernel,
        out_shape=jax.ShapeDtypeStruct((L, OUT_PAD), jnp.float32),
        grid=(1,),
        in_specs=[
            pl.BlockSpec((L * n_pad, IN_PAD), lambda i: (0, 0)),
            pl.BlockSpec((IN_PAD, G_PAD), lambda i: (0, 0)),
            pl.BlockSpec((NUM_LAYERS - 1, H_PAD, G_PAD), lambda i: (0, 0, 0)),
            pl.BlockSpec((NUM_LAYERS, H_PAD, G_PAD), lambda i: (0, 0, 0)),
            pl.BlockSpec((NUM_LAYERS, 1, G_PAD), lambda i: (0, 0, 0)),
            pl.BlockSpec((H_PAD, OUT_PAD), lambda i: (0, 0)),
            pl.BlockSpec((1, OUT_PAD), lambda i: (0, 0)),
        ],
        out_specs=pl.BlockSpec((L, OUT_PAD), lambda i: (0, 0)),
        scratch_shapes=[
            pltpu.VMEM((L, n_pad, G_PAD), jnp.float32),   # hoisted gate preacts
            pltpu.VMEM((L, n_pad, H_PAD), jnp.float32),   # layer output sequence
        ],
        compiler_params=pltpu.CompilerParams(
            dimension_semantics=("arbitrary",)),
    )(x_flat, wih0, wihr, whh, b, wlin, blin)

    # PyTorch: out[:, -1] selects the LAST BATCH element across all time steps
    # (nn.LSTM default layout is (seq, batch, hidden)), then Linear(33 -> 1).
    return out_pad[:, :OUT_FEATURES]                      # (L, 1)


# -----------------------------------------------------------------------------
# Deterministic parameter init (PyTorch-style shapes) + padding helpers
# -----------------------------------------------------------------------------
def init_torch_style_params(key):
    k = 1.0 / jnp.sqrt(jnp.float32(HIDDEN))
    lstm = []
    for l in range(NUM_LAYERS):
        in_dim = INPUT_SIZE if l == 0 else HIDDEN
        key, k1, k2, k3, k4 = jax.random.split(key, 5)
        w_ih = jax.random.uniform(k1, (4 * HIDDEN, in_dim), jnp.float32, -k, k)
        w_hh = jax.random.uniform(k2, (4 * HIDDEN, HIDDEN), jnp.float32, -k, k)
        b_ih = jax.random.uniform(k3, (4 * HIDDEN,), jnp.float32, -k, k)
        b_hh = jax.random.uniform(k4, (4 * HIDDEN,), jnp.float32, -k, k)
        lstm.append((w_ih, w_hh, b_ih, b_hh))
    key, k1, k2 = jax.random.split(key, 3)
    kl = 1.0 / jnp.sqrt(jnp.float32(HIDDEN))
    w_lin = jax.random.uniform(k1, (OUT_FEATURES, HIDDEN), jnp.float32, -kl, kl)
    b_lin = jax.random.uniform(k2, (OUT_FEATURES,), jnp.float32, -kl, kl)
    return lstm, w_lin, b_lin


def _pad_gate_weight_T(w, in_dim_pad):
    # w: (4*HIDDEN, in_dim) -> (in_dim_pad, G_PAD) bf16, transposed,
    # gate blocks reordered to [i | f | o | g]
    in_dim = w.shape[1]
    out = jnp.zeros((in_dim_pad, G_PAD), jnp.float32)
    for p, src in enumerate(GATE_SRC):
        blk = w[src * HIDDEN:(src + 1) * HIDDEN, :]            # (33, in_dim)
        out = out.at[:in_dim, p * H_PAD:p * H_PAD + HIDDEN].set(blk.T)
    return out.astype(jnp.bfloat16)


def _pad_gate_bias(b):
    out = jnp.zeros((G_PAD,), jnp.float32)
    for p, src in enumerate(GATE_SRC):
        out = out.at[p * H_PAD:p * H_PAD + HIDDEN].set(
            b[src * HIDDEN:(src + 1) * HIDDEN])
    return out


def pad_params(lstm, w_lin, b_lin):
    wih0 = _pad_gate_weight_T(lstm[0][0], IN_PAD)
    wihr = jnp.stack([_pad_gate_weight_T(lstm[l][0], H_PAD)
                      for l in range(1, NUM_LAYERS)])
    whh = jnp.stack([_pad_gate_weight_T(lstm[l][1], H_PAD)
                     for l in range(NUM_LAYERS)])
    b = jnp.stack([_pad_gate_bias(lstm[l][2] + lstm[l][3])[None, :]
                   for l in range(NUM_LAYERS)])                 # f32 (5,1,512)
    wlin = jnp.zeros((H_PAD, OUT_PAD), jnp.float32)
    wlin = wlin.at[:HIDDEN, :OUT_FEATURES].set(w_lin.T)
    wlin = wlin.astype(jnp.bfloat16)
    blin = jnp.zeros((1, OUT_PAD), jnp.float32)
    blin = blin.at[0, :OUT_FEATURES].set(b_lin)
    return (wih0, wihr, whh, b, wlin, blin)


# -----------------------------------------------------------------------------
# Pure-JAX reference (mirrors PyTorch nn.LSTM + Linear exactly, f32) for checks
# -----------------------------------------------------------------------------
def reference_forward(x, lstm, w_lin, b_lin):
    L, N, _ = x.shape
    h_seq = x
    for l in range(NUM_LAYERS):
        w_ih, w_hh, b_ih, b_hh = lstm[l]
        h = jnp.zeros((N, HIDDEN), jnp.float32)
        c = jnp.zeros((N, HIDDEN), jnp.float32)
        outs = []
        for t in range(L):
            g = h_seq[t] @ w_ih.T + b_ih + h @ w_hh.T + b_hh
            i_g = jax.nn.sigmoid(g[:, 0:HIDDEN])
            f_g = jax.nn.sigmoid(g[:, HIDDEN:2 * HIDDEN])
            g_g = jnp.tanh(g[:, 2 * HIDDEN:3 * HIDDEN])
            o_g = jax.nn.sigmoid(g[:, 3 * HIDDEN:4 * HIDDEN])
            c = f_g * c + i_g * g_g
            h = o_g * jnp.tanh(c)
            outs.append(h)
        h_seq = jnp.stack(outs)
    out = h_seq[:, -1]                                     # (L, 33) last batch
    return out @ w_lin.T + b_lin                           # (L, 1)


if __name__ == "__main__":
    key = jax.random.PRNGKey(0)
    key, xkey = jax.random.split(key)

    # small shapes consistent with the module: (seq_len=6, batch=2, 264)
    L, N = 6, 2
    x = jax.random.normal(xkey, (L, N, INPUT_SIZE), jnp.float32)

    lstm, w_lin, b_lin = init_torch_style_params(key)
    padded = pad_params(lstm, w_lin, b_lin)

    out = jax.block_until_ready(lstm_pollution_forward(x, padded))
    assert out.shape == (L, OUT_FEATURES), out.shape

    ref = reference_forward(x, lstm, w_lin, b_lin)
    # weights / matmul operands are bf16 (f32 accumulation & state), so compare
    # against the f32 reference at bf16-level tolerance.
    assert jnp.allclose(out, ref, atol=5e-2, rtol=5e-2), (out, ref)

    print("KERNEL_OK")
</pallas_src>

<mosaic_0001>
module attributes {stable_mosaic.version = 11 : i64} {
  func.func @lstm_pollution_kernel(%arg0: i32, %arg1: memref<48x384xbf16, #tpu.memory_space<vmem>>, %arg2: memref<384x512xbf16, #tpu.memory_space<vmem>>, %arg3: memref<4x128x512xbf16, #tpu.memory_space<vmem>>, %arg4: memref<5x128x512xbf16, #tpu.memory_space<vmem>>, %arg5: memref<5x1x512xf32, #tpu.memory_space<vmem>>, %arg6: memref<128x128xbf16, #tpu.memory_space<vmem>>, %arg7: memref<1x128xf32, #tpu.memory_space<vmem>>, %arg8: memref<6x128xf32, #tpu.memory_space<vmem>>, %arg9: memref<6x8x512xf32, #tpu.memory_space<vmem>>, %arg10: memref<6x8x128xf32, #tpu.memory_space<vmem>>) attributes {dimension_semantics = [#tpu.dimension_semantics<arbitrary>], iteration_bounds = array<i64: 1>, scalar_prefetch = 0 : i64, scratch_operands = 2 : i64, tpu.core_type = #tpu.core_type<tc>, window_params = [{pipeline_mode = #tpu.pipeline_mode<synchronous>, transform_indices = @transform_0, window_bounds = array<i64: 48, 384>}, {pipeline_mode = #tpu.pipeline_mode<synchronous>, transform_indices = @transform_1, window_bounds = array<i64: 384, 512>}, {pipeline_mode = #tpu.pipeline_mode<synchronous>, transform_indices = @transform_2, window_bounds = array<i64: 4, 128, 512>}, {pipeline_mode = #tpu.pipeline_mode<synchronous>, transform_indices = @transform_3, window_bounds = array<i64: 5, 128, 512>}, {pipeline_mode = #tpu.pipeline_mode<synchronous>, transform_indices = @transform_4, window_bounds = array<i64: 5, 1, 512>}, {pipeline_mode = #tpu.pipeline_mode<synchronous>, transform_indices = @transform_5, window_bounds = array<i64: 128, 128>}, {pipeline_mode = #tpu.pipeline_mode<synchronous>, transform_indices = @transform_6, window_bounds = array<i64: 1, 128>}, {pipeline_mode = #tpu.pipeline_mode<synchronous>, transform_indices = @transform_7, window_bounds = array<i64: 6, 128>}]} {
    %cst = arith.constant 0.000000e+00 : f32
    %0 = vector.broadcast %cst : f32 to vector<8x128xf32>
    %c0 = arith.constant 0 : index
    %c0_0 = arith.constant 0 : index
    %1 = vector.load %arg1[%c0, %c0_0] : memref<48x384xbf16, #tpu.memory_space<vmem>>, vector<48x384xbf16>
    %c0_1 = arith.constant 0 : index
    %c0_2 = arith.constant 0 : index
    %2 = vector.load %arg2[%c0_1, %c0_2] : memref<384x512xbf16, #tpu.memory_space<vmem>>, vector<384x512xbf16>
    %cst_3 = arith.constant dense<0.000000e+00> : vector<48x512xf32>
    %3 = tpu.matmul %1, %2, %cst_3 {dimension_numbers = #tpu.dot_dimension_numbers<[1], [0], [0], [1], [0, 0, 1, 1], [], []>} : vector<48x384xbf16>, vector<384x512xbf16>, vector<48x512xf32> -> vector<48x512xf32>
    %c0_4 = arith.constant 0 : index
    %c0_5 = arith.constant 0 : index
    %c0_6 = arith.constant 0 : index
    %4 = vector.load %arg5[%c0_4, %c0_5, %c0_6] : memref<5x1x512xf32, #tpu.memory_space<vmem>>, vector<1x1x512xf32>
    %5 = vector.shape_cast %4 : vector<1x1x512xf32> to vector<1x512xf32>
    %6 = vector.broadcast %5 : vector<1x512xf32> to vector<48x512xf32>
    %7 = arith.addf %3, %6 : vector<48x512xf32>
    %8 = vector.shape_cast %7 : vector<48x512xf32> to vector<6x8x512xf32>
    %c0_7 = arith.constant 0 : index
    %c0_8 = arith.constant 0 : index
    %c0_9 = arith.constant 0 : index
    %9 = vector.load %arg9[%c0_7, %c0_8, %c0_9] : memref<6x8x512xf32, #tpu.memory_space<vmem>>, vector<6x8x512xf32>
    tpu.vector_store %arg9[%c0_7, %c0_8, %c0_9], %8 {strides = array<i32>} : memref<6x8x512xf32, #tpu.memory_space<vmem>>, vector<6x8x512xf32>,
    %c0_10 = arith.constant 0 : index
    %c0_11 = arith.constant 0 : index
    %c0_12 = arith.constant 0 : index
    %10 = vector.load %arg4[%c0_10, %c0_11, %c0_12] : memref<5x128x512xbf16, #tpu.memory_space<vmem>>, vector<1x128x512xbf16>
    %11 = vector.shape_cast %10 : vector<1x128x512xbf16> to vector<128x512xbf16>
    %c0_i32 = arith.constant 0 : i32
    %12 = arith.index_cast %c0_i32 : i32 to index
    %c0_13 = arith.constant 0 : index
    %c0_14 = arith.constant 0 : index
    %13 = vector.load %arg9[%12, %c0_13, %c0_14] : memref<6x8x512xf32, #tpu.memory_space<vmem>>, vector<1x8x512xf32>
    %14 = vector.shape_cast %13 : vector<1x8x512xf32> to vector<8x512xf32>
    %15 = arith.truncf %0 : vector<8x128xf32> to vector<8x128xbf16>
    %cst_15 = arith.constant dense<0.000000e+00> : vector<8x512xf32>
    %16 = tpu.matmul %15, %11, %cst_15 {dimension_numbers = #tpu.dot_dimension_numbers<[1], [0], [0], [1], [0, 0, 1, 1], [], []>} : vector<8x128xbf16>, vector<128x512xbf16>, vector<8x512xf32> -> vector<8x512xf32>
    %17 = arith.addf %14, %16 : vector<8x512xf32>
    %18 = vector.extract_strided_slice %17 {offsets = [0, 0], sizes = [8, 384], strides = [1, 1]} : vector<8x512xf32> to vector<8x384xf32>
    %19 = arith.negf %18 : vector<8x384xf32>
    %20 = math.exp %19 : vector<8x384xf32>
    %cst_16 = arith.constant 1.000000e+00 : f32
    %21 = vector.broadcast %cst_16 : f32 to vector<8x384xf32>
    %22 = arith.addf %21, %20 : vector<8x384xf32>
    %23 = arith.divf %21, %22 : vector<8x384xf32>
    %24 = vector.extract_strided_slice %23 {offsets = [0, 0], sizes = [8, 128], strides = [1, 1]} : vector<8x384xf32> to vector<8x128xf32>
    %25 = vector.extract_strided_slice %23 {offsets = [0, 128], sizes = [8, 128], strides = [1, 1]} : vector<8x384xf32> to vector<8x128xf32>
    %26 = vector.extract_strided_slice %23 {offsets = [0, 256], sizes = [8, 128], strides = [1, 1]} : vector<8x384xf32> to vector<8x128xf32>
    %27 = vector.extract_strided_slice %17 {offsets = [0, 384], sizes = [8, 128], strides = [1, 1]} : vector<8x512xf32> to vector<8x128xf32>
    %28 = math.tanh %27 : vector<8x128xf32>
    %29 = arith.mulf %25, %0 : vector<8x128xf32>
    %30 = arith.mulf %24, %28 : vector<8x128xf32>
    %31 = arith.addf %29, %30 : vector<8x128xf32>
    %32 = math.tanh %31 : vector<8x128xf32>
    %33 = arith.mulf %26, %32 : vector<8x128xf32>
    %34 = arith.index_cast %c0_i32 : i32 to index
    %c0_17 = arith.constant 0 : index
    %c0_18 = arith.constant 0 : index
    %35 = vector.load %arg10[%34, %c0_17, %c0_18] : memref<6x8x128xf32, #tpu.memory_space<vmem>>, vector<1x8x128xf32>
    %36 = vector.shape_cast %35 : vector<1x8x128xf32> to vector<8x128xf32>
    %37 = vector.shape_cast %33 : vector<8x128xf32> to vector<1x8x128xf32>
    tpu.vector_store %arg10[%34, %c0_17, %c0_18], %37 {strides = array<i32>} : memref<6x8x128xf32, #tpu.memory_space<vmem>>, vector<1x8x128xf32>,
    %c1_i32 = arith.constant 1 : i32
    %38 = arith.index_cast %c1_i32 : i32 to index
    %c0_19 = arith.constant 0 : index
    %c0_20 = arith.constant 0 : index
    %39 = vector.load %arg9[%38, %c0_19, %c0_20] : memref<6x8x512xf32, #tpu.memory_space<vmem>>, vector<1x8x512xf32>
    %40 = vector.shape_cast %39 : vector<1x8x512xf32> to vector<8x512xf32>
    %41 = arith.truncf %33 : vector<8x128xf32> to vector<8x128xbf16>
    %cst_21 = arith.constant dense<0.000000e+00> : vector<8x512xf32>
    %42 = tpu.matmul %41, %11, %cst_21 {dimension_numbers = #tpu.dot_dimension_numbers<[1], [0], [0], [1], [0, 0, 1, 1], [], []>} : vector<8x128xbf16>, vector<128x512xbf16>, vector<8x512xf32> -> vector<8x512xf32>
    %43 = arith.addf %40, %42 : vector<8x512xf32>
    %44 = vector.extract_strided_slice %43 {offsets = [0, 0], sizes = [8, 384], strides = [1, 1]} : vector<8x512xf32> to vector<8x384xf32>
    %45 = arith.negf %44 : vector<8x384xf32>
    %46 = math.exp %45 : vector<8x384xf32>
    %cst_22 = arith.constant 1.000000e+00 : f32
    %47 = vector.broadcast %cst_22 : f32 to vector<8x384xf32>
    %48 = arith.addf %47, %46 : vector<8x384xf32>
    %49 = arith.divf %47, %48 : vector<8x384xf32>
    %50 = vector.extract_strided_slice %49 {offsets = [0, 0], sizes = [8, 128], strides = [1, 1]} : vector<8x384xf32> to vector<8x128xf32>
    %51 = vector.extract_strided_slice %49 {offsets = [0, 128], sizes = [8, 128], strides = [1, 1]} : vector<8x384xf32> to vector<8x128xf32>
    %52 = vector.extract_strided_slice %49 {offsets = [0, 256], sizes = [8, 128], strides = [1, 1]} : vector<8x384xf32> to vector<8x128xf32>
    %53 = vector.extract_strided_slice %43 {offsets = [0, 384], sizes = [8, 128], strides = [1, 1]} : vector<8x512xf32> to vector<8x128xf32>
    %54 = math.tanh %53 : vector<8x128xf32>
    %55 = arith.mulf %51, %31 : vector<8x128xf32>
    %56 = arith.mulf %50, %54 : vector<8x128xf32>
    %57 = arith.addf %55, %56 : vector<8x128xf32>
    %58 = math.tanh %57 : vector<8x128xf32>
    %59 = arith.mulf %52, %58 : vector<8x128xf32>
    %60 = arith.index_cast %c1_i32 : i32 to index
    %c0_23 = arith.constant 0 : index
    %c0_24 = arith.constant 0 : index
    %61 = vector.load %arg10[%60, %c0_23, %c0_24] : memref<6x8x128xf32, #tpu.memory_space<vmem>>, vector<1x8x128xf32>
    %62 = vector.shape_cast %61 : vector<1x8x128xf32> to vector<8x128xf32>
    %63 = vector.shape_cast %59 : vector<8x128xf32> to vector<1x8x128xf32>
    tpu.vector_store %arg10[%60, %c0_23, %c0_24], %63 {strides = array<i32>} : memref<6x8x128xf32, #tpu.memory_space<vmem>>, vector<1x8x128xf32>,
    %c2_i32 = arith.constant 2 : i32
    %64 = arith.index_cast %c2_i32 : i32 to index
    %c0_25 = arith.constant 0 : index
    %c0_26 = arith.constant 0 : index
    %65 = vector.load %arg9[%64, %c0_25, %c0_26] : memref<6x8x512xf32, #tpu.memory_space<vmem>>, vector<1x8x512xf32>
    %66 = vector.shape_cast %65 : vector<1x8x512xf32> to vector<8x512xf32>
    %67 = arith.truncf %59 : vector<8x128xf32> to vector<8x128xbf16>
    %cst_27 = arith.constant dense<0.000000e+00> : vector<8x512xf32>
    %68 = tpu.matmul %67, %11, %cst_27 {dimension_numbers = #tpu.dot_dimension_numbers<[1], [0], [0], [1], [0, 0, 1, 1], [], []>} : vector<8x128xbf16>, vector<128x512xbf16>, vector<8x512xf32> -> vector<8x512xf32>
    %69 = arith.addf %66, %68 : vector<8x512xf32>
    %70 = vector.extract_strided_slice %69 {offsets = [0, 0], sizes = [8, 384], strides = [1, 1]} : vector<8x512xf32> to vector<8x384xf32>
    %71 = arith.negf %70 : vector<8x384xf32>
    %72 = math.exp %71 : vector<8x384xf32>
    %cst_28 = arith.constant 1.000000e+00 : f32
    %73 = vector.broadcast %cst_28 : f32 to vector<8x384xf32>
    %74 = arith.addf %73, %72 : vector<8x384xf32>
    %75 = arith.divf %73, %74 : vector<8x384xf32>
    %76 = vector.extract_strided_slice %75 {offsets = [0, 0], sizes = [8, 128], strides = [1, 1]} : vector<8x384xf32> to vector<8x128xf32>
    %77 = vector.extract_strided_slice %75 {offsets = [0, 128], sizes = [8, 128], strides = [1, 1]} : vector<8x384xf32> to vector<8x128xf32>
    %78 = vector.extract_strided_slice %75 {offsets = [0, 256], sizes = [8, 128], strides = [1, 1]} : vector<8x384xf32> to vector<8x128xf32>
    %79 = vector.extract_strided_slice %69 {offsets = [0, 384], sizes = [8, 128], strides = [1, 1]} : vector<8x512xf32> to vector<8x128xf32>
    %80 = math.tanh %79 : vector<8x128xf32>
    %81 = arith.mulf %77, %57 : vector<8x128xf32>
    %82 = arith.mulf %76, %80 : vector<8x128xf32>
    %83 = arith.addf %81, %82 : vector<8x128xf32>
    %84 = math.tanh %83 : vector<8x128xf32>
    %85 = arith.mulf %78, %84 : vector<8x128xf32>
    %86 = arith.index_cast %c2_i32 : i32 to index
    %c0_29 = arith.constant 0 : index
    %c0_30 = arith.constant 0 : index
    %87 = vector.load %arg10[%86, %c0_29, %c0_30] : memref<6x8x128xf32, #tpu.memory_space<vmem>>, vector<1x8x128xf32>
    %88 = vector.shape_cast %87 : vector<1x8x128xf32> to vector<8x128xf32>
    %89 = vector.shape_cast %85 : vector<8x128xf32> to vector<1x8x128xf32>
    tpu.vector_store %arg10[%86, %c0_29, %c0_30], %89 {strides = array<i32>} : memref<6x8x128xf32, #tpu.memory_space<vmem>>, vector<1x8x128xf32>,
    %c3_i32 = arith.constant 3 : i32
    %90 = arith.index_cast %c3_i32 : i32 to index
    %c0_31 = arith.constant 0 : index
    %c0_32 = arith.constant 0 : index
    %91 = vector.load %arg9[%90, %c0_31, %c0_32] : memref<6x8x512xf32, #tpu.memory_space<vmem>>, vector<1x8x512xf32>
    %92 = vector.shape_cast %91 : vector<1x8x512xf32> to vector<8x512xf32>
    %93 = arith.truncf %85 : vector<8x128xf32> to vector<8x128xbf16>
    %cst_33 = arith.constant dense<0.000000e+00> : vector<8x512xf32>
    %94 = tpu.matmul %93, %11, %cst_33 {dimension_numbers = #tpu.dot_dimension_numbers<[1], [0], [0], [1], [0, 0, 1, 1], [], []>} : vector<8x128xbf16>, vector<128x512xbf16>, vector<8x512xf32> -> vector<8x512xf32>
    %95 = arith.addf %92, %94 : vector<8x512xf32>
    %96 = vector.extract_strided_slice %95 {offsets = [0, 0], sizes = [8, 384], strides = [1, 1]} : vector<8x512xf32> to vector<8x384xf32>
    %97 = arith.negf %96 : vector<8x384xf32>
    %98 = math.exp %97 : vector<8x384xf32>
    %cst_34 = arith.constant 1.000000e+00 : f32
    %99 = vector.broadcast %cst_34 : f32 to vector<8x384xf32>
    %100 = arith.addf %99, %98 : vector<8x384xf32>
    %101 = arith.divf %99, %100 : vector<8x384xf32>
    %102 = vector.extract_strided_slice %101 {offsets = [0, 0], sizes = [8, 128], strides = [1, 1]} : vector<8x384xf32> to vector<8x128xf32>
    %103 = vector.extract_strided_slice %101 {offsets = [0, 128], sizes = [8, 128], strides = [1, 1]} : vector<8x384xf32> to vector<8x128xf32>
    %104 = vector.extract_strided_slice %101 {offsets = [0, 256], sizes = [8, 128], strides = [1, 1]} : vector<8x384xf32> to vector<8x128xf32>
    %105 = vector.extract_strided_slice %95 {offsets = [0, 384], sizes = [8, 128], strides = [1, 1]} : vector<8x512xf32> to vector<8x128xf32>
    %106 = math.tanh %105 : vector<8x128xf32>
    %107 = arith.mulf %103, %83 : vector<8x128xf32>
    %108 = arith.mulf %102, %106 : vector<8x128xf32>
    %109 = arith.addf %107, %108 : vector<8x128xf32>
    %110 = math.tanh %109 : vector<8x128xf32>
    %111 = arith.mulf %104, %110 : vector<8x128xf32>
    %112 = arith.index_cast %c3_i32 : i32 to index
    %c0_35 = arith.constant 0 : index
    %c0_36 = arith.constant 0 : index
    %113 = vector.load %arg10[%112, %c0_35, %c0_36] : memref<6x8x128xf32, #tpu.memory_space<vmem>>, vector<1x8x128xf32>
    %114 = vector.shape_cast %113 : vector<1x8x128xf32> to vector<8x128xf32>
    %115 = vector.shape_cast %111 : vector<8x128xf32> to vector<1x8x128xf32>
    tpu.vector_store %arg10[%112, %c0_35, %c0_36], %115 {strides = array<i32>} : memref<6x8x128xf32, #tpu.memory_space<vmem>>, vector<1x8x128xf32>,
    %c4_i32 = arith.constant 4 : i32
    %116 = arith.index_cast %c4_i32 : i32 to index
    %c0_37 = arith.constant 0 : index
    %c0_38 = arith.constant 0 : index
    %117 = vector.load %arg9[%116, %c0_37, %c0_38] : memref<6x8x512xf32, #tpu.memory_space<vmem>>, vector<1x8x512xf32>
    %118 = vector.shape_cast %117 : vector<1x8x512xf32> to vector<8x512xf32>
    %119 = arith.truncf %111 : vector<8x128xf32> to vector<8x128xbf16>
    %cst_39 = arith.constant dense<0.000000e+00> : vector<8x512xf32>
    %120 = tpu.matmul %119, %11, %cst_39 {dimension_numbers = #tpu.dot_dimension_numbers<[1], [0], [0], [1], [0, 0, 1, 1], [], []>} : vector<8x128xbf16>, vector<128x512xbf16>, vector<8x512xf32> -> vector<8x512xf32>
    %121 = arith.addf %118, %120 : vector<8x512xf32>
    %122 = vector.extract_strided_slice %121 {offsets = [0, 0], sizes = [8, 384], strides = [1, 1]} : vector<8x512xf32> to vector<8x384xf32>
    %123 = arith.negf %122 : vector<8x384xf32>
    %124 = math.exp %123 : vector<8x384xf32>
    %cst_40 = arith.constant 1.000000e+00 : f32
    %125 = vector.broadcast %cst_40 : f32 to vector<8x384xf32>
    %126 = arith.addf %125, %124 : vector<8x384xf32>
    %127 = arith.divf %125, %126 : vector<8x384xf32>
    %128 = vector.extract_strided_slice %127 {offsets = [0, 0], sizes = [8, 128], strides = [1, 1]} : vector<8x384xf32> to vector<8x128xf32>
    %129 = vector.extract_strided_slice %127 {offsets = [0, 128], sizes = [8, 128], strides = [1, 1]} : vector<8x384xf32> to vector<8x128xf32>
    %130 = vector.extract_strided_slice %127 {offsets = [0, 256], sizes = [8, 128], strides = [1, 1]} : vector<8x384xf32> to vector<8x128xf32>
    %131 = vector.extract_strided_slice %121 {offsets = [0, 384], sizes = [8, 128], strides = [1, 1]} : vector<8x512xf32> to vector<8x128xf32>
    %132 = math.tanh %131 : vector<8x128xf32>
    %133 = arith.mulf %129, %109 : vector<8x128xf32>
    %134 = arith.mulf %128, %132 : vector<8x128xf32>
    %135 = arith.addf %133, %134 : vector<8x128xf32>
    %136 = math.tanh %135 : vector<8x128xf32>
    %137 = arith.mulf %130, %136 : vector<8x128xf32>
    %138 = arith.index_cast %c4_i32 : i32 to index
    %c0_41 = arith.constant 0 : index
    %c0_42 = arith.constant 0 : index
    %139 = vector.load %arg10[%138, %c0_41, %c0_42] : memref<6x8x128xf32, #tpu.memory_space<vmem>>, vector<1x8x128xf32>
    %140 = vector.shape_cast %139 : vector<1x8x128xf32> to vector<8x128xf32>
    %141 = vector.shape_cast %137 : vector<8x128xf32> to vector<1x8x128xf32>
    tpu.vector_store %arg10[%138, %c0_41, %c0_42], %141 {strides = array<i32>} : memref<6x8x128xf32, #tpu.memory_space<vmem>>, vector<1x8x128xf32>,
    %c5_i32 = arith.constant 5 : i32
    %142 = arith.index_cast %c5_i32 : i32 to index
    %c0_43 = arith.constant 0 : index
    %c0_44 = arith.constant 0 : index
    %143 = vector.load %arg9[%142, %c0_43, %c0_44] : memref<6x8x512xf32, #tpu.memory_space<vmem>>, vector<1x8x512xf32>
    %144 = vector.shape_cast %143 : vector<1x8x512xf32> to vector<8x512xf32>
    %145 = arith.truncf %137 : vector<8x128xf32> to vector<8x128xbf16>
    %cst_45 = arith.constant dense<0.000000e+00> : vector<8x512xf32>
    %146 = tpu.matmul %145, %11, %cst_45 {dimension_numbers = #tpu.dot_dimension_numbers<[1], [0], [0], [1], [0, 0, 1, 1], [], []>} : vector<8x128xbf16>, vector<128x512xbf16>, vector<8x512xf32> -> vector<8x512xf32>
    %147 = arith.addf %144, %146 : vector<8x512xf32>
    %148 = vector.extract_strided_slice %147 {offsets = [0, 0], sizes = [8, 384], strides = [1, 1]} : vector<8x512xf32> to vector<8x384xf32>
    %149 = arith.negf %148 : vector<8x384xf32>
    %150 = math.exp %149 : vector<8x384xf32>
    %cst_46 = arith.constant 1.000000e+00 : f32
    %151 = vector.broadcast %cst_46 : f32 to vector<8x384xf32>
    %152 = arith.addf %151, %150 : vector<8x384xf32>
    %153 = arith.divf %151, %152 : vector<8x384xf32>
    %154 = vector.extract_strided_slice %153 {offsets = [0, 0], sizes = [8, 128], strides = [1, 1]} : vector<8x384xf32> to vector<8x128xf32>
    %155 = vector.extract_strided_slice %153 {offsets = [0, 128], sizes = [8, 128], strides = [1, 1]} : vector<8x384xf32> to vector<8x128xf32>
    %156 = vector.extract_strided_slice %153 {offsets = [0, 256], sizes = [8, 128], strides = [1, 1]} : vector<8x384xf32> to vector<8x128xf32>
    %157 = vector.extract_strided_slice %147 {offsets = [0, 384], sizes = [8, 128], strides = [1, 1]} : vector<8x512xf32> to vector<8x128xf32>
    %158 = math.tanh %157 : vector<8x128xf32>
    %159 = arith.mulf %155, %135 : vector<8x128xf32>
    %160 = arith.mulf %154, %158 : vector<8x128xf32>
    %161 = arith.addf %159, %160 : vector<8x128xf32>
    %162 = math.tanh %161 : vector<8x128xf32>
    %163 = arith.mulf %156, %162 : vector<8x128xf32>
    %164 = arith.index_cast %c5_i32 : i32 to index
    %c0_47 = arith.constant 0 : index
    %c0_48 = arith.constant 0 : index
    %165 = vector.load %arg10[%164, %c0_47, %c0_48] : memref<6x8x128xf32, #tpu.memory_space<vmem>>, vector<1x8x128xf32>
    %166 = vector.shape_cast %165 : vector<1x8x128xf32> to vector<8x128xf32>
    %167 = vector.shape_cast %163 : vector<8x128xf32> to vector<1x8x128xf32>
    tpu.vector_store %arg10[%164, %c0_47, %c0_48], %167 {strides = array<i32>} : memref<6x8x128xf32, #tpu.memory_space<vmem>>, vector<1x8x128xf32>,
    %c6_i32 = arith.constant 6 : i32
    %c0_49 = arith.constant 0 : index
    %c0_50 = arith.constant 0 : index
    %c0_51 = arith.constant 0 : index
    %168 = vector.load %arg10[%c0_49, %c0_50, %c0_51] : memref<6x8x128xf32, #tpu.memory_space<vmem>>, vector<6x8x128xf32>
    %169 = vector.shape_cast %168 : vector<6x8x128xf32> to vector<48x128xf32>
    %170 = arith.truncf %169 : vector<48x128xf32> to vector<48x128xbf16>
    %c0_52 = arith.constant 0 : index
    %c0_53 = arith.constant 0 : index
    %c0_54 = arith.constant 0 : index
    %171 = vector.load %arg3[%c0_52, %c0_53, %c0_54] : memref<4x128x512xbf16, #tpu.memory_space<vmem>>, vector<1x128x512xbf16>
    %172 = vector.shape_cast %171 : vector<1x128x512xbf16> to vector<128x512xbf16>
    %cst_55 = arith.constant dense<0.000000e+00> : vector<48x512xf32>
    %173 = tpu.matmul %170, %172, %cst_55 {dimension_numbers = #tpu.dot_dimension_numbers<[1], [0], [0], [1], [0, 0, 1, 1], [], []>} : vector<48x128xbf16>, vector<128x512xbf16>, vector<48x512xf32> -> vector<48x512xf32>
    %c1 = arith.constant 1 : index
    %c0_56 = arith.constant 0 : index
    %c0_57 = arith.constant 0 : index
    %174 = vector.load %arg5[%c1, %c0_56, %c0_57] : memref<5x1x512xf32, #tpu.memory_space<vmem>>, vector<1x1x512xf32>
    %175 = vector.shape_cast %174 : vector<1x1x512xf32> to vector<1x512xf32>
    %176 = vector.broadcast %175 : vector<1x512xf32> to vector<48x512xf32>
    %177 = arith.addf %173, %176 : vector<48x512xf32>
    %178 = vector.shape_cast %177 : vector<48x512xf32> to vector<6x8x512xf32>
    %c0_58 = arith.constant 0 : index
    %c0_59 = arith.constant 0 : index
    %c0_60 = arith.constant 0 : index
    %179 = vector.load %arg9[%c0_58, %c0_59, %c0_60] : memref<6x8x512xf32, #tpu.memory_space<vmem>>, vector<6x8x512xf32>
    tpu.vector_store %arg9[%c0_58, %c0_59, %c0_60], %178 {strides = array<i32>} : memref<6x8x512xf32, #tpu.memory_space<vmem>>, vector<6x8x512xf32>,
    %c1_61 = arith.constant 1 : index
    %c0_62 = arith.constant 0 : index
    %c0_63 = arith.constant 0 : index
    %180 = vector.load %arg4[%c1_61, %c0_62, %c0_63] : memref<5x128x512xbf16, #tpu.memory_space<vmem>>, vector<1x128x512xbf16>
    %181 = vector.shape_cast %180 : vector<1x128x512xbf16> to vector<128x512xbf16>
    %c0_i32_64 = arith.constant 0 : i32
    %182 = arith.index_cast %c0_i32_64 : i32 to index
    %c0_65 = arith.constant 0 : index
    %c0_66 = arith.constant 0 : index
    %183 = vector.load %arg9[%182, %c0_65, %c0_66] : memref<6x8x512xf32, #tpu.memory_space<vmem>>, vector<1x8x512xf32>
    %184 = vector.shape_cast %183 : vector<1x8x512xf32> to vector<8x512xf32>
    %185 = arith.truncf %0 : vector<8x128xf32> to vector<8x128xbf16>
    %cst_67 = arith.constant dense<0.000000e+00> : vector<8x512xf32>
    %186 = tpu.matmul %185, %181, %cst_67 {dimension_numbers = #tpu.dot_dimension_numbers<[1], [0], [0], [1], [0, 0, 1, 1], [], []>} : vector<8x128xbf16>, vector<128x512xbf16>, vector<8x512xf32> -> vector<8x512xf32>
    %187 = arith.addf %184, %186 : vector<8x512xf32>
    %188 = vector.extract_strided_slice %187 {offsets = [0, 0], sizes = [8, 384], strides = [1, 1]} : vector<8x512xf32> to vector<8x384xf32>
    %189 = arith.negf %188 : vector<8x384xf32>
    %190 = math.exp %189 : vector<8x384xf32>
    %cst_68 = arith.constant 1.000000e+00 : f32
    %191 = vector.broadcast %cst_68 : f32 to vector<8x384xf32>
    %192 = arith.addf %191, %190 : vector<8x384xf32>
    %193 = arith.divf %191, %192 : vector<8x384xf32>
    %194 = vector.extract_strided_slice %193 {offsets = [0, 0], sizes = [8, 128], strides = [1, 1]} : vector<8x384xf32> to vector<8x128xf32>
    %195 = vector.extract_strided_slice %193 {offsets = [0, 128], sizes = [8, 128], strides = [1, 1]} : vector<8x384xf32> to vector<8x128xf32>
    %196 = vector.extract_strided_slice %193 {offsets = [0, 256], sizes = [8, 128], strides = [1, 1]} : vector<8x384xf32> to vector<8x128xf32>
    %197 = vector.extract_strided_slice %187 {offsets = [0, 384], sizes = [8, 128], strides = [1, 1]} : vector<8x512xf32> to vector<8x128xf32>
    %198 = math.tanh %197 : vector<8x128xf32>
    %199 = arith.mulf %195, %0 : vector<8x128xf32>
    %200 = arith.mulf %194, %198 : vector<8x128xf32>
    %201 = arith.addf %199, %200 : vector<8x128xf32>
    %202 = math.tanh %201 : vector<8x128xf32>
    %203 = arith.mulf %196, %202 : vector<8x128xf32>
    %204 = arith.index_cast %c0_i32_64 : i32 to index
    %c0_69 = arith.constant 0 : index
    %c0_70 = arith.constant 0 : index
    %205 = vector.load %arg10[%204, %c0_69, %c0_70] : memref<6x8x128xf32, #tpu.memory_space<vmem>>, vector<1x8x128xf32>
    %206 = vector.shape_cast %205 : vector<1x8x128xf32> to vector<8x128xf32>
    %207 = vector.shape_cast %203 : vector<8x128xf32> to vector<1x8x128xf32>
    tpu.vector_store %arg10[%204, %c0_69, %c0_70], %207 {strides = array<i32>} : memref<6x8x128xf32, #tpu.memory_space<vmem>>, vector<1x8x128xf32>,
    %c1_i32_71 = arith.constant 1 : i32
    %208 = arith.index_cast %c1_i32_71 : i32 to index
    %c0_72 = arith.constant 0 : index
    %c0_73 = arith.constant 0 : index
    %209 = vector.load %arg9[%208, %c0_72, %c0_73] : memref<6x8x512xf32, #tpu.memory_space<vmem>>, vector<1x8x512xf32>
    %210 = vector.shape_cast %209 : vector<1x8x512xf32> to vector<8x512xf32>
    %211 = arith.truncf %203 : vector<8x128xf32> to vector<8x128xbf16>
    %cst_74 = arith.constant dense<0.000000e+00> : vector<8x512xf32>
    %212 = tpu.matmul %211, %181, %cst_74 {dimension_numbers = #tpu.dot_dimension_numbers<[1], [0], [0], [1], [0, 0, 1, 1], [], []>} : vector<8x128xbf16>, vector<128x512xbf16>, vector<8x512xf32> -> vector<8x512xf32>
    %213 = arith.addf %210, %212 : vector<8x512xf32>
    %214 = vector.extract_strided_slice %213 {offsets = [0, 0], sizes = [8, 384], strides = [1, 1]} : vector<8x512xf32> to vector<8x384xf32>
    %215 = arith.negf %214 : vector<8x384xf32>
    %216 = math.exp %215 : vector<8x384xf32>
    %cst_75 = arith.constant 1.000000e+00 : f32
    %217 = vector.broadcast %cst_75 : f32 to vector<8x384xf32>
    %218 = arith.addf %217, %216 : vector<8x384xf32>
    %219 = arith.divf %217, %218 : vector<8x384xf32>
    %220 = vector.extract_strided_slice %219 {offsets = [0, 0], sizes = [8, 128], strides = [1, 1]} : vector<8x384xf32> to vector<8x128xf32>
    %221 = vector.extract_strided_slice %219 {offsets = [0, 128], sizes = [8, 128], strides = [1, 1]} : vector<8x384xf32> to vector<8x128xf32>
    %222 = vector.extract_strided_slice %219 {offsets = [0, 256], sizes = [8, 128], strides = [1, 1]} : vector<8x384xf32> to vector<8x128xf32>
    %223 = vector.extract_strided_slice %213 {offsets = [0, 384], sizes = [8, 128], strides = [1, 1]} : vector<8x512xf32> to vector<8x128xf32>
    %224 = math.tanh %223 : vector<8x128xf32>
    %225 = arith.mulf %221, %201 : vector<8x128xf32>
    %226 = arith.mulf %220, %224 : vector<8x128xf32>
    %227 = arith.addf %225, %226 : vector<8x128xf32>
    %228 = math.tanh %227 : vector<8x128xf32>
    %229 = arith.mulf %222, %228 : vector<8x128xf32>
    %230 = arith.index_cast %c1_i32_71 : i32 to index
    %c0_76 = arith.constant 0 : index
    %c0_77 = arith.constant 0 : index
    %231 = vector.load %arg10[%230, %c0_76, %c0_77] : memref<6x8x128xf32, #tpu.memory_space<vmem>>, vector<1x8x128xf32>
    %232 = vector.shape_cast %231 : vector<1x8x128xf32> to vector<8x128xf32>
    %233 = vector.shape_cast %229 : vector<8x128xf32> to vector<1x8x128xf32>
    tpu.vector_store %arg10[%230, %c0_76, %c0_77], %233 {strides = array<i32>} : memref<6x8x128xf32, #tpu.memory_space<vmem>>, vector<1x8x128xf32>,
    %c2_i32_78 = arith.constant 2 : i32
    %234 = arith.index_cast %c2_i32_78 : i32 to index
    %c0_79 = arith.constant 0 : index
    %c0_80 = arith.constant 0 : index
    %235 = vector.load %arg9[%234, %c0_79, %c0_80] : memref<6x8x512xf32, #tpu.memory_space<vmem>>, vector<1x8x512xf32>
    %236 = vector.shape_cast %235 : vector<1x8x512xf32> to vector<8x512xf32>
    %237 = arith.truncf %229 : vector<8x128xf32> to vector<8x128xbf16>
    %cst_81 = arith.constant dense<0.000000e+00> : vector<8x512xf32>
    %238 = tpu.matmul %237, %181, %cst_81 {dimension_numbers = #tpu.dot_dimension_numbers<[1], [0], [0], [1], [0, 0, 1, 1], [], []>} : vector<8x128xbf16>, vector<128x512xbf16>, vector<8x512xf32> -> vector<8x512xf32>
    %239 = arith.addf %236, %238 : vector<8x512xf32>
    %240 = vector.extract_strided_slice %239 {offsets = [0, 0], sizes = [8, 384], strides = [1, 1]} : vector<8x512xf32> to vector<8x384xf32>
    %241 = arith.negf %240 : vector<8x384xf32>
    %242 = math.exp %241 : vector<8x384xf32>
    %cst_82 = arith.constant 1.000000e+00 : f32
    %243 = vector.broadcast %cst_82 : f32 to vector<8x384xf32>
    %244 = arith.addf %243, %242 : vector<8x384xf32>
    %245 = arith.divf %243, %244 : vector<8x384xf32>
    %246 = vector.extract_strided_slice %245 {offsets = [0, 0], sizes = [8, 128], strides = [1, 1]} : vector<8x384xf32> to vector<8x128xf32>
    %247 = vector.extract_strided_slice %245 {offsets = [0, 128], sizes = [8, 128], strides = [1, 1]} : vector<8x384xf32> to vector<8x128xf32>
    %248 = vector.extract_strided_slice %245 {offsets = [0, 256], sizes = [8, 128], strides = [1, 1]} : vector<8x384xf32> to vector<8x128xf32>
    %249 = vector.extract_strided_slice %239 {offsets = [0, 384], sizes = [8, 128], strides = [1, 1]} : vector<8x512xf32> to vector<8x128xf32>
    %250 = math.tanh %249 : vector<8x128xf32>
    %251 = arith.mulf %247, %227 : vector<8x128xf32>
    %252 = arith.mulf %246, %250 : vector<8x128xf32>
    %253 = arith.addf %251, %252 : vector<8x128xf32>
    %254 = math.tanh %253 : vector<8x128xf32>
    %255 = arith.mulf %248, %254 : vector<8x128xf32>
    %256 = arith.index_cast %c2_i32_78 : i32 to index
    %c0_83 = arith.constant 0 : index
    %c0_84 = arith.constant 0 : index
    %257 = vector.load %arg10[%256, %c0_83, %c0_84] : memref<6x8x128xf32, #tpu.memory_space<vmem>>, vector<1x8x128xf32>
    %258 = vector.shape_cast %257 : vector<1x8x128xf32> to vector<8x128xf32>
    %259 = vector.shape_cast %255 : vector<8x128xf32> to vector<1x8x128xf32>
    tpu.vector_store %arg10[%256, %c0_83, %c0_84], %259 {strides = array<i32>} : memref<6x8x128xf32, #tpu.memory_space<vmem>>, vector<1x8x128xf32>,
    %c3_i32_85 = arith.constant 3 : i32
    %260 = arith.index_cast %c3_i32_85 : i32 to index
    %c0_86 = arith.constant 0 : index
    %c0_87 = arith.constant 0 : index
    %261 = vector.load %arg9[%260, %c0_86, %c0_87] : memref<6x8x512xf32, #tpu.memory_space<vmem>>, vector<1x8x512xf32>
    %262 = vector.shape_cast %261 : vector<1x8x512xf32> to vector<8x512xf32>
    %263 = arith.truncf %255 : vector<8x128xf32> to vector<8x128xbf16>
    %cst_88 = arith.constant dense<0.000000e+00> : vector<8x512xf32>
    %264 = tpu.matmul %263, %181, %cst_88 {dimension_numbers = #tpu.dot_dimension_numbers<[1], [0], [0], [1], [0, 0, 1, 1], [], []>} : vector<8x128xbf16>, vector<128x512xbf16>, vector<8x512xf32> -> vector<8x512xf32>
    %265 = arith.addf %262, %264 : vector<8x512xf32>
    %266 = vector.extract_strided_slice %265 {offsets = [0, 0], sizes = [8, 384], strides = [1, 1]} : vector<8x512xf32> to vector<8x384xf32>
    %267 = arith.negf %266 : vector<8x384xf32>
    %268 = math.exp %267 : vector<8x384xf32>
    %cst_89 = arith.constant 1.000000e+00 : f32
    %269 = vector.broadcast %cst_89 : f32 to vector<8x384xf32>
    %270 = arith.addf %269, %268 : vector<8x384xf32>
    %271 = arith.divf %269, %270 : vector<8x384xf32>
    %272 = vector.extract_strided_slice %271 {offsets = [0, 0], sizes = [8, 128], strides = [1, 1]} : vector<8x384xf32> to vector<8x128xf32>
    %273 = vector.extract_strided_slice %271 {offsets = [0, 128], sizes = [8, 128], strides = [1, 1]} : vector<8x384xf32> to vector<8x128xf32>
    %274 = vector.extract_strided_slice %271 {offsets = [0, 256], sizes = [8, 128], strides = [1, 1]} : vector<8x384xf32> to vector<8x128xf32>
    %275 = vector.extract_strided_slice %265 {offsets = [0, 384], sizes = [8, 128], strides = [1, 1]} : vector<8x512xf32> to vector<8x128xf32>
    %276 = math.tanh %275 : vector<8x128xf32>
    %277 = arith.mulf %273, %253 : vector<8x128xf32>
    %278 = arith.mulf %272, %276 : vector<8x128xf32>
    %279 = arith.addf %277, %278 : vector<8x128xf32>
    %280 = math.tanh %279 : vector<8x128xf32>
    %281 = arith.mulf %274, %280 : vector<8x128xf32>
    %282 = arith.index_cast %c3_i32_85 : i32 to index
    %c0_90 = arith.constant 0 : index
    %c0_91 = arith.constant 0 : index
    %283 = vector.load %arg10[%282, %c0_90, %c0_91] : memref<6x8x128xf32, #tpu.memory_space<vmem>>, vector<1x8x128xf32>
    %284 = vector.shape_cast %283 : vector<1x8x128xf32> to vector<8x128xf32>
    %285 = vector.shape_cast %281 : vector<8x128xf32> to vector<1x8x128xf32>
    tpu.vector_store %arg10[%282, %c0_90, %c0_91], %285 {strides = array<i32>} : memref<6x8x128xf32, #tpu.memory_space<vmem>>, vector<1x8x128xf32>,
    %c4_i32_92 = arith.constant 4 : i32
    %286 = arith.index_cast %c4_i32_92 : i32 to index
    %c0_93 = arith.constant 0 : index
    %c0_94 = arith.constant 0 : index
    %287 = vector.load %arg9[%286, %c0_93, %c0_94] : memref<6x8x512xf32, #tpu.memory_space<vmem>>, vector<1x8x512xf32>
    %288 = vector.shape_cast %287 : vector<1x8x512xf32> to vector<8x512xf32>
    %289 = arith.truncf %281 : vector<8x128xf32> to vector<8x128xbf16>
    %cst_95 = arith.constant dense<0.000000e+00> : vector<8x512xf32>
    %290 = tpu.matmul %289, %181, %cst_95 {dimension_numbers = #tpu.dot_dimension_numbers<[1], [0], [0], [1], [0, 0, 1, 1], [], []>} : vector<8x128xbf16>, vector<128x512xbf16>, vector<8x512xf32> -> vector<8x512xf32>
    %291 = arith.addf %288, %290 : vector<8x512xf32>
    %292 = vector.extract_strided_slice %291 {offsets = [0, 0], sizes = [8, 384], strides = [1, 1]} : vector<8x512xf32> to vector<8x384xf32>
    %293 = arith.negf %292 : vector<8x384xf32>
    %294 = math.exp %293 : vector<8x384xf32>
    %cst_96 = arith.constant 1.000000e+00 : f32
    %295 = vector.broadcast %cst_96 : f32 to vector<8x384xf32>
    %296 = arith.addf %295, %294 : vector<8x384xf32>
    %297 = arith.divf %295, %296 : vector<8x384xf32>
    %298 = vector.extract_strided_slice %297 {offsets = [0, 0], sizes = [8, 128], strides = [1, 1]} : vector<8x384xf32> to vector<8x128xf32>
    %299 = vector.extract_strided_slice %297 {offsets = [0, 128], sizes = [8, 128], strides = [1, 1]} : vector<8x384xf32> to vector<8x128xf32>
    %300 = vector.extract_strided_slice %297 {offsets = [0, 256], sizes = [8, 128], strides = [1, 1]} : vector<8x384xf32> to vector<8x128xf32>
    %301 = vector.extract_strided_slice %291 {offsets = [0, 384], sizes = [8, 128], strides = [1, 1]} : vector<8x512xf32> to vector<8x128xf32>
    %302 = math.tanh %301 : vector<8x128xf32>
    %303 = arith.mulf %299, %279 : vector<8x128xf32>
    %304 = arith.mulf %298, %302 : vector<8x128xf32>
    %305 = arith.addf %303, %304 : vector<8x128xf32>
    %306 = math.tanh %305 : vector<8x128xf32>
    %307 = arith.mulf %300, %306 : vector<8x128xf32>
    %308 = arith.index_cast %c4_i32_92 : i32 to index
    %c0_97 = arith.constant 0 : index
    %c0_98 = arith.constant 0 : index
    %309 = vector.load %arg10[%308, %c0_97, %c0_98] : memref<6x8x128xf32, #tpu.memory_space<vmem>>, vector<1x8x128xf32>
    %310 = vector.shape_cast %309 : vector<1x8x128xf32> to vector<8x128xf32>
    %311 = vector.shape_cast %307 : vector<8x128xf32> to vector<1x8x128xf32>
    tpu.vector_store %arg10[%308, %c0_97, %c0_98], %311 {strides = array<i32>} : memref<6x8x128xf32, #tpu.memory_space<vmem>>, vector<1x8x128xf32>,
    %c5_i32_99 = arith.constant 5 : i32
    %312 = arith.index_cast %c5_i32_99 : i32 to index
    %c0_100 = arith.constant 0 : index
    %c0_101 = arith.constant 0 : index
    %313 = vector.load %arg9[%312, %c0_100, %c0_101] : memref<6x8x512xf32, #tpu.memory_space<vmem>>, vector<1x8x512xf32>
    %314 = vector.shape_cast %313 : vector<1x8x512xf32> to vector<8x512xf32>
    %315 = arith.truncf %307 : vector<8x128xf32> to vector<8x128xbf16>
    %cst_102 = arith.constant dense<0.000000e+00> : vector<8x512xf32>
    %316 = tpu.matmul %315, %181, %cst_102 {dimension_numbers = #tpu.dot_dimension_numbers<[1], [0], [0], [1], [0, 0, 1, 1], [], []>} : vector<8x128xbf16>, vector<128x512xbf16>, vector<8x512xf32> -> vector<8x512xf32>
    %317 = arith.addf %314, %316 : vector<8x512xf32>
    %318 = vector.extract_strided_slice %317 {offsets = [0, 0], sizes = [8, 384], strides = [1, 1]} : vector<8x512xf32> to vector<8x384xf32>
    %319 = arith.negf %318 : vector<8x384xf32>
    %320 = math.exp %319 : vector<8x384xf32>
    %cst_103 = arith.constant 1.000000e+00 : f32
    %321 = vector.broadcast %cst_103 : f32 to vector<8x384xf32>
    %322 = arith.addf %321, %320 : vector<8x384xf32>
    %323 = arith.divf %321, %322 : vector<8x384xf32>
    %324 = vector.extract_strided_slice %323 {offsets = [0, 0], sizes = [8, 128], strides = [1, 1]} : vector<8x384xf32> to vector<8x128xf32>
    %325 = vector.extract_strided_slice %323 {offsets = [0, 128], sizes = [8, 128], strides = [1, 1]} : vector<8x384xf32> to vector<8x128xf32>
    %326 = vector.extract_strided_slice %323 {offsets = [0, 256], sizes = [8, 128], strides = [1, 1]} : vector<8x384xf32> to vector<8x128xf32>
    %327 = vector.extract_strided_slice %317 {offsets = [0, 384], sizes = [8, 128], strides = [1, 1]} : vector<8x512xf32> to vector<8x128xf32>
    %328 = math.tanh %327 : vector<8x128xf32>
    %329 = arith.mulf %325, %305 : vector<8x128xf32>
    %330 = arith.mulf %324, %328 : vector<8x128xf32>
    %331 = arith.addf %329, %330 : vector<8x128xf32>
    %332 = math.tanh %331 : vector<8x128xf32>
    %333 = arith.mulf %326, %332 : vector<8x128xf32>
    %334 = arith.index_cast %c5_i32_99 : i32 to index
    %c0_104 = arith.constant 0 : index
    %c0_105 = arith.constant 0 : index
    %335 = vector.load %arg10[%334, %c0_104, %c0_105] : memref<6x8x128xf32, #tpu.memory_space<vmem>>, vector<1x8x128xf32>
    %336 = vector.shape_cast %335 : vector<1x8x128xf32> to vector<8x128xf32>
    %337 = vector.shape_cast %333 : vector<8x128xf32> to vector<1x8x128xf32>
    tpu.vector_store %arg10[%334, %c0_104, %c0_105], %337 {strides = array<i32>} : memref<6x8x128xf32, #tpu.memory_space<vmem>>, vector<1x8x128xf32>,
    %c6_i32_106 = arith.constant 6 : i32
    %c0_107 = arith.constant 0 : index
    %c0_108 = arith.constant 0 : index
    %c0_109 = arith.constant 0 : index
    %338 = vector.load %arg10[%c0_107, %c0_108, %c0_109] : memref<6x8x128xf32, #tpu.memory_space<vmem>>, vector<6x8x128xf32>
    %339 = vector.shape_cast %338 : vector<6x8x128xf32> to vector<48x128xf32>
    %340 = arith.truncf %339 : vector<48x128xf32> to vector<48x128xbf16>
    %c1_110 = arith.constant 1 : index
    %c0_111 = arith.constant 0 : index
    %c0_112 = arith.constant 0 : index
    %341 = vector.load %arg3[%c1_110, %c0_111, %c0_112] : memref<4x128x512xbf16, #tpu.memory_space<vmem>>, vector<1x128x512xbf16>
    %342 = vector.shape_cast %341 : vector<1x128x512xbf16> to vector<128x512xbf16>
    %cst_113 = arith.constant dense<0.000000e+00> : vector<48x512xf32>
    %343 = tpu.matmul %340, %342, %cst_113 {dimension_numbers = #tpu.dot_dimension_numbers<[1], [0], [0], [1], [0, 0, 1, 1], [], []>} : vector<48x128xbf16>, vector<128x512xbf16>, vector<48x512xf32> -> vector<48x512xf32>
    %c2 = arith.constant 2 : index
    %c0_114 = arith.constant 0 : index
    %c0_115 = arith.constant 0 : index
    %344 = vector.load %arg5[%c2, %c0_114, %c0_115] : memref<5x1x512xf32, #tpu.memory_space<vmem>>, vector<1x1x512xf32>
    %345 = vector.shape_cast %344 : vector<1x1x512xf32> to vector<1x512xf32>
    %346 = vector.broadcast %345 : vector<1x512xf32> to vector<48x512xf32>
    %347 = arith.addf %343, %346 : vector<48x512xf32>
    %348 = vector.shape_cast %347 : vector<48x512xf32> to vector<6x8x512xf32>
    %c0_116 = arith.constant 0 : index
    %c0_117 = arith.constant 0 : index
    %c0_118 = arith.constant 0 : index
    %349 = vector.load %arg9[%c0_116, %c0_117, %c0_118] : memref<6x8x512xf32, #tpu.memory_space<vmem>>, vector<6x8x512xf32>
    tpu.vector_store %arg9[%c0_116, %c0_117, %c0_118], %348 {strides = array<i32>} : memref<6x8x512xf32, #tpu.memory_space<vmem>>, vector<6x8x512xf32>,
    %c2_119 = arith.constant 2 : index
    %c0_120 = arith.constant 0 : index
    %c0_121 = arith.constant 0 : index
    %350 = vector.load %arg4[%c2_119, %c0_120, %c0_121] : memref<5x128x512xbf16, #tpu.memory_space<vmem>>, vector<1x128x512xbf16>
    %351 = vector.shape_cast %350 : vector<1x128x512xbf16> to vector<128x512xbf16>
    %c0_i32_122 = arith.constant 0 : i32
    %352 = arith.index_cast %c0_i32_122 : i32 to index
    %c0_123 = arith.constant 0 : index
    %c0_124 = arith.constant 0 : index
    %353 = vector.load %arg9[%352, %c0_123, %c0_124] : memref<6x8x512xf32, #tpu.memory_space<vmem>>, vector<1x8x512xf32>
    %354 = vector.shape_cast %353 : vector<1x8x512xf32> to vector<8x512xf32>
    %355 = arith.truncf %0 : vector<8x128xf32> to vector<8x128xbf16>
    %cst_125 = arith.constant dense<0.000000e+00> : vector<8x512xf32>
    %356 = tpu.matmul %355, %351, %cst_125 {dimension_numbers = #tpu.dot_dimension_numbers<[1], [0], [0], [1], [0, 0, 1, 1], [], []>} : vector<8x128xbf16>, vector<128x512xbf16>, vector<8x512xf32> -> vector<8x512xf32>
    %357 = arith.addf %354, %356 : vector<8x512xf32>
    %358 = vector.extract_strided_slice %357 {offsets = [0, 0], sizes = [8, 384], strides = [1, 1]} : vector<8x512xf32> to vector<8x384xf32>
    %359 = arith.negf %358 : vector<8x384xf32>
    %360 = math.exp %359 : vector<8x384xf32>
    %cst_126 = arith.constant 1.000000e+00 : f32
    %361 = vector.broadcast %cst_126 : f32 to vector<8x384xf32>
    %362 = arith.addf %361, %360 : vector<8x384xf32>
    %363 = arith.divf %361, %362 : vector<8x384xf32>
    %364 = vector.extract_strided_slice %363 {offsets = [0, 0], sizes = [8, 128], strides = [1, 1]} : vector<8x384xf32> to vector<8x128xf32>
    %365 = vector.extract_strided_slice %363 {offsets = [0, 128], sizes = [8, 128], strides = [1, 1]} : vector<8x384xf32> to vector<8x128xf32>
    %366 = vector.extract_strided_slice %363 {offsets = [0, 256], sizes = [8, 128], strides = [1, 1]} : vector<8x384xf32> to vector<8x128xf32>
    %367 = vector.extract_strided_slice %357 {offsets = [0, 384], sizes = [8, 128], strides = [1, 1]} : vector<8x512xf32> to vector<8x128xf32>
    %368 = math.tanh %367 : vector<8x128xf32>
    %369 = arith.mulf %365, %0 : vector<8x128xf32>
    %370 = arith.mulf %364, %368 : vector<8x128xf32>
    %371 = arith.addf %369, %370 : vector<8x128xf32>
    %372 = math.tanh %371 : vector<8x128xf32>
    %373 = arith.mulf %366, %372 : vector<8x128xf32>
    %374 = arith.index_cast %c0_i32_122 : i32 to index
    %c0_127 = arith.constant 0 : index
    %c0_128 = arith.constant 0 : index
    %375 = vector.load %arg10[%374, %c0_127, %c0_128] : memref<6x8x128xf32, #tpu.memory_space<vmem>>, vector<1x8x128xf32>
    %376 = vector.shape_cast %375 : vector<1x8x128xf32> to vector<8x128xf32>
    %377 = vector.shape_cast %373 : vector<8x128xf32> to vector<1x8x128xf32>
    tpu.vector_store %arg10[%374, %c0_127, %c0_128], %377 {strides = array<i32>} : memref<6x8x128xf32, #tpu.memory_space<vmem>>, vector<1x8x128xf32>,
    %c1_i32_129 = arith.constant 1 : i32
    %378 = arith.index_cast %c1_i32_129 : i32 to index
    %c0_130 = arith.constant 0 : index
    %c0_131 = arith.constant 0 : index
    %379 = vector.load %arg9[%378, %c0_130, %c0_131] : memref<6x8x512xf32, #tpu.memory_space<vmem>>, vector<1x8x512xf32>
    %380 = vector.shape_cast %379 : vector<1x8x512xf32> to vector<8x512xf32>
    %381 = arith.truncf %373 : vector<8x128xf32> to vector<8x128xbf16>
    %cst_132 = arith.constant dense<0.000000e+00> : vector<8x512xf32>
    %382 = tpu.matmul %381, %351, %cst_132 {dimension_numbers = #tpu.dot_dimension_numbers<[1], [0], [0], [1], [0, 0, 1, 1], [], []>} : vector<8x128xbf16>, vector<128x512xbf16>, vector<8x512xf32> -> vector<8x512xf32>
    %383 = arith.addf %380, %382 : vector<8x512xf32>
    %384 = vector.extract_strided_slice %383 {offsets = [0, 0], sizes = [8, 384], strides = [1, 1]} : vector<8x512xf32> to vector<8x384xf32>
    %385 = arith.negf %384 : vector<8x384xf32>
    %386 = math.exp %385 : vector<8x384xf32>
    %cst_133 = arith.constant 1.000000e+00 : f32
    %387 = vector.broadcast %cst_133 : f32 to vector<8x384xf32>
    %388 = arith.addf %387, %386 : vector<8x384xf32>
    %389 = arith.divf %387, %388 : vector<8x384xf32>
    %390 = vector.extract_strided_slice %389 {offsets = [0, 0], sizes = [8, 128], strides = [1, 1]} : vector<8x384xf32> to vector<8x128xf32>
    %391 = vector.extract_strided_slice %389 {offsets = [0, 128], sizes = [8, 128], strides = [1, 1]} : vector<8x384xf32> to vector<8x128xf32>
    %392 = vector.extract_strided_slice %389 {offsets = [0, 256], sizes = [8, 128], strides = [1, 1]} : vector<8x384xf32> to vector<8x128xf32>
    %393 = vector.extract_strided_slice %383 {offsets = [0, 384], sizes = [8, 128], strides = [1, 1]} : vector<8x512xf32> to vector<8x128xf32>
    %394 = math.tanh %393 : vector<8x128xf32>
    %395 = arith.mulf %391, %371 : vector<8x128xf32>
    %396 = arith.mulf %390, %394 : vector<8x128xf32>
    %397 = arith.addf %395, %396 : vector<8x128xf32>
    %398 = math.tanh %397 : vector<8x128xf32>
    %399 = arith.mulf %392, %398 : vector<8x128xf32>
    %400 = arith.index_cast %c1_i32_129 : i32 to index
    %c0_134 = arith.constant 0 : index
    %c0_135 = arith.constant 0 : index
    %401 = vector.load %arg10[%400, %c0_134, %c0_135] : memref<6x8x128xf32, #tpu.memory_space<vmem>>, vector<1x8x128xf32>
    %402 = vector.shape_cast %401 : vector<1x8x128xf32> to vector<8x128xf32>
    %403 = vector.shape_cast %399 : vector<8x128xf32> to vector<1x8x128xf32>
    tpu.vector_store %arg10[%400, %c0_134, %c0_135], %403 {strides = array<i32>} : memref<6x8x128xf32, #tpu.memory_space<vmem>>, vector<1x8x128xf32>,
    %c2_i32_136 = arith.constant 2 : i32
    %404 = arith.index_cast %c2_i32_136 : i32 to index
    %c0_137 = arith.constant 0 : index
    %c0_138 = arith.constant 0 : index
    %405 = vector.load %arg9[%404, %c0_137, %c0_138] : memref<6x8x512xf32, #tpu.memory_space<vmem>>, vector<1x8x512xf32>
    %406 = vector.shape_cast %405 : vector<1x8x512xf32> to vector<8x512xf32>
    %407 = arith.truncf %399 : vector<8x128xf32> to vector<8x128xbf16>
    %cst_139 = arith.constant dense<0.000000e+00> : vector<8x512xf32>
    %408 = tpu.matmul %407, %351, %cst_139 {dimension_numbers = #tpu.dot_dimension_numbers<[1], [0], [0], [1], [0, 0, 1, 1], [], []>} : vector<8x128xbf16>, vector<128x512xbf16>, vector<8x512xf32> -> vector<8x512xf32>
    %409 = arith.addf %406, %408 : vector<8x512xf32>
    %410 = vector.extract_strided_slice %409 {offsets = [0, 0], sizes = [8, 384], strides = [1, 1]} : vector<8x512xf32> to vector<8x384xf32>
    %411 = arith.negf %410 : vector<8x384xf32>
    %412 = math.exp %411 : vector<8x384xf32>
    %cst_140 = arith.constant 1.000000e+00 : f32
    %413 = vector.broadcast %cst_140 : f32 to vector<8x384xf32>
    %414 = arith.addf %413, %412 : vector<8x384xf32>
    %415 = arith.divf %413, %414 : vector<8x384xf32>
    %416 = vector.extract_strided_slice %415 {offsets = [0, 0], sizes = [8, 128], strides = [1, 1]} : vector<8x384xf32> to vector<8x128xf32>
    %417 = vector.extract_strided_slice %415 {offsets = [0, 128], sizes = [8, 128], strides = [1, 1]} : vector<8x384xf32> to vector<8x128xf32>
    %418 = vector.extract_strided_slice %415 {offsets = [0, 256], sizes = [8, 128], strides = [1, 1]} : vector<8x384xf32> to vector<8x128xf32>
    %419 = vector.extract_strided_slice %409 {offsets = [0, 384], sizes = [8, 128], strides = [1, 1]} : vector<8x512xf32> to vector<8x128xf32>
    %420 = math.tanh %419 : vector<8x128xf32>
    %421 = arith.mulf %417, %397 : vector<8x128xf32>
    %422 = arith.mulf %416, %420 : vector<8x128xf32>
    %423 = arith.addf %421, %422 : vector<8x128xf32>
    %424 = math.tanh %423 : vector<8x128xf32>
    %425 = arith.mulf %418, %424 : vector<8x128xf32>
    %426 = arith.index_cast %c2_i32_136 : i32 to index
    %c0_141 = arith.constant 0 : index
    %c0_142 = arith.constant 0 : index
    %427 = vector.load %arg10[%426, %c0_141, %c0_142] : memref<6x8x128xf32, #tpu.memory_space<vmem>>, vector<1x8x128xf32>
    %428 = vector.shape_cast %427 : vector<1x8x128xf32> to vector<8x128xf32>
    %429 = vector.shape_cast %425 : vector<8x128xf32> to vector<1x8x128xf32>
    tpu.vector_store %arg10[%426, %c0_141, %c0_142], %429 {strides = array<i32>} : memref<6x8x128xf32, #tpu.memory_space<vmem>>, vector<1x8x128xf32>,
    %c3_i32_143 = arith.constant 3 : i32
    %430 = arith.index_cast %c3_i32_143 : i32 to index
    %c0_144 = arith.constant 0 : index
    %c0_145 = arith.constant 0 : index
    %431 = vector.load %arg9[%430, %c0_144, %c0_145] : memref<6x8x512xf32, #tpu.memory_space<vmem>>, vector<1x8x512xf32>
    %432 = vector.shape_cast %431 : vector<1x8x512xf32> to vector<8x512xf32>
    %433 = arith.truncf %425 : vector<8x128xf32> to vector<8x128xbf16>
    %cst_146 = arith.constant dense<0.000000e+00> : vector<8x512xf32>
    %434 = tpu.matmul %433, %351, %cst_146 {dimension_numbers = #tpu.dot_dimension_numbers<[1], [0], [0], [1], [0, 0, 1, 1], [], []>} : vector<8x128xbf16>, vector<128x512xbf16>, vector<8x512xf32> -> vector<8x512xf32>
    %435 = arith.addf %432, %434 : vector<8x512xf32>
    %436 = vector.extract_strided_slice %435 {offsets = [0, 0], sizes = [8, 384], strides = [1, 1]} : vector<8x512xf32> to vector<8x384xf32>
    %437 = arith.negf %436 : vector<8x384xf32>
    %438 = math.exp %437 : vector<8x384xf32>
    %cst_147 = arith.constant 1.000000e+00 : f32
    %439 = vector.broadcast %cst_147 : f32 to vector<8x384xf32>
    %440 = arith.addf %439, %438 : vector<8x384xf32>
    %441 = arith.divf %439, %440 : vector<8x384xf32>
    %442 = vector.extract_strided_slice %441 {offsets = [0, 0], sizes = [8, 128], strides = [1, 1]} : vector<8x384xf32> to vector<8x128xf32>
    %443 = vector.extract_strided_slice %441 {offsets = [0, 128], sizes = [8, 128], strides = [1, 1]} : vector<8x384xf32> to vector<8x128xf32>
    %444 = vector.extract_strided_slice %441 {offsets = [0, 256], sizes = [8, 128], strides = [1, 1]} : vector<8x384xf32> to vector<8x128xf32>
    %445 = vector.extract_strided_slice %435 {offsets = [0, 384], sizes = [8, 128], strides = [1, 1]} : vector<8x512xf32> to vector<8x128xf32>
    %446 = math.tanh %445 : vector<8x128xf32>
    %447 = arith.mulf %443, %423 : vector<8x128xf32>
    %448 = arith.mulf %442, %446 : vector<8x128xf32>
    %449 = arith.addf %447, %448 : vector<8x128xf32>
    %450 = math.tanh %449 : vector<8x128xf32>
    %451 = arith.mulf %444, %450 : vector<8x128xf32>
    %452 = arith.index_cast %c3_i32_143 : i32 to index
    %c0_148 = arith.constant 0 : index
    %c0_149 = arith.constant 0 : index
    %453 = vector.load %arg10[%452, %c0_148, %c0_149] : memref<6x8x128xf32, #tpu.memory_space<vmem>>, vector<1x8x128xf32>
    %454 = vector.shape_cast %453 : vector<1x8x128xf32> to vector<8x128xf32>
    %455 = vector.shape_cast %451 : vector<8x128xf32> to vector<1x8x128xf32>
    tpu.vector_store %arg10[%452, %c0_148, %c0_149], %455 {strides = array<i32>} : memref<6x8x128xf32, #tpu.memory_space<vmem>>, vector<1x8x128xf32>,
    %c4_i32_150 = arith.constant 4 : i32
    %456 = arith.index_cast %c4_i32_150 : i32 to index
    %c0_151 = arith.constant 0 : index
    %c0_152 = arith.constant 0 : index
    %457 = vector.load %arg9[%456, %c0_151, %c0_152] : memref<6x8x512xf32, #tpu.memory_space<vmem>>, vector<1x8x512xf32>
    %458 = vector.shape_cast %457 : vector<1x8x512xf32> to vector<8x512xf32>
    %459 = arith.truncf %451 : vector<8x128xf32> to vector<8x128xbf16>
    %cst_153 = arith.constant dense<0.000000e+00> : vector<8x512xf32>
    %460 = tpu.matmul %459, %351, %cst_153 {dimension_numbers = #tpu.dot_dimension_numbers<[1], [0], [0], [1], [0, 0, 1, 1], [], []>} : vector<8x128xbf16>, vector<128x512xbf16>, vector<8x512xf32> -> vector<8x512xf32>
    %461 = arith.addf %458, %460 : vector<8x512xf32>
    %462 = vector.extract_strided_slice %461 {offsets = [0, 0], sizes = [8, 384], strides = [1, 1]} : vector<8x512xf32> to vector<8x384xf32>
    %463 = arith.negf %462 : vector<8x384xf32>
    %464 = math.exp %463 : vector<8x384xf32>
    %cst_154 = arith.constant 1.000000e+00 : f32
    %465 = vector.broadcast %cst_154 : f32 to vector<8x384xf32>
    %466 = arith.addf %465, %464 : vector<8x384xf32>
    %467 = arith.divf %465, %466 : vector<8x384xf32>
    %468 = vector.extract_strided_slice %467 {offsets = [0, 0], sizes = [8, 128], strides = [1, 1]} : vector<8x384xf32> to vector<8x128xf32>
    %469 = vector.extract_strided_slice %467 {offsets = [0, 128], sizes = [8, 128], strides = [1, 1]} : vector<8x384xf32> to vector<8x128xf32>
    %470 = vector.extract_strided_slice %467 {offsets = [0, 256], sizes = [8, 128], strides = [1, 1]} : vector<8x384xf32> to vector<8x128xf32>
    %471 = vector.extract_strided_slice %461 {offsets = [0, 384], sizes = [8, 128], strides = [1, 1]} : vector<8x512xf32> to vector<8x128xf32>
    %472 = math.tanh %471 : vector<8x128xf32>
    %473 = arith.mulf %469, %449 : vector<8x128xf32>
    %474 = arith.mulf %468, %472 : vector<8x128xf32>
    %475 = arith.addf %473, %474 : vector<8x128xf32>
    %476 = math.tanh %475 : vector<8x128xf32>
    %477 = arith.mulf %470, %476 : vector<8x128xf32>
    %478 = arith.index_cast %c4_i32_150 : i32 to index
    %c0_155 = arith.constant 0 : index
    %c0_156 = arith.constant 0 : index
    %479 = vector.load %arg10[%478, %c0_155, %c0_156] : memref<6x8x128xf32, #tpu.memory_space<vmem>>, vector<1x8x128xf32>
    %480 = vector.shape_cast %479 : vector<1x8x128xf32> to vector<8x128xf32>
    %481 = vector.shape_cast %477 : vector<8x128xf32> to vector<1x8x128xf32>
    tpu.vector_store %arg10[%478, %c0_155, %c0_156], %481 {strides = array<i32>} : memref<6x8x128xf32, #tpu.memory_space<vmem>>, vector<1x8x128xf32>,
    %c5_i32_157 = arith.constant 5 : i32
    %482 = arith.index_cast %c5_i32_157 : i32 to index
    %c0_158 = arith.constant 0 : index
    %c0_159 = arith.constant 0 : index
    %483 = vector.load %arg9[%482, %c0_158, %c0_159] : memref<6x8x512xf32, #tpu.memory_space<vmem>>, vector<1x8x512xf32>
    %484 = vector.shape_cast %483 : vector<1x8x512xf32> to vector<8x512xf32>
    %485 = arith.truncf %477 : vector<8x128xf32> to vector<8x128xbf16>
    %cst_160 = arith.constant dense<0.000000e+00> : vector<8x512xf32>
    %486 = tpu.matmul %485, %351, %cst_160 {dimension_numbers = #tpu.dot_dimension_numbers<[1], [0], [0], [1], [0, 0, 1, 1], [], []>} : vector<8x128xbf16>, vector<128x512xbf16>, vector<8x512xf32> -> vector<8x512xf32>
    %487 = arith.addf %484, %486 : vector<8x512xf32>
    %488 = vector.extract_strided_slice %487 {offsets = [0, 0], sizes = [8, 384], strides = [1, 1]} : vector<8x512xf32> to vector<8x384xf32>
    %489 = arith.negf %488 : vector<8x384xf32>
    %490 = math.exp %489 : vector<8x384xf32>
    %cst_161 = arith.constant 1.000000e+00 : f32
    %491 = vector.broadcast %cst_161 : f32 to vector<8x384xf32>
    %492 = arith.addf %491, %490 : vector<8x384xf32>
    %493 = arith.divf %491, %492 : vector<8x384xf32>
    %494 = vector.extract_strided_slice %493 {offsets = [0, 0], sizes = [8, 128], strides = [1, 1]} : vector<8x384xf32> to vector<8x128xf32>
    %495 = vector.extract_strided_slice %493 {offsets = [0, 128], sizes = [8, 128], strides = [1, 1]} : vector<8x384xf32> to vector<8x128xf32>
    %496 = vector.extract_strided_slice %493 {offsets = [0, 256], sizes = [8, 128], strides = [1, 1]} : vector<8x384xf32> to vector<8x128xf32>
    %497 = vector.extract_strided_slice %487 {offsets = [0, 384], sizes = [8, 128], strides = [1, 1]} : vector<8x512xf32> to vector<8x128xf32>
    %498 = math.tanh %497 : vector<8x128xf32>
    %499 = arith.mulf %495, %475 : vector<8x128xf32>
    %500 = arith.mulf %494, %498 : vector<8x128xf32>
    %501 = arith.addf %499, %500 : vector<8x128xf32>
    %502 = math.tanh %501 : vector<8x128xf32>
    %503 = arith.mulf %496, %502 : vector<8x128xf32>
    %504 = arith.index_cast %c5_i32_157 : i32 to index
    %c0_162 = arith.constant 0 : index
    %c0_163 = arith.constant 0 : index
    %505 = vector.load %arg10[%504, %c0_162, %c0_163] : memref<6x8x128xf32, #tpu.memory_space<vmem>>, vector<1x8x128xf32>
    %506 = vector.shape_cast %505 : vector<1x8x128xf32> to vector<8x128xf32>
    %507 = vector.shape_cast %503 : vector<8x128xf32> to vector<1x8x128xf32>
    tpu.vector_store %arg10[%504, %c0_162, %c0_163], %507 {strides = array<i32>} : memref<6x8x128xf32, #tpu.memory_space<vmem>>, vector<1x8x128xf32>,
    %c6_i32_164 = arith.constant 6 : i32
    %c0_165 = arith.constant 0 : index
    %c0_166 = arith.constant 0 : index
    %c0_167 = arith.constant 0 : index
    %508 = vector.load %arg10[%c0_165, %c0_166, %c0_167] : memref<6x8x128xf32, #tpu.memory_space<vmem>>, vector<6x8x128xf32>
    %509 = vector.shape_cast %508 : vector<6x8x128xf32> to vector<48x128xf32>
    %510 = arith.truncf %509 : vector<48x128xf32> to vector<48x128xbf16>
    %c2_168 = arith.constant 2 : index
    %c0_169 = arith.constant 0 : index
    %c0_170 = arith.constant 0 : index
    %511 = vector.load %arg3[%c2_168, %c0_169, %c0_170] : memref<4x128x512xbf16, #tpu.memory_space<vmem>>, vector<1x128x512xbf16>
    %512 = vector.shape_cast %511 : vector<1x128x512xbf16> to vector<128x512xbf16>
    %cst_171 = arith.constant dense<0.000000e+00> : vector<48x512xf32>
    %513 = tpu.matmul %510, %512, %cst_171 {dimension_numbers = #tpu.dot_dimension_numbers<[1], [0], [0], [1], [0, 0, 1, 1], [], []>} : vector<48x128xbf16>, vector<128x512xbf16>, vector<48x512xf32> -> vector<48x512xf32>
    %c3 = arith.constant 3 : index
    %c0_172 = arith.constant 0 : index
    %c0_173 = arith.constant 0 : index
    %514 = vector.load %arg5[%c3, %c0_172, %c0_173] : memref<5x1x512xf32, #tpu.memory_space<vmem>>, vector<1x1x512xf32>
    %515 = vector.shape_cast %514 : vector<1x1x512xf32> to vector<1x512xf32>
    %516 = vector.broadcast %515 : vector<1x512xf32> to vector<48x512xf32>
    %517 = arith.addf %513, %516 : vector<48x512xf32>
    %518 = vector.shape_cast %517 : vector<48x512xf32> to vector<6x8x512xf32>
    %c0_174 = arith.constant 0 : index
    %c0_175 = arith.constant 0 : index
    %c0_176 = arith.constant 0 : index
    %519 = vector.load %arg9[%c0_174, %c0_175, %c0_176] : memref<6x8x512xf32, #tpu.memory_space<vmem>>, vector<6x8x512xf32>
    tpu.vector_store %arg9[%c0_174, %c0_175, %c0_176], %518 {strides = array<i32>} : memref<6x8x512xf32, #tpu.memory_space<vmem>>, vector<6x8x512xf32>,
    %c3_177 = arith.constant 3 : index
    %c0_178 = arith.constant 0 : index
    %c0_179 = arith.constant 0 : index
    %520 = vector.load %arg4[%c3_177, %c0_178, %c0_179] : memref<5x128x512xbf16, #tpu.memory_space<vmem>>, vector<1x128x512xbf16>
    %521 = vector.shape_cast %520 : vector<1x128x512xbf16> to vector<128x512xbf16>
    %c0_i32_180 = arith.constant 0 : i32
    %522 = arith.index_cast %c0_i32_180 : i32 to index
    %c0_181 = arith.constant 0 : index
    %c0_182 = arith.constant 0 : index
    %523 = vector.load %arg9[%522, %c0_181, %c0_182] : memref<6x8x512xf32, #tpu.memory_space<vmem>>, vector<1x8x512xf32>
    %524 = vector.shape_cast %523 : vector<1x8x512xf32> to vector<8x512xf32>
    %525 = arith.truncf %0 : vector<8x128xf32> to vector<8x128xbf16>
    %cst_183 = arith.constant dense<0.000000e+00> : vector<8x512xf32>
    %526 = tpu.matmul %525, %521, %cst_183 {dimension_numbers = #tpu.dot_dimension_numbers<[1], [0], [0], [1], [0, 0, 1, 1], [], []>} : vector<8x128xbf16>, vector<128x512xbf16>, vector<8x512xf32> -> vector<8x512xf32>
    %527 = arith.addf %524, %526 : vector<8x512xf32>
    %528 = vector.extract_strided_slice %527 {offsets = [0, 0], sizes = [8, 384], strides = [1, 1]} : vector<8x512xf32> to vector<8x384xf32>
    %529 = arith.negf %528 : vector<8x384xf32>
    %530 = math.exp %529 : vector<8x384xf32>
    %cst_184 = arith.constant 1.000000e+00 : f32
    %531 = vector.broadcast %cst_184 : f32 to vector<8x384xf32>
    %532 = arith.addf %531, %530 : vector<8x384xf32>
    %533 = arith.divf %531, %532 : vector<8x384xf32>
    %534 = vector.extract_strided_slice %533 {offsets = [0, 0], sizes = [8, 128], strides = [1, 1]} : vector<8x384xf32> to vector<8x128xf32>
    %535 = vector.extract_strided_slice %533 {offsets = [0, 128], sizes = [8, 128], strides = [1, 1]} : vector<8x384xf32> to vector<8x128xf32>
    %536 = vector.extract_strided_slice %533 {offsets = [0, 256], sizes = [8, 128], strides = [1, 1]} : vector<8x384xf32> to vector<8x128xf32>
    %537 = vector.extract_strided_slice %527 {offsets = [0, 384], sizes = [8, 128], strides = [1, 1]} : vector<8x512xf32> to vector<8x128xf32>
    %538 = math.tanh %537 : vector<8x128xf32>
    %539 = arith.mulf %535, %0 : vector<8x128xf32>
    %540 = arith.mulf %534, %538 : vector<8x128xf32>
    %541 = arith.addf %539, %540 : vector<8x128xf32>
    %542 = math.tanh %541 : vector<8x128xf32>
    %543 = arith.mulf %536, %542 : vector<8x128xf32>
    %544 = arith.index_cast %c0_i32_180 : i32 to index
    %c0_185 = arith.constant 0 : index
    %c0_186 = arith.constant 0 : index
    %545 = vector.load %arg10[%544, %c0_185, %c0_186] : memref<6x8x128xf32, #tpu.memory_space<vmem>>, vector<1x8x128xf32>
    %546 = vector.shape_cast %545 : vector<1x8x128xf32> to vector<8x128xf32>
    %547 = vector.shape_cast %543 : vector<8x128xf32> to vector<1x8x128xf32>
    tpu.vector_store %arg10[%544, %c0_185, %c0_186], %547 {strides = array<i32>} : memref<6x8x128xf32, #tpu.memory_space<vmem>>, vector<1x8x128xf32>,
    %c1_i32_187 = arith.constant 1 : i32
    %548 = arith.index_cast %c1_i32_187 : i32 to index
    %c0_188 = arith.constant 0 : index
    %c0_189 = arith.constant 0 : index
    %549 = vector.load %arg9[%548, %c0_188, %c0_189] : memref<6x8x512xf32, #tpu.memory_space<vmem>>, vector<1x8x512xf32>
    %550 = vector.shape_cast %549 : vector<1x8x512xf32> to vector<8x512xf32>
    %551 = arith.truncf %543 : vector<8x128xf32> to vector<8x128xbf16>
    %cst_190 = arith.constant dense<0.000000e+00> : vector<8x512xf32>
    %552 = tpu.matmul %551, %521, %cst_190 {dimension_numbers = #tpu.dot_dimension_numbers<[1], [0], [0], [1], [0, 0, 1, 1], [], []>} : vector<8x128xbf16>, vector<128x512xbf16>, vector<8x512xf32> -> vector<8x512xf32>
    %553 = arith.addf %550, %552 : vector<8x512xf32>
    %554 = vector.extract_strided_slice %553 {offsets = [0, 0], sizes = [8, 384], strides = [1, 1]} : vector<8x512xf32> to vector<8x384xf32>
    %555 = arith.negf %554 : vector<8x384xf32>
    %556 = math.exp %555 : vector<8x384xf32>
    %cst_191 = arith.constant 1.000000e+00 : f32
    %557 = vector.broadcast %cst_191 : f32 to vector<8x384xf32>
    %558 = arith.addf %557, %556 : vector<8x384xf32>
    %559 = arith.divf %557, %558 : vector<8x384xf32>
    %560 = vector.extract_strided_slice %559 {offsets = [0, 0], sizes = [8, 128], strides = [1, 1]} : vector<8x384xf32> to vector<8x128xf32>
    %561 = vector.extract_strided_slice %559 {offsets = [0, 128], sizes = [8, 128], strides = [1, 1]} : vector<8x384xf32> to vector<8x128xf32>
    %562 = vector.extract_strided_slice %559 {offsets = [0, 256], sizes = [8, 128], strides = [1, 1]} : vector<8x384xf32> to vector<8x128xf32>
    %563 = vector.extract_strided_slice %553 {offsets = [0, 384], sizes = [8, 128], strides = [1, 1]} : vector<8x512xf32> to vector<8x128xf32>
    %564 = math.tanh %563 : vector<8x128xf32>
    %565 = arith.mulf %561, %541 : vector<8x128xf32>
    %566 = arith.mulf %560, %564 : vector<8x128xf32>
    %567 = arith.addf %565, %566 : vector<8x128xf32>
    %568 = math.tanh %567 : vector<8x128xf32>
    %569 = arith.mulf %562, %568 : vector<8x128xf32>
    %570 = arith.index_cast %c1_i32_187 : i32 to index
    %c0_192 = arith.constant 0 : index
    %c0_193 = arith.constant 0 : index
    %571 = vector.load %arg10[%570, %c0_192, %c0_193] : memref<6x8x128xf32, #tpu.memory_space<vmem>>, vector<1x8x128xf32>
    %572 = vector.shape_cast %571 : vector<1x8x128xf32> to vector<8x128xf32>
    %573 = vector.shape_cast %569 : vector<8x128xf32> to vector<1x8x128xf32>
    tpu.vector_store %arg10[%570, %c0_192, %c0_193], %573 {strides = array<i32>} : memref<6x8x128xf32, #tpu.memory_space<vmem>>, vector<1x8x128xf32>,
    %c2_i32_194 = arith.constant 2 : i32
    %574 = arith.index_cast %c2_i32_194 : i32 to index
    %c0_195 = arith.constant 0 : index
    %c0_196 = arith.constant 0 : index
    %575 = vector.load %arg9[%574, %c0_195, %c0_196] : memref<6x8x512xf32, #tpu.memory_space<vmem>>, vector<1x8x512xf32>
    %576 = vector.shape_cast %575 : vector<1x8x512xf32> to vector<8x512xf32>
    %577 = arith.truncf %569 : vector<8x128xf32> to vector<8x128xbf16>
    %cst_197 = arith.constant dense<0.000000e+00> : vector<8x512xf32>
    %578 = tpu.matmul %577, %521, %cst_197 {dimension_numbers = #tpu.dot_dimension_numbers<[1], [0], [0], [1], [0, 0, 1, 1], [], []>} : vector<8x128xbf16>, vector<128x512xbf16>, vector<8x512xf32> -> vector<8x512xf32>
    %579 = arith.addf %576, %578 : vector<8x512xf32>
    %580 = vector.extract_strided_slice %579 {offsets = [0, 0], sizes = [8, 384], strides = [1, 1]} : vector<8x512xf32> to vector<8x384xf32>
    %581 = arith.negf %580 : vector<8x384xf32>
    %582 = math.exp %581 : vector<8x384xf32>
    %cst_198 = arith.constant 1.000000e+00 : f32
    %583 = vector.broadcast %cst_198 : f32 to vector<8x384xf32>
    %584 = arith.addf %583, %582 : vector<8x384xf32>
    %585 = arith.divf %583, %584 : vector<8x384xf32>
    %586 = vector.extract_strided_slice %585 {offsets = [0, 0], sizes = [8, 128], strides = [1, 1]} : vector<8x384xf32> to vector<8x128xf32>
    %587 = vector.extract_strided_slice %585 {offsets = [0, 128], sizes = [8, 128], strides = [1, 1]} : vector<8x384xf32> to vector<8x128xf32>
    %588 = vector.extract_strided_slice %585 {offsets = [0, 256], sizes = [8, 128], strides = [1, 1]} : vector<8x384xf32> to vector<8x128xf32>
    %589 = vector.extract_strided_slice %579 {offsets = [0, 384], sizes = [8, 128], strides = [1, 1]} : vector<8x512xf32> to vector<8x128xf32>
    %590 = math.tanh %589 : vector<8x128xf32>
    %591 = arith.mulf %587, %567 : vector<8x128xf32>
    %592 = arith.mulf %586, %590 : vector<8x128xf32>
    %593 = arith.addf %591, %592 : vector<8x128xf32>
    %594 = math.tanh %593 : vector<8x128xf32>
    %595 = arith.mulf %588, %594 : vector<8x128xf32>
    %596 = arith.index_cast %c2_i32_194 : i32 to index
    %c0_199 = arith.constant 0 : index
    %c0_200 = arith.constant 0 : index
    %597 = vector.load %arg10[%596, %c0_199, %c0_200] : memref<6x8x128xf32, #tpu.memory_space<vmem>>, vector<1x8x128xf32>
    %598 = vector.shape_cast %597 : vector<1x8x128xf32> to vector<8x128xf32>
    %599 = vector.shape_cast %595 : vector<8x128xf32> to vector<1x8x128xf32>
    tpu.vector_store %arg10[%596, %c0_199, %c0_200], %599 {strides = array<i32>} : memref<6x8x128xf32, #tpu.memory_space<vmem>>, vector<1x8x128xf32>,
    %c3_i32_201 = arith.constant 3 : i32
    %600 = arith.index_cast %c3_i32_201 : i32 to index
    %c0_202 = arith.constant 0 : index
    %c0_203 = arith.constant 0 : index
    %601 = vector.load %arg9[%600, %c0_202, %c0_203] : memref<6x8x512xf32, #tpu.memory_space<vmem>>, vector<1x8x512xf32>
    %602 = vector.shape_cast %601 : vector<1x8x512xf32> to vector<8x512xf32>
    %603 = arith.truncf %595 : vector<8x128xf32> to vector<8x128xbf16>
    %cst_204 = arith.constant dense<0.000000e+00> : vector<8x512xf32>
    %604 = tpu.matmul %603, %521, %cst_204 {dimension_numbers = #tpu.dot_dimension_numbers<[1], [0], [0], [1], [0, 0, 1, 1], [], []>} : vector<8x128xbf16>, vector<128x512xbf16>, vector<8x512xf32> -> vector<8x512xf32>
    %605 = arith.addf %602, %604 : vector<8x512xf32>
    %606 = vector.extract_strided_slice %605 {offsets = [0, 0], sizes = [8, 384], strides = [1, 1]} : vector<8x512xf32> to vector<8x384xf32>
    %607 = arith.negf %606 : vector<8x384xf32>
    %608 = math.exp %607 : vector<8x384xf32>
    %cst_205 = arith.constant 1.000000e+00 : f32
    %609 = vector.broadcast %cst_205 : f32 to vector<8x384xf32>
    %610 = arith.addf %609, %608 : vector<8x384xf32>
    %611 = arith.divf %609, %610 : vector<8x384xf32>
    %612 = vector.extract_strided_slice %611 {offsets = [0, 0], sizes = [8, 128], strides = [1, 1]} : vector<8x384xf32> to vector<8x128xf32>
    %613 = vector.extract_strided_slice %611 {offsets = [0, 128], sizes = [8, 128], strides = [1, 1]} : vector<8x384xf32> to vector<8x128xf32>
    %614 = vector.extract_strided_slice %611 {offsets = [0, 256], sizes = [8, 128], strides = [1, 1]} : vector<8x384xf32> to vector<8x128xf32>
    %615 = vector.extract_strided_slice %605 {offsets = [0, 384], sizes = [8, 128], strides = [1, 1]} : vector<8x512xf32> to vector<8x128xf32>
    %616 = math.tanh %615 : vector<8x128xf32>
    %617 = arith.mulf %613, %593 : vector<8x128xf32>
    %618 = arith.mulf %612, %616 : vector<8x128xf32>
    %619 = arith.addf %617, %618 : vector<8x128xf32>
    %620 = math.tanh %619 : vector<8x128xf32>
    %621 = arith.mulf %614, %620 : vector<8x128xf32>
    %622 = arith.index_cast %c3_i32_201 : i32 to index
    %c0_206 = arith.constant 0 : index
    %c0_207 = arith.constant 0 : index
    %623 = vector.load %arg10[%622, %c0_206, %c0_207] : memref<6x8x128xf32, #tpu.memory_space<vmem>>, vector<1x8x128xf32>
    %624 = vector.shape_cast %623 : vector<1x8x128xf32> to vector<8x128xf32>
    %625 = vector.shape_cast %621 : vector<8x128xf32> to vector<1x8x128xf32>
    tpu.vector_store %arg10[%622, %c0_206, %c0_207], %625 {strides = array<i32>} : memref<6x8x128xf32, #tpu.memory_space<vmem>>, vector<1x8x128xf32>,
    %c4_i32_208 = arith.constant 4 : i32
    %626 = arith.index_cast %c4_i32_208 : i32 to index
    %c0_209 = arith.constant 0 : index
    %c0_210 = arith.constant 0 : index
    %627 = vector.load %arg9[%626, %c0_209, %c0_210] : memref<6x8x512xf32, #tpu.memory_space<vmem>>, vector<1x8x512xf32>
    %628 = vector.shape_cast %627 : vector<1x8x512xf32> to vector<8x512xf32>
    %629 = arith.truncf %621 : vector<8x128xf32> to vector<8x128xbf16>
    %cst_211 = arith.constant dense<0.000000e+00> : vector<8x512xf32>
    %630 = tpu.matmul %629, %521, %cst_211 {dimension_numbers = #tpu.dot_dimension_numbers<[1], [0], [0], [1], [0, 0, 1, 1], [], []>} : vector<8x128xbf16>, vector<128x512xbf16>, vector<8x512xf32> -> vector<8x512xf32>
    %631 = arith.addf %628, %630 : vector<8x512xf32>
    %632 = vector.extract_strided_slice %631 {offsets = [0, 0], sizes = [8, 384], strides = [1, 1]} : vector<8x512xf32> to vector<8x384xf32>
    %633 = arith.negf %632 : vector<8x384xf32>
    %634 = math.exp %633 : vector<8x384xf32>
    %cst_212 = arith.constant 1.000000e+00 : f32
    %635 = vector.broadcast %cst_212 : f32 to vector<8x384xf32>
    %636 = arith.addf %635, %634 : vector<8x384xf32>
    %637 = arith.divf %635, %636 : vector<8x384xf32>
    %638 = vector.extract_strided_slice %637 {offsets = [0, 0], sizes = [8, 128], strides = [1, 1]} : vector<8x384xf32> to vector<8x128xf32>
    %639 = vector.extract_strided_slice %637 {offsets = [0, 128], sizes = [8, 128], strides = [1, 1]} : vector<8x384xf32> to vector<8x128xf32>
    %640 = vector.extract_strided_slice %637 {offsets = [0, 256], sizes = [8, 128], strides = [1, 1]} : vector<8x384xf32> to vector<8x128xf32>
    %641 = vector.extract_strided_slice %631 {offsets = [0, 384], sizes = [8, 128], strides = [1, 1]} : vector<8x512xf32> to vector<8x128xf32>
    %642 = math.tanh %641 : vector<8x128xf32>
    %643 = arith.mulf %639, %619 : vector<8x128xf32>
    %644 = arith.mulf %638, %642 : vector<8x128xf32>
    %645 = arith.addf %643, %644 : vector<8x128xf32>
    %646 = math.tanh %645 : vector<8x128xf32>
    %647 = arith.mulf %640, %646 : vector<8x128xf32>
    %648 = arith.index_cast %c4_i32_208 : i32 to index
    %c0_213 = arith.constant 0 : index
    %c0_214 = arith.constant 0 : index
    %649 = vector.load %arg10[%648, %c0_213, %c0_214] : memref<6x8x128xf32, #tpu.memory_space<vmem>>, vector<1x8x128xf32>
    %650 = vector.shape_cast %649 : vector<1x8x128xf32> to vector<8x128xf32>
    %651 = vector.shape_cast %647 : vector<8x128xf32> to vector<1x8x128xf32>
    tpu.vector_store %arg10[%648, %c0_213, %c0_214], %651 {strides = array<i32>} : memref<6x8x128xf32, #tpu.memory_space<vmem>>, vector<1x8x128xf32>,
    %c5_i32_215 = arith.constant 5 : i32
    %652 = arith.index_cast %c5_i32_215 : i32 to index
    %c0_216 = arith.constant 0 : index
    %c0_217 = arith.constant 0 : index
    %653 = vector.load %arg9[%652, %c0_216, %c0_217] : memref<6x8x512xf32, #tpu.memory_space<vmem>>, vector<1x8x512xf32>
    %654 = vector.shape_cast %653 : vector<1x8x512xf32> to vector<8x512xf32>
    %655 = arith.truncf %647 : vector<8x128xf32> to vector<8x128xbf16>
    %cst_218 = arith.constant dense<0.000000e+00> : vector<8x512xf32>
    %656 = tpu.matmul %655, %521, %cst_218 {dimension_numbers = #tpu.dot_dimension_numbers<[1], [0], [0], [1], [0, 0, 1, 1], [], []>} : vector<8x128xbf16>, vector<128x512xbf16>, vector<8x512xf32> -> vector<8x512xf32>
    %657 = arith.addf %654, %656 : vector<8x512xf32>
    %658 = vector.extract_strided_slice %657 {offsets = [0, 0], sizes = [8, 384], strides = [1, 1]} : vector<8x512xf32> to vector<8x384xf32>
    %659 = arith.negf %658 : vector<8x384xf32>
    %660 = math.exp %659 : vector<8x384xf32>
    %cst_219 = arith.constant 1.000000e+00 : f32
    %661 = vector.broadcast %cst_219 : f32 to vector<8x384xf32>
    %662 = arith.addf %661, %660 : vector<8x384xf32>
    %663 = arith.divf %661, %662 : vector<8x384xf32>
    %664 = vector.extract_strided_slice %663 {offsets = [0, 0], sizes = [8, 128], strides = [1, 1]} : vector<8x384xf32> to vector<8x128xf32>
    %665 = vector.extract_strided_slice %663 {offsets = [0, 128], sizes = [8, 128], strides = [1, 1]} : vector<8x384xf32> to vector<8x128xf32>
    %666 = vector.extract_strided_slice %663 {offsets = [0, 256], sizes = [8, 128], strides = [1, 1]} : vector<8x384xf32> to vector<8x128xf32>
    %667 = vector.extract_strided_slice %657 {offsets = [0, 384], sizes = [8, 128], strides = [1, 1]} : vector<8x512xf32> to vector<8x128xf32>
    %668 = math.tanh %667 : vector<8x128xf32>
    %669 = arith.mulf %665, %645 : vector<8x128xf32>
    %670 = arith.mulf %664, %668 : vector<8x128xf32>
    %671 = arith.addf %669, %670 : vector<8x128xf32>
    %672 = math.tanh %671 : vector<8x128xf32>
    %673 = arith.mulf %666, %672 : vector<8x128xf32>
    %674 = arith.index_cast %c5_i32_215 : i32 to index
    %c0_220 = arith.constant 0 : index
    %c0_221 = arith.constant 0 : index
    %675 = vector.load %arg10[%674, %c0_220, %c0_221] : memref<6x8x128xf32, #tpu.memory_space<vmem>>, vector<1x8x128xf32>
    %676 = vector.shape_cast %675 : vector<1x8x128xf32> to vector<8x128xf32>
    %677 = vector.shape_cast %673 : vector<8x128xf32> to vector<1x8x128xf32>
    tpu.vector_store %arg10[%674, %c0_220, %c0_221], %677 {strides = array<i32>} : memref<6x8x128xf32, #tpu.memory_space<vmem>>, vector<1x8x128xf32>,
    %c6_i32_222 = arith.constant 6 : i32
    %c0_223 = arith.constant 0 : index
    %c0_224 = arith.constant 0 : index
    %c0_225 = arith.constant 0 : index
    %678 = vector.load %arg10[%c0_223, %c0_224, %c0_225] : memref<6x8x128xf32, #tpu.memory_space<vmem>>, vector<6x8x128xf32>
    %679 = vector.shape_cast %678 : vector<6x8x128xf32> to vector<48x128xf32>
    %680 = arith.truncf %679 : vector<48x128xf32> to vector<48x128xbf16>
    %c3_226 = arith.constant 3 : index
    %c0_227 = arith.constant 0 : index
    %c0_228 = arith.constant 0 : index
    %681 = vector.load %arg3[%c3_226, %c0_227, %c0_228] : memref<4x128x512xbf16, #tpu.memory_space<vmem>>, vector<1x128x512xbf16>
    %682 = vector.shape_cast %681 : vector<1x128x512xbf16> to vector<128x512xbf16>
    %cst_229 = arith.constant dense<0.000000e+00> : vector<48x512xf32>
    %683 = tpu.matmul %680, %682, %cst_229 {dimension_numbers = #tpu.dot_dimension_numbers<[1], [0], [0], [1], [0, 0, 1, 1], [], []>} : vector<48x128xbf16>, vector<128x512xbf16>, vector<48x512xf32> -> vector<48x512xf32>
    %c4 = arith.constant 4 : index
    %c0_230 = arith.constant 0 : index
    %c0_231 = arith.constant 0 : index
    %684 = vector.load %arg5[%c4, %c0_230, %c0_231] : memref<5x1x512xf32, #tpu.memory_space<vmem>>, vector<1x1x512xf32>
    %685 = vector.shape_cast %684 : vector<1x1x512xf32> to vector<1x512xf32>
    %686 = vector.broadcast %685 : vector<1x512xf32> to vector<48x512xf32>
    %687 = arith.addf %683, %686 : vector<48x512xf32>
    %688 = vector.shape_cast %687 : vector<48x512xf32> to vector<6x8x512xf32>
    %c0_232 = arith.constant 0 : index
    %c0_233 = arith.constant 0 : index
    %c0_234 = arith.constant 0 : index
    %689 = vector.load %arg9[%c0_232, %c0_233, %c0_234] : memref<6x8x512xf32, #tpu.memory_space<vmem>>, vector<6x8x512xf32>
    tpu.vector_store %arg9[%c0_232, %c0_233, %c0_234], %688 {strides = array<i32>} : memref<6x8x512xf32, #tpu.memory_space<vmem>>, vector<6x8x512xf32>,
    %c4_235 = arith.constant 4 : index
    %c0_236 = arith.constant 0 : index
    %c0_237 = arith.constant 0 : index
    %690 = vector.load %arg4[%c4_235, %c0_236, %c0_237] : memref<5x128x512xbf16, #tpu.memory_space<vmem>>, vector<1x128x512xbf16>
    %691 = vector.shape_cast %690 : vector<1x128x512xbf16> to vector<128x512xbf16>
    %c0_i32_238 = arith.constant 0 : i32
    %692 = arith.index_cast %c0_i32_238 : i32 to index
    %c0_239 = arith.constant 0 : index
    %c0_240 = arith.constant 0 : index
    %693 = vector.load %arg9[%692, %c0_239, %c0_240] : memref<6x8x512xf32, #tpu.memory_space<vmem>>, vector<1x8x512xf32>
    %694 = vector.shape_cast %693 : vector<1x8x512xf32> to vector<8x512xf32>
    %695 = arith.truncf %0 : vector<8x128xf32> to vector<8x128xbf16>
    %cst_241 = arith.constant dense<0.000000e+00> : vector<8x512xf32>
    %696 = tpu.matmul %695, %691, %cst_241 {dimension_numbers = #tpu.dot_dimension_numbers<[1], [0], [0], [1], [0, 0, 1, 1], [], []>} : vector<8x128xbf16>, vector<128x512xbf16>, vector<8x512xf32> -> vector<8x512xf32>
    %697 = arith.addf %694, %696 : vector<8x512xf32>
    %698 = vector.extract_strided_slice %697 {offsets = [0, 0], sizes = [8, 384], strides = [1, 1]} : vector<8x512xf32> to vector<8x384xf32>
    %699 = arith.negf %698 : vector<8x384xf32>
    %700 = math.exp %699 : vector<8x384xf32>
    %cst_242 = arith.constant 1.000000e+00 : f32
    %701 = vector.broadcast %cst_242 : f32 to vector<8x384xf32>
    %702 = arith.addf %701, %700 : vector<8x384xf32>
    %703 = arith.divf %701, %702 : vector<8x384xf32>
    %704 = vector.extract_strided_slice %703 {offsets = [0, 0], sizes = [8, 128], strides = [1, 1]} : vector<8x384xf32> to vector<8x128xf32>
    %705 = vector.extract_strided_slice %703 {offsets = [0, 128], sizes = [8, 128], strides = [1, 1]} : vector<8x384xf32> to vector<8x128xf32>
    %706 = vector.extract_strided_slice %703 {offsets = [0, 256], sizes = [8, 128], strides = [1, 1]} : vector<8x384xf32> to vector<8x128xf32>
    %707 = vector.extract_strided_slice %697 {offsets = [0, 384], sizes = [8, 128], strides = [1, 1]} : vector<8x512xf32> to vector<8x128xf32>
    %708 = math.tanh %707 : vector<8x128xf32>
    %709 = arith.mulf %705, %0 : vector<8x128xf32>
    %710 = arith.mulf %704, %708 : vector<8x128xf32>
    %711 = arith.addf %709, %710 : vector<8x128xf32>
    %712 = math.tanh %711 : vector<8x128xf32>
    %713 = arith.mulf %706, %712 : vector<8x128xf32>
    %714 = arith.index_cast %c0_i32_238 : i32 to index
    %c0_243 = arith.constant 0 : index
    %c0_244 = arith.constant 0 : index
    %715 = vector.load %arg10[%714, %c0_243, %c0_244] : memref<6x8x128xf32, #tpu.memory_space<vmem>>, vector<1x8x128xf32>
    %716 = vector.shape_cast %715 : vector<1x8x128xf32> to vector<8x128xf32>
    %717 = vector.shape_cast %713 : vector<8x128xf32> to vector<1x8x128xf32>
    tpu.vector_store %arg10[%714, %c0_243, %c0_244], %717 {strides = array<i32>} : memref<6x8x128xf32, #tpu.memory_space<vmem>>, vector<1x8x128xf32>,
    %c1_i32_245 = arith.constant 1 : i32
    %718 = arith.index_cast %c1_i32_245 : i32 to index
    %c0_246 = arith.constant 0 : index
    %c0_247 = arith.constant 0 : index
    %719 = vector.load %arg9[%718, %c0_246, %c0_247] : memref<6x8x512xf32, #tpu.memory_space<vmem>>, vector<1x8x512xf32>
    %720 = vector.shape_cast %719 : vector<1x8x512xf32> to vector<8x512xf32>
    %721 = arith.truncf %713 : vector<8x128xf32> to vector<8x128xbf16>
    %cst_248 = arith.constant dense<0.000000e+00> : vector<8x512xf32>
    %722 = tpu.matmul %721, %691, %cst_248 {dimension_numbers = #tpu.dot_dimension_numbers<[1], [0], [0], [1], [0, 0, 1, 1], [], []>} : vector<8x128xbf16>, vector<128x512xbf16>, vector<8x512xf32> -> vector<8x512xf32>
    %723 = arith.addf %720, %722 : vector<8x512xf32>
    %724 = vector.extract_strided_slice %723 {offsets = [0, 0], sizes = [8, 384], strides = [1, 1]} : vector<8x512xf32> to vector<8x384xf32>
    %725 = arith.negf %724 : vector<8x384xf32>
    %726 = math.exp %725 : vector<8x384xf32>
    %cst_249 = arith.constant 1.000000e+00 : f32
    %727 = vector.broadcast %cst_249 : f32 to vector<8x384xf32>
    %728 = arith.addf %727, %726 : vector<8x384xf32>
    %729 = arith.divf %727, %728 : vector<8x384xf32>
    %730 = vector.extract_strided_slice %729 {offsets = [0, 0], sizes = [8, 128], strides = [1, 1]} : vector<8x384xf32> to vector<8x128xf32>
    %731 = vector.extract_strided_slice %729 {offsets = [0, 128], sizes = [8, 128], strides = [1, 1]} : vector<8x384xf32> to vector<8x128xf32>
    %732 = vector.extract_strided_slice %729 {offsets = [0, 256], sizes = [8, 128], strides = [1, 1]} : vector<8x384xf32> to vector<8x128xf32>
    %733 = vector.extract_strided_slice %723 {offsets = [0, 384], sizes = [8, 128], strides = [1, 1]} : vector<8x512xf32> to vector<8x128xf32>
    %734 = math.tanh %733 : vector<8x128xf32>
    %735 = arith.mulf %731, %711 : vector<8x128xf32>
    %736 = arith.mulf %730, %734 : vector<8x128xf32>
    %737 = arith.addf %735, %736 : vector<8x128xf32>
    %738 = math.tanh %737 : vector<8x128xf32>
    %739 = arith.mulf %732, %738 : vector<8x128xf32>
    %740 = arith.index_cast %c1_i32_245 : i32 to index
    %c0_250 = arith.constant 0 : index
    %c0_251 = arith.constant 0 : index
    %741 = vector.load %arg10[%740, %c0_250, %c0_251] : memref<6x8x128xf32, #tpu.memory_space<vmem>>, vector<1x8x128xf32>
    %742 = vector.shape_cast %741 : vector<1x8x128xf32> to vector<8x128xf32>
    %743 = vector.shape_cast %739 : vector<8x128xf32> to vector<1x8x128xf32>
    tpu.vector_store %arg10[%740, %c0_250, %c0_251], %743 {strides = array<i32>} : memref<6x8x128xf32, #tpu.memory_space<vmem>>, vector<1x8x128xf32>,
    %c2_i32_252 = arith.constant 2 : i32
    %744 = arith.index_cast %c2_i32_252 : i32 to index
    %c0_253 = arith.constant 0 : index
    %c0_254 = arith.constant 0 : index
    %745 = vector.load %arg9[%744, %c0_253, %c0_254] : memref<6x8x512xf32, #tpu.memory_space<vmem>>, vector<1x8x512xf32>
    %746 = vector.shape_cast %745 : vector<1x8x512xf32> to vector<8x512xf32>
    %747 = arith.truncf %739 : vector<8x128xf32> to vector<8x128xbf16>
    %cst_255 = arith.constant dense<0.000000e+00> : vector<8x512xf32>
    %748 = tpu.matmul %747, %691, %cst_255 {dimension_numbers = #tpu.dot_dimension_numbers<[1], [0], [0], [1], [0, 0, 1, 1], [], []>} : vector<8x128xbf16>, vector<128x512xbf16>, vector<8x512xf32> -> vector<8x512xf32>
    %749 = arith.addf %746, %748 : vector<8x512xf32>
    %750 = vector.extract_strided_slice %749 {offsets = [0, 0], sizes = [8, 384], strides = [1, 1]} : vector<8x512xf32> to vector<8x384xf32>
    %751 = arith.negf %750 : vector<8x384xf32>
    %752 = math.exp %751 : vector<8x384xf32>
    %cst_256 = arith.constant 1.000000e+00 : f32
    %753 = vector.broadcast %cst_256 : f32 to vector<8x384xf32>
    %754 = arith.addf %753, %752 : vector<8x384xf32>
    %755 = arith.divf %753, %754 : vector<8x384xf32>
    %756 = vector.extract_strided_slice %755 {offsets = [0, 0], sizes = [8, 128], strides = [1, 1]} : vector<8x384xf32> to vector<8x128xf32>
    %757 = vector.extract_strided_slice %755 {offsets = [0, 128], sizes = [8, 128], strides = [1, 1]} : vector<8x384xf32> to vector<8x128xf32>
    %758 = vector.extract_strided_slice %755 {offsets = [0, 256], sizes = [8, 128], strides = [1, 1]} : vector<8x384xf32> to vector<8x128xf32>
    %759 = vector.extract_strided_slice %749 {offsets = [0, 384], sizes = [8, 128], strides = [1, 1]} : vector<8x512xf32> to vector<8x128xf32>
    %760 = math.tanh %759 : vector<8x128xf32>
    %761 = arith.mulf %757, %737 : vector<8x128xf32>
    %762 = arith.mulf %756, %760 : vector<8x128xf32>
    %763 = arith.addf %761, %762 : vector<8x128xf32>
    %764 = math.tanh %763 : vector<8x128xf32>
    %765 = arith.mulf %758, %764 : vector<8x128xf32>
    %766 = arith.index_cast %c2_i32_252 : i32 to index
    %c0_257 = arith.constant 0 : index
    %c0_258 = arith.constant 0 : index
    %767 = vector.load %arg10[%766, %c0_257, %c0_258] : memref<6x8x128xf32, #tpu.memory_space<vmem>>, vector<1x8x128xf32>
    %768 = vector.shape_cast %767 : vector<1x8x128xf32> to vector<8x128xf32>
    %769 = vector.shape_cast %765 : vector<8x128xf32> to vector<1x8x128xf32>
    tpu.vector_store %arg10[%766, %c0_257, %c0_258], %769 {strides = array<i32>} : memref<6x8x128xf32, #tpu.memory_space<vmem>>, vector<1x8x128xf32>,
    %c3_i32_259 = arith.constant 3 : i32
    %770 = arith.index_cast %c3_i32_259 : i32 to index
    %c0_260 = arith.constant 0 : index
    %c0_261 = arith.constant 0 : index
    %771 = vector.load %arg9[%770, %c0_260, %c0_261] : memref<6x8x512xf32, #tpu.memory_space<vmem>>, vector<1x8x512xf32>
    %772 = vector.shape_cast %771 : vector<1x8x512xf32> to vector<8x512xf32>
    %773 = arith.truncf %765 : vector<8x128xf32> to vector<8x128xbf16>
    %cst_262 = arith.constant dense<0.000000e+00> : vector<8x512xf32>
    %774 = tpu.matmul %773, %691, %cst_262 {dimension_numbers = #tpu.dot_dimension_numbers<[1], [0], [0], [1], [0, 0, 1, 1], [], []>} : vector<8x128xbf16>, vector<128x512xbf16>, vector<8x512xf32> -> vector<8x512xf32>
    %775 = arith.addf %772, %774 : vector<8x512xf32>
    %776 = vector.extract_strided_slice %775 {offsets = [0, 0], sizes = [8, 384], strides = [1, 1]} : vector<8x512xf32> to vector<8x384xf32>
    %777 = arith.negf %776 : vector<8x384xf32>
    %778 = math.exp %777 : vector<8x384xf32>
    %cst_263 = arith.constant 1.000000e+00 : f32
    %779 = vector.broadcast %cst_263 : f32 to vector<8x384xf32>
    %780 = arith.addf %779, %778 : vector<8x384xf32>
    %781 = arith.divf %779, %780 : vector<8x384xf32>
    %782 = vector.extract_strided_slice %781 {offsets = [0, 0], sizes = [8, 128], strides = [1, 1]} : vector<8x384xf32> to vector<8x128xf32>
    %783 = vector.extract_strided_slice %781 {offsets = [0, 128], sizes = [8, 128], strides = [1, 1]} : vector<8x384xf32> to vector<8x128xf32>
    %784 = vector.extract_strided_slice %781 {offsets = [0, 256], sizes = [8, 128], strides = [1, 1]} : vector<8x384xf32> to vector<8x128xf32>
    %785 = vector.extract_strided_slice %775 {offsets = [0, 384], sizes = [8, 128], strides = [1, 1]} : vector<8x512xf32> to vector<8x128xf32>
    %786 = math.tanh %785 : vector<8x128xf32>
    %787 = arith.mulf %783, %763 : vector<8x128xf32>
    %788 = arith.mulf %782, %786 : vector<8x128xf32>
    %789 = arith.addf %787, %788 : vector<8x128xf32>
    %790 = math.tanh %789 : vector<8x128xf32>
    %791 = arith.mulf %784, %790 : vector<8x128xf32>
    %792 = arith.index_cast %c3_i32_259 : i32 to index
    %c0_264 = arith.constant 0 : index
    %c0_265 = arith.constant 0 : index
    %793 = vector.load %arg10[%792, %c0_264, %c0_265] : memref<6x8x128xf32, #tpu.memory_space<vmem>>, vector<1x8x128xf32>
    %794 = vector.shape_cast %793 : vector<1x8x128xf32> to vector<8x128xf32>
    %795 = vector.shape_cast %791 : vector<8x128xf32> to vector<1x8x128xf32>
    tpu.vector_store %arg10[%792, %c0_264, %c0_265], %795 {strides = array<i32>} : memref<6x8x128xf32, #tpu.memory_space<vmem>>, vector<1x8x128xf32>,
    %c4_i32_266 = arith.constant 4 : i32
    %796 = arith.index_cast %c4_i32_266 : i32 to index
    %c0_267 = arith.constant 0 : index
    %c0_268 = arith.constant 0 : index
    %797 = vector.load %arg9[%796, %c0_267, %c0_268] : memref<6x8x512xf32, #tpu.memory_space<vmem>>, vector<1x8x512xf32>
    %798 = vector.shape_cast %797 : vector<1x8x512xf32> to vector<8x512xf32>
    %799 = arith.truncf %791 : vector<8x128xf32> to vector<8x128xbf16>
    %cst_269 = arith.constant dense<0.000000e+00> : vector<8x512xf32>
    %800 = tpu.matmul %799, %691, %cst_269 {dimension_numbers = #tpu.dot_dimension_numbers<[1], [0], [0], [1], [0, 0, 1, 1], [], []>} : vector<8x128xbf16>, vector<128x512xbf16>, vector<8x512xf32> -> vector<8x512xf32>
    %801 = arith.addf %798, %800 : vector<8x512xf32>
    %802 = vector.extract_strided_slice %801 {offsets = [0, 0], sizes = [8, 384], strides = [1, 1]} : vector<8x512xf32> to vector<8x384xf32>
    %803 = arith.negf %802 : vector<8x384xf32>
    %804 = math.exp %803 : vector<8x384xf32>
    %cst_270 = arith.constant 1.000000e+00 : f32
    %805 = vector.broadcast %cst_270 : f32 to vector<8x384xf32>
    %806 = arith.addf %805, %804 : vector<8x384xf32>
    %807 = arith.divf %805, %806 : vector<8x384xf32>
    %808 = vector.extract_strided_slice %807 {offsets = [0, 0], sizes = [8, 128], strides = [1, 1]} : vector<8x384xf32> to vector<8x128xf32>
    %809 = vector.extract_strided_slice %807 {offsets = [0, 128], sizes = [8, 128], strides = [1, 1]} : vector<8x384xf32> to vector<8x128xf32>
    %810 = vector.extract_strided_slice %807 {offsets = [0, 256], sizes = [8, 128], strides = [1, 1]} : vector<8x384xf32> to vector<8x128xf32>
    %811 = vector.extract_strided_slice %801 {offsets = [0, 384], sizes = [8, 128], strides = [1, 1]} : vector<8x512xf32> to vector<8x128xf32>
    %812 = math.tanh %811 : vector<8x128xf32>
    %813 = arith.mulf %809, %789 : vector<8x128xf32>
    %814 = arith.mulf %808, %812 : vector<8x128xf32>
    %815 = arith.addf %813, %814 : vector<8x128xf32>
    %816 = math.tanh %815 : vector<8x128xf32>
    %817 = arith.mulf %810, %816 : vector<8x128xf32>
    %818 = arith.index_cast %c4_i32_266 : i32 to index
    %c0_271 = arith.constant 0 : index
    %c0_272 = arith.constant 0 : index
    %819 = vector.load %arg10[%818, %c0_271, %c0_272] : memref<6x8x128xf32, #tpu.memory_space<vmem>>, vector<1x8x128xf32>
    %820 = vector.shape_cast %819 : vector<1x8x128xf32> to vector<8x128xf32>
    %821 = vector.shape_cast %817 : vector<8x128xf32> to vector<1x8x128xf32>
    tpu.vector_store %arg10[%818, %c0_271, %c0_272], %821 {strides = array<i32>} : memref<6x8x128xf32, #tpu.memory_space<vmem>>, vector<1x8x128xf32>,
    %c5_i32_273 = arith.constant 5 : i32
    %822 = arith.index_cast %c5_i32_273 : i32 to index
    %c0_274 = arith.constant 0 : index
    %c0_275 = arith.constant 0 : index
    %823 = vector.load %arg9[%822, %c0_274, %c0_275] : memref<6x8x512xf32, #tpu.memory_space<vmem>>, vector<1x8x512xf32>
    %824 = vector.shape_cast %823 : vector<1x8x512xf32> to vector<8x512xf32>
    %825 = arith.truncf %817 : vector<8x128xf32> to vector<8x128xbf16>
    %cst_276 = arith.constant dense<0.000000e+00> : vector<8x512xf32>
    %826 = tpu.matmul %825, %691, %cst_276 {dimension_numbers = #tpu.dot_dimension_numbers<[1], [0], [0], [1], [0, 0, 1, 1], [], []>} : vector<8x128xbf16>, vector<128x512xbf16>, vector<8x512xf32> -> vector<8x512xf32>
    %827 = arith.addf %824, %826 : vector<8x512xf32>
    %828 = vector.extract_strided_slice %827 {offsets = [0, 0], sizes = [8, 384], strides = [1, 1]} : vector<8x512xf32> to vector<8x384xf32>
    %829 = arith.negf %828 : vector<8x384xf32>
    %830 = math.exp %829 : vector<8x384xf32>
    %cst_277 = arith.constant 1.000000e+00 : f32
    %831 = vector.broadcast %cst_277 : f32 to vector<8x384xf32>
    %832 = arith.addf %831, %830 : vector<8x384xf32>
    %833 = arith.divf %831, %832 : vector<8x384xf32>
    %834 = vector.extract_strided_slice %833 {offsets = [0, 0], sizes = [8, 128], strides = [1, 1]} : vector<8x384xf32> to vector<8x128xf32>
    %835 = vector.extract_strided_slice %833 {offsets = [0, 128], sizes = [8, 128], strides = [1, 1]} : vector<8x384xf32> to vector<8x128xf32>
    %836 = vector.extract_strided_slice %833 {offsets = [0, 256], sizes = [8, 128], strides = [1, 1]} : vector<8x384xf32> to vector<8x128xf32>
    %837 = vector.extract_strided_slice %827 {offsets = [0, 384], sizes = [8, 128], strides = [1, 1]} : vector<8x512xf32> to vector<8x128xf32>
    %838 = math.tanh %837 : vector<8x128xf32>
    %839 = arith.mulf %835, %815 : vector<8x128xf32>
    %840 = arith.mulf %834, %838 : vector<8x128xf32>
    %841 = arith.addf %839, %840 : vector<8x128xf32>
    %842 = math.tanh %841 : vector<8x128xf32>
    %843 = arith.mulf %836, %842 : vector<8x128xf32>
    %844 = arith.index_cast %c5_i32_273 : i32 to index
    %c0_278 = arith.constant 0 : index
    %c0_279 = arith.constant 0 : index
    %845 = vector.load %arg10[%844, %c0_278, %c0_279] : memref<6x8x128xf32, #tpu.memory_space<vmem>>, vector<1x8x128xf32>
    %846 = vector.shape_cast %845 : vector<1x8x128xf32> to vector<8x128xf32>
    %847 = vector.shape_cast %843 : vector<8x128xf32> to vector<1x8x128xf32>
    tpu.vector_store %arg10[%844, %c0_278, %c0_279], %847 {strides = array<i32>} : memref<6x8x128xf32, #tpu.memory_space<vmem>>, vector<1x8x128xf32>,
    %c6_i32_280 = arith.constant 6 : i32
    %c0_281 = arith.constant 0 : index
    %c0_282 = arith.constant 0 : index
    %c0_283 = arith.constant 0 : index
    %848 = vector.load %arg10[%c0_281, %c0_282, %c0_283] : memref<6x8x128xf32, #tpu.memory_space<vmem>>, vector<6x8x128xf32>
    %849 = vector.extract_strided_slice %848 {offsets = [0, 1, 0], sizes = [6, 1, 128], strides = [1, 1, 1]} : vector<6x8x128xf32> to vector<6x1x128xf32>
    %850 = vector.shape_cast %849 : vector<6x1x128xf32> to vector<6x128xf32>
    %851 = arith.truncf %850 : vector<6x128xf32> to vector<6x128xbf16>
    %c0_284 = arith.constant 0 : index
    %c0_285 = arith.constant 0 : index
    %852 = vector.load %arg6[%c0_284, %c0_285] : memref<128x128xbf16, #tpu.memory_space<vmem>>, vector<128x128xbf16>
    %cst_286 = arith.constant dense<0.000000e+00> : vector<6x128xf32>
    %853 = tpu.matmul %851, %852, %cst_286 {dimension_numbers = #tpu.dot_dimension_numbers<[1], [0], [0], [1], [0, 0, 1, 1], [], []>} : vector<6x128xbf16>, vector<128x128xbf16>, vector<6x128xf32> -> vector<6x128xf32>
    %c0_287 = arith.constant 0 : index
    %c0_288 = arith.constant 0 : index
    %854 = vector.load %arg7[%c0_287, %c0_288] : memref<1x128xf32, #tpu.memory_space<vmem>>, vector<1x128xf32>
    %855 = vector.broadcast %854 : vector<1x128xf32> to vector<6x128xf32>
    %856 = arith.addf %853, %855 : vector<6x128xf32>
    %c0_289 = arith.constant 0 : index
    %c0_290 = arith.constant 0 : index
    %857 = vector.load %arg8[%c0_289, %c0_290] : memref<6x128xf32, #tpu.memory_space<vmem>>, vector<6x128xf32>
    tpu.vector_store %arg8[%c0_289, %c0_290], %856 {strides = array<i32>} : memref<6x128xf32, #tpu.memory_space<vmem>>, vector<6x128xf32>,
    return
  }
  func.func @transform_0(%arg0: i32) -> (i32, i32) {
    %c0_i32 = arith.constant 0 : i32
    %c0_i32_0 = arith.constant 0 : i32
    %c0_i32_1 = arith.constant 0 : i32
    return %c0_i32, %c0_i32_0 : i32, i32
  }
  func.func @transform_1(%arg0: i32) -> (i32, i32) {
    %c0_i32 = arith.constant 0 : i32
    %c0_i32_0 = arith.constant 0 : i32
    %c0_i32_1 = arith.constant 0 : i32
    return %c0_i32, %c0_i32_0 : i32, i32
  }
  func.func @transform_2(%arg0: i32) -> (i32, i32, i32) {
    %c0_i32 = arith.constant 0 : i32
    %c0_i32_0 = arith.constant 0 : i32
    %c0_i32_1 = arith.constant 0 : i32
    %c0_i32_2 = arith.constant 0 : i32
    return %c0_i32, %c0_i32_0, %c0_i32_1 : i32, i32, i32
  }
  func.func @transform_3(%arg0: i32) -> (i32, i32, i32) {
    %c0_i32 = arith.constant 0 : i32
    %c0_i32_0 = arith.constant 0 : i32
    %c0_i32_1 = arith.constant 0 : i32
    %c0_i32_2 = arith.constant 0 : i32
    return %c0_i32, %c0_i32_0, %c0_i32_1 : i32, i32, i32
  }
  func.func @transform_4(%arg0: i32) -> (i32, i32, i32) {
    %c0_i32 = arith.constant 0 : i32
    %c0_i32_0 = arith.constant 0 : i32
    %c0_i32_1 = arith.constant 0 : i32
    %c0_i32_2 = arith.constant 0 : i32
    return %c0_i32, %c0_i32_0, %c0_i32_1 : i32, i32, i32
  }
  func.func @transform_5(%arg0: i32) -> (i32, i32) {
    %c0_i32 = arith.constant 0 : i32
    %c0_i32_0 = arith.constant 0 : i32
    %c0_i32_1 = arith.constant 0 : i32
    return %c0_i32, %c0_i32_0 : i32, i32
  }
  func.func @transform_6(%arg0: i32) -> (i32, i32) {
    %c0_i32 = arith.constant 0 : i32
    %c0_i32_0 = arith.constant 0 : i32
    %c0_i32_1 = arith.constant 0 : i32
    return %c0_i32, %c0_i32_0 : i32, i32
  }
  func.func @transform_7(%arg0: i32) -> (i32, i32) {
    %c0_i32 = arith.constant 0 : i32
    %c0_i32_0 = arith.constant 0 : i32
    %c0_i32_1 = arith.constant 0 : i32
    return %c0_i32, %c0_i32_0 : i32, i32
  }
}

</mosaic_0001>

<llo_original>
// kernel: tpu_custom_call.1
$region0: #{tpu_custom_call.1}
  #allocation0 [shape = 'u32[]', space=smem, size = 0x4, offset = 0x4, fixed_abs, tag = 'smem constant byte address 0x4 - core index']
  #allocation1 [shape = 'u32[72,128]{1,0:T(1,128)}', space=vmem, size = 0x9000, scoped, tag = 'internal scratch']
  #allocation2 [shape = 'f32[6,8,512]{2,1,0:T(8,128)}', space=vmem, size = 0x18000, scoped, tag = 'scratch operand']
  #allocation3 [shape = 'f32[6,8,128]{2,1,0:T(8,128)}', space=vmem, size = 0x6000, scoped, tag = 'scratch operand']
  %s0 = inlined_call_operand.hbm [shape: bf16[48,384], index: 0, kind: input, shape index: {}]
  %s1 = inlined_call_operand.hbm [shape: bf16[384,512], index: 1, kind: input, shape index: {}]
  %s2 = inlined_call_operand.hbm [shape: bf16[4,128,512], index: 2, kind: input, shape index: {}]
  %s3 = inlined_call_operand.hbm [shape: bf16[5,128,512], index: 3, kind: input, shape index: {}]
  %s4 = inlined_call_operand.hbm [shape: f32[5,1,512], index: 4, kind: input, shape index: {}]
  %s5 = inlined_call_operand.hbm [shape: bf16[128,128], index: 5, kind: input, shape index: {}]
  %s6 = inlined_call_operand.vmem [shape: f32[1,128], index: 6, kind: input, shape index: {}]
  %s7 = inlined_call_operand.hbm [shape: f32[6,128], index: 7, kind: output, shape index: {}]
  %s8 = sld [smem:[#allocation0]]
  $region62: #{tpu_custom_call.1} parent=0
    _
  %s10 = ssub.s32 1, %s8
  %s11 = scalar_select 0, %s10, %s8
  $region1: #{tpu_custom_call.1} parent=0
    #allocation4 [shape = 'u8[36864]{0}', space=vmem, size = 0x9000, scoped, tag = 'input window, operand 0, single buffered']
    #allocation5 [shape = 's32[1]{0}', space=sflag, size = 0x4, scoped, tag = 'scoped memory for tpu_custom_call.1']
    #allocation6 [shape = 's32[1]{0}', space=sflag, size = 0x4, scoped, tag = 'scoped memory for tpu_custom_call.1']
    #allocation7 [shape = 'u8[393216]{0}', space=vmem, size = 0x60000, scoped, tag = 'input window, operand 1, single buffered']
    #allocation8 [shape = 's32[1]{0}', space=sflag, size = 0x4, scoped, tag = 'scoped memory for tpu_custom_call.1']
    #allocation9 [shape = 'u8[524288]{0}', space=vmem, size = 0x80000, scoped, tag = 'input window, operand 2, single buffered']
    #allocation10 [shape = 'u8[655360]{0}', space=vmem, size = 0xa0000, scoped, tag = 'input window, operand 3, single buffered']
    #allocation11 [shape = 's32[1]{0}', space=sflag, size = 0x4, scoped, tag = 'scoped memory for tpu_custom_call.1']
    #allocation12 [shape = 'u8[10240]{0}', space=vmem, size = 0x2800, scoped, tag = 'input window, operand 4, single buffered']
    #allocation13 [shape = 'u8[32768]{0}', space=vmem, size = 0x8000, scoped, tag = 'input window, operand 5, single buffered']
    #allocation14 [shape = 's32[1]{0}', space=sflag, size = 0x4, scoped, tag = 'scoped memory for tpu_custom_call.1']
    #allocation15 [shape = 'u8[4096]{0}', space=vmem, size = 0x1000, scoped, tag = 'output window, operand 0, single buffered']
    %12 = vsyncpa [#allocation5], 0
    %13 = vsyncpa [#allocation8], 0
    %14 = vsyncpa [#allocation11], 0
    %15 = vsyncpa [#allocation14], 0
    %16 = vsyncpa [#allocation6], 0
    // Predicated region
    $region2: #{tpu_custom_call.1} parent=1 // pred_check
      _
    $region3: #{tpu_custom_call.1} parent=1 // pred_check_branch
      %18 = sbr.rel (0) target = $region5
    $region4: #{tpu_custom_call.1} parent=1 // pred_region
      %20 = vsyncadd [#allocation5], 0
      %s21 = sshll.u32 %s0, 4
      %s22 = int_to_ptr.hbm [resolvable:$true] %s21
      %s23 = sshll.u32 [#allocation4], 4
      %s24 = int_to_ptr.vmem [resolvable:$true] %s23
      %29 = dma.hbm_to_vmem [thread:$0]  %s22, 1152, %s24, [#allocation5], 192, 192, 12
    $region5: #{tpu_custom_call.1} parent=1 // pred_fallthru
      _
    // Predicated region
    $region6: #{tpu_custom_call.1} parent=1 // pred_check
      _
    $region7: #{tpu_custom_call.1} parent=1 // pred_check_branch
      %31 = sbr.rel (0) target = $region9
    $region8: #{tpu_custom_call.1} parent=1 // pred_region
      %33 = vsyncadd [#allocation8], 0
      %s34 = sshll.u32 %s1, 4
      %s35 = int_to_ptr.hbm [resolvable:$true] %s34
      %s36 = sshll.u32 [#allocation7], 4
      %s37 = int_to_ptr.vmem [resolvable:$true] %s36
      %42 = dma.hbm_to_vmem [thread:$0]  %s35, 12288, %s37, [#allocation8], 256, 256, 16
    $region9: #{tpu_custom_call.1} parent=1 // pred_fallthru
      _
    // Predicated region
    $region10: #{tpu_custom_call.1} parent=1 // pred_check
      _
    $region11: #{tpu_custom_call.1} parent=1 // pred_check_branch
      %44 = sbr.rel (0) target = $region13
    $region12: #{tpu_custom_call.1} parent=1 // pred_region
      %46 = vsyncadd [#allocation8], 0
      %s47 = sshll.u32 %s2, 4
      %s48 = int_to_ptr.hbm [resolvable:$true] %s47
      %s49 = sshll.u32 [#allocation9], 4
      %s50 = int_to_ptr.vmem [resolvable:$true] %s49
      %55 = dma.hbm_to_vmem [thread:$0]  %s48, 16384, %s50, [#allocation8], 256, 256, 16
    $region13: #{tpu_custom_call.1} parent=1 // pred_fallthru
      _
    // Predicated region
    $region14: #{tpu_custom_call.1} parent=1 // pred_check
      _
    $region15: #{tpu_custom_call.1} parent=1 // pred_check_branch
      %57 = sbr.rel (0) target = $region17
    $region16: #{tpu_custom_call.1} parent=1 // pred_region
      %59 = vsyncadd [#allocation11], 0
      %s60 = sshll.u32 %s3, 4
      %s61 = int_to_ptr.hbm [resolvable:$true] %s60
      %s62 = sshll.u32 [#allocation10], 4
      %s63 = int_to_ptr.vmem [resolvable:$true] %s62
      %68 = dma.hbm_to_vmem [thread:$0]  %s61, 20480, %s63, [#allocation11], 256, 256, 16
    $region17: #{tpu_custom_call.1} parent=1 // pred_fallthru
      _
    // Predicated region
    $region18: #{tpu_custom_call.1} parent=1 // pred_check
      _
    $region19: #{tpu_custom_call.1} parent=1 // pred_check_branch
      %70 = sbr.rel (0) target = $region21
    $region20: #{tpu_custom_call.1} parent=1 // pred_region
      %72 = vsyncadd [#allocation11], 0
      %s73 = sshll.u32 %s4, 4
      %s74 = int_to_ptr.hbm [resolvable:$true] %s73
      %s75 = sshll.u32 [#allocation12], 4
      %s76 = int_to_ptr.vmem [resolvable:$true] %s75
      %81 = dma.hbm_to_vmem [thread:$0]  %s74, 320, %s76, [#allocation11], 64, 64, 4
    $region21: #{tpu_custom_call.1} parent=1 // pred_fallthru
      _
    // Predicated region
    $region22: #{tpu_custom_call.1} parent=1 // pred_check
      _
    $region23: #{tpu_custom_call.1} parent=1 // pred_check_branch
      %83 = sbr.rel (0) target = $region25
    $region24: #{tpu_custom_call.1} parent=1 // pred_region
      %85 = vsyncadd [#allocation14], 0
      %s86 = sshll.u32 %s5, 4
      %s87 = int_to_ptr.hbm [resolvable:$true] %s86
      %s88 = sshll.u32 [#allocation13], 4
      %s89 = int_to_ptr.vmem [resolvable:$true] %s88
      %94 = dma.hbm_to_vmem [thread:$0]  %s87, 1024, %s89, [#allocation14], 64, 64, 4
    $region25: #{tpu_custom_call.1} parent=1 // pred_fallthru
      _
    // Predicated region
    $region26: #{tpu_custom_call.1} parent=1 // pred_check
      _
    $region27: #{tpu_custom_call.1} parent=1 // pred_check_branch
      %96 = sbr.rel (0) target = $region29
    $region28: #{tpu_custom_call.1} parent=1 // pred_region
      _
    $region29: #{tpu_custom_call.1} parent=1 // pred_fallthru
      _
    // Predicated region
    $region30: #{tpu_custom_call.1} parent=1 // pred_check
      _
    $region31: #{tpu_custom_call.1} parent=1 // pred_check_branch
      %98 = sbr.rel (0) target = $region33
    $region32: #{tpu_custom_call.1} parent=1 // pred_region
      %100 = dma.done [#allocation5], 1152
    $region33: #{tpu_custom_call.1} parent=1 // pred_fallthru
      _
    // Predicated region
    $region34: #{tpu_custom_call.1} parent=1 // pred_check
      _
    $region35: #{tpu_custom_call.1} parent=1 // pred_check_branch
      %102 = sbr.rel (0) target = $region37
    $region36: #{tpu_custom_call.1} parent=1 // pred_region
      %104 = dma.done [#allocation8], 12288
    $region37: #{tpu_custom_call.1} parent=1 // pred_fallthru
      _
    // Predicated region
    $region38: #{tpu_custom_call.1} parent=1 // pred_check
      _
    $region39: #{tpu_custom_call.1} parent=1 // pred_check_branch
      %106 = sbr.rel (0) target = $region41
    $region40: #{tpu_custom_call.1} parent=1 // pred_region
      %108 = dma.done [#allocation8], 16384
    $region41: #{tpu_custom_call.1} parent=1 // pred_fallthru
      _
    // Predicated region
    $region42: #{tpu_custom_call.1} parent=1 // pred_check
      _
    $region43: #{tpu_custom_call.1} parent=1 // pred_check_branch
      %110 = sbr.rel (0) target = $region45
    $region44: #{tpu_custom_call.1} parent=1 // pred_region
      %112 = dma.done [#allocation11], 20480
    $region45: #{tpu_custom_call.1} parent=1 // pred_fallthru
      _
    // Predicated region
    $region46: #{tpu_custom_call.1} parent=1 // pred_check
      _
    $region47: #{tpu_custom_call.1} parent=1 // pred_check_branch
      %114 = sbr.rel (0) target = $region49
    $region48: #{tpu_custom_call.1} parent=1 // pred_region
      %116 = dma.done [#allocation11], 320
    $region49: #{tpu_custom_call.1} parent=1 // pred_fallthru
      _
    // Predicated region
    $region50: #{tpu_custom_call.1} parent=1 // pred_check
      _
    $region51: #{tpu_custom_call.1} parent=1 // pred_check_branch
      %118 = sbr.rel (0) target = $region53
    $region52: #{tpu_custom_call.1} parent=1 // pred_region
      %120 = dma.done [#allocation14], 1024
    $region53: #{tpu_custom_call.1} parent=1 // pred_fallthru
      _
    %v122 = vld [vmem:[#allocation4] sm:$0xff]
    %v123 = vld [vmem:[#allocation4 + $0x8] sm:$0xf]
    %v124 = vld [vmem:[#allocation4 + $0xc] sm:$0xff]
    %v125 = vld [vmem:[#allocation4 + $0x14] sm:$0xf]
    %v126 = vld [vmem:[#allocation4 + $0x18] sm:$0xff]
    %v127 = vld [vmem:[#allocation4 + $0x20] sm:$0xf]
    %v128 = vld [vmem:[#allocation4 + $0x24] sm:$0xff]
    %v129 = vld [vmem:[#allocation4 + $0x2c] sm:$0xf]
    %v130 = vld [vmem:[#allocation4 + $0x30] sm:$0xff]
    %v131 = vld [vmem:[#allocation4 + $0x38] sm:$0xf]
    %v132 = vld [vmem:[#allocation4 + $0x3c] sm:$0xff]
    %v133 = vld [vmem:[#allocation4 + $0x44] sm:$0xf]
    %v134 = vld [vmem:[#allocation7] sm:$0xff]
    %v135 = vld [vmem:[#allocation7 + $0x8] sm:$0xff]
    %v136 = vld [vmem:[#allocation7 + $0x10] sm:$0xff]
    %v137 = vld [vmem:[#allocation7 + $0x18] sm:$0xff]
    %v138 = vld [vmem:[#allocation7 + $0x20] sm:$0xff]
    %v139 = vld [vmem:[#allocation7 + $0x28] sm:$0xff]
    %v140 = vld [vmem:[#allocation7 + $0x30] sm:$0xff]
    %v141 = vld [vmem:[#allocation7 + $0x38] sm:$0xff]
    %v142 = vld [vmem:[#allocation7 + $0x40] sm:$0xff]
    %v143 = vld [vmem:[#allocation7 + $0x48] sm:$0xff]
    %v144 = vld [vmem:[#allocation7 + $0x50] sm:$0xff]
    %v145 = vld [vmem:[#allocation7 + $0x58] sm:$0xff]
    %v146 = vld [vmem:[#allocation7 + $0x60] sm:$0xff]
    %v147 = vld [vmem:[#allocation7 + $0x68] sm:$0xff]
    %v148 = vld [vmem:[#allocation7 + $0x70] sm:$0xff]
    %v149 = vld [vmem:[#allocation7 + $0x78] sm:$0xff]
    %v150 = vld [vmem:[#allocation7 + $0x80] sm:$0xff]
    %v151 = vld [vmem:[#allocation7 + $0x88] sm:$0xff]
    %v152 = vld [vmem:[#allocation7 + $0x90] sm:$0xff]
    %v153 = vld [vmem:[#allocation7 + $0x98] sm:$0xff]
    %v154 = vld [vmem:[#allocation7 + $0xa0] sm:$0xff]
    %v155 = vld [vmem:[#allocation7 + $0xa8] sm:$0xff]
    %v156 = vld [vmem:[#allocation7 + $0xb0] sm:$0xff]
    %v157 = vld [vmem:[#allocation7 + $0xb8] sm:$0xff]
    %v158 = vld [vmem:[#allocation7 + $0xc0] sm:$0xff]
    %v159 = vld [vmem:[#allocation7 + $0xc8] sm:$0xff]
    %v160 = vld [vmem:[#allocation7 + $0xd0] sm:$0xff]
    %v161 = vld [vmem:[#allocation7 + $0xd8] sm:$0xff]
    %v162 = vld [vmem:[#allocation7 + $0xe0] sm:$0xff]
    %v163 = vld [vmem:[#allocation7 + $0xe8] sm:$0xff]
    %v164 = vld [vmem:[#allocation7 + $0xf0] sm:$0xff]
    %v165 = vld [vmem:[#allocation7 + $0xf8] sm:$0xff]
    %v166 = vld [vmem:[#allocation7 + $0x100] sm:$0xff]
    %v167 = vld [vmem:[#allocation7 + $0x108] sm:$0xff]
    %v168 = vld [vmem:[#allocation7 + $0x110] sm:$0xff]
    %v169 = vld [vmem:[#allocation7 + $0x118] sm:$0xff]
    %v170 = vld [vmem:[#allocation7 + $0x120] sm:$0xff]
    %v171 = vld [vmem:[#allocation7 + $0x128] sm:$0xff]
    %v172 = vld [vmem:[#allocation7 + $0x130] sm:$0xff]
    %v173 = vld [vmem:[#allocation7 + $0x138] sm:$0xff]
    %v174 = vld [vmem:[#allocation7 + $0x140] sm:$0xff]
    %v175 = vld [vmem:[#allocation7 + $0x148] sm:$0xff]
    %v176 = vld [vmem:[#allocation7 + $0x150] sm:$0xff]
    %v177 = vld [vmem:[#allocation7 + $0x158] sm:$0xff]
    %v178 = vld [vmem:[#allocation7 + $0x160] sm:$0xff]
    %v179 = vld [vmem:[#allocation7 + $0x168] sm:$0xff]
    %v180 = vld [vmem:[#allocation7 + $0x170] sm:$0xff]
    %v181 = vld [vmem:[#allocation7 + $0x178] sm:$0xff]
    %v182 = vld [vmem:[#allocation7 + $0x180] sm:$0xff]
    %v183 = vld [vmem:[#allocation7 + $0x188] sm:$0xff]
    %v184 = vld [vmem:[#allocation7 + $0x190] sm:$0xff]
    %v185 = vld [vmem:[#allocation7 + $0x198] sm:$0xff]
    %v186 = vld [vmem:[#allocation7 + $0x1a0] sm:$0xff]
    %v187 = vld [vmem:[#allocation7 + $0x1a8] sm:$0xff]
    %v188 = vld [vmem:[#allocation7 + $0x1b0] sm:$0xff]
    %v189 = vld [vmem:[#allocation7 + $0x1b8] sm:$0xff]
    %v190 = vld [vmem:[#allocation7 + $0x1c0] sm:$0xff]
    %v191 = vld [vmem:[#allocation7 + $0x1c8] sm:$0xff]
    %v192 = vld [vmem:[#allocation7 + $0x1d0] sm:$0xff]
    %v193 = vld [vmem:[#allocation7 + $0x1d8] sm:$0xff]
    %v194 = vld [vmem:[#allocation7 + $0x1e0] sm:$0xff]
    %v195 = vld [vmem:[#allocation7 + $0x1e8] sm:$0xff]
    %v196 = vld [vmem:[#allocation7 + $0x1f0] sm:$0xff]
    %v197 = vld [vmem:[#allocation7 + $0x1f8] sm:$0xff]
    %v198 = vld [vmem:[#allocation7 + $0x200] sm:$0xff]
    %v199 = vld [vmem:[#allocation7 + $0x208] sm:$0xff]
    %v200 = vld [vmem:[#allocation7 + $0x210] sm:$0xff]
    %v201 = vld [vmem:[#allocation7 + $0x218] sm:$0xff]
    %v202 = vld [vmem:[#allocation7 + $0x220] sm:$0xff]
    %v203 = vld [vmem:[#allocation7 + $0x228] sm:$0xff]
    %v204 = vld [vmem:[#allocation7 + $0x230] sm:$0xff]
    %v205 = vld [vmem:[#allocation7 + $0x238] sm:$0xff]
    %v206 = vld [vmem:[#allocation7 + $0x240] sm:$0xff]
    %v207 = vld [vmem:[#allocation7 + $0x248] sm:$0xff]
    %v208 = vld [vmem:[#allocation7 + $0x250] sm:$0xff]
    %v209 = vld [vmem:[#allocation7 + $0x258] sm:$0xff]
    %v210 = vld [vmem:[#allocation7 + $0x260] sm:$0xff]
    %v211 = vld [vmem:[#allocation7 + $0x268] sm:$0xff]
    %v212 = vld [vmem:[#allocation7 + $0x270] sm:$0xff]
    %v213 = vld [vmem:[#allocation7 + $0x278] sm:$0xff]
    %v214 = vld [vmem:[#allocation7 + $0x280] sm:$0xff]
    %v215 = vld [vmem:[#allocation7 + $0x288] sm:$0xff]
    %v216 = vld [vmem:[#allocation7 + $0x290] sm:$0xff]
    %v217 = vld [vmem:[#allocation7 + $0x298] sm:$0xff]
    %v218 = vld [vmem:[#allocation7 + $0x2a0] sm:$0xff]
    %v219 = vld [vmem:[#allocation7 + $0x2a8] sm:$0xff]
    %v220 = vld [vmem:[#allocation7 + $0x2b0] sm:$0xff]
    %v221 = vld [vmem:[#allocation7 + $0x2b8] sm:$0xff]
    %v222 = vld [vmem:[#allocation7 + $0x2c0] sm:$0xff]
    %v223 = vld [vmem:[#allocation7 + $0x2c8] sm:$0xff]
    %v224 = vld [vmem:[#allocation7 + $0x2d0] sm:$0xff]
    %v225 = vld [vmem:[#allocation7 + $0x2d8] sm:$0xff]
    %v226 = vld [vmem:[#allocation7 + $0x2e0] sm:$0xff]
    %v227 = vld [vmem:[#allocation7 + $0x2e8] sm:$0xff]
    %v228 = vld [vmem:[#allocation7 + $0x2f0] sm:$0xff]
    %v229 = vld [vmem:[#allocation7 + $0x2f8] sm:$0xff]
    %v230 = vld [vmem:[#allocation12] sm:$0xf]
    %v232 = vperm.slane %v230, 0
    %v233 = vperm.slane %v230, 1
    %v234 = vperm.slane %v230, 2
    %v235 = vperm.slane %v230, 3
    %v252 = vunpack.c.l.b16 %v122
    %v253 = vunpack.c.h.b16 %v122
    %v254 = vunpack.c.l.b16 %v123
    %v255 = vunpack.c.l.b16 %v124
    %v256 = vunpack.c.h.b16 %v124
    %v257 = vunpack.c.l.b16 %v125
    %v258 = vunpack.c.l.b16 %v126
    %v259 = vunpack.c.h.b16 %v126
    %v260 = vunpack.c.l.b16 %v127
    %v261 = vunpack.c.l.b16 %v128
    %v262 = vunpack.c.h.b16 %v128
    %v263 = vunpack.c.l.b16 %v129
    %v264 = vunpack.c.l.b16 %v130
    %v265 = vunpack.c.h.b16 %v130
    %v266 = vunpack.c.l.b16 %v131
    %v267 = vunpack.c.l.b16 %v132
    %v268 = vunpack.c.h.b16 %v132
    %v269 = vunpack.c.l.b16 %v133
    %v270 = vpack.c.b16 %v255, %v252
    %v271 = vpack.c.b16 %v256, %v253
    %v272 = vpack.c.b16 %v257, %v254
    %v273 = vpack.c.b16 %v261, %v258
    %v274 = vpack.c.b16 %v262, %v259
    %v275 = vpack.c.b16 %v263, %v260
    %v276 = vpack.c.b16 %v267, %v264
    %v277 = vpack.c.b16 %v268, %v265
    %v278 = vpack.c.b16 %v269, %v266
    %v384 = vunpack.c.l.b16 %v134
    %v385 = vunpack.c.h.b16 %v134
    %v386 = vunpack.c.l.b16 %v135
    %v387 = vunpack.c.h.b16 %v135
    %v388 = vunpack.c.l.b16 %v136
    %v389 = vunpack.c.h.b16 %v136
    %v390 = vunpack.c.l.b16 %v137
    %v391 = vunpack.c.h.b16 %v137
    %v392 = vunpack.c.l.b16 %v138
    %v393 = vunpack.c.h.b16 %v138
    %v394 = vunpack.c.l.b16 %v139
    %v395 = vunpack.c.h.b16 %v139
    %v396 = vunpack.c.l.b16 %v140
    %v397 = vunpack.c.h.b16 %v140
    %v398 = vunpack.c.l.b16 %v141
    %v399 = vunpack.c.h.b16 %v141
    %v400 = vunpack.c.l.b16 %v142
    %v401 = vunpack.c.h.b16 %v142
    %v402 = vunpack.c.l.b16 %v143
    %v403 = vunpack.c.h.b16 %v143
    %v404 = vunpack.c.l.b16 %v144
    %v405 = vunpack.c.h.b16 %v144
    %v406 = vunpack.c.l.b16 %v145
    %v407 = vunpack.c.h.b16 %v145
    %v408 = vunpack.c.l.b16 %v146
    %v409 = vunpack.c.h.b16 %v146
    %v410 = vunpack.c.l.b16 %v147
    %v411 = vunpack.c.h.b16 %v147
    %v412 = vunpack.c.l.b16 %v148
    %v413 = vunpack.c.h.b16 %v148
    %v414 = vunpack.c.l.b16 %v149
    %v415 = vunpack.c.h.b16 %v149
    %v416 = vunpack.c.l.b16 %v150
    %v417 = vunpack.c.h.b16 %v150
    %v418 = vunpack.c.l.b16 %v151
    %v419 = vunpack.c.h.b16 %v151
    %v420 = vunpack.c.l.b16 %v152
    %v421 = vunpack.c.h.b16 %v152
    %v422 = vunpack.c.l.b16 %v153
    %v423 = vunpack.c.h.b16 %v153
    %v424 = vunpack.c.l.b16 %v154
    %v425 = vunpack.c.h.b16 %v154
    %v426 = vunpack.c.l.b16 %v155
    %v427 = vunpack.c.h.b16 %v155
    %v428 = vunpack.c.l.b16 %v156
    %v429 = vunpack.c.h.b16 %v156
    %v430 = vunpack.c.l.b16 %v157
    %v431 = vunpack.c.h.b16 %v157
    %v432 = vunpack.c.l.b16 %v158
    %v433 = vunpack.c.h.b16 %v158
    %v434 = vunpack.c.l.b16 %v159
    %v435 = vunpack.c.h.b16 %v159
    %v436 = vunpack.c.l.b16 %v160
    %v437 = vunpack.c.h.b16 %v160
    %v438 = vunpack.c.l.b16 %v161
    %v439 = vunpack.c.h.b16 %v161
    %v440 = vunpack.c.l.b16 %v162
    %v441 = vunpack.c.h.b16 %v162
    %v442 = vunpack.c.l.b16 %v163
    %v443 = vunpack.c.h.b16 %v163
    %v444 = vunpack.c.l.b16 %v164
    %v445 = vunpack.c.h.b16 %v164
    %v446 = vunpack.c.l.b16 %v165
    %v447 = vunpack.c.h.b16 %v165
    %v448 = vunpack.c.l.b16 %v166
    %v449 = vunpack.c.h.b16 %v166
    %v450 = vunpack.c.l.b16 %v167
    %v451 = vunpack.c.h.b16 %v167
    %v452 = vunpack.c.l.b16 %v168
    %v453 = vunpack.c.h.b16 %v168
    %v454 = vunpack.c.l.b16 %v169
    %v455 = vunpack.c.h.b16 %v169
    %v456 = vunpack.c.l.b16 %v170
    %v457 = vunpack.c.h.b16 %v170
    %v458 = vunpack.c.l.b16 %v171
    %v459 = vunpack.c.h.b16 %v171
    %v460 = vunpack.c.l.b16 %v172
    %v461 = vunpack.c.h.b16 %v172
    %v462 = vunpack.c.l.b16 %v173
    %v463 = vunpack.c.h.b16 %v173
    %v464 = vunpack.c.l.b16 %v174
    %v465 = vunpack.c.h.b16 %v174
    %v466 = vunpack.c.l.b16 %v175
    %v467 = vunpack.c.h.b16 %v175
    %v468 = vunpack.c.l.b16 %v176
    %v469 = vunpack.c.h.b16 %v176
    %v470 = vunpack.c.l.b16 %v177
    %v471 = vunpack.c.h.b16 %v177
    %v472 = vunpack.c.l.b16 %v178
    %v473 = vunpack.c.h.b16 %v178
    %v474 = vunpack.c.l.b16 %v179
    %v475 = vunpack.c.h.b16 %v179
    %v476 = vunpack.c.l.b16 %v180
    %v477 = vunpack.c.h.b16 %v180
    %v478 = vunpack.c.l.b16 %v181
    %v479 = vunpack.c.h.b16 %v181
    %v480 = vunpack.c.l.b16 %v182
    %v481 = vunpack.c.h.b16 %v182
    %v482 = vunpack.c.l.b16 %v183
    %v483 = vunpack.c.h.b16 %v183
    %v484 = vunpack.c.l.b16 %v184
    %v485 = vunpack.c.h.b16 %v184
    %v486 = vunpack.c.l.b16 %v185
    %v487 = vunpack.c.h.b16 %v185
    %v488 = vunpack.c.l.b16 %v186
    %v489 = vunpack.c.h.b16 %v186
    %v490 = vunpack.c.l.b16 %v187
    %v491 = vunpack.c.h.b16 %v187
    %v492 = vunpack.c.l.b16 %v188
    %v493 = vunpack.c.h.b16 %v188
    %v494 = vunpack.c.l.b16 %v189
    %v495 = vunpack.c.h.b16 %v189
    %v496 = vunpack.c.l.b16 %v190
    %v497 = vunpack.c.h.b16 %v190
    %v498 = vunpack.c.l.b16 %v191
    %v499 = vunpack.c.h.b16 %v191
    %v500 = vunpack.c.l.b16 %v192
    %v501 = vunpack.c.h.b16 %v192
    %v502 = vunpack.c.l.b16 %v193
    %v503 = vunpack.c.h.b16 %v193
    %v504 = vunpack.c.l.b16 %v194
    %v505 = vunpack.c.h.b16 %v194
    %v506 = vunpack.c.l.b16 %v195
    %v507 = vunpack.c.h.b16 %v195
    %v508 = vunpack.c.l.b16 %v196
    %v509 = vunpack.c.h.b16 %v196
    %v510 = vunpack.c.l.b16 %v197
    %v511 = vunpack.c.h.b16 %v197
    %v512 = vunpack.c.l.b16 %v198
    %v513 = vunpack.c.h.b16 %v198
    %v514 = vunpack.c.l.b16 %v199
    %v515 = vunpack.c.h.b16 %v199
    %v516 = vunpack.c.l.b16 %v200
    %v517 = vunpack.c.h.b16 %v200
    %v518 = vunpack.c.l.b16 %v201
    %v519 = vunpack.c.h.b16 %v201
    %v520 = vunpack.c.l.b16 %v202
    %v521 = vunpack.c.h.b16 %v202
    %v522 = vunpack.c.l.b16 %v203
    %v523 = vunpack.c.h.b16 %v203
    %v524 = vunpack.c.l.b16 %v204
    %v525 = vunpack.c.h.b16 %v204
    %v526 = vunpack.c.l.b16 %v205
    %v527 = vunpack.c.h.b16 %v205
    %v528 = vunpack.c.l.b16 %v206
    %v529 = vunpack.c.h.b16 %v206
    %v530 = vunpack.c.l.b16 %v207
    %v531 = vunpack.c.h.b16 %v207
    %v532 = vunpack.c.l.b16 %v208
    %v533 = vunpack.c.h.b16 %v208
    %v534 = vunpack.c.l.b16 %v209
    %v535 = vunpack.c.h.b16 %v209
    %v536 = vunpack.c.l.b16 %v210
    %v537 = vunpack.c.h.b16 %v210
    %v538 = vunpack.c.l.b16 %v211
    %v539 = vunpack.c.h.b16 %v211
    %v540 = vunpack.c.l.b16 %v212
    %v541 = vunpack.c.h.b16 %v212
    %v542 = vunpack.c.l.b16 %v213
    %v543 = vunpack.c.h.b16 %v213
    %v544 = vunpack.c.l.b16 %v214
    %v545 = vunpack.c.h.b16 %v214
    %v546 = vunpack.c.l.b16 %v215
    %v547 = vunpack.c.h.b16 %v215
    %v548 = vunpack.c.l.b16 %v216
    %v549 = vunpack.c.h.b16 %v216
    %v550 = vunpack.c.l.b16 %v217
    %v551 = vunpack.c.h.b16 %v217
    %v552 = vunpack.c.l.b16 %v218
    %v553 = vunpack.c.h.b16 %v218
    %v554 = vunpack.c.l.b16 %v219
    %v555 = vunpack.c.h.b16 %v219
    %v556 = vunpack.c.l.b16 %v220
    %v557 = vunpack.c.h.b16 %v220
    %v558 = vunpack.c.l.b16 %v221
    %v559 = vunpack.c.h.b16 %v221
    %v560 = vunpack.c.l.b16 %v222
    %v561 = vunpack.c.h.b16 %v222
    %v562 = vunpack.c.l.b16 %v223
    %v563 = vunpack.c.h.b16 %v223
    %v564 = vunpack.c.l.b16 %v224
    %v565 = vunpack.c.h.b16 %v224
    %v566 = vunpack.c.l.b16 %v225
    %v567 = vunpack.c.h.b16 %v225
    %v568 = vunpack.c.l.b16 %v226
    %v569 = vunpack.c.h.b16 %v226
    %v570 = vunpack.c.l.b16 %v227
    %v571 = vunpack.c.h.b16 %v227
    %v572 = vunpack.c.l.b16 %v228
    %v573 = vunpack.c.h.b16 %v228
    %v574 = vunpack.c.l.b16 %v229
    %v575 = vunpack.c.h.b16 %v229
    %v576 = vpack.c.b16 %v388, %v384
    %v577 = vpack.c.b16 %v389, %v385
    %v578 = vpack.c.b16 %v390, %v386
    %v579 = vpack.c.b16 %v391, %v387
    %v580 = vpack.c.b16 %v396, %v392
    %v581 = vpack.c.b16 %v397, %v393
    %v582 = vpack.c.b16 %v398, %v394
    %v583 = vpack.c.b16 %v399, %v395
    %v584 = vpack.c.b16 %v404, %v400
    %v585 = vpack.c.b16 %v405, %v401
    %v586 = vpack.c.b16 %v406, %v402
    %v587 = vpack.c.b16 %v407, %v403
    %v588 = vpack.c.b16 %v412, %v408
    %v589 = vpack.c.b16 %v413, %v409
    %v590 = vpack.c.b16 %v414, %v410
    %v591 = vpack.c.b16 %v415, %v411
    %v592 = vpack.c.b16 %v420, %v416
    %v593 = vpack.c.b16 %v421, %v417
    %v594 = vpack.c.b16 %v422, %v418
    %v595 = vpack.c.b16 %v423, %v419
    %v596 = vpack.c.b16 %v428, %v424
    %v597 = vpack.c.b16 %v429, %v425
    %v598 = vpack.c.b16 %v430, %v426
    %v599 = vpack.c.b16 %v431, %v427
    %v600 = vpack.c.b16 %v436, %v432
    %v601 = vpack.c.b16 %v437, %v433
    %v602 = vpack.c.b16 %v438, %v434
    %v603 = vpack.c.b16 %v439, %v435
    %v604 = vpack.c.b16 %v444, %v440
    %v605 = vpack.c.b16 %v445, %v441
    %v606 = vpack.c.b16 %v446, %v442
    %v607 = vpack.c.b16 %v447, %v443
    %v608 = vpack.c.b16 %v452, %v448
    %v609 = vpack.c.b16 %v453, %v449
    %v610 = vpack.c.b16 %v454, %v450
    %v611 = vpack.c.b16 %v455, %v451
    %v612 = vpack.c.b16 %v460, %v456
    %v613 = vpack.c.b16 %v461, %v457
    %v614 = vpack.c.b16 %v462, %v458
    %v615 = vpack.c.b16 %v463, %v459
    %v616 = vpack.c.b16 %v468, %v464
    %v617 = vpack.c.b16 %v469, %v465
    %v618 = vpack.c.b16 %v470, %v466
    %v619 = vpack.c.b16 %v471, %v467
    %v620 = vpack.c.b16 %v476, %v472
    %v621 = vpack.c.b16 %v477, %v473
    %v622 = vpack.c.b16 %v478, %v474
    %v623 = vpack.c.b16 %v479, %v475
    %v624 = vpack.c.b16 %v484, %v480
    %v625 = vpack.c.b16 %v485, %v481
    %v626 = vpack.c.b16 %v486, %v482
    %v627 = vpack.c.b16 %v487, %v483
    %v628 = vpack.c.b16 %v492, %v488
    %v629 = vpack.c.b16 %v493, %v489
    %v630 = vpack.c.b16 %v494, %v490
    %v631 = vpack.c.b16 %v495, %v491
    %v632 = vpack.c.b16 %v500, %v496
    %v633 = vpack.c.b16 %v501, %v497
    %v634 = vpack.c.b16 %v502, %v498
    %v635 = vpack.c.b16 %v503, %v499
    %v636 = vpack.c.b16 %v508, %v504
    %v637 = vpack.c.b16 %v509, %v505
    %v638 = vpack.c.b16 %v510, %v506
    %v639 = vpack.c.b16 %v511, %v507
    %v640 = vpack.c.b16 %v516, %v512
    %v641 = vpack.c.b16 %v517, %v513
    %v642 = vpack.c.b16 %v518, %v514
    %v643 = vpack.c.b16 %v519, %v515
    %v644 = vpack.c.b16 %v524, %v520
    %v645 = vpack.c.b16 %v525, %v521
    %v646 = vpack.c.b16 %v526, %v522
    %v647 = vpack.c.b16 %v527, %v523
    %v648 = vpack.c.b16 %v532, %v528
    %v649 = vpack.c.b16 %v533, %v529
    %v650 = vpack.c.b16 %v534, %v530
    %v651 = vpack.c.b16 %v535, %v531
    %v652 = vpack.c.b16 %v540, %v536
    %v653 = vpack.c.b16 %v541, %v537
    %v654 = vpack.c.b16 %v542, %v538
    %v655 = vpack.c.b16 %v543, %v539
    %v656 = vpack.c.b16 %v548, %v544
    %v657 = vpack.c.b16 %v549, %v545
    %v658 = vpack.c.b16 %v550, %v546
    %v659 = vpack.c.b16 %v551, %v547
    %v660 = vpack.c.b16 %v556, %v552
    %v661 = vpack.c.b16 %v557, %v553
    %v662 = vpack.c.b16 %v558, %v554
    %v663 = vpack.c.b16 %v559, %v555
    %v664 = vpack.c.b16 %v564, %v560
    %v665 = vpack.c.b16 %v565, %v561
    %v666 = vpack.c.b16 %v566, %v562
    %v667 = vpack.c.b16 %v567, %v563
    %v668 = vpack.c.b16 %v572, %v568
    %v669 = vpack.c.b16 %v573, %v569
    %v670 = vpack.c.b16 %v574, %v570
    %v671 = vpack.c.b16 %v575, %v571
    %768 = vmatpush.bf16.msra.mxu0 %v604
    %769 = vmatpush.bf16.msra.mxu0 %v600
    %770 = vmatpush.bf16.msra.mxu0 %v596
    %771 = vmatpush.bf16.msra.mxu0 %v592
    %772 = vmatpush.bf16.msra.mxu0 %v588
    %773 = vmatpush.bf16.msra.mxu0 %v584
    %774 = vmatpush.bf16.msra.mxu0 %v580
    %775 = vmatpush.bf16.msra.mxu0 %v576
    %776 = vmatmul.bf16.gmra.mxu0 %v270
    %v777 = vpop.f32.mrf.mxu0
    %v778 = vadd.f32 %v232, %v777
    %v779 = vpop.f32.mrf.mxu0
    %v780 = vadd.f32 %v232, %v779
    %781 = vmatmul.bf16.gmra.mxu0 %v273
    %v782 = vpop.f32.mrf.mxu0
    %v783 = vadd.f32 %v232, %v782
    %v784 = vpop.f32.mrf.mxu0
    %v785 = vadd.f32 %v232, %v784
    %786 = vmatmul.bf16.gmra.mxu0 %v276
    %v787 = vpop.f32.mrf.mxu0
    %v788 = vadd.f32 %v232, %v787
    %v789 = vpop.f32.mrf.mxu0
    %v790 = vadd.f32 %v232, %v789
    %791 = vdwg.mxu0
    %792 = vmatpush.bf16.msra.mxu0 %v636
    %793 = vmatpush.bf16.msra.mxu0 %v632
    %794 = vmatpush.bf16.msra.mxu0 %v628
    %795 = vmatpush.bf16.msra.mxu0 %v624
    %796 = vmatpush.bf16.msra.mxu0 %v620
    %797 = vmatpush.bf16.msra.mxu0 %v616
    %798 = vmatpush.bf16.msra.mxu0 %v612
    %799 = vmatpush.bf16.msra.mxu0 %v608
    %800 = vmatmul.bf16.gmra.mxu0 %v271
    %v801 = vpop.f32.mrf.mxu0
    %v802 = vadd.f32 %v778, %v801
    %v803 = vpop.f32.mrf.mxu0
    %v804 = vadd.f32 %v780, %v803
    %805 = vmatmul.bf16.gmra.mxu0 %v274
    %v806 = vpop.f32.mrf.mxu0
    %v807 = vadd.f32 %v783, %v806
    %v808 = vpop.f32.mrf.mxu0
    %v809 = vadd.f32 %v785, %v808
    %810 = vmatmul.bf16.gmra.mxu0 %v277
    %v811 = vpop.f32.mrf.mxu0
    %v812 = vadd.f32 %v788, %v811
    %v813 = vpop.f32.mrf.mxu0
    %v814 = vadd.f32 %v790, %v813
    %815 = vdwg.mxu0
    %816 = vmatpush.bf16.msra.mxu0 %v668
    %817 = vmatpush.bf16.msra.mxu0 %v664
    %818 = vmatpush.bf16.msra.mxu0 %v660
    %819 = vmatpush.bf16.msra.mxu0 %v656
    %820 = vmatpush.bf16.msra.mxu0 %v652
    %821 = vmatpush.bf16.msra.mxu0 %v648
    %822 = vmatpush.bf16.msra.mxu0 %v644
    %823 = vmatpush.bf16.msra.mxu0 %v640
    %824 = vmatmul.bf16.gmra.mxu0 %v272
    %v825 = vpop.f32.mrf.mxu0
    %v826 = vadd.f32 %v802, %v825
    %v827 = vpop.f32.mrf.mxu0
    %v828 = vadd.f32 %v804, %v827
    %829 = vmatmul.bf16.gmra.mxu0 %v275
    %v830 = vpop.f32.mrf.mxu0
    %v831 = vadd.f32 %v807, %v830
    %v832 = vpop.f32.mrf.mxu0
    %v833 = vadd.f32 %v809, %v832
    %834 = vmatmul.bf16.gmra.mxu0 %v278
    %v835 = vpop.f32.mrf.mxu0
    %v836 = vadd.f32 %v812, %v835
    %v837 = vpop.f32.mrf.mxu0
    %v838 = vadd.f32 %v814, %v837
    %839 = vdwg.mxu0
    %840 = vmatpush.bf16.msra.mxu0 %v605
    %841 = vmatpush.bf16.msra.mxu0 %v601
    %842 = vmatpush.bf16.msra.mxu0 %v597
    %843 = vmatpush.bf16.msra.mxu0 %v593
    %844 = vmatpush.bf16.msra.mxu0 %v589
    %845 = vmatpush.bf16.msra.mxu0 %v585
    %846 = vmatpush.bf16.msra.mxu0 %v581
    %847 = vmatpush.bf16.msra.mxu0 %v577
    %848 = vmatmul.bf16.gmra.mxu0 %v270
    %v849 = vpop.f32.mrf.mxu0
    %v850 = vadd.f32 %v233, %v849
    %v851 = vpop.f32.mrf.mxu0
    %v852 = vadd.f32 %v233, %v851
    %853 = vmatmul.bf16.gmra.mxu0 %v273
    %v854 = vpop.f32.mrf.mxu0
    %v855 = vadd.f32 %v233, %v854
    %v856 = vpop.f32.mrf.mxu0
    %v857 = vadd.f32 %v233, %v856
    %858 = vmatmul.bf16.gmra.mxu0 %v276
    %v859 = vpop.f32.mrf.mxu0
    %v860 = vadd.f32 %v233, %v859
    %v861 = vpop.f32.mrf.mxu0
    %v862 = vadd.f32 %v233, %v861
    %863 = vdwg.mxu0
    %864 = vmatpush.bf16.msra.mxu0 %v637
    %865 = vmatpush.bf16.msra.mxu0 %v633
    %866 = vmatpush.bf16.msra.mxu0 %v629
    %867 = vmatpush.bf16.msra.mxu0 %v625
    %868 = vmatpush.bf16.msra.mxu0 %v621
    %869 = vmatpush.bf16.msra.mxu0 %v617
    %870 = vmatpush.bf16.msra.mxu0 %v613
    %871 = vmatpush.bf16.msra.mxu0 %v609
    %872 = vmatmul.bf16.gmra.mxu0 %v271
    %v873 = vpop.f32.mrf.mxu0
    %v874 = vadd.f32 %v850, %v873
    %v875 = vpop.f32.mrf.mxu0
    %v876 = vadd.f32 %v852, %v875
    %877 = vmatmul.bf16.gmra.mxu0 %v274
    %v878 = vpop.f32.mrf.mxu0
    %v879 = vadd.f32 %v855, %v878
    %v880 = vpop.f32.mrf.mxu0
    %v881 = vadd.f32 %v857, %v880
    %882 = vmatmul.bf16.gmra.mxu0 %v277
    %v883 = vpop.f32.mrf.mxu0
    %v884 = vadd.f32 %v860, %v883
    %v885 = vpop.f32.mrf.mxu0
    %v886 = vadd.f32 %v862, %v885
    %887 = vdwg.mxu0
    %888 = vmatpush.bf16.msra.mxu0 %v669
    %889 = vmatpush.bf16.msra.mxu0 %v665
    %890 = vmatpush.bf16.msra.mxu0 %v661
    %891 = vmatpush.bf16.msra.mxu0 %v657
    %892 = vmatpush.bf16.msra.mxu0 %v653
    %893 = vmatpush.bf16.msra.mxu0 %v649
    %894 = vmatpush.bf16.msra.mxu0 %v645
    %895 = vmatpush.bf16.msra.mxu0 %v641
    %896 = vmatmul.bf16.gmra.mxu0 %v272
    %v897 = vpop.f32.mrf.mxu0
    %v898 = vadd.f32 %v874, %v897
    %v899 = vpop.f32.mrf.mxu0
    %v900 = vadd.f32 %v876, %v899
    %901 = vmatmul.bf16.gmra.mxu0 %v275
    %v902 = vpop.f32.mrf.mxu0
    %v903 = vadd.f32 %v879, %v902
    %v904 = vpop.f32.mrf.mxu0
    %v905 = vadd.f32 %v881, %v904
    %906 = vmatmul.bf16.gmra.mxu0 %v278
    %v907 = vpop.f32.mrf.mxu0
    %v908 = vadd.f32 %v884, %v907
    %v909 = vpop.f32.mrf.mxu0
    %v910 = vadd.f32 %v886, %v909
    %911 = vdwg.mxu0
    %912 = vmatpush.bf16.msra.mxu0 %v606
    %913 = vmatpush.bf16.msra.mxu0 %v602
    %914 = vmatpush.bf16.msra.mxu0 %v598
    %915 = vmatpush.bf16.msra.mxu0 %v594
    %916 = vmatpush.bf16.msra.mxu0 %v590
    %917 = vmatpush.bf16.msra.mxu0 %v586
    %918 = vmatpush.bf16.msra.mxu0 %v582
    %919 = vmatpush.bf16.msra.mxu0 %v578
    %920 = vmatmul.bf16.gmra.mxu0 %v270
    %v921 = vpop.f32.mrf.mxu0
    %v922 = vadd.f32 %v234, %v921
    %v923 = vpop.f32.mrf.mxu0
    %v924 = vadd.f32 %v234, %v923
    %925 = vmatmul.bf16.gmra.mxu0 %v273
    %v926 = vpop.f32.mrf.mxu0
    %v927 = vadd.f32 %v234, %v926
    %v928 = vpop.f32.mrf.mxu0
    %v929 = vadd.f32 %v234, %v928
    %930 = vmatmul.bf16.gmra.mxu0 %v276
    %v931 = vpop.f32.mrf.mxu0
    %v932 = vadd.f32 %v234, %v931
    %v933 = vpop.f32.mrf.mxu0
    %v934 = vadd.f32 %v234, %v933
    %935 = vdwg.mxu0
    %936 = vmatpush.bf16.msra.mxu0 %v638
    %937 = vmatpush.bf16.msra.mxu0 %v634
    %938 = vmatpush.bf16.msra.mxu0 %v630
    %939 = vmatpush.bf16.msra.mxu0 %v626
    %940 = vmatpush.bf16.msra.mxu0 %v622
    %941 = vmatpush.bf16.msra.mxu0 %v618
    %942 = vmatpush.bf16.msra.mxu0 %v614
    %943 = vmatpush.bf16.msra.mxu0 %v610
    %944 = vmatmul.bf16.gmra.mxu0 %v271
    %v945 = vpop.f32.mrf.mxu0
    %v946 = vadd.f32 %v922, %v945
    %v947 = vpop.f32.mrf.mxu0
    %v948 = vadd.f32 %v924, %v947
    %949 = vmatmul.bf16.gmra.mxu0 %v274
    %v950 = vpop.f32.mrf.mxu0
    %v951 = vadd.f32 %v927, %v950
    %v952 = vpop.f32.mrf.mxu0
    %v953 = vadd.f32 %v929, %v952
    %954 = vmatmul.bf16.gmra.mxu0 %v277
    %v955 = vpop.f32.mrf.mxu0
    %v956 = vadd.f32 %v932, %v955
    %v957 = vpop.f32.mrf.mxu0
    %v958 = vadd.f32 %v934, %v957
    %959 = vdwg.mxu0
    %960 = vmatpush.bf16.msra.mxu0 %v670
    %961 = vmatpush.bf16.msra.mxu0 %v666
    %962 = vmatpush.bf16.msra.mxu0 %v662
    %963 = vmatpush.bf16.msra.mxu0 %v658
    %964 = vmatpush.bf16.msra.mxu0 %v654
    %965 = vmatpush.bf16.msra.mxu0 %v650
    %966 = vmatpush.bf16.msra.mxu0 %v646
    %967 = vmatpush.bf16.msra.mxu0 %v642
    %968 = vmatmul.bf16.gmra.mxu0 %v272
    %v969 = vpop.f32.mrf.mxu0
    %v970 = vadd.f32 %v946, %v969
    %v971 = vpop.f32.mrf.mxu0
    %v972 = vadd.f32 %v948, %v971
    %973 = vmatmul.bf16.gmra.mxu0 %v275
    %v974 = vpop.f32.mrf.mxu0
    %v975 = vadd.f32 %v951, %v974
    %v976 = vpop.f32.mrf.mxu0
    %v977 = vadd.f32 %v953, %v976
    %978 = vmatmul.bf16.gmra.mxu0 %v278
    %v979 = vpop.f32.mrf.mxu0
    %v980 = vadd.f32 %v956, %v979
    %v981 = vpop.f32.mrf.mxu0
    %v982 = vadd.f32 %v958, %v981
    %983 = vdwg.mxu0
    %984 = vmatpush.bf16.msra.mxu0 %v607
    %985 = vmatpush.bf16.msra.mxu0 %v603
    %986 = vmatpush.bf16.msra.mxu0 %v599
    %987 = vmatpush.bf16.msra.mxu0 %v595
    %988 = vmatpush.bf16.msra.mxu0 %v591
    %989 = vmatpush.bf16.msra.mxu0 %v587
    %990 = vmatpush.bf16.msra.mxu0 %v583
    %991 = vmatpush.bf16.msra.mxu0 %v579
    %992 = vmatmul.bf16.gmra.mxu0 %v270
    %v993 = vpop.f32.mrf.mxu0
    %v994 = vadd.f32 %v235, %v993
    %v995 = vpop.f32.mrf.mxu0
    %v996 = vadd.f32 %v235, %v995
    %997 = vmatmul.bf16.gmra.mxu0 %v273
    %v998 = vpop.f32.mrf.mxu0
    %v999 = vadd.f32 %v235, %v998
    %v1000 = vpop.f32.mrf.mxu0
    %v1001 = vadd.f32 %v235, %v1000
    %1002 = vmatmul.bf16.gmra.mxu0 %v276
    %v1003 = vpop.f32.mrf.mxu0
    %v1004 = vadd.f32 %v235, %v1003
    %v1005 = vpop.f32.mrf.mxu0
    %v1006 = vadd.f32 %v235, %v1005
    %1007 = vdwg.mxu0
    %1008 = vmatpush.bf16.msra.mxu0 %v639
    %1009 = vmatpush.bf16.msra.mxu0 %v635
    %1010 = vmatpush.bf16.msra.mxu0 %v631
    %1011 = vmatpush.bf16.msra.mxu0 %v627
    %1012 = vmatpush.bf16.msra.mxu0 %v623
    %1013 = vmatpush.bf16.msra.mxu0 %v619
    %1014 = vmatpush.bf16.msra.mxu0 %v615
    %1015 = vmatpush.bf16.msra.mxu0 %v611
    %1016 = vmatmul.bf16.gmra.mxu0 %v271
    %v1017 = vpop.f32.mrf.mxu0
    %v1018 = vadd.f32 %v994, %v1017
    %v1019 = vpop.f32.mrf.mxu0
    %v1020 = vadd.f32 %v996, %v1019
    %1021 = vmatmul.bf16.gmra.mxu0 %v274
    %v1022 = vpop.f32.mrf.mxu0
    %v1023 = vadd.f32 %v999, %v1022
    %v1024 = vpop.f32.mrf.mxu0
    %v1025 = vadd.f32 %v1001, %v1024
    %1026 = vmatmul.bf16.gmra.mxu0 %v277
    %v1027 = vpop.f32.mrf.mxu0
    %v1028 = vadd.f32 %v1004, %v1027
    %v1029 = vpop.f32.mrf.mxu0
    %v1030 = vadd.f32 %v1006, %v1029
    %1031 = vdwg.mxu0
    %1032 = vmatpush.bf16.msra.mxu0 %v671
    %1033 = vmatpush.bf16.msra.mxu0 %v667
    %1034 = vmatpush.bf16.msra.mxu0 %v663
    %1035 = vmatpush.bf16.msra.mxu0 %v659
    %1036 = vmatpush.bf16.msra.mxu0 %v655
    %1037 = vmatpush.bf16.msra.mxu0 %v651
    %1038 = vmatpush.bf16.msra.mxu0 %v647
    %1039 = vmatpush.bf16.msra.mxu0 %v643
    %1040 = vmatmul.bf16.gmra.mxu0 %v272
    %v1041 = vpop.f32.mrf.mxu0
    %v1042 = vadd.f32 %v1018, %v1041
    %v1043 = vpop.f32.mrf.mxu0
    %v1044 = vadd.f32 %v1020, %v1043
    %1045 = vmatmul.bf16.gmra.mxu0 %v275
    %v1046 = vpop.f32.mrf.mxu0
    %v1047 = vadd.f32 %v1023, %v1046
    %v1048 = vpop.f32.mrf.mxu0
    %v1049 = vadd.f32 %v1025, %v1048
    %1050 = vmatmul.bf16.gmra.mxu0 %v278
    %v1051 = vpop.f32.mrf.mxu0
    %v1052 = vadd.f32 %v1028, %v1051
    %v1053 = vpop.f32.mrf.mxu0
    %v1054 = vadd.f32 %v1030, %v1053
    %1055 = vdwg.mxu0
    %1056 = vst [vmem:[#allocation2] sm:$0xff] %v826
    %1057 = vst [vmem:[#allocation2 + $0x8] sm:$0xff] %v898
    %1058 = vst [vmem:[#allocation2 + $0x10] sm:$0xff] %v970
    %1059 = vst [vmem:[#allocation2 + $0x18] sm:$0xff] %v1042
    %1060 = vst [vmem:[#allocation2 + $0x20] sm:$0xff] %v828
    %1061 = vst [vmem:[#allocation2 + $0x28] sm:$0xff] %v900
    %1062 = vst [vmem:[#allocation2 + $0x30] sm:$0xff] %v972
    %1063 = vst [vmem:[#allocation2 + $0x38] sm:$0xff] %v1044
    %1064 = vst [vmem:[#allocation2 + $0x40] sm:$0xff] %v831
    %1065 = vst [vmem:[#allocation2 + $0x48] sm:$0xff] %v903
    %1066 = vst [vmem:[#allocation2 + $0x50] sm:$0xff] %v975
    %1067 = vst [vmem:[#allocation2 + $0x58] sm:$0xff] %v1047
    %1068 = vst [vmem:[#allocation2 + $0x60] sm:$0xff] %v833
    %1069 = vst [vmem:[#allocation2 + $0x68] sm:$0xff] %v905
    %1070 = vst [vmem:[#allocation2 + $0x70] sm:$0xff] %v977
    %1071 = vst [vmem:[#allocation2 + $0x78] sm:$0xff] %v1049
    %1072 = vst [vmem:[#allocation2 + $0x80] sm:$0xff] %v836
    %1073 = vst [vmem:[#allocation2 + $0x88] sm:$0xff] %v908
    %1074 = vst [vmem:[#allocation2 + $0x90] sm:$0xff] %v980
    %1075 = vst [vmem:[#allocation2 + $0x98] sm:$0xff] %v1052
    %1076 = vst [vmem:[#allocation2 + $0xa0] sm:$0xff] %v838
    %1077 = vst [vmem:[#allocation2 + $0xa8] sm:$0xff] %v910
    %1078 = vst [vmem:[#allocation2 + $0xb0] sm:$0xff] %v982
    %1079 = vst [vmem:[#allocation2 + $0xb8] sm:$0xff] %v1054
    %v1080 = vld [vmem:[#allocation10] sm:$0xff]
    %v1081 = vld [vmem:[#allocation10 + $0x8] sm:$0xff]
    %v1082 = vld [vmem:[#allocation10 + $0x10] sm:$0xff]
    %v1083 = vld [vmem:[#allocation10 + $0x18] sm:$0xff]
    %v1084 = vld [vmem:[#allocation10 + $0x20] sm:$0xff]
    %v1085 = vld [vmem:[#allocation10 + $0x28] sm:$0xff]
    %v1086 = vld [vmem:[#allocation10 + $0x30] sm:$0xff]
    %v1087 = vld [vmem:[#allocation10 + $0x38] sm:$0xff]
    %v1088 = vld [vmem:[#allocation10 + $0x40] sm:$0xff]
    %v1089 = vld [vmem:[#allocation10 + $0x48] sm:$0xff]
    %v1090 = vld [vmem:[#allocation10 + $0x50] sm:$0xff]
    %v1091 = vld [vmem:[#allocation10 + $0x58] sm:$0xff]
    %v1092 = vld [vmem:[#allocation10 + $0x60] sm:$0xff]
    %v1093 = vld [vmem:[#allocation10 + $0x68] sm:$0xff]
    %v1094 = vld [vmem:[#allocation10 + $0x70] sm:$0xff]
    %v1095 = vld [vmem:[#allocation10 + $0x78] sm:$0xff]
    %v1096 = vld [vmem:[#allocation10 + $0x80] sm:$0xff]
    %v1097 = vld [vmem:[#allocation10 + $0x88] sm:$0xff]
    %v1098 = vld [vmem:[#allocation10 + $0x90] sm:$0xff]
    %v1099 = vld [vmem:[#allocation10 + $0x98] sm:$0xff]
    %v1100 = vld [vmem:[#allocation10 + $0xa0] sm:$0xff]
    %v1101 = vld [vmem:[#allocation10 + $0xa8] sm:$0xff]
    %v1102 = vld [vmem:[#allocation10 + $0xb0] sm:$0xff]
    %v1103 = vld [vmem:[#allocation10 + $0xb8] sm:$0xff]
    %v1104 = vld [vmem:[#allocation10 + $0xc0] sm:$0xff]
    %v1105 = vld [vmem:[#allocation10 + $0xc8] sm:$0xff]
    %v1106 = vld [vmem:[#allocation10 + $0xd0] sm:$0xff]
    %v1107 = vld [vmem:[#allocation10 + $0xd8] sm:$0xff]
    %v1108 = vld [vmem:[#allocation10 + $0xe0] sm:$0xff]
    %v1109 = vld [vmem:[#allocation10 + $0xe8] sm:$0xff]
    %v1110 = vld [vmem:[#allocation10 + $0xf0] sm:$0xff]
    %v1111 = vld [vmem:[#allocation10 + $0xf8] sm:$0xff]
    %v1112 = vld [vmem:[#allocation2] sm:$0xff]
    %v1113 = vld [vmem:[#allocation2 + $0x8] sm:$0xff]
    %v1114 = vld [vmem:[#allocation2 + $0x10] sm:$0xff]
    %v1115 = vld [vmem:[#allocation2 + $0x18] sm:$0xff]
    %v1148 = vunpack.c.l.b16 %v1080
    %v1149 = vunpack.c.h.b16 %v1080
    %v1150 = vunpack.c.l.b16 %v1081
    %v1151 = vunpack.c.h.b16 %v1081
    %v1152 = vunpack.c.l.b16 %v1082
    %v1153 = vunpack.c.h.b16 %v1082
    %v1154 = vunpack.c.l.b16 %v1083
    %v1155 = vunpack.c.h.b16 %v1083
    %v1156 = vunpack.c.l.b16 %v1084
    %v1157 = vunpack.c.h.b16 %v1084
    %v1158 = vunpack.c.l.b16 %v1085
    %v1159 = vunpack.c.h.b16 %v1085
    %v1160 = vunpack.c.l.b16 %v1086
    %v1161 = vunpack.c.h.b16 %v1086
    %v1162 = vunpack.c.l.b16 %v1087
    %v1163 = vunpack.c.h.b16 %v1087
    %v1164 = vunpack.c.l.b16 %v1088
    %v1165 = vunpack.c.h.b16 %v1088
    %v1166 = vunpack.c.l.b16 %v1089
    %v1167 = vunpack.c.h.b16 %v1089
    %v1168 = vunpack.c.l.b16 %v1090
    %v1169 = vunpack.c.h.b16 %v1090
    %v1170 = vunpack.c.l.b16 %v1091
    %v1171 = vunpack.c.h.b16 %v1091
    %v1172 = vunpack.c.l.b16 %v1092
    %v1173 = vunpack.c.h.b16 %v1092
    %v1174 = vunpack.c.l.b16 %v1093
    %v1175 = vunpack.c.h.b16 %v1093
    %v1176 = vunpack.c.l.b16 %v1094
    %v1177 = vunpack.c.h.b16 %v1094
    %v1178 = vunpack.c.l.b16 %v1095
    %v1179 = vunpack.c.h.b16 %v1095
    %v1180 = vunpack.c.l.b16 %v1096
    %v1181 = vunpack.c.h.b16 %v1096
    %v1182 = vunpack.c.l.b16 %v1097
    %v1183 = vunpack.c.h.b16 %v1097
    %v1184 = vunpack.c.l.b16 %v1098
    %v1185 = vunpack.c.h.b16 %v1098
    %v1186 = vunpack.c.l.b16 %v1099
    %v1187 = vunpack.c.h.b16 %v1099
    %v1188 = vunpack.c.l.b16 %v1100
    %v1189 = vunpack.c.h.b16 %v1100
    %v1190 = vunpack.c.l.b16 %v1101
    %v1191 = vunpack.c.h.b16 %v1101
    %v1192 = vunpack.c.l.b16 %v1102
    %v1193 = vunpack.c.h.b16 %v1102
    %v1194 = vunpack.c.l.b16 %v1103
    %v1195 = vunpack.c.h.b16 %v1103
    %v1196 = vunpack.c.l.b16 %v1104
    %v1197 = vunpack.c.h.b16 %v1104
    %v1198 = vunpack.c.l.b16 %v1105
    %v1199 = vunpack.c.h.b16 %v1105
    %v1200 = vunpack.c.l.b16 %v1106
    %v1201 = vunpack.c.h.b16 %v1106
    %v1202 = vunpack.c.l.b16 %v1107
    %v1203 = vunpack.c.h.b16 %v1107
    %v1204 = vunpack.c.l.b16 %v1108
    %v1205 = vunpack.c.h.b16 %v1108
    %v1206 = vunpack.c.l.b16 %v1109
    %v1207 = vunpack.c.h.b16 %v1109
    %v1208 = vunpack.c.l.b16 %v1110
    %v1209 = vunpack.c.h.b16 %v1110
    %v1210 = vunpack.c.l.b16 %v1111
    %v1211 = vunpack.c.h.b16 %v1111
    %v1212 = vpack.c.b16 %v1152, %v1148
    %v1213 = vpack.c.b16 %v1153, %v1149
    %v1214 = vpack.c.b16 %v1154, %v1150
    %v1215 = vpack.c.b16 %v1155, %v1151
    %v1216 = vpack.c.b16 %v1160, %v1156
    %v1217 = vpack.c.b16 %v1161, %v1157
    %v1218 = vpack.c.b16 %v1162, %v1158
    %v1219 = vpack.c.b16 %v1163, %v1159
    %v1220 = vpack.c.b16 %v1168, %v1164
    %v1221 = vpack.c.b16 %v1169, %v1165
    %v1222 = vpack.c.b16 %v1170, %v1166
    %v1223 = vpack.c.b16 %v1171, %v1167
    %v1224 = vpack.c.b16 %v1176, %v1172
    %v1225 = vpack.c.b16 %v1177, %v1173
    %v1226 = vpack.c.b16 %v1178, %v1174
    %v1227 = vpack.c.b16 %v1179, %v1175
    %v1228 = vpack.c.b16 %v1184, %v1180
    %v1229 = vpack.c.b16 %v1185, %v1181
    %v1230 = vpack.c.b16 %v1186, %v1182
    %v1231 = vpack.c.b16 %v1187, %v1183
    %v1232 = vpack.c.b16 %v1192, %v1188
    %v1233 = vpack.c.b16 %v1193, %v1189
    %v1234 = vpack.c.b16 %v1194, %v1190
    %v1235 = vpack.c.b16 %v1195, %v1191
    %v1236 = vpack.c.b16 %v1200, %v1196
    %v1237 = vpack.c.b16 %v1201, %v1197
    %v1238 = vpack.c.b16 %v1202, %v1198
    %v1239 = vpack.c.b16 %v1203, %v1199
    %v1240 = vpack.c.b16 %v1208, %v1204
    %v1241 = vpack.c.b16 %v1209, %v1205
    %v1242 = vpack.c.b16 %v1210, %v1206
    %v1243 = vpack.c.b16 %v1211, %v1207
    %1276 = vmatpush.bf16.msra.mxu0 %v1240
    %1277 = vmatpush.bf16.msra.mxu0 %v1236
    %1278 = vmatpush.bf16.msra.mxu0 %v1232
    %1279 = vmatpush.bf16.msra.mxu0 %v1228
    %1280 = vmatpush.bf16.msra.mxu0 %v1224
    %1281 = vmatpush.bf16.msra.mxu0 %v1220
    %1282 = vmatpush.bf16.msra.mxu0 %v1216
    %1283 = vmatpush.bf16.msra.mxu0 %v1212
    %1284 = vmatmul.bf16.gmra.mxu0 0
    %v1285 = vpop.f32.mrf.mxu0
    %v1286 = vadd.f32 0.0, %v1285
    %v1287 = vpop.f32.mrf.mxu0
    %1288 = vdwg.mxu0
    %1289 = vmatpush.bf16.msra.mxu0 %v1241
    %1290 = vmatpush.bf16.msra.mxu0 %v1237
    %1291 = vmatpush.bf16.msra.mxu0 %v1233
    %1292 = vmatpush.bf16.msra.mxu0 %v1229
    %1293 = vmatpush.bf16.msra.mxu0 %v1225
    %1294 = vmatpush.bf16.msra.mxu0 %v1221
    %1295 = vmatpush.bf16.msra.mxu0 %v1217
    %1296 = vmatpush.bf16.msra.mxu0 %v1213
    %1297 = vmatmul.bf16.gmra.mxu0 0
    %v1298 = vpop.f32.mrf.mxu0
    %v1299 = vadd.f32 0.0, %v1298
    %v1300 = vpop.f32.mrf.mxu0
    %1301 = vdwg.mxu0
    %1302 = vmatpush.bf16.msra.mxu0 %v1242
    %1303 = vmatpush.bf16.msra.mxu0 %v1238
    %1304 = vmatpush.bf16.msra.mxu0 %v1234
    %1305 = vmatpush.bf16.msra.mxu0 %v1230
    %1306 = vmatpush.bf16.msra.mxu0 %v1226
    %1307 = vmatpush.bf16.msra.mxu0 %v1222
    %1308 = vmatpush.bf16.msra.mxu0 %v1218
    %1309 = vmatpush.bf16.msra.mxu0 %v1214
    %1310 = vmatmul.bf16.gmra.mxu0 0
    %v1311 = vpop.f32.mrf.mxu0
    %v1312 = vadd.f32 0.0, %v1311
    %v1313 = vpop.f32.mrf.mxu0
    %1314 = vdwg.mxu0
    %1315 = vmatpush.bf16.msra.mxu0 %v1243
    %1316 = vmatpush.bf16.msra.mxu0 %v1239
    %1317 = vmatpush.bf16.msra.mxu0 %v1235
    %1318 = vmatpush.bf16.msra.mxu0 %v1231
    %1319 = vmatpush.bf16.msra.mxu0 %v1227
    %1320 = vmatpush.bf16.msra.mxu0 %v1223
    %1321 = vmatpush.bf16.msra.mxu0 %v1219
    %1322 = vmatpush.bf16.msra.mxu0 %v1215
    %1323 = vmatmul.bf16.gmra.mxu0 0
    %v1324 = vpop.f32.mrf.mxu0
    %v1325 = vadd.f32 0.0, %v1324
    %v1326 = vpop.f32.mrf.mxu0
    %1327 = vdwg.mxu0
    %v1328 = vadd.f32 %v1112, %v1286
    %v1329 = vadd.f32 %v1113, %v1299
    %v1330 = vadd.f32 %v1114, %v1312
    %v1331 = vadd.f32 %v1115, %v1325
    %v1332 = vxor.u32 %v1328, 2147483648
    %v1333 = vxor.u32 %v1329, 2147483648
    %v1334 = vxor.u32 %v1330, 2147483648
    %v1335 = vmul.f32 %v1332, 1.442695
    %v1336 = vpow.pop %v1335
    %v1337 = vmul.f32 %v1333, 1.442695
    %v1338 = vpow.pop %v1337
    %v1339 = vmul.f32 %v1334, 1.442695
    %v1340 = vpow.pop %v1339
    %v1341 = vadd.f32 %v1336, 1.0
    %v1342 = vadd.f32 %v1338, 1.0
    %v1343 = vadd.f32 %v1340, 1.0
    %v1344 = vrcp.pop %v1341
    %v1345 = vmul.f32 %v1341, %v1344
    %v1346 = vsub.f32 1.0, %v1345
    %v1347 = vmul.f32 %v1344, %v1346
    %v1348 = vadd.f32 %v1344, %v1347
    %vm1349 = vweird.f32 %v1341
    %vm1350 = vweird.f32 %v1344
    %vm1351 = vmor %vm1349, %vm1350
    %v1352 = vsel %vm1351, %v1344, %v1348
    %v1353 = vand.u32 2147483647, %v1341
    %vm1354 = vcmp.eq.f32.partialorder %v1353, 8.507059e+37
    %v1355 = vand.u32 %v1341, 2147483648
    %v1356 = vor.u32 1.1754944e-38, %v1355
    %v1357 = vsel %vm1354, %v1356, %v1352
    %v1358 = vmul.f32 1.0, %v1357
    %v1359 = vrcp.pop %v1342
    %v1360 = vmul.f32 %v1342, %v1359
    %v1361 = vsub.f32 1.0, %v1360
    %v1362 = vmul.f32 %v1359, %v1361
    %v1363 = vadd.f32 %v1359, %v1362
    %vm1364 = vweird.f32 %v1342
    %vm1365 = vweird.f32 %v1359
    %vm1366 = vmor %vm1364, %vm1365
    %v1367 = vsel %vm1366, %v1359, %v1363
    %v1368 = vand.u32 2147483647, %v1342
    %vm1369 = vcmp.eq.f32.partialorder %v1368, 8.507059e+37
    %v1370 = vand.u32 %v1342, 2147483648
    %v1371 = vor.u32 1.1754944e-38, %v1370
    %v1372 = vsel %vm1369, %v1371, %v1367
    %v1373 = vmul.f32 1.0, %v1372
    %v1374 = vrcp.pop %v1343
    %v1375 = vmul.f32 %v1343, %v1374
    %v1376 = vsub.f32 1.0, %v1375
    %v1377 = vmul.f32 %v1374, %v1376
    %v1378 = vadd.f32 %v1374, %v1377
    %vm1379 = vweird.f32 %v1343
    %vm1380 = vweird.f32 %v1374
    %vm1381 = vmor %vm1379, %vm1380
    %v1382 = vsel %vm1381, %v1374, %v1378
    %v1383 = vand.u32 2147483647, %v1343
    %vm1384 = vcmp.eq.f32.partialorder %v1383, 8.507059e+37
    %v1385 = vand.u32 %v1343, 2147483648
    %v1386 = vor.u32 1.1754944e-38, %v1385
    %v1387 = vsel %vm1384, %v1386, %v1382
    %v1388 = vmul.f32 1.0, %v1387
    %v1389 = vtanh.pop %v1331
    %v1390 = vmul.f32 %v1373, 0.0
    %v1391 = vmul.f32 %v1358, %v1389
    %v1392 = vadd.f32 %v1390, %v1391
    %v1393 = vtanh.pop %v1392
    %v1394 = vmul.f32 %v1388, %v1393
    %1395 = vst [vmem:[#allocation3] sm:$0xff] %v1394
    %s1396 = scalar_lea.vmem [#allocation2], 32
    %v1397 = vld [vmem:[%s1396] sm:$0xff]
    %v1398 = vld [vmem:[%s1396 + $0x8] sm:$0xff]
    %v1399 = vld [vmem:[%s1396 + $0x10] sm:$0xff]
    %v1400 = vld [vmem:[%s1396 + $0x18] sm:$0xff]
    %v1401 = vpack.c.bf16 %v1394, %v1394
    %1402 = vmatpush.bf16.msra.mxu0 %v1240
    %1403 = vmatpush.bf16.msra.mxu0 %v1236
    %1404 = vmatpush.bf16.msra.mxu0 %v1232
    %1405 = vmatpush.bf16.msra.mxu0 %v1228
    %1406 = vmatpush.bf16.msra.mxu0 %v1224
    %1407 = vmatpush.bf16.msra.mxu0 %v1220
    %1408 = vmatpush.bf16.msra.mxu0 %v1216
    %1409 = vmatpush.bf16.msra.mxu0 %v1212
    %1410 = vmatmul.bf16.gmra.mxu0 %v1401
    %v1411 = vpop.f32.mrf.mxu0
    %v1412 = vadd.f32 0.0, %v1411
    %v1413 = vpop.f32.mrf.mxu0
    %1414 = vdwg.mxu0
    %1415 = vmatpush.bf16.msra.mxu0 %v1241
    %1416 = vmatpush.bf16.msra.mxu0 %v1237
    %1417 = vmatpush.bf16.msra.mxu0 %v1233
    %1418 = vmatpush.bf16.msra.mxu0 %v1229
    %1419 = vmatpush.bf16.msra.mxu0 %v1225
    %1420 = vmatpush.bf16.msra.mxu0 %v1221
    %1421 = vmatpush.bf16.msra.mxu0 %v1217
    %1422 = vmatpush.bf16.msra.mxu0 %v1213
    %1423 = vmatmul.bf16.gmra.mxu0 %v1401
    %v1424 = vpop.f32.mrf.mxu0
    %v1425 = vadd.f32 0.0, %v1424
    %v1426 = vpop.f32.mrf.mxu0
    %1427 = vdwg.mxu0
    %1428 = vmatpush.bf16.msra.mxu0 %v1242
    %1429 = vmatpush.bf16.msra.mxu0 %v1238
    %1430 = vmatpush.bf16.msra.mxu0 %v1234
    %1431 = vmatpush.bf16.msra.mxu0 %v1230
    %1432 = vmatpush.bf16.msra.mxu0 %v1226
    %1433 = vmatpush.bf16.msra.mxu0 %v1222
    %1434 = vmatpush.bf16.msra.mxu0 %v1218
    %1435 = vmatpush.bf16.msra.mxu0 %v1214
    %1436 = vmatmul.bf16.gmra.mxu0 %v1401
    %v1437 = vpop.f32.mrf.mxu0
    %v1438 = vadd.f32 0.0, %v1437
    %v1439 = vpop.f32.mrf.mxu0
    %1440 = vdwg.mxu0
    %1441 = vmatpush.bf16.msra.mxu0 %v1243
    %1442 = vmatpush.bf16.msra.mxu0 %v1239
    %1443 = vmatpush.bf16.msra.mxu0 %v1235
    %1444 = vmatpush.bf16.msra.mxu0 %v1231
    %1445 = vmatpush.bf16.msra.mxu0 %v1227
    %1446 = vmatpush.bf16.msra.mxu0 %v1223
    %1447 = vmatpush.bf16.msra.mxu0 %v1219
    %1448 = vmatpush.bf16.msra.mxu0 %v1215
    %1449 = vmatmul.bf16.gmra.mxu0 %v1401
    %v1450 = vpop.f32.mrf.mxu0
    %v1451 = vadd.f32 0.0, %v1450
    %v1452 = vpop.f32.mrf.mxu0
    %1453 = vdwg.mxu0
    %v1454 = vadd.f32 %v1397, %v1412
    %v1455 = vadd.f32 %v1398, %v1425
    %v1456 = vadd.f32 %v1399, %v1438
    %v1457 = vadd.f32 %v1400, %v1451
    %v1458 = vxor.u32 %v1454, 2147483648
    %v1459 = vxor.u32 %v1455, 2147483648
    %v1460 = vxor.u32 %v1456, 2147483648
    %v1461 = vmul.f32 %v1458, 1.442695
    %v1462 = vpow.pop %v1461
    %v1463 = vmul.f32 %v1459, 1.442695
    %v1464 = vpow.pop %v1463
    %v1465 = vmul.f32 %v1460, 1.442695
    %v1466 = vpow.pop %v1465
    %v1467 = vadd.f32 %v1462, 1.0
    %v1468 = vadd.f32 %v1464, 1.0
    %v1469 = vadd.f32 %v1466, 1.0
    %v1470 = vrcp.pop %v1467
    %v1471 = vmul.f32 %v1467, %v1470
    %v1472 = vsub.f32 1.0, %v1471
    %v1473 = vmul.f32 %v1470, %v1472
    %v1474 = vadd.f32 %v1470, %v1473
    %vm1475 = vweird.f32 %v1467
    %vm1476 = vweird.f32 %v1470
    %vm1477 = vmor %vm1475, %vm1476
    %v1478 = vsel %vm1477, %v1470, %v1474
    %v1479 = vand.u32 2147483647, %v1467
    %vm1480 = vcmp.eq.f32.partialorder %v1479, 8.507059e+37
    %v1481 = vand.u32 %v1467, 2147483648
    %v1482 = vor.u32 1.1754944e-38, %v1481
    %v1483 = vsel %vm1480, %v1482, %v1478
    %v1484 = vmul.f32 1.0, %v1483
    %v1485 = vrcp.pop %v1468
    %v1486 = vmul.f32 %v1468, %v1485
    %v1487 = vsub.f32 1.0, %v1486
    %v1488 = vmul.f32 %v1485, %v1487
    %v1489 = vadd.f32 %v1485, %v1488
    %vm1490 = vweird.f32 %v1468
    %vm1491 = vweird.f32 %v1485
    %vm1492 = vmor %vm1490, %vm1491
    %v1493 = vsel %vm1492, %v1485, %v1489
    %v1494 = vand.u32 2147483647, %v1468
    %vm1495 = vcmp.eq.f32.partialorder %v1494, 8.507059e+37
    %v1496 = vand.u32 %v1468, 2147483648
    %v1497 = vor.u32 1.1754944e-38, %v1496
    %v1498 = vsel %vm1495, %v1497, %v1493
    %v1499 = vmul.f32 1.0, %v1498
    %v1500 = vrcp.pop %v1469
    %v1501 = vmul.f32 %v1469, %v1500
    %v1502 = vsub.f32 1.0, %v1501
    %v1503 = vmul.f32 %v1500, %v1502
    %v1504 = vadd.f32 %v1500, %v1503
    %vm1505 = vweird.f32 %v1469
    %vm1506 = vweird.f32 %v1500
    %vm1507 = vmor %vm1505, %vm1506
    %v1508 = vsel %vm1507, %v1500, %v1504
    %v1509 = vand.u32 2147483647, %v1469
    %vm1510 = vcmp.eq.f32.partialorder %v1509, 8.507059e+37
    %v1511 = vand.u32 %v1469, 2147483648
    %v1512 = vor.u32 1.1754944e-38, %v1511
    %v1513 = vsel %vm1510, %v1512, %v1508
    %v1514 = vmul.f32 1.0, %v1513
    %v1515 = vtanh.pop %v1457
    %v1516 = vmul.f32 %v1499, %v1392
    %v1517 = vmul.f32 %v1484, %v1515
    %v1518 = vadd.f32 %v1516, %v1517
    %v1519 = vtanh.pop %v1518
    %v1520 = vmul.f32 %v1514, %v1519
    %s1521 = scalar_lea.vmem [#allocation3], 8
    %1522 = vst [vmem:[%s1521] sm:$0xff] %v1520
    %s1523 = scalar_lea.vmem [#allocation2], 64
    %v1524 = vld [vmem:[%s1523] sm:$0xff]
    %v1525 = vld [vmem:[%s1523 + $0x8] sm:$0xff]
    %v1526 = vld [vmem:[%s1523 + $0x10] sm:$0xff]
    %v1527 = vld [vmem:[%s1523 + $0x18] sm:$0xff]
    %v1528 = vpack.c.bf16 %v1520, %v1520
    %1529 = vmatpush.bf16.msra.mxu0 %v1240
    %1530 = vmatpush.bf16.msra.mxu0 %v1236
    %1531 = vmatpush.bf16.msra.mxu0 %v1232
    %1532 = vmatpush.bf16.msra.mxu0 %v1228
    %1533 = vmatpush.bf16.msra.mxu0 %v1224
    %1534 = vmatpush.bf16.msra.mxu0 %v1220
    %1535 = vmatpush.bf16.msra.mxu0 %v1216
    %1536 = vmatpush.bf16.msra.mxu0 %v1212
    %1537 = vmatmul.bf16.gmra.mxu0 %v1528
    %v1538 = vpop.f32.mrf.mxu0
    %v1539 = vadd.f32 0.0, %v1538
    %v1540 = vpop.f32.mrf.mxu0
    %1541 = vdwg.mxu0
    %1542 = vmatpush.bf16.msra.mxu0 %v1241
    %1543 = vmatpush.bf16.msra.mxu0 %v1237
    %1544 = vmatpush.bf16.msra.mxu0 %v1233
    %1545 = vmatpush.bf16.msra.mxu0 %v1229
    %1546 = vmatpush.bf16.msra.mxu0 %v1225
    %1547 = vmatpush.bf16.msra.mxu0 %v1221
    %1548 = vmatpush.bf16.msra.mxu0 %v1217
    %1549 = vmatpush.bf16.msra.mxu0 %v1213
    %1550 = vmatmul.bf16.gmra.mxu0 %v1528
    %v1551 = vpop.f32.mrf.mxu0
    %v1552 = vadd.f32 0.0, %v1551
    %v1553 = vpop.f32.mrf.mxu0
    %1554 = vdwg.mxu0
    %1555 = vmatpush.bf16.msra.mxu0 %v1242
    %1556 = vmatpush.bf16.msra.mxu0 %v1238
    %1557 = vmatpush.bf16.msra.mxu0 %v1234
    %1558 = vmatpush.bf16.msra.mxu0 %v1230
    %1559 = vmatpush.bf16.msra.mxu0 %v1226
    %1560 = vmatpush.bf16.msra.mxu0 %v1222
    %1561 = vmatpush.bf16.msra.mxu0 %v1218
    %1562 = vmatpush.bf16.msra.mxu0 %v1214
    %1563 = vmatmul.bf16.gmra.mxu0 %v1528
    %v1564 = vpop.f32.mrf.mxu0
    %v1565 = vadd.f32 0.0, %v1564
    %v1566 = vpop.f32.mrf.mxu0
    %1567 = vdwg.mxu0
    %1568 = vmatpush.bf16.msra.mxu0 %v1243
    %1569 = vmatpush.bf16.msra.mxu0 %v1239
    %1570 = vmatpush.bf16.msra.mxu0 %v1235
    %1571 = vmatpush.bf16.msra.mxu0 %v1231
    %1572 = vmatpush.bf16.msra.mxu0 %v1227
    %1573 = vmatpush.bf16.msra.mxu0 %v1223
    %1574 = vmatpush.bf16.msra.mxu0 %v1219
    %1575 = vmatpush.bf16.msra.mxu0 %v1215
    %1576 = vmatmul.bf16.gmra.mxu0 %v1528
    %v1577 = vpop.f32.mrf.mxu0
    %v1578 = vadd.f32 0.0, %v1577
    %v1579 = vpop.f32.mrf.mxu0
    %1580 = vdwg.mxu0
    %v1581 = vadd.f32 %v1524, %v1539
    %v1582 = vadd.f32 %v1525, %v1552
    %v1583 = vadd.f32 %v1526, %v1565
    %v1584 = vadd.f32 %v1527, %v1578
    %v1585 = vxor.u32 %v1581, 2147483648
    %v1586 = vxor.u32 %v1582, 2147483648
    %v1587 = vxor.u32 %v1583, 2147483648
    %v1588 = vmul.f32 %v1585, 1.442695
    %v1589 = vpow.pop %v1588
    %v1590 = vmul.f32 %v1586, 1.442695
    %v1591 = vpow.pop %v1590
    %v1592 = vmul.f32 %v1587, 1.442695
    %v1593 = vpow.pop %v1592
    %v1594 = vadd.f32 %v1589, 1.0
    %v1595 = vadd.f32 %v1591, 1.0
    %v1596 = vadd.f32 %v1593, 1.0
    %v1597 = vrcp.pop %v1594
    %v1598 = vmul.f32 %v1594, %v1597
    %v1599 = vsub.f32 1.0, %v1598
    %v1600 = vmul.f32 %v1597, %v1599
    %v1601 = vadd.f32 %v1597, %v1600
    %vm1602 = vweird.f32 %v1594
    %vm1603 = vweird.f32 %v1597
    %vm1604 = vmor %vm1602, %vm1603
    %v1605 = vsel %vm1604, %v1597, %v1601
    %v1606 = vand.u32 2147483647, %v1594
    %vm1607 = vcmp.eq.f32.partialorder %v1606, 8.507059e+37
    %v1608 = vand.u32 %v1594, 2147483648
    %v1609 = vor.u32 1.1754944e-38, %v1608
    %v1610 = vsel %vm1607, %v1609, %v1605
    %v1611 = vmul.f32 1.0, %v1610
    %v1612 = vrcp.pop %v1595
    %v1613 = vmul.f32 %v1595, %v1612
    %v1614 = vsub.f32 1.0, %v1613
    %v1615 = vmul.f32 %v1612, %v1614
    %v1616 = vadd.f32 %v1612, %v1615
    %vm1617 = vweird.f32 %v1595
    %vm1618 = vweird.f32 %v1612
    %vm1619 = vmor %vm1617, %vm1618
    %v1620 = vsel %vm1619, %v1612, %v1616
    %v1621 = vand.u32 2147483647, %v1595
    %vm1622 = vcmp.eq.f32.partialorder %v1621, 8.507059e+37
    %v1623 = vand.u32 %v1595, 2147483648
    %v1624 = vor.u32 1.1754944e-38, %v1623
    %v1625 = vsel %vm1622, %v1624, %v1620
    %v1626 = vmul.f32 1.0, %v1625
    %v1627 = vrcp.pop %v1596
    %v1628 = vmul.f32 %v1596, %v1627
    %v1629 = vsub.f32 1.0, %v1628
    %v1630 = vmul.f32 %v1627, %v1629
    %v1631 = vadd.f32 %v1627, %v1630
    %vm1632 = vweird.f32 %v1596
    %vm1633 = vweird.f32 %v1627
    %vm1634 = vmor %vm1632, %vm1633
    %v1635 = vsel %vm1634, %v1627, %v1631
    %v1636 = vand.u32 2147483647, %v1596
    %vm1637 = vcmp.eq.f32.partialorder %v1636, 8.507059e+37
    %v1638 = vand.u32 %v1596, 2147483648
    %v1639 = vor.u32 1.1754944e-38, %v1638
    %v1640 = vsel %vm1637, %v1639, %v1635
    %v1641 = vmul.f32 1.0, %v1640
    %v1642 = vtanh.pop %v1584
    %v1643 = vmul.f32 %v1626, %v1518
    %v1644 = vmul.f32 %v1611, %v1642
    %v1645 = vadd.f32 %v1643, %v1644
    %v1646 = vtanh.pop %v1645
    %v1647 = vmul.f32 %v1641, %v1646
    %s1648 = scalar_lea.vmem [#allocation3], 16
    %1649 = vst [vmem:[%s1648] sm:$0xff] %v1647
    %s1650 = scalar_lea.vmem [#allocation2], 96
    %v1651 = vld [vmem:[%s1650] sm:$0xff]
    %v1652 = vld [vmem:[%s1650 + $0x8] sm:$0xff]
    %v1653 = vld [vmem:[%s1650 + $0x10] sm:$0xff]
    %v1654 = vld [vmem:[%s1650 + $0x18] sm:$0xff]
    %v1655 = vpack.c.bf16 %v1647, %v1647
    %1656 = vmatpush.bf16.msra.mxu0 %v1240
    %1657 = vmatpush.bf16.msra.mxu0 %v1236
    %1658 = vmatpush.bf16.msra.mxu0 %v1232
    %1659 = vmatpush.bf16.msra.mxu0 %v1228
    %1660 = vmatpush.bf16.msra.mxu0 %v1224
    %1661 = vmatpush.bf16.msra.mxu0 %v1220
    %1662 = vmatpush.bf16.msra.mxu0 %v1216
    %1663 = vmatpush.bf16.msra.mxu0 %v1212
    %1664 = vmatmul.bf16.gmra.mxu0 %v1655
    %v1665 = vpop.f32.mrf.mxu0
    %v1666 = vadd.f32 0.0, %v1665
    %v1667 = vpop.f32.mrf.mxu0
    %1668 = vdwg.mxu0
    %1669 = vmatpush.bf16.msra.mxu0 %v1241
    %1670 = vmatpush.bf16.msra.mxu0 %v1237
    %1671 = vmatpush.bf16.msra.mxu0 %v1233
    %1672 = vmatpush.bf16.msra.mxu0 %v1229
    %1673 = vmatpush.bf16.msra.mxu0 %v1225
    %1674 = vmatpush.bf16.msra.mxu0 %v1221
    %1675 = vmatpush.bf16.msra.mxu0 %v1217
    %1676 = vmatpush.bf16.msra.mxu0 %v1213
    %1677 = vmatmul.bf16.gmra.mxu0 %v1655
    %v1678 = vpop.f32.mrf.mxu0
    %v1679 = vadd.f32 0.0, %v1678
    %v1680 = vpop.f32.mrf.mxu0
    %1681 = vdwg.mxu0
    %1682 = vmatpush.bf16.msra.mxu0 %v1242
    %1683 = vmatpush.bf16.msra.mxu0 %v1238
    %1684 = vmatpush.bf16.msra.mxu0 %v1234
    %1685 = vmatpush.bf16.msra.mxu0 %v1230
    %1686 = vmatpush.bf16.msra.mxu0 %v1226
    %1687 = vmatpush.bf16.msra.mxu0 %v1222
    %1688 = vmatpush.bf16.msra.mxu0 %v1218
    %1689 = vmatpush.bf16.msra.mxu0 %v1214
    %1690 = vmatmul.bf16.gmra.mxu0 %v1655
    %v1691 = vpop.f32.mrf.mxu0
    %v1692 = vadd.f32 0.0, %v1691
    %v1693 = vpop.f32.mrf.mxu0
    %1694 = vdwg.mxu0
    %1695 = vmatpush.bf16.msra.mxu0 %v1243
    %1696 = vmatpush.bf16.msra.mxu0 %v1239
    %1697 = vmatpush.bf16.msra.mxu0 %v1235
    %1698 = vmatpush.bf16.msra.mxu0 %v1231
    %1699 = vmatpush.bf16.msra.mxu0 %v1227
    %1700 = vmatpush.bf16.msra.mxu0 %v1223
    %1701 = vmatpush.bf16.msra.mxu0 %v1219
    %1702 = vmatpush.bf16.msra.mxu0 %v1215
    %1703 = vmatmul.bf16.gmra.mxu0 %v1655
    %v1704 = vpop.f32.mrf.mxu0
    %v1705 = vadd.f32 0.0, %v1704
    %v1706 = vpop.f32.mrf.mxu0
    %1707 = vdwg.mxu0
    %v1708 = vadd.f32 %v1651, %v1666
    %v1709 = vadd.f32 %v1652, %v1679
    %v1710 = vadd.f32 %v1653, %v1692
    %v1711 = vadd.f32 %v1654, %v1705
    %v1712 = vxor.u32 %v1708, 2147483648
    %v1713 = vxor.u32 %v1709, 2147483648
    %v1714 = vxor.u32 %v1710, 2147483648
    %v1715 = vmul.f32 %v1712, 1.442695
    %v1716 = vpow.pop %v1715
    %v1717 = vmul.f32 %v1713, 1.442695
    %v1718 = vpow.pop %v1717
    %v1719 = vmul.f32 %v1714, 1.442695
    %v1720 = vpow.pop %v1719
    %v1721 = vadd.f32 %v1716, 1.0
    %v1722 = vadd.f32 %v1718, 1.0
    %v1723 = vadd.f32 %v1720, 1.0
    %v1724 = vrcp.pop %v1721
    %v1725 = vmul.f32 %v1721, %v1724
    %v1726 = vsub.f32 1.0, %v1725
    %v1727 = vmul.f32 %v1724, %v1726
    %v1728 = vadd.f32 %v1724, %v1727
    %vm1729 = vweird.f32 %v1721
    %vm1730 = vweird.f32 %v1724
    %vm1731 = vmor %vm1729, %vm1730
    %v1732 = vsel %vm1731, %v1724, %v1728
    %v1733 = vand.u32 2147483647, %v1721
    %vm1734 = vcmp.eq.f32.partialorder %v1733, 8.507059e+37
    %v1735 = vand.u32 %v1721, 2147483648
    %v1736 = vor.u32 1.1754944e-38, %v1735
    %v1737 = vsel %vm1734, %v1736, %v1732
    %v1738 = vmul.f32 1.0, %v1737
    %v1739 = vrcp.pop %v1722
    %v1740 = vmul.f32 %v1722, %v1739
    %v1741 = vsub.f32 1.0, %v1740
    %v1742 = vmul.f32 %v1739, %v1741
    %v1743 = vadd.f32 %v1739, %v1742
    %vm1744 = vweird.f32 %v1722
    %vm1745 = vweird.f32 %v1739
    %vm1746 = vmor %vm1744, %vm1745
    %v1747 = vsel %vm1746, %v1739, %v1743
    %v1748 = vand.u32 2147483647, %v1722
    %vm1749 = vcmp.eq.f32.partialorder %v1748, 8.507059e+37
    %v1750 = vand.u32 %v1722, 2147483648
    %v1751 = vor.u32 1.1754944e-38, %v1750
    %v1752 = vsel %vm1749, %v1751, %v1747
    %v1753 = vmul.f32 1.0, %v1752
    %v1754 = vrcp.pop %v1723
    %v1755 = vmul.f32 %v1723, %v1754
    %v1756 = vsub.f32 1.0, %v1755
    %v1757 = vmul.f32 %v1754, %v1756
    %v1758 = vadd.f32 %v1754, %v1757
    %vm1759 = vweird.f32 %v1723
    %vm1760 = vweird.f32 %v1754
    %vm1761 = vmor %vm1759, %vm1760
    %v1762 = vsel %vm1761, %v1754, %v1758
    %v1763 = vand.u32 2147483647, %v1723
    %vm1764 = vcmp.eq.f32.partialorder %v1763, 8.507059e+37
    %v1765 = vand.u32 %v1723, 2147483648
    %v1766 = vor.u32 1.1754944e-38, %v1765
    %v1767 = vsel %vm1764, %v1766, %v1762
    %v1768 = vmul.f32 1.0, %v1767
    %v1769 = vtanh.pop %v1711
    %v1770 = vmul.f32 %v1753, %v1645
    %v1771 = vmul.f32 %v1738, %v1769
    %v1772 = vadd.f32 %v1770, %v1771
    %v1773 = vtanh.pop %v1772
    %v1774 = vmul.f32 %v1768, %v1773
    %s1775 = scalar_lea.vmem [#allocation3], 24
    %1776 = vst [vmem:[%s1775] sm:$0xff] %v1774
    %s1777 = scalar_lea.vmem [#allocation2], 128
    %v1778 = vld [vmem:[%s1777] sm:$0xff]
    %v1779 = vld [vmem:[%s1777 + $0x8] sm:$0xff]
    %v1780 = vld [vmem:[%s1777 + $0x10] sm:$0xff]
    %v1781 = vld [vmem:[%s1777 + $0x18] sm:$0xff]
    %v1782 = vpack.c.bf16 %v1774, %v1774
    %1783 = vmatpush.bf16.msra.mxu0 %v1240
    %1784 = vmatpush.bf16.msra.mxu0 %v1236
    %1785 = vmatpush.bf16.msra.mxu0 %v1232
    %1786 = vmatpush.bf16.msra.mxu0 %v1228
    %1787 = vmatpush.bf16.msra.mxu0 %v1224
    %1788 = vmatpush.bf16.msra.mxu0 %v1220
    %1789 = vmatpush.bf16.msra.mxu0 %v1216
    %1790 = vmatpush.bf16.msra.mxu0 %v1212
    %1791 = vmatmul.bf16.gmra.mxu0 %v1782
    %v1792 = vpop.f32.mrf.mxu0
    %v1793 = vadd.f32 0.0, %v1792
    %v1794 = vpop.f32.mrf.mxu0
    %1795 = vdwg.mxu0
    %1796 = vmatpush.bf16.msra.mxu0 %v1241
    %1797 = vmatpush.bf16.msra.mxu0 %v1237
    %1798 = vmatpush.bf16.msra.mxu0 %v1233
    %1799 = vmatpush.bf16.msra.mxu0 %v1229
    %1800 = vmatpush.bf16.msra.mxu0 %v1225
    %1801 = vmatpush.bf16.msra.mxu0 %v1221
    %1802 = vmatpush.bf16.msra.mxu0 %v1217
    %1803 = vmatpush.bf16.msra.mxu0 %v1213
    %1804 = vmatmul.bf16.gmra.mxu0 %v1782
    %v1805 = vpop.f32.mrf.mxu0
    %v1806 = vadd.f32 0.0, %v1805
    %v1807 = vpop.f32.mrf.mxu0
    %1808 = vdwg.mxu0
    %1809 = vmatpush.bf16.msra.mxu0 %v1242
    %1810 = vmatpush.bf16.msra.mxu0 %v1238
    %1811 = vmatpush.bf16.msra.mxu0 %v1234
    %1812 = vmatpush.bf16.msra.mxu0 %v1230
    %1813 = vmatpush.bf16.msra.mxu0 %v1226
    %1814 = vmatpush.bf16.msra.mxu0 %v1222
    %1815 = vmatpush.bf16.msra.mxu0 %v1218
    %1816 = vmatpush.bf16.msra.mxu0 %v1214
    %1817 = vmatmul.bf16.gmra.mxu0 %v1782
    %v1818 = vpop.f32.mrf.mxu0
    %v1819 = vadd.f32 0.0, %v1818
    %v1820 = vpop.f32.mrf.mxu0
    %1821 = vdwg.mxu0
    %1822 = vmatpush.bf16.msra.mxu0 %v1243
    %1823 = vmatpush.bf16.msra.mxu0 %v1239
    %1824 = vmatpush.bf16.msra.mxu0 %v1235
    %1825 = vmatpush.bf16.msra.mxu0 %v1231
    %1826 = vmatpush.bf16.msra.mxu0 %v1227
    %1827 = vmatpush.bf16.msra.mxu0 %v1223
    %1828 = vmatpush.bf16.msra.mxu0 %v1219
    %1829 = vmatpush.bf16.msra.mxu0 %v1215
    %1830 = vmatmul.bf16.gmra.mxu0 %v1782
    %v1831 = vpop.f32.mrf.mxu0
    %v1832 = vadd.f32 0.0, %v1831
    %v1833 = vpop.f32.mrf.mxu0
    %1834 = vdwg.mxu0
    %v1835 = vadd.f32 %v1778, %v1793
    %v1836 = vadd.f32 %v1779, %v1806
    %v1837 = vadd.f32 %v1780, %v1819
    %v1838 = vadd.f32 %v1781, %v1832
    %v1839 = vxor.u32 %v1835, 2147483648
    %v1840 = vxor.u32 %v1836, 2147483648
    %v1841 = vxor.u32 %v1837, 2147483648
    %v1842 = vmul.f32 %v1839, 1.442695
    %v1843 = vpow.pop %v1842
    %v1844 = vmul.f32 %v1840, 1.442695
    %v1845 = vpow.pop %v1844
    %v1846 = vmul.f32 %v1841, 1.442695
    %v1847 = vpow.pop %v1846
    %v1848 = vadd.f32 %v1843, 1.0
    %v1849 = vadd.f32 %v1845, 1.0
    %v1850 = vadd.f32 %v1847, 1.0
    %v1851 = vrcp.pop %v1848
    %v1852 = vmul.f32 %v1848, %v1851
    %v1853 = vsub.f32 1.0, %v1852
    %v1854 = vmul.f32 %v1851, %v1853
    %v1855 = vadd.f32 %v1851, %v1854
    %vm1856 = vweird.f32 %v1848
    %vm1857 = vweird.f32 %v1851
    %vm1858 = vmor %vm1856, %vm1857
    %v1859 = vsel %vm1858, %v1851, %v1855
    %v1860 = vand.u32 2147483647, %v1848
    %vm1861 = vcmp.eq.f32.partialorder %v1860, 8.507059e+37
    %v1862 = vand.u32 %v1848, 2147483648
    %v1863 = vor.u32 1.1754944e-38, %v1862
    %v1864 = vsel %vm1861, %v1863, %v1859
    %v1865 = vmul.f32 1.0, %v1864
    %v1866 = vrcp.pop %v1849
    %v1867 = vmul.f32 %v1849, %v1866
    %v1868 = vsub.f32 1.0, %v1867
    %v1869 = vmul.f32 %v1866, %v1868
    %v1870 = vadd.f32 %v1866, %v1869
    %vm1871 = vweird.f32 %v1849
    %vm1872 = vweird.f32 %v1866
    %vm1873 = vmor %vm1871, %vm1872
    %v1874 = vsel %vm1873, %v1866, %v1870
    %v1875 = vand.u32 2147483647, %v1849
    %vm1876 = vcmp.eq.f32.partialorder %v1875, 8.507059e+37
    %v1877 = vand.u32 %v1849, 2147483648
    %v1878 = vor.u32 1.1754944e-38, %v1877
    %v1879 = vsel %vm1876, %v1878, %v1874
    %v1880 = vmul.f32 1.0, %v1879
    %v1881 = vrcp.pop %v1850
    %v1882 = vmul.f32 %v1850, %v1881
    %v1883 = vsub.f32 1.0, %v1882
    %v1884 = vmul.f32 %v1881, %v1883
    %v1885 = vadd.f32 %v1881, %v1884
    %vm1886 = vweird.f32 %v1850
    %vm1887 = vweird.f32 %v1881
    %vm1888 = vmor %vm1886, %vm1887
    %v1889 = vsel %vm1888, %v1881, %v1885
    %v1890 = vand.u32 2147483647, %v1850
    %vm1891 = vcmp.eq.f32.partialorder %v1890, 8.507059e+37
    %v1892 = vand.u32 %v1850, 2147483648
    %v1893 = vor.u32 1.1754944e-38, %v1892
    %v1894 = vsel %vm1891, %v1893, %v1889
    %v1895 = vmul.f32 1.0, %v1894
    %v1896 = vtanh.pop %v1838
    %v1897 = vmul.f32 %v1880, %v1772
    %v1898 = vmul.f32 %v1865, %v1896
    %v1899 = vadd.f32 %v1897, %v1898
    %v1900 = vtanh.pop %v1899
    %v1901 = vmul.f32 %v1895, %v1900
    %s1902 = scalar_lea.vmem [#allocation3], 32
    %1903 = vst [vmem:[%s1902] sm:$0xff] %v1901
    %s1904 = scalar_lea.vmem [#allocation2], 160
    %v1905 = vld [vmem:[%s1904] sm:$0xff]
    %v1906 = vld [vmem:[%s1904 + $0x8] sm:$0xff]
    %v1907 = vld [vmem:[%s1904 + $0x10] sm:$0xff]
    %v1908 = vld [vmem:[%s1904 + $0x18] sm:$0xff]
    %v1909 = vpack.c.bf16 %v1901, %v1901
    %1910 = vmatpush.bf16.msra.mxu0 %v1240
    %1911 = vmatpush.bf16.msra.mxu0 %v1236
    %1912 = vmatpush.bf16.msra.mxu0 %v1232
    %1913 = vmatpush.bf16.msra.mxu0 %v1228
    %1914 = vmatpush.bf16.msra.mxu0 %v1224
    %1915 = vmatpush.bf16.msra.mxu0 %v1220
    %1916 = vmatpush.bf16.msra.mxu0 %v1216
    %1917 = vmatpush.bf16.msra.mxu0 %v1212
    %1918 = vmatmul.bf16.gmra.mxu0 %v1909
    %v1919 = vpop.f32.mrf.mxu0
    %v1920 = vadd.f32 0.0, %v1919
    %v1921 = vpop.f32.mrf.mxu0
    %1922 = vdwg.mxu0
    %1923 = vmatpush.bf16.msra.mxu0 %v1241
    %1924 = vmatpush.bf16.msra.mxu0 %v1237
    %1925 = vmatpush.bf16.msra.mxu0 %v1233
    %1926 = vmatpush.bf16.msra.mxu0 %v1229
    %1927 = vmatpush.bf16.msra.mxu0 %v1225
    %1928 = vmatpush.bf16.msra.mxu0 %v1221
    %1929 = vmatpush.bf16.msra.mxu0 %v1217
    %1930 = vmatpush.bf16.msra.mxu0 %v1213
    %1931 = vmatmul.bf16.gmra.mxu0 %v1909
    %v1932 = vpop.f32.mrf.mxu0
    %v1933 = vadd.f32 0.0, %v1932
    %v1934 = vpop.f32.mrf.mxu0
    %1935 = vdwg.mxu0
    %1936 = vmatpush.bf16.msra.mxu0 %v1242
    %1937 = vmatpush.bf16.msra.mxu0 %v1238
    %1938 = vmatpush.bf16.msra.mxu0 %v1234
    %1939 = vmatpush.bf16.msra.mxu0 %v1230
    %1940 = vmatpush.bf16.msra.mxu0 %v1226
    %1941 = vmatpush.bf16.msra.mxu0 %v1222
    %1942 = vmatpush.bf16.msra.mxu0 %v1218
    %1943 = vmatpush.bf16.msra.mxu0 %v1214
    %1944 = vmatmul.bf16.gmra.mxu0 %v1909
    %v1945 = vpop.f32.mrf.mxu0
    %v1946 = vadd.f32 0.0, %v1945
    %v1947 = vpop.f32.mrf.mxu0
    %1948 = vdwg.mxu0
    %1949 = vmatpush.bf16.msra.mxu0 %v1243
    %1950 = vmatpush.bf16.msra.mxu0 %v1239
    %1951 = vmatpush.bf16.msra.mxu0 %v1235
    %1952 = vmatpush.bf16.msra.mxu0 %v1231
    %1953 = vmatpush.bf16.msra.mxu0 %v1227
    %1954 = vmatpush.bf16.msra.mxu0 %v1223
    %1955 = vmatpush.bf16.msra.mxu0 %v1219
    %1956 = vmatpush.bf16.msra.mxu0 %v1215
    %1957 = vmatmul.bf16.gmra.mxu0 %v1909
    %v1958 = vpop.f32.mrf.mxu0
    %v1959 = vadd.f32 0.0, %v1958
    %v1960 = vpop.f32.mrf.mxu0
    %1961 = vdwg.mxu0
    %v1962 = vadd.f32 %v1905, %v1920
    %v1963 = vadd.f32 %v1906, %v1933
    %v1964 = vadd.f32 %v1907, %v1946
    %v1965 = vadd.f32 %v1908, %v1959
    %v1966 = vxor.u32 %v1962, 2147483648
    %v1967 = vxor.u32 %v1963, 2147483648
    %v1968 = vxor.u32 %v1964, 2147483648
    %v1969 = vmul.f32 %v1966, 1.442695
    %v1970 = vpow.pop %v1969
    %v1971 = vmul.f32 %v1967, 1.442695
    %v1972 = vpow.pop %v1971
    %v1973 = vmul.f32 %v1968, 1.442695
    %v1974 = vpow.pop %v1973
    %v1975 = vadd.f32 %v1970, 1.0
    %v1976 = vadd.f32 %v1972, 1.0
    %v1977 = vadd.f32 %v1974, 1.0
    %v1978 = vrcp.pop %v1975
    %v1979 = vmul.f32 %v1975, %v1978
    %v1980 = vsub.f32 1.0, %v1979
    %v1981 = vmul.f32 %v1978, %v1980
    %v1982 = vadd.f32 %v1978, %v1981
    %vm1983 = vweird.f32 %v1975
    %vm1984 = vweird.f32 %v1978
    %vm1985 = vmor %vm1983, %vm1984
    %v1986 = vsel %vm1985, %v1978, %v1982
    %v1987 = vand.u32 2147483647, %v1975
    %vm1988 = vcmp.eq.f32.partialorder %v1987, 8.507059e+37
    %v1989 = vand.u32 %v1975, 2147483648
    %v1990 = vor.u32 1.1754944e-38, %v1989
    %v1991 = vsel %vm1988, %v1990, %v1986
    %v1992 = vmul.f32 1.0, %v1991
    %v1993 = vrcp.pop %v1976
    %v1994 = vmul.f32 %v1976, %v1993
    %v1995 = vsub.f32 1.0, %v1994
    %v1996 = vmul.f32 %v1993, %v1995
    %v1997 = vadd.f32 %v1993, %v1996
    %vm1998 = vweird.f32 %v1976
    %vm1999 = vweird.f32 %v1993
    %vm2000 = vmor %vm1998, %vm1999
    %v2001 = vsel %vm2000, %v1993, %v1997
    %v2002 = vand.u32 2147483647, %v1976
    %vm2003 = vcmp.eq.f32.partialorder %v2002, 8.507059e+37
    %v2004 = vand.u32 %v1976, 2147483648
    %v2005 = vor.u32 1.1754944e-38, %v2004
    %v2006 = vsel %vm2003, %v2005, %v2001
    %v2007 = vmul.f32 1.0, %v2006
    %v2008 = vrcp.pop %v1977
    %v2009 = vmul.f32 %v1977, %v2008
    %v2010 = vsub.f32 1.0, %v2009
    %v2011 = vmul.f32 %v2008, %v2010
    %v2012 = vadd.f32 %v2008, %v2011
    %vm2013 = vweird.f32 %v1977
    %vm2014 = vweird.f32 %v2008
    %vm2015 = vmor %vm2013, %vm2014
    %v2016 = vsel %vm2015, %v2008, %v2012
    %v2017 = vand.u32 2147483647, %v1977
    %vm2018 = vcmp.eq.f32.partialorder %v2017, 8.507059e+37
    %v2019 = vand.u32 %v1977, 2147483648
    %v2020 = vor.u32 1.1754944e-38, %v2019
    %v2021 = vsel %vm2018, %v2020, %v2016
    %v2022 = vmul.f32 1.0, %v2021
    %v2023 = vtanh.pop %v1965
    %v2024 = vmul.f32 %v2007, %v1899
    %v2025 = vmul.f32 %v1992, %v2023
    %v2026 = vadd.f32 %v2024, %v2025
    %v2027 = vtanh.pop %v2026
    %v2028 = vmul.f32 %v2022, %v2027
    %s2029 = scalar_lea.vmem [#allocation3], 40
    %2030 = vst [vmem:[%s2029] sm:$0xff] %v2028
    %v2031 = vld [vmem:[#allocation3] sm:$0xff]
    %v2032 = vld [vmem:[#allocation3 + $0x8] sm:$0xff]
    %v2033 = vld [vmem:[#allocation3 + $0x10] sm:$0xff]
    %v2034 = vld [vmem:[#allocation3 + $0x18] sm:$0xff]
    %v2035 = vld [vmem:[#allocation3 + $0x20] sm:$0xff]
    %v2036 = vld [vmem:[#allocation3 + $0x28] sm:$0xff]
    %v2037 = vpack.c.bf16 %v2032, %v2031
    %v2038 = vpack.c.bf16 %v2034, %v2033
    %v2039 = vpack.c.bf16 %v2036, %v2035
    %v2040 = vld [vmem:[#allocation9] sm:$0xff]
    %v2041 = vld [vmem:[#allocation9 + $0x8] sm:$0xff]
    %v2042 = vld [vmem:[#allocation9 + $0x10] sm:$0xff]
    %v2043 = vld [vmem:[#allocation9 + $0x18] sm:$0xff]
    %v2044 = vld [vmem:[#allocation9 + $0x20] sm:$0xff]
    %v2045 = vld [vmem:[#allocation9 + $0x28] sm:$0xff]
    %v2046 = vld [vmem:[#allocation9 + $0x30] sm:$0xff]
    %v2047 = vld [vmem:[#allocation9 + $0x38] sm:$0xff]
    %v2048 = vld [vmem:[#allocation9 + $0x40] sm:$0xff]
    %v2049 = vld [vmem:[#allocation9 + $0x48] sm:$0xff]
    %v2050 = vld [vmem:[#allocation9 + $0x50] sm:$0xff]
    %v2051 = vld [vmem:[#allocation9 + $0x58] sm:$0xff]
    %v2052 = vld [vmem:[#allocation9 + $0x60] sm:$0xff]
    %v2053 = vld [vmem:[#allocation9 + $0x68] sm:$0xff]
    %v2054 = vld [vmem:[#allocation9 + $0x70] sm:$0xff]
    %v2055 = vld [vmem:[#allocation9 + $0x78] sm:$0xff]
    %v2056 = vld [vmem:[#allocation9 + $0x80] sm:$0xff]
    %v2057 = vld [vmem:[#allocation9 + $0x88] sm:$0xff]
    %v2058 = vld [vmem:[#allocation9 + $0x90] sm:$0xff]
    %v2059 = vld [vmem:[#allocation9 + $0x98] sm:$0xff]
    %v2060 = vld [vmem:[#allocation9 + $0xa0] sm:$0xff]
    %v2061 = vld [vmem:[#allocation9 + $0xa8] sm:$0xff]
    %v2062 = vld [vmem:[#allocation9 + $0xb0] sm:$0xff]
    %v2063 = vld [vmem:[#allocation9 + $0xb8] sm:$0xff]
    %v2064 = vld [vmem:[#allocation9 + $0xc0] sm:$0xff]
    %v2065 = vld [vmem:[#allocation9 + $0xc8] sm:$0xff]
    %v2066 = vld [vmem:[#allocation9 + $0xd0] sm:$0xff]
    %v2067 = vld [vmem:[#allocation9 + $0xd8] sm:$0xff]
    %v2068 = vld [vmem:[#allocation9 + $0xe0] sm:$0xff]
    %v2069 = vld [vmem:[#allocation9 + $0xe8] sm:$0xff]
    %v2070 = vld [vmem:[#allocation9 + $0xf0] sm:$0xff]
    %v2071 = vld [vmem:[#allocation9 + $0xf8] sm:$0xff]
    %s2072 = scalar_lea.vmem [#allocation12], 4
    %v2073 = vld [vmem:[%s2072] sm:$0xf]
    %v2075 = vperm.slane %v2073, 0
    %v2076 = vperm.slane %v2073, 1
    %v2077 = vperm.slane %v2073, 2
    %v2078 = vperm.slane %v2073, 3
    %v2115 = vunpack.c.l.b16 %v2040
    %v2116 = vunpack.c.h.b16 %v2040
    %v2117 = vunpack.c.l.b16 %v2041
    %v2118 = vunpack.c.h.b16 %v2041
    %v2119 = vunpack.c.l.b16 %v2042
    %v2120 = vunpack.c.h.b16 %v2042
    %v2121 = vunpack.c.l.b16 %v2043
    %v2122 = vunpack.c.h.b16 %v2043
    %v2123 = vunpack.c.l.b16 %v2044
    %v2124 = vunpack.c.h.b16 %v2044
    %v2125 = vunpack.c.l.b16 %v2045
    %v2126 = vunpack.c.h.b16 %v2045
    %v2127 = vunpack.c.l.b16 %v2046
    %v2128 = vunpack.c.h.b16 %v2046
    %v2129 = vunpack.c.l.b16 %v2047
    %v2130 = vunpack.c.h.b16 %v2047
    %v2131 = vunpack.c.l.b16 %v2048
    %v2132 = vunpack.c.h.b16 %v2048
    %v2133 = vunpack.c.l.b16 %v2049
    %v2134 = vunpack.c.h.b16 %v2049
    %v2135 = vunpack.c.l.b16 %v2050
    %v2136 = vunpack.c.h.b16 %v2050
    %v2137 = vunpack.c.l.b16 %v2051
    %v2138 = vunpack.c.h.b16 %v2051
    %v2139 = vunpack.c.l.b16 %v2052
    %v2140 = vunpack.c.h.b16 %v2052
    %v2141 = vunpack.c.l.b16 %v2053
    %v2142 = vunpack.c.h.b16 %v2053
    %v2143 = vunpack.c.l.b16 %v2054
    %v2144 = vunpack.c.h.b16 %v2054
    %v2145 = vunpack.c.l.b16 %v2055
    %v2146 = vunpack.c.h.b16 %v2055
    %v2147 = vunpack.c.l.b16 %v2056
    %v2148 = vunpack.c.h.b16 %v2056
    %v2149 = vunpack.c.l.b16 %v2057
    %v2150 = vunpack.c.h.b16 %v2057
    %v2151 = vunpack.c.l.b16 %v2058
    %v2152 = vunpack.c.h.b16 %v2058
    %v2153 = vunpack.c.l.b16 %v2059
    %v2154 = vunpack.c.h.b16 %v2059
    %v2155 = vunpack.c.l.b16 %v2060
    %v2156 = vunpack.c.h.b16 %v2060
    %v2157 = vunpack.c.l.b16 %v2061
    %v2158 = vunpack.c.h.b16 %v2061
    %v2159 = vunpack.c.l.b16 %v2062
    %v2160 = vunpack.c.h.b16 %v2062
    %v2161 = vunpack.c.l.b16 %v2063
    %v2162 = vunpack.c.h.b16 %v2063
    %v2163 = vunpack.c.l.b16 %v2064
    %v2164 = vunpack.c.h.b16 %v2064
    %v2165 = vunpack.c.l.b16 %v2065
    %v2166 = vunpack.c.h.b16 %v2065
    %v2167 = vunpack.c.l.b16 %v2066
    %v2168 = vunpack.c.h.b16 %v2066
    %v2169 = vunpack.c.l.b16 %v2067
    %v2170 = vunpack.c.h.b16 %v2067
    %v2171 = vunpack.c.l.b16 %v2068
    %v2172 = vunpack.c.h.b16 %v2068
    %v2173 = vunpack.c.l.b16 %v2069
    %v2174 = vunpack.c.h.b16 %v2069
    %v2175 = vunpack.c.l.b16 %v2070
    %v2176 = vunpack.c.h.b16 %v2070
    %v2177 = vunpack.c.l.b16 %v2071
    %v2178 = vunpack.c.h.b16 %v2071
    %v2179 = vpack.c.b16 %v2119, %v2115
    %v2180 = vpack.c.b16 %v2120, %v2116
    %v2181 = vpack.c.b16 %v2121, %v2117
    %v2182 = vpack.c.b16 %v2122, %v2118
    %v2183 = vpack.c.b16 %v2127, %v2123
    %v2184 = vpack.c.b16 %v2128, %v2124
    %v2185 = vpack.c.b16 %v2129, %v2125
    %v2186 = vpack.c.b16 %v2130, %v2126
    %v2187 = vpack.c.b16 %v2135, %v2131
    %v2188 = vpack.c.b16 %v2136, %v2132
    %v2189 = vpack.c.b16 %v2137, %v2133
    %v2190 = vpack.c.b16 %v2138, %v2134
    %v2191 = vpack.c.b16 %v2143, %v2139
    %v2192 = vpack.c.b16 %v2144, %v2140
    %v2193 = vpack.c.b16 %v2145, %v2141
    %v2194 = vpack.c.b16 %v2146, %v2142
    %v2195 = vpack.c.b16 %v2151, %v2147
    %v2196 = vpack.c.b16 %v2152, %v2148
    %v2197 = vpack.c.b16 %v2153, %v2149
    %v2198 = vpack.c.b16 %v2154, %v2150
    %v2199 = vpack.c.b16 %v2159, %v2155
    %v2200 = vpack.c.b16 %v2160, %v2156
    %v2201 = vpack.c.b16 %v2161, %v2157
    %v2202 = vpack.c.b16 %v2162, %v2158
    %v2203 = vpack.c.b16 %v2167, %v2163
    %v2204 = vpack.c.b16 %v2168, %v2164
    %v2205 = vpack.c.b16 %v2169, %v2165
    %v2206 = vpack.c.b16 %v2170, %v2166
    %v2207 = vpack.c.b16 %v2175, %v2171
    %v2208 = vpack.c.b16 %v2176, %v2172
    %v2209 = vpack.c.b16 %v2177, %v2173
    %v2210 = vpack.c.b16 %v2178, %v2174
    %2243 = vmatpush.bf16.msra.mxu0 %v2207
    %2244 = vmatpush.bf16.msra.mxu0 %v2203
    %2245 = vmatpush.bf16.msra.mxu0 %v2199
    %2246 = vmatpush.bf16.msra.mxu0 %v2195
    %2247 = vmatpush.bf16.msra.mxu0 %v2191
    %2248 = vmatpush.bf16.msra.mxu0 %v2187
    %2249 = vmatpush.bf16.msra.mxu0 %v2183
    %2250 = vmatpush.bf16.msra.mxu0 %v2179
    %2251 = vmatmul.bf16.gmra.mxu0 %v2037
    %v2252 = vpop.f32.mrf.mxu0
    %v2253 = vadd.f32 %v2075, %v2252
    %v2254 = vpop.f32.mrf.mxu0
    %v2255 = vadd.f32 %v2075, %v2254
    %2256 = vmatmul.bf16.gmra.mxu0 %v2038
    %v2257 = vpop.f32.mrf.mxu0
    %v2258 = vadd.f32 %v2075, %v2257
    %v2259 = vpop.f32.mrf.mxu0
    %v2260 = vadd.f32 %v2075, %v2259
    %2261 = vmatmul.bf16.gmra.mxu0 %v2039
    %v2262 = vpop.f32.mrf.mxu0
    %v2263 = vadd.f32 %v2075, %v2262
    %v2264 = vpop.f32.mrf.mxu0
    %v2265 = vadd.f32 %v2075, %v2264
    %2266 = vdwg.mxu0
    %2267 = vmatpush.bf16.msra.mxu0 %v2208
    %2268 = vmatpush.bf16.msra.mxu0 %v2204
    %2269 = vmatpush.bf16.msra.mxu0 %v2200
    %2270 = vmatpush.bf16.msra.mxu0 %v2196
    %2271 = vmatpush.bf16.msra.mxu0 %v2192
    %2272 = vmatpush.bf16.msra.mxu0 %v2188
    %2273 = vmatpush.bf16.msra.mxu0 %v2184
    %2274 = vmatpush.bf16.msra.mxu0 %v2180
    %2275 = vmatmul.bf16.gmra.mxu0 %v2037
    %v2276 = vpop.f32.mrf.mxu0
    %v2277 = vadd.f32 %v2076, %v2276
    %v2278 = vpop.f32.mrf.mxu0
    %v2279 = vadd.f32 %v2076, %v2278
    %2280 = vmatmul.bf16.gmra.mxu0 %v2038
    %v2281 = vpop.f32.mrf.mxu0
    %v2282 = vadd.f32 %v2076, %v2281
    %v2283 = vpop.f32.mrf.mxu0
    %v2284 = vadd.f32 %v2076, %v2283
    %2285 = vmatmul.bf16.gmra.mxu0 %v2039
    %v2286 = vpop.f32.mrf.mxu0
    %v2287 = vadd.f32 %v2076, %v2286
    %v2288 = vpop.f32.mrf.mxu0
    %v2289 = vadd.f32 %v2076, %v2288
    %2290 = vdwg.mxu0
    %2291 = vmatpush.bf16.msra.mxu0 %v2209
    %2292 = vmatpush.bf16.msra.mxu0 %v2205
    %2293 = vmatpush.bf16.msra.mxu0 %v2201
    %2294 = vmatpush.bf16.msra.mxu0 %v2197
    %2295 = vmatpush.bf16.msra.mxu0 %v2193
    %2296 = vmatpush.bf16.msra.mxu0 %v2189
    %2297 = vmatpush.bf16.msra.mxu0 %v2185
    %2298 = vmatpush.bf16.msra.mxu0 %v2181
    %2299 = vmatmul.bf16.gmra.mxu0 %v2037
    %v2300 = vpop.f32.mrf.mxu0
    %v2301 = vadd.f32 %v2077, %v2300
    %v2302 = vpop.f32.mrf.mxu0
    %v2303 = vadd.f32 %v2077, %v2302
    %2304 = vmatmul.bf16.gmra.mxu0 %v2038
    %v2305 = vpop.f32.mrf.mxu0
    %v2306 = vadd.f32 %v2077, %v2305
    %v2307 = vpop.f32.mrf.mxu0
    %v2308 = vadd.f32 %v2077, %v2307
    %2309 = vmatmul.bf16.gmra.mxu0 %v2039
    %v2310 = vpop.f32.mrf.mxu0
    %v2311 = vadd.f32 %v2077, %v2310
    %v2312 = vpop.f32.mrf.mxu0
    %v2313 = vadd.f32 %v2077, %v2312
    %2314 = vdwg.mxu0
    %2315 = vmatpush.bf16.msra.mxu0 %v2210
    %2316 = vmatpush.bf16.msra.mxu0 %v2206
    %2317 = vmatpush.bf16.msra.mxu0 %v2202
    %2318 = vmatpush.bf16.msra.mxu0 %v2198
    %2319 = vmatpush.bf16.msra.mxu0 %v2194
    %2320 = vmatpush.bf16.msra.mxu0 %v2190
    %2321 = vmatpush.bf16.msra.mxu0 %v2186
    %2322 = vmatpush.bf16.msra.mxu0 %v2182
    %2323 = vmatmul.bf16.gmra.mxu0 %v2037
    %v2324 = vpop.f32.mrf.mxu0
    %v2325 = vadd.f32 %v2078, %v2324
    %v2326 = vpop.f32.mrf.mxu0
    %v2327 = vadd.f32 %v2078, %v2326
    %2328 = vmatmul.bf16.gmra.mxu0 %v2038
    %v2329 = vpop.f32.mrf.mxu0
    %v2330 = vadd.f32 %v2078, %v2329
    %v2331 = vpop.f32.mrf.mxu0
    %v2332 = vadd.f32 %v2078, %v2331
    %2333 = vmatmul.bf16.gmra.mxu0 %v2039
    %v2334 = vpop.f32.mrf.mxu0
    %v2335 = vadd.f32 %v2078, %v2334
    %v2336 = vpop.f32.mrf.mxu0
    %v2337 = vadd.f32 %v2078, %v2336
    %2338 = vdwg.mxu0
    %2339 = vst [vmem:[#allocation2] sm:$0xff] %v2253
    %2340 = vst [vmem:[#allocation2 + $0x8] sm:$0xff] %v2277
    %2341 = vst [vmem:[#allocation2 + $0x10] sm:$0xff] %v2301
    %2342 = vst [vmem:[#allocation2 + $0x18] sm:$0xff] %v2325
    %2343 = vst [vmem:[#allocation2 + $0x20] sm:$0xff] %v2255
    %2344 = vst [vmem:[#allocation2 + $0x28] sm:$0xff] %v2279
    %2345 = vst [vmem:[#allocation2 + $0x30] sm:$0xff] %v2303
    %2346 = vst [vmem:[#allocation2 + $0x38] sm:$0xff] %v2327
    %2347 = vst [vmem:[#allocation2 + $0x40] sm:$0xff] %v2258
    %2348 = vst [vmem:[#allocation2 + $0x48] sm:$0xff] %v2282
    %2349 = vst [vmem:[#allocation2 + $0x50] sm:$0xff] %v2306
    %2350 = vst [vmem:[#allocation2 + $0x58] sm:$0xff] %v2330
    %2351 = vst [vmem:[#allocation2 + $0x60] sm:$0xff] %v2260
    %2352 = vst [vmem:[#allocation2 + $0x68] sm:$0xff] %v2284
    %2353 = vst [vmem:[#allocation2 + $0x70] sm:$0xff] %v2308
    %2354 = vst [vmem:[#allocation2 + $0x78] sm:$0xff] %v2332
    %2355 = vst [vmem:[#allocation2 + $0x80] sm:$0xff] %v2263
    %2356 = vst [vmem:[#allocation2 + $0x88] sm:$0xff] %v2287
    %2357 = vst [vmem:[#allocation2 + $0x90] sm:$0xff] %v2311
    %2358 = vst [vmem:[#allocation2 + $0x98] sm:$0xff] %v2335
    %2359 = vst [vmem:[#allocation2 + $0xa0] sm:$0xff] %v2265
    %2360 = vst [vmem:[#allocation2 + $0xa8] sm:$0xff] %v2289
    %2361 = vst [vmem:[#allocation2 + $0xb0] sm:$0xff] %v2313
    %2362 = vst [vmem:[#allocation2 + $0xb8] sm:$0xff] %v2337
    %s2363 = scalar_lea.vmem [#allocation10], 256
    %v2364 = vld [vmem:[%s2363] sm:$0xff]
    %v2365 = vld [vmem:[%s2363 + $0x8] sm:$0xff]
    %v2366 = vld [vmem:[%s2363 + $0x10] sm:$0xff]
    %v2367 = vld [vmem:[%s2363 + $0x18] sm:$0xff]
    %v2368 = vld [vmem:[%s2363 + $0x20] sm:$0xff]
    %v2369 = vld [vmem:[%s2363 + $0x28] sm:$0xff]
    %v2370 = vld [vmem:[%s2363 + $0x30] sm:$0xff]
    %v2371 = vld [vmem:[%s2363 + $0x38] sm:$0xff]
    %v2372 = vld [vmem:[%s2363 + $0x40] sm:$0xff]
    %v2373 = vld [vmem:[%s2363 + $0x48] sm:$0xff]
    %v2374 = vld [vmem:[%s2363 + $0x50] sm:$0xff]
    %v2375 = vld [vmem:[%s2363 + $0x58] sm:$0xff]
    %v2376 = vld [vmem:[%s2363 + $0x60] sm:$0xff]
    %v2377 = vld [vmem:[%s2363 + $0x68] sm:$0xff]
    %v2378 = vld [vmem:[%s2363 + $0x70] sm:$0xff]
    %v2379 = vld [vmem:[%s2363 + $0x78] sm:$0xff]
    %v2380 = vld [vmem:[%s2363 + $0x80] sm:$0xff]
    %v2381 = vld [vmem:[%s2363 + $0x88] sm:$0xff]
    %v2382 = vld [vmem:[%s2363 + $0x90] sm:$0xff]
    %v2383 = vld [vmem:[%s2363 + $0x98] sm:$0xff]
    %v2384 = vld [vmem:[%s2363 + $0xa0] sm:$0xff]
    %v2385 = vld [vmem:[%s2363 + $0xa8] sm:$0xff]
    %v2386 = vld [vmem:[%s2363 + $0xb0] sm:$0xff]
    %v2387 = vld [vmem:[%s2363 + $0xb8] sm:$0xff]
    %v2388 = vld [vmem:[%s2363 + $0xc0] sm:$0xff]
    %v2389 = vld [vmem:[%s2363 + $0xc8] sm:$0xff]
    %v2390 = vld [vmem:[%s2363 + $0xd0] sm:$0xff]
    %v2391 = vld [vmem:[%s2363 + $0xd8] sm:$0xff]
    %v2392 = vld [vmem:[%s2363 + $0xe0] sm:$0xff]
    %v2393 = vld [vmem:[%s2363 + $0xe8] sm:$0xff]
    %v2394 = vld [vmem:[%s2363 + $0xf0] sm:$0xff]
    %v2395 = vld [vmem:[%s2363 + $0xf8] sm:$0xff]
    %v2396 = vld [vmem:[#allocation2] sm:$0xff]
    %v2397 = vld [vmem:[#allocation2 + $0x8] sm:$0xff]
    %v2398 = vld [vmem:[#allocation2 + $0x10] sm:$0xff]
    %v2399 = vld [vmem:[#allocation2 + $0x18] sm:$0xff]
    %v2432 = vunpack.c.l.b16 %v2364
    %v2433 = vunpack.c.h.b16 %v2364
    %v2434 = vunpack.c.l.b16 %v2365
    %v2435 = vunpack.c.h.b16 %v2365
    %v2436 = vunpack.c.l.b16 %v2366
    %v2437 = vunpack.c.h.b16 %v2366
    %v2438 = vunpack.c.l.b16 %v2367
    %v2439 = vunpack.c.h.b16 %v2367
    %v2440 = vunpack.c.l.b16 %v2368
    %v2441 = vunpack.c.h.b16 %v2368
    %v2442 = vunpack.c.l.b16 %v2369
    %v2443 = vunpack.c.h.b16 %v2369
    %v2444 = vunpack.c.l.b16 %v2370
    %v2445 = vunpack.c.h.b16 %v2370
    %v2446 = vunpack.c.l.b16 %v2371
    %v2447 = vunpack.c.h.b16 %v2371
    %v2448 = vunpack.c.l.b16 %v2372
    %v2449 = vunpack.c.h.b16 %v2372
    %v2450 = vunpack.c.l.b16 %v2373
    %v2451 = vunpack.c.h.b16 %v2373
    %v2452 = vunpack.c.l.b16 %v2374
    %v2453 = vunpack.c.h.b16 %v2374
    %v2454 = vunpack.c.l.b16 %v2375
    %v2455 = vunpack.c.h.b16 %v2375
    %v2456 = vunpack.c.l.b16 %v2376
    %v2457 = vunpack.c.h.b16 %v2376
    %v2458 = vunpack.c.l.b16 %v2377
    %v2459 = vunpack.c.h.b16 %v2377
    %v2460 = vunpack.c.l.b16 %v2378
    %v2461 = vunpack.c.h.b16 %v2378
    %v2462 = vunpack.c.l.b16 %v2379
    %v2463 = vunpack.c.h.b16 %v2379
    %v2464 = vunpack.c.l.b16 %v2380
    %v2465 = vunpack.c.h.b16 %v2380
    %v2466 = vunpack.c.l.b16 %v2381
    %v2467 = vunpack.c.h.b16 %v2381
    %v2468 = vunpack.c.l.b16 %v2382
    %v2469 = vunpack.c.h.b16 %v2382
    %v2470 = vunpack.c.l.b16 %v2383
    %v2471 = vunpack.c.h.b16 %v2383
    %v2472 = vunpack.c.l.b16 %v2384
    %v2473 = vunpack.c.h.b16 %v2384
    %v2474 = vunpack.c.l.b16 %v2385
    %v2475 = vunpack.c.h.b16 %v2385
    %v2476 = vunpack.c.l.b16 %v2386
    %v2477 = vunpack.c.h.b16 %v2386
    %v2478 = vunpack.c.l.b16 %v2387
    %v2479 = vunpack.c.h.b16 %v2387
    %v2480 = vunpack.c.l.b16 %v2388
    %v2481 = vunpack.c.h.b16 %v2388
    %v2482 = vunpack.c.l.b16 %v2389
    %v2483 = vunpack.c.h.b16 %v2389
    %v2484 = vunpack.c.l.b16 %v2390
    %v2485 = vunpack.c.h.b16 %v2390
    %v2486 = vunpack.c.l.b16 %v2391
    %v2487 = vunpack.c.h.b16 %v2391
    %v2488 = vunpack.c.l.b16 %v2392
    %v2489 = vunpack.c.h.b16 %v2392
    %v2490 = vunpack.c.l.b16 %v2393
    %v2491 = vunpack.c.h.b16 %v2393
    %v2492 = vunpack.c.l.b16 %v2394
    %v2493 = vunpack.c.h.b16 %v2394
    %v2494 = vunpack.c.l.b16 %v2395
    %v2495 = vunpack.c.h.b16 %v2395
    %v2496 = vpack.c.b16 %v2436, %v2432
    %v2497 = vpack.c.b16 %v2437, %v2433
    %v2498 = vpack.c.b16 %v2438, %v2434
    %v2499 = vpack.c.b16 %v2439, %v2435
    %v2500 = vpack.c.b16 %v2444, %v2440
    %v2501 = vpack.c.b16 %v2445, %v2441
    %v2502 = vpack.c.b16 %v2446, %v2442
    %v2503 = vpack.c.b16 %v2447, %v2443
    %v2504 = vpack.c.b16 %v2452, %v2448
    %v2505 = vpack.c.b16 %v2453, %v2449
    %v2506 = vpack.c.b16 %v2454, %v2450
    %v2507 = vpack.c.b16 %v2455, %v2451
    %v2508 = vpack.c.b16 %v2460, %v2456
    %v2509 = vpack.c.b16 %v2461, %v2457
    %v2510 = vpack.c.b16 %v2462, %v2458
    %v2511 = vpack.c.b16 %v2463, %v2459
    %v2512 = vpack.c.b16 %v2468, %v2464
    %v2513 = vpack.c.b16 %v2469, %v2465
    %v2514 = vpack.c.b16 %v2470, %v2466
    %v2515 = vpack.c.b16 %v2471, %v2467
    %v2516 = vpack.c.b16 %v2476, %v2472
    %v2517 = vpack.c.b16 %v2477, %v2473
    %v2518 = vpack.c.b16 %v2478, %v2474
    %v2519 = vpack.c.b16 %v2479, %v2475
    %v2520 = vpack.c.b16 %v2484, %v2480
    %v2521 = vpack.c.b16 %v2485, %v2481
    %v2522 = vpack.c.b16 %v2486, %v2482
    %v2523 = vpack.c.b16 %v2487, %v2483
    %v2524 = vpack.c.b16 %v2492, %v2488
    %v2525 = vpack.c.b16 %v2493, %v2489
    %v2526 = vpack.c.b16 %v2494, %v2490
    %v2527 = vpack.c.b16 %v2495, %v2491
    %2560 = vmatpush.bf16.msra.mxu0 %v2524
    %2561 = vmatpush.bf16.msra.mxu0 %v2520
    %2562 = vmatpush.bf16.msra.mxu0 %v2516
    %2563 = vmatpush.bf16.msra.mxu0 %v2512
    %2564 = vmatpush.bf16.msra.mxu0 %v2508
    %2565 = vmatpush.bf16.msra.mxu0 %v2504
    %2566 = vmatpush.bf16.msra.mxu0 %v2500
    %2567 = vmatpush.bf16.msra.mxu0 %v2496
    %2568 = vmatmul.bf16.gmra.mxu0 0
    %v2569 = vpop.f32.mrf.mxu0
    %v2570 = vadd.f32 0.0, %v2569
    %v2571 = vpop.f32.mrf.mxu0
    %2572 = vdwg.mxu0
    %2573 = vmatpush.bf16.msra.mxu0 %v2525
    %2574 = vmatpush.bf16.msra.mxu0 %v2521
    %2575 = vmatpush.bf16.msra.mxu0 %v2517
    %2576 = vmatpush.bf16.msra.mxu0 %v2513
    %2577 = vmatpush.bf16.msra.mxu0 %v2509
    %2578 = vmatpush.bf16.msra.mxu0 %v2505
    %2579 = vmatpush.bf16.msra.mxu0 %v2501
    %2580 = vmatpush.bf16.msra.mxu0 %v2497
    %2581 = vmatmul.bf16.gmra.mxu0 0
    %v2582 = vpop.f32.mrf.mxu0
    %v2583 = vadd.f32 0.0, %v2582
    %v2584 = vpop.f32.mrf.mxu0
    %2585 = vdwg.mxu0
    %2586 = vmatpush.bf16.msra.mxu0 %v2526
    %2587 = vmatpush.bf16.msra.mxu0 %v2522
    %2588 = vmatpush.bf16.msra.mxu0 %v2518
    %2589 = vmatpush.bf16.msra.mxu0 %v2514
    %2590 = vmatpush.bf16.msra.mxu0 %v2510
    %2591 = vmatpush.bf16.msra.mxu0 %v2506
    %2592 = vmatpush.bf16.msra.mxu0 %v2502
    %2593 = vmatpush.bf16.msra.mxu0 %v2498
    %2594 = vmatmul.bf16.gmra.mxu0 0
    %v2595 = vpop.f32.mrf.mxu0
    %v2596 = vadd.f32 0.0, %v2595
    %v2597 = vpop.f32.mrf.mxu0
    %2598 = vdwg.mxu0
    %2599 = vmatpush.bf16.msra.mxu0 %v2527
    %2600 = vmatpush.bf16.msra.mxu0 %v2523
    %2601 = vmatpush.bf16.msra.mxu0 %v2519
    %2602 = vmatpush.bf16.msra.mxu0 %v2515
    %2603 = vmatpush.bf16.msra.mxu0 %v2511
    %2604 = vmatpush.bf16.msra.mxu0 %v2507
    %2605 = vmatpush.bf16.msra.mxu0 %v2503
    %2606 = vmatpush.bf16.msra.mxu0 %v2499
    %2607 = vmatmul.bf16.gmra.mxu0 0
    %v2608 = vpop.f32.mrf.mxu0
    %v2609 = vadd.f32 0.0, %v2608
    %v2610 = vpop.f32.mrf.mxu0
    %2611 = vdwg.mxu0
    %v2612 = vadd.f32 %v2396, %v2570
    %v2613 = vadd.f32 %v2397, %v2583
    %v2614 = vadd.f32 %v2398, %v2596
    %v2615 = vadd.f32 %v2399, %v2609
    %v2616 = vxor.u32 %v2612, 2147483648
    %v2617 = vxor.u32 %v2613, 2147483648
    %v2618 = vxor.u32 %v2614, 2147483648
    %v2619 = vmul.f32 %v2616, 1.442695
    %v2620 = vpow.pop %v2619
    %v2621 = vmul.f32 %v2617, 1.442695
    %v2622 = vpow.pop %v2621
    %v2623 = vmul.f32 %v2618, 1.442695
    %v2624 = vpow.pop %v2623
    %v2625 = vadd.f32 %v2620, 1.0
    %v2626 = vadd.f32 %v2622, 1.0
    %v2627 = vadd.f32 %v2624, 1.0
    %v2628 = vrcp.pop %v2625
    %v2629 = vmul.f32 %v2625, %v2628
    %v2630 = vsub.f32 1.0, %v2629
    %v2631 = vmul.f32 %v2628, %v2630
    %v2632 = vadd.f32 %v2628, %v2631
    %vm2633 = vweird.f32 %v2625
    %vm2634 = vweird.f32 %v2628
    %vm2635 = vmor %vm2633, %vm2634
    %v2636 = vsel %vm2635, %v2628, %v2632
    %v2637 = vand.u32 2147483647, %v2625
    %vm2638 = vcmp.eq.f32.partialorder %v2637, 8.507059e+37
    %v2639 = vand.u32 %v2625, 2147483648
    %v2640 = vor.u32 1.1754944e-38, %v2639
    %v2641 = vsel %vm2638, %v2640, %v2636
    %v2642 = vmul.f32 1.0, %v2641
    %v2643 = vrcp.pop %v2626
    %v2644 = vmul.f32 %v2626, %v2643
    %v2645 = vsub.f32 1.0, %v2644
    %v2646 = vmul.f32 %v2643, %v2645
    %v2647 = vadd.f32 %v2643, %v2646
    %vm2648 = vweird.f32 %v2626
    %vm2649 = vweird.f32 %v2643
    %vm2650 = vmor %vm2648, %vm2649
    %v2651 = vsel %vm2650, %v2643, %v2647
    %v2652 = vand.u32 2147483647, %v2626
    %vm2653 = vcmp.eq.f32.partialorder %v2652, 8.507059e+37
    %v2654 = vand.u32 %v2626, 2147483648
    %v2655 = vor.u32 1.1754944e-38, %v2654
    %v2656 = vsel %vm2653, %v2655, %v2651
    %v2657 = vmul.f32 1.0, %v2656
    %v2658 = vrcp.pop %v2627
    %v2659 = vmul.f32 %v2627, %v2658
    %v2660 = vsub.f32 1.0, %v2659
    %v2661 = vmul.f32 %v2658, %v2660
    %v2662 = vadd.f32 %v2658, %v2661
    %vm2663 = vweird.f32 %v2627
    %vm2664 = vweird.f32 %v2658
    %vm2665 = vmor %vm2663, %vm2664
    %v2666 = vsel %vm2665, %v2658, %v2662
    %v2667 = vand.u32 2147483647, %v2627
    %vm2668 = vcmp.eq.f32.partialorder %v2667, 8.507059e+37
    %v2669 = vand.u32 %v2627, 2147483648
    %v2670 = vor.u32 1.1754944e-38, %v2669
    %v2671 = vsel %vm2668, %v2670, %v2666
    %v2672 = vmul.f32 1.0, %v2671
    %v2673 = vtanh.pop %v2615
    %v2674 = vmul.f32 %v2657, 0.0
    %v2675 = vmul.f32 %v2642, %v2673
    %v2676 = vadd.f32 %v2674, %v2675
    %v2677 = vtanh.pop %v2676
    %v2678 = vmul.f32 %v2672, %v2677
    %2679 = vst [vmem:[#allocation3] sm:$0xff] %v2678
    %v2680 = vld [vmem:[%s1396] sm:$0xff]
    %v2681 = vld [vmem:[%s1396 + $0x8] sm:$0xff]
    %v2682 = vld [vmem:[%s1396 + $0x10] sm:$0xff]
    %v2683 = vld [vmem:[%s1396 + $0x18] sm:$0xff]
    %v2684 = vpack.c.bf16 %v2678, %v2678
    %2685 = vmatpush.bf16.msra.mxu0 %v2524
    %2686 = vmatpush.bf16.msra.mxu0 %v2520
    %2687 = vmatpush.bf16.msra.mxu0 %v2516
    %2688 = vmatpush.bf16.msra.mxu0 %v2512
    %2689 = vmatpush.bf16.msra.mxu0 %v2508
    %2690 = vmatpush.bf16.msra.mxu0 %v2504
    %2691 = vmatpush.bf16.msra.mxu0 %v2500
    %2692 = vmatpush.bf16.msra.mxu0 %v2496
    %2693 = vmatmul.bf16.gmra.mxu0 %v2684
    %v2694 = vpop.f32.mrf.mxu0
    %v2695 = vadd.f32 0.0, %v2694
    %v2696 = vpop.f32.mrf.mxu0
    %2697 = vdwg.mxu0
    %2698 = vmatpush.bf16.msra.mxu0 %v2525
    %2699 = vmatpush.bf16.msra.mxu0 %v2521
    %2700 = vmatpush.bf16.msra.mxu0 %v2517
    %2701 = vmatpush.bf16.msra.mxu0 %v2513
    %2702 = vmatpush.bf16.msra.mxu0 %v2509
    %2703 = vmatpush.bf16.msra.mxu0 %v2505
    %2704 = vmatpush.bf16.msra.mxu0 %v2501
    %2705 = vmatpush.bf16.msra.mxu0 %v2497
    %2706 = vmatmul.bf16.gmra.mxu0 %v2684
    %v2707 = vpop.f32.mrf.mxu0
    %v2708 = vadd.f32 0.0, %v2707
    %v2709 = vpop.f32.mrf.mxu0
    %2710 = vdwg.mxu0
    %2711 = vmatpush.bf16.msra.mxu0 %v2526
    %2712 = vmatpush.bf16.msra.mxu0 %v2522
    %2713 = vmatpush.bf16.msra.mxu0 %v2518
    %2714 = vmatpush.bf16.msra.mxu0 %v2514
    %2715 = vmatpush.bf16.msra.mxu0 %v2510
    %2716 = vmatpush.bf16.msra.mxu0 %v2506
    %2717 = vmatpush.bf16.msra.mxu0 %v2502
    %2718 = vmatpush.bf16.msra.mxu0 %v2498
    %2719 = vmatmul.bf16.gmra.mxu0 %v2684
    %v2720 = vpop.f32.mrf.mxu0
    %v2721 = vadd.f32 0.0, %v2720
    %v2722 = vpop.f32.mrf.mxu0
    %2723 = vdwg.mxu0
    %2724 = vmatpush.bf16.msra.mxu0 %v2527
    %2725 = vmatpush.bf16.msra.mxu0 %v2523
    %2726 = vmatpush.bf16.msra.mxu0 %v2519
    %2727 = vmatpush.bf16.msra.mxu0 %v2515
    %2728 = vmatpush.bf16.msra.mxu0 %v2511
    %2729 = vmatpush.bf16.msra.mxu0 %v2507
    %2730 = vmatpush.bf16.msra.mxu0 %v2503
    %2731 = vmatpush.bf16.msra.mxu0 %v2499
    %2732 = vmatmul.bf16.gmra.mxu0 %v2684
    %v2733 = vpop.f32.mrf.mxu0
    %v2734 = vadd.f32 0.0, %v2733
    %v2735 = vpop.f32.mrf.mxu0
    %2736 = vdwg.mxu0
    %v2737 = vadd.f32 %v2680, %v2695
    %v2738 = vadd.f32 %v2681, %v2708
    %v2739 = vadd.f32 %v2682, %v2721
    %v2740 = vadd.f32 %v2683, %v2734
    %v2741 = vxor.u32 %v2737, 2147483648
    %v2742 = vxor.u32 %v2738, 2147483648
    %v2743 = vxor.u32 %v2739, 2147483648
    %v2744 = vmul.f32 %v2741, 1.442695
    %v2745 = vpow.pop %v2744
    %v2746 = vmul.f32 %v2742, 1.442695
    %v2747 = vpow.pop %v2746
    %v2748 = vmul.f32 %v2743, 1.442695
    %v2749 = vpow.pop %v2748
    %v2750 = vadd.f32 %v2745, 1.0
    %v2751 = vadd.f32 %v2747, 1.0
    %v2752 = vadd.f32 %v2749, 1.0
    %v2753 = vrcp.pop %v2750
    %v2754 = vmul.f32 %v2750, %v2753
    %v2755 = vsub.f32 1.0, %v2754
    %v2756 = vmul.f32 %v2753, %v2755
    %v2757 = vadd.f32 %v2753, %v2756
    %vm2758 = vweird.f32 %v2750
    %vm2759 = vweird.f32 %v2753
    %vm2760 = vmor %vm2758, %vm2759
    %v2761 = vsel %vm2760, %v2753, %v2757
    %v2762 = vand.u32 2147483647, %v2750
    %vm2763 = vcmp.eq.f32.partialorder %v2762, 8.507059e+37
    %v2764 = vand.u32 %v2750, 2147483648
    %v2765 = vor.u32 1.1754944e-38, %v2764
    %v2766 = vsel %vm2763, %v2765, %v2761
    %v2767 = vmul.f32 1.0, %v2766
    %v2768 = vrcp.pop %v2751
    %v2769 = vmul.f32 %v2751, %v2768
    %v2770 = vsub.f32 1.0, %v2769
    %v2771 = vmul.f32 %v2768, %v2770
    %v2772 = vadd.f32 %v2768, %v2771
    %vm2773 = vweird.f32 %v2751
    %vm2774 = vweird.f32 %v2768
    %vm2775 = vmor %vm2773, %vm2774
    %v2776 = vsel %vm2775, %v2768, %v2772
    %v2777 = vand.u32 2147483647, %v2751
    %vm2778 = vcmp.eq.f32.partialorder %v2777, 8.507059e+37
    %v2779 = vand.u32 %v2751, 2147483648
    %v2780 = vor.u32 1.1754944e-38, %v2779
    %v2781 = vsel %vm2778, %v2780, %v2776
    %v2782 = vmul.f32 1.0, %v2781
    %v2783 = vrcp.pop %v2752
    %v2784 = vmul.f32 %v2752, %v2783
    %v2785 = vsub.f32 1.0, %v2784
    %v2786 = vmul.f32 %v2783, %v2785
    %v2787 = vadd.f32 %v2783, %v2786
    %vm2788 = vweird.f32 %v2752
    %vm2789 = vweird.f32 %v2783
    %vm2790 = vmor %vm2788, %vm2789
    %v2791 = vsel %vm2790, %v2783, %v2787
    %v2792 = vand.u32 2147483647, %v2752
    %vm2793 = vcmp.eq.f32.partialorder %v2792, 8.507059e+37
    %v2794 = vand.u32 %v2752, 2147483648
    %v2795 = vor.u32 1.1754944e-38, %v2794
    %v2796 = vsel %vm2793, %v2795, %v2791
    %v2797 = vmul.f32 1.0, %v2796
    %v2798 = vtanh.pop %v2740
    %v2799 = vmul.f32 %v2782, %v2676
    %v2800 = vmul.f32 %v2767, %v2798
    %v2801 = vadd.f32 %v2799, %v2800
    %v2802 = vtanh.pop %v2801
    %v2803 = vmul.f32 %v2797, %v2802
    %2804 = vst [vmem:[%s1521] sm:$0xff] %v2803
    %v2805 = vld [vmem:[%s1523] sm:$0xff]
    %v2806 = vld [vmem:[%s1523 + $0x8] sm:$0xff]
    %v2807 = vld [vmem:[%s1523 + $0x10] sm:$0xff]
    %v2808 = vld [vmem:[%s1523 + $0x18] sm:$0xff]
    %v2809 = vpack.c.bf16 %v2803, %v2803
    %2810 = vmatpush.bf16.msra.mxu0 %v2524
    %2811 = vmatpush.bf16.msra.mxu0 %v2520
    %2812 = vmatpush.bf16.msra.mxu0 %v2516
    %2813 = vmatpush.bf16.msra.mxu0 %v2512
    %2814 = vmatpush.bf16.msra.mxu0 %v2508
    %2815 = vmatpush.bf16.msra.mxu0 %v2504
    %2816 = vmatpush.bf16.msra.mxu0 %v2500
    %2817 = vmatpush.bf16.msra.mxu0 %v2496
    %2818 = vmatmul.bf16.gmra.mxu0 %v2809
    %v2819 = vpop.f32.mrf.mxu0
    %v2820 = vadd.f32 0.0, %v2819
    %v2821 = vpop.f32.mrf.mxu0
    %2822 = vdwg.mxu0
    %2823 = vmatpush.bf16.msra.mxu0 %v2525
    %2824 = vmatpush.bf16.msra.mxu0 %v2521
    %2825 = vmatpush.bf16.msra.mxu0 %v2517
    %2826 = vmatpush.bf16.msra.mxu0 %v2513
    %2827 = vmatpush.bf16.msra.mxu0 %v2509
    %2828 = vmatpush.bf16.msra.mxu0 %v2505
    %2829 = vmatpush.bf16.msra.mxu0 %v2501
    %2830 = vmatpush.bf16.msra.mxu0 %v2497
    %2831 = vmatmul.bf16.gmra.mxu0 %v2809
    %v2832 = vpop.f32.mrf.mxu0
    %v2833 = vadd.f32 0.0, %v2832
    %v2834 = vpop.f32.mrf.mxu0
    %2835 = vdwg.mxu0
    %2836 = vmatpush.bf16.msra.mxu0 %v2526
    %2837 = vmatpush.bf16.msra.mxu0 %v2522
    %2838 = vmatpush.bf16.msra.mxu0 %v2518
    %2839 = vmatpush.bf16.msra.mxu0 %v2514
    %2840 = vmatpush.bf16.msra.mxu0 %v2510
    %2841 = vmatpush.bf16.msra.mxu0 %v2506
    %2842 = vmatpush.bf16.msra.mxu0 %v2502
    %2843 = vmatpush.bf16.msra.mxu0 %v2498
    %2844 = vmatmul.bf16.gmra.mxu0 %v2809
    %v2845 = vpop.f32.mrf.mxu0
    %v2846 = vadd.f32 0.0, %v2845
    %v2847 = vpop.f32.mrf.mxu0
    %2848 = vdwg.mxu0
    %2849 = vmatpush.bf16.msra.mxu0 %v2527
    %2850 = vmatpush.bf16.msra.mxu0 %v2523
    %2851 = vmatpush.bf16.msra.mxu0 %v2519
    %2852 = vmatpush.bf16.msra.mxu0 %v2515
    %2853 = vmatpush.bf16.msra.mxu0 %v2511
    %2854 = vmatpush.bf16.msra.mxu0 %v2507
    %2855 = vmatpush.bf16.msra.mxu0 %v2503
    %2856 = vmatpush.bf16.msra.mxu0 %v2499
    %2857 = vmatmul.bf16.gmra.mxu0 %v2809
    %v2858 = vpop.f32.mrf.mxu0
    %v2859 = vadd.f32 0.0, %v2858
    %v2860 = vpop.f32.mrf.mxu0
    %2861 = vdwg.mxu0
    %v2862 = vadd.f32 %v2805, %v2820
    %v2863 = vadd.f32 %v2806, %v2833
    %v2864 = vadd.f32 %v2807, %v2846
    %v2865 = vadd.f32 %v2808, %v2859
    %v2866 = vxor.u32 %v2862, 2147483648
    %v2867 = vxor.u32 %v2863, 2147483648
    %v2868 = vxor.u32 %v2864, 2147483648
    %v2869 = vmul.f32 %v2866, 1.442695
    %v2870 = vpow.pop %v2869
    %v2871 = vmul.f32 %v2867, 1.442695
    %v2872 = vpow.pop %v2871
    %v2873 = vmul.f32 %v2868, 1.442695
    %v2874 = vpow.pop %v2873
    %v2875 = vadd.f32 %v2870, 1.0
    %v2876 = vadd.f32 %v2872, 1.0
    %v2877 = vadd.f32 %v2874, 1.0
    %v2878 = vrcp.pop %v2875
    %v2879 = vmul.f32 %v2875, %v2878
    %v2880 = vsub.f32 1.0, %v2879
    %v2881 = vmul.f32 %v2878, %v2880
    %v2882 = vadd.f32 %v2878, %v2881
    %vm2883 = vweird.f32 %v2875
    %vm2884 = vweird.f32 %v2878
    %vm2885 = vmor %vm2883, %vm2884
    %v2886 = vsel %vm2885, %v2878, %v2882
    %v2887 = vand.u32 2147483647, %v2875
    %vm2888 = vcmp.eq.f32.partialorder %v2887, 8.507059e+37
    %v2889 = vand.u32 %v2875, 2147483648
    %v2890 = vor.u32 1.1754944e-38, %v2889
    %v2891 = vsel %vm2888, %v2890, %v2886
    %v2892 = vmul.f32 1.0, %v2891
    %v2893 = vrcp.pop %v2876
    %v2894 = vmul.f32 %v2876, %v2893
    %v2895 = vsub.f32 1.0, %v2894
    %v2896 = vmul.f32 %v2893, %v2895
    %v2897 = vadd.f32 %v2893, %v2896
    %vm2898 = vweird.f32 %v2876
    %vm2899 = vweird.f32 %v2893
    %vm2900 = vmor %vm2898, %vm2899
    %v2901 = vsel %vm2900, %v2893, %v2897
    %v2902 = vand.u32 2147483647, %v2876
    %vm2903 = vcmp.eq.f32.partialorder %v2902, 8.507059e+37
    %v2904 = vand.u32 %v2876, 2147483648
    %v2905 = vor.u32 1.1754944e-38, %v2904
    %v2906 = vsel %vm2903, %v2905, %v2901
    %v2907 = vmul.f32 1.0, %v2906
    %v2908 = vrcp.pop %v2877
    %v2909 = vmul.f32 %v2877, %v2908
    %v2910 = vsub.f32 1.0, %v2909
    %v2911 = vmul.f32 %v2908, %v2910
    %v2912 = vadd.f32 %v2908, %v2911
    %vm2913 = vweird.f32 %v2877
    %vm2914 = vweird.f32 %v2908
    %vm2915 = vmor %vm2913, %vm2914
    %v2916 = vsel %vm2915, %v2908, %v2912
    %v2917 = vand.u32 2147483647, %v2877
    %vm2918 = vcmp.eq.f32.partialorder %v2917, 8.507059e+37
    %v2919 = vand.u32 %v2877, 2147483648
    %v2920 = vor.u32 1.1754944e-38, %v2919
    %v2921 = vsel %vm2918, %v2920, %v2916
    %v2922 = vmul.f32 1.0, %v2921
    %v2923 = vtanh.pop %v2865
    %v2924 = vmul.f32 %v2907, %v2801
    %v2925 = vmul.f32 %v2892, %v2923
    %v2926 = vadd.f32 %v2924, %v2925
    %v2927 = vtanh.pop %v2926
    %v2928 = vmul.f32 %v2922, %v2927
    %2929 = vst [vmem:[%s1648] sm:$0xff] %v2928
    %v2930 = vld [vmem:[%s1650] sm:$0xff]
    %v2931 = vld [vmem:[%s1650 + $0x8] sm:$0xff]
    %v2932 = vld [vmem:[%s1650 + $0x10] sm:$0xff]
    %v2933 = vld [vmem:[%s1650 + $0x18] sm:$0xff]
    %v2934 = vpack.c.bf16 %v2928, %v2928
    %2935 = vmatpush.bf16.msra.mxu0 %v2524
    %2936 = vmatpush.bf16.msra.mxu0 %v2520
    %2937 = vmatpush.bf16.msra.mxu0 %v2516
    %2938 = vmatpush.bf16.msra.mxu0 %v2512
    %2939 = vmatpush.bf16.msra.mxu0 %v2508
    %2940 = vmatpush.bf16.msra.mxu0 %v2504
    %2941 = vmatpush.bf16.msra.mxu0 %v2500
    %2942 = vmatpush.bf16.msra.mxu0 %v2496
    %2943 = vmatmul.bf16.gmra.mxu0 %v2934
    %v2944 = vpop.f32.mrf.mxu0
    %v2945 = vadd.f32 0.0, %v2944
    %v2946 = vpop.f32.mrf.mxu0
    %2947 = vdwg.mxu0
    %2948 = vmatpush.bf16.msra.mxu0 %v2525
    %2949 = vmatpush.bf16.msra.mxu0 %v2521
    %2950 = vmatpush.bf16.msra.mxu0 %v2517
    %2951 = vmatpush.bf16.msra.mxu0 %v2513
    %2952 = vmatpush.bf16.msra.mxu0 %v2509
    %2953 = vmatpush.bf16.msra.mxu0 %v2505
    %2954 = vmatpush.bf16.msra.mxu0 %v2501
    %2955 = vmatpush.bf16.msra.mxu0 %v2497
    %2956 = vmatmul.bf16.gmra.mxu0 %v2934
    %v2957 = vpop.f32.mrf.mxu0
    %v2958 = vadd.f32 0.0, %v2957
    %v2959 = vpop.f32.mrf.mxu0
    %2960 = vdwg.mxu0
    %2961 = vmatpush.bf16.msra.mxu0 %v2526
    %2962 = vmatpush.bf16.msra.mxu0 %v2522
    %2963 = vmatpush.bf16.msra.mxu0 %v2518
    %2964 = vmatpush.bf16.msra.mxu0 %v2514
    %2965 = vmatpush.bf16.msra.mxu0 %v2510
    %2966 = vmatpush.bf16.msra.mxu0 %v2506
    %2967 = vmatpush.bf16.msra.mxu0 %v2502
    %2968 = vmatpush.bf16.msra.mxu0 %v2498
    %2969 = vmatmul.bf16.gmra.mxu0 %v2934
    %v2970 = vpop.f32.mrf.mxu0
    %v2971 = vadd.f32 0.0, %v2970
    %v2972 = vpop.f32.mrf.mxu0
    %2973 = vdwg.mxu0
    %2974 = vmatpush.bf16.msra.mxu0 %v2527
    %2975 = vmatpush.bf16.msra.mxu0 %v2523
    %2976 = vmatpush.bf16.msra.mxu0 %v2519
    %2977 = vmatpush.bf16.msra.mxu0 %v2515
    %2978 = vmatpush.bf16.msra.mxu0 %v2511
    %2979 = vmatpush.bf16.msra.mxu0 %v2507
    %2980 = vmatpush.bf16.msra.mxu0 %v2503
    %2981 = vmatpush.bf16.msra.mxu0 %v2499
    %2982 = vmatmul.bf16.gmra.mxu0 %v2934
    %v2983 = vpop.f32.mrf.mxu0
    %v2984 = vadd.f32 0.0, %v2983
    %v2985 = vpop.f32.mrf.mxu0
    %2986 = vdwg.mxu0
    %v2987 = vadd.f32 %v2930, %v2945
    %v2988 = vadd.f32 %v2931, %v2958
    %v2989 = vadd.f32 %v2932, %v2971
    %v2990 = vadd.f32 %v2933, %v2984
    %v2991 = vxor.u32 %v2987, 2147483648
    %v2992 = vxor.u32 %v2988, 2147483648
    %v2993 = vxor.u32 %v2989, 2147483648
    %v2994 = vmul.f32 %v2991, 1.442695
    %v2995 = vpow.pop %v2994
    %v2996 = vmul.f32 %v2992, 1.442695
    %v2997 = vpow.pop %v2996
    %v2998 = vmul.f32 %v2993, 1.442695
    %v2999 = vpow.pop %v2998
    %v3000 = vadd.f32 %v2995, 1.0
    %v3001 = vadd.f32 %v2997, 1.0
    %v3002 = vadd.f32 %v2999, 1.0
    %v3003 = vrcp.pop %v3000
    %v3004 = vmul.f32 %v3000, %v3003
    %v3005 = vsub.f32 1.0, %v3004
    %v3006 = vmul.f32 %v3003, %v3005
    %v3007 = vadd.f32 %v3003, %v3006
    %vm3008 = vweird.f32 %v3000
    %vm3009 = vweird.f32 %v3003
    %vm3010 = vmor %vm3008, %vm3009
    %v3011 = vsel %vm3010, %v3003, %v3007
    %v3012 = vand.u32 2147483647, %v3000
    %vm3013 = vcmp.eq.f32.partialorder %v3012, 8.507059e+37
    %v3014 = vand.u32 %v3000, 2147483648
    %v3015 = vor.u32 1.1754944e-38, %v3014
    %v3016 = vsel %vm3013, %v3015, %v3011
    %v3017 = vmul.f32 1.0, %v3016
    %v3018 = vrcp.pop %v3001
    %v3019 = vmul.f32 %v3001, %v3018
    %v3020 = vsub.f32 1.0, %v3019
    %v3021 = vmul.f32 %v3018, %v3020
    %v3022 = vadd.f32 %v3018, %v3021
    %vm3023 = vweird.f32 %v3001
    %vm3024 = vweird.f32 %v3018
    %vm3025 = vmor %vm3023, %vm3024
    %v3026 = vsel %vm3025, %v3018, %v3022
    %v3027 = vand.u32 2147483647, %v3001
    %vm3028 = vcmp.eq.f32.partialorder %v3027, 8.507059e+37
    %v3029 = vand.u32 %v3001, 2147483648
    %v3030 = vor.u32 1.1754944e-38, %v3029
    %v3031 = vsel %vm3028, %v3030, %v3026
    %v3032 = vmul.f32 1.0, %v3031
    %v3033 = vrcp.pop %v3002
    %v3034 = vmul.f32 %v3002, %v3033
    %v3035 = vsub.f32 1.0, %v3034
    %v3036 = vmul.f32 %v3033, %v3035
    %v3037 = vadd.f32 %v3033, %v3036
    %vm3038 = vweird.f32 %v3002
    %vm3039 = vweird.f32 %v3033
    %vm3040 = vmor %vm3038, %vm3039
    %v3041 = vsel %vm3040, %v3033, %v3037
    %v3042 = vand.u32 2147483647, %v3002
    %vm3043 = vcmp.eq.f32.partialorder %v3042, 8.507059e+37
    %v3044 = vand.u32 %v3002, 2147483648
    %v3045 = vor.u32 1.1754944e-38, %v3044
    %v3046 = vsel %vm3043, %v3045, %v3041
    %v3047 = vmul.f32 1.0, %v3046
    %v3048 = vtanh.pop %v2990
    %v3049 = vmul.f32 %v3032, %v2926
    %v3050 = vmul.f32 %v3017, %v3048
    %v3051 = vadd.f32 %v3049, %v3050
    %v3052 = vtanh.pop %v3051
    %v3053 = vmul.f32 %v3047, %v3052
    %3054 = vst [vmem:[%s1775] sm:$0xff] %v3053
    %v3055 = vld [vmem:[%s1777] sm:$0xff]
    %v3056 = vld [vmem:[%s1777 + $0x8] sm:$0xff]
    %v3057 = vld [vmem:[%s1777 + $0x10] sm:$0xff]
    %v3058 = vld [vmem:[%s1777 + $0x18] sm:$0xff]
    %v3059 = vpack.c.bf16 %v3053, %v3053
    %3060 = vmatpush.bf16.msra.mxu0 %v2524
    %3061 = vmatpush.bf16.msra.mxu0 %v2520
    %3062 = vmatpush.bf16.msra.mxu0 %v2516
    %3063 = vmatpush.bf16.msra.mxu0 %v2512
    %3064 = vmatpush.bf16.msra.mxu0 %v2508
    %3065 = vmatpush.bf16.msra.mxu0 %v2504
    %3066 = vmatpush.bf16.msra.mxu0 %v2500
    %3067 = vmatpush.bf16.msra.mxu0 %v2496
    %3068 = vmatmul.bf16.gmra.mxu0 %v3059
    %v3069 = vpop.f32.mrf.mxu0
    %v3070 = vadd.f32 0.0, %v3069
    %v3071 = vpop.f32.mrf.mxu0
    %3072 = vdwg.mxu0
    %3073 = vmatpush.bf16.msra.mxu0 %v2525
    %3074 = vmatpush.bf16.msra.mxu0 %v2521
    %3075 = vmatpush.bf16.msra.mxu0 %v2517
    %3076 = vmatpush.bf16.msra.mxu0 %v2513
    %3077 = vmatpush.bf16.msra.mxu0 %v2509
    %3078 = vmatpush.bf16.msra.mxu0 %v2505
    %3079 = vmatpush.bf16.msra.mxu0 %v2501
    %3080 = vmatpush.bf16.msra.mxu0 %v2497
    %3081 = vmatmul.bf16.gmra.mxu0 %v3059
    %v3082 = vpop.f32.mrf.mxu0
    %v3083 = vadd.f32 0.0, %v3082
    %v3084 = vpop.f32.mrf.mxu0
    %3085 = vdwg.mxu0
    %3086 = vmatpush.bf16.msra.mxu0 %v2526
    %3087 = vmatpush.bf16.msra.mxu0 %v2522
    %3088 = vmatpush.bf16.msra.mxu0 %v2518
    %3089 = vmatpush.bf16.msra.mxu0 %v2514
    %3090 = vmatpush.bf16.msra.mxu0 %v2510
    %3091 = vmatpush.bf16.msra.mxu0 %v2506
    %3092 = vmatpush.bf16.msra.mxu0 %v2502
    %3093 = vmatpush.bf16.msra.mxu0 %v2498
    %3094 = vmatmul.bf16.gmra.mxu0 %v3059
    %v3095 = vpop.f32.mrf.mxu0
    %v3096 = vadd.f32 0.0, %v3095
    %v3097 = vpop.f32.mrf.mxu0
    %3098 = vdwg.mxu0
    %3099 = vmatpush.bf16.msra.mxu0 %v2527
    %3100 = vmatpush.bf16.msra.mxu0 %v2523
    %3101 = vmatpush.bf16.msra.mxu0 %v2519
    %3102 = vmatpush.bf16.msra.mxu0 %v2515
    %3103 = vmatpush.bf16.msra.mxu0 %v2511
    %3104 = vmatpush.bf16.msra.mxu0 %v2507
    %3105 = vmatpush.bf16.msra.mxu0 %v2503
    %3106 = vmatpush.bf16.msra.mxu0 %v2499
    %3107 = vmatmul.bf16.gmra.mxu0 %v3059
    %v3108 = vpop.f32.mrf.mxu0
    %v3109 = vadd.f32 0.0, %v3108
    %v3110 = vpop.f32.mrf.mxu0
    %3111 = vdwg.mxu0
    %v3112 = vadd.f32 %v3055, %v3070
    %v3113 = vadd.f32 %v3056, %v3083
    %v3114 = vadd.f32 %v3057, %v3096
    %v3115 = vadd.f32 %v3058, %v3109
    %v3116 = vxor.u32 %v3112, 2147483648
    %v3117 = vxor.u32 %v3113, 2147483648
    %v3118 = vxor.u32 %v3114, 2147483648
    %v3119 = vmul.f32 %v3116, 1.442695
    %v3120 = vpow.pop %v3119
    %v3121 = vmul.f32 %v3117, 1.442695
    %v3122 = vpow.pop %v3121
    %v3123 = vmul.f32 %v3118, 1.442695
    %v3124 = vpow.pop %v3123
    %v3125 = vadd.f32 %v3120, 1.0
    %v3126 = vadd.f32 %v3122, 1.0
    %v3127 = vadd.f32 %v3124, 1.0
    %v3128 = vrcp.pop %v3125
    %v3129 = vmul.f32 %v3125, %v3128
    %v3130 = vsub.f32 1.0, %v3129
    %v3131 = vmul.f32 %v3128, %v3130
    %v3132 = vadd.f32 %v3128, %v3131
    %vm3133 = vweird.f32 %v3125
    %vm3134 = vweird.f32 %v3128
    %vm3135 = vmor %vm3133, %vm3134
    %v3136 = vsel %vm3135, %v3128, %v3132
    %v3137 = vand.u32 2147483647, %v3125
    %vm3138 = vcmp.eq.f32.partialorder %v3137, 8.507059e+37
    %v3139 = vand.u32 %v3125, 2147483648
    %v3140 = vor.u32 1.1754944e-38, %v3139
    %v3141 = vsel %vm3138, %v3140, %v3136
    %v3142 = vmul.f32 1.0, %v3141
    %v3143 = vrcp.pop %v3126
    %v3144 = vmul.f32 %v3126, %v3143
    %v3145 = vsub.f32 1.0, %v3144
    %v3146 = vmul.f32 %v3143, %v3145
    %v3147 = vadd.f32 %v3143, %v3146
    %vm3148 = vweird.f32 %v3126
    %vm3149 = vweird.f32 %v3143
    %vm3150 = vmor %vm3148, %vm3149
    %v3151 = vsel %vm3150, %v3143, %v3147
    %v3152 = vand.u32 2147483647, %v3126
    %vm3153 = vcmp.eq.f32.partialorder %v3152, 8.507059e+37
    %v3154 = vand.u32 %v3126, 2147483648
    %v3155 = vor.u32 1.1754944e-38, %v3154
    %v3156 = vsel %vm3153, %v3155, %v3151
    %v3157 = vmul.f32 1.0, %v3156
    %v3158 = vrcp.pop %v3127
    %v3159 = vmul.f32 %v3127, %v3158
    %v3160 = vsub.f32 1.0, %v3159
    %v3161 = vmul.f32 %v3158, %v3160
    %v3162 = vadd.f32 %v3158, %v3161
    %vm3163 = vweird.f32 %v3127
    %vm3164 = vweird.f32 %v3158
    %vm3165 = vmor %vm3163, %vm3164
    %v3166 = vsel %vm3165, %v3158, %v3162
    %v3167 = vand.u32 2147483647, %v3127
    %vm3168 = vcmp.eq.f32.partialorder %v3167, 8.507059e+37
    %v3169 = vand.u32 %v3127, 2147483648
    %v3170 = vor.u32 1.1754944e-38, %v3169
    %v3171 = vsel %vm3168, %v3170, %v3166
    %v3172 = vmul.f32 1.0, %v3171
    %v3173 = vtanh.pop %v3115
    %v3174 = vmul.f32 %v3157, %v3051
    %v3175 = vmul.f32 %v3142, %v3173
    %v3176 = vadd.f32 %v3174, %v3175
    %v3177 = vtanh.pop %v3176
    %v3178 = vmul.f32 %v3172, %v3177
    %3179 = vst [vmem:[%s1902] sm:$0xff] %v3178
    %v3180 = vld [vmem:[%s1904] sm:$0xff]
    %v3181 = vld [vmem:[%s1904 + $0x8] sm:$0xff]
    %v3182 = vld [vmem:[%s1904 + $0x10] sm:$0xff]
    %v3183 = vld [vmem:[%s1904 + $0x18] sm:$0xff]
    %v3184 = vpack.c.bf16 %v3178, %v3178
    %3185 = vmatpush.bf16.msra.mxu0 %v2524
    %3186 = vmatpush.bf16.msra.mxu0 %v2520
    %3187 = vmatpush.bf16.msra.mxu0 %v2516
    %3188 = vmatpush.bf16.msra.mxu0 %v2512
    %3189 = vmatpush.bf16.msra.mxu0 %v2508
    %3190 = vmatpush.bf16.msra.mxu0 %v2504
    %3191 = vmatpush.bf16.msra.mxu0 %v2500
    %3192 = vmatpush.bf16.msra.mxu0 %v2496
    %3193 = vmatmul.bf16.gmra.mxu0 %v3184
    %v3194 = vpop.f32.mrf.mxu0
    %v3195 = vadd.f32 0.0, %v3194
    %v3196 = vpop.f32.mrf.mxu0
    %3197 = vdwg.mxu0
    %3198 = vmatpush.bf16.msra.mxu0 %v2525
    %3199 = vmatpush.bf16.msra.mxu0 %v2521
    %3200 = vmatpush.bf16.msra.mxu0 %v2517
    %3201 = vmatpush.bf16.msra.mxu0 %v2513
    %3202 = vmatpush.bf16.msra.mxu0 %v2509
    %3203 = vmatpush.bf16.msra.mxu0 %v2505
    %3204 = vmatpush.bf16.msra.mxu0 %v2501
    %3205 = vmatpush.bf16.msra.mxu0 %v2497
    %3206 = vmatmul.bf16.gmra.mxu0 %v3184
    %v3207 = vpop.f32.mrf.mxu0
    %v3208 = vadd.f32 0.0, %v3207
    %v3209 = vpop.f32.mrf.mxu0
    %3210 = vdwg.mxu0
    %3211 = vmatpush.bf16.msra.mxu0 %v2526
    %3212 = vmatpush.bf16.msra.mxu0 %v2522
    %3213 = vmatpush.bf16.msra.mxu0 %v2518
    %3214 = vmatpush.bf16.msra.mxu0 %v2514
    %3215 = vmatpush.bf16.msra.mxu0 %v2510
    %3216 = vmatpush.bf16.msra.mxu0 %v2506
    %3217 = vmatpush.bf16.msra.mxu0 %v2502
    %3218 = vmatpush.bf16.msra.mxu0 %v2498
    %3219 = vmatmul.bf16.gmra.mxu0 %v3184
    %v3220 = vpop.f32.mrf.mxu0
    %v3221 = vadd.f32 0.0, %v3220
    %v3222 = vpop.f32.mrf.mxu0
    %3223 = vdwg.mxu0
    %3224 = vmatpush.bf16.msra.mxu0 %v2527
    %3225 = vmatpush.bf16.msra.mxu0 %v2523
    %3226 = vmatpush.bf16.msra.mxu0 %v2519
    %3227 = vmatpush.bf16.msra.mxu0 %v2515
    %3228 = vmatpush.bf16.msra.mxu0 %v2511
    %3229 = vmatpush.bf16.msra.mxu0 %v2507
    %3230 = vmatpush.bf16.msra.mxu0 %v2503
    %3231 = vmatpush.bf16.msra.mxu0 %v2499
    %3232 = vmatmul.bf16.gmra.mxu0 %v3184
    %v3233 = vpop.f32.mrf.mxu0
    %v3234 = vadd.f32 0.0, %v3233
    %v3235 = vpop.f32.mrf.mxu0
    %3236 = vdwg.mxu0
    %v3237 = vadd.f32 %v3180, %v3195
    %v3238 = vadd.f32 %v3181, %v3208
    %v3239 = vadd.f32 %v3182, %v3221
    %v3240 = vadd.f32 %v3183, %v3234
    %v3241 = vxor.u32 %v3237, 2147483648
    %v3242 = vxor.u32 %v3238, 2147483648
    %v3243 = vxor.u32 %v3239, 2147483648
    %v3244 = vmul.f32 %v3241, 1.442695
    %v3245 = vpow.pop %v3244
    %v3246 = vmul.f32 %v3242, 1.442695
    %v3247 = vpow.pop %v3246
    %v3248 = vmul.f32 %v3243, 1.442695
    %v3249 = vpow.pop %v3248
    %v3250 = vadd.f32 %v3245, 1.0
    %v3251 = vadd.f32 %v3247, 1.0
    %v3252 = vadd.f32 %v3249, 1.0
    %v3253 = vrcp.pop %v3250
    %v3254 = vmul.f32 %v3250, %v3253
    %v3255 = vsub.f32 1.0, %v3254
    %v3256 = vmul.f32 %v3253, %v3255
    %v3257 = vadd.f32 %v3253, %v3256
    %vm3258 = vweird.f32 %v3250
    %vm3259 = vweird.f32 %v3253
    %vm3260 = vmor %vm3258, %vm3259
    %v3261 = vsel %vm3260, %v3253, %v3257
    %v3262 = vand.u32 2147483647, %v3250
    %vm3263 = vcmp.eq.f32.partialorder %v3262, 8.507059e+37
    %v3264 = vand.u32 %v3250, 2147483648
    %v3265 = vor.u32 1.1754944e-38, %v3264
    %v3266 = vsel %vm3263, %v3265, %v3261
    %v3267 = vmul.f32 1.0, %v3266
    %v3268 = vrcp.pop %v3251
    %v3269 = vmul.f32 %v3251, %v3268
    %v3270 = vsub.f32 1.0, %v3269
    %v3271 = vmul.f32 %v3268, %v3270
    %v3272 = vadd.f32 %v3268, %v3271
    %vm3273 = vweird.f32 %v3251
    %vm3274 = vweird.f32 %v3268
    %vm3275 = vmor %vm3273, %vm3274
    %v3276 = vsel %vm3275, %v3268, %v3272
    %v3277 = vand.u32 2147483647, %v3251
    %vm3278 = vcmp.eq.f32.partialorder %v3277, 8.507059e+37
    %v3279 = vand.u32 %v3251, 2147483648
    %v3280 = vor.u32 1.1754944e-38, %v3279
    %v3281 = vsel %vm3278, %v3280, %v3276
    %v3282 = vmul.f32 1.0, %v3281
    %v3283 = vrcp.pop %v3252
    %v3284 = vmul.f32 %v3252, %v3283
    %v3285 = vsub.f32 1.0, %v3284
    %v3286 = vmul.f32 %v3283, %v3285
    %v3287 = vadd.f32 %v3283, %v3286
    %vm3288 = vweird.f32 %v3252
    %vm3289 = vweird.f32 %v3283
    %vm3290 = vmor %vm3288, %vm3289
    %v3291 = vsel %vm3290, %v3283, %v3287
    %v3292 = vand.u32 2147483647, %v3252
    %vm3293 = vcmp.eq.f32.partialorder %v3292, 8.507059e+37
    %v3294 = vand.u32 %v3252, 2147483648
    %v3295 = vor.u32 1.1754944e-38, %v3294
    %v3296 = vsel %vm3293, %v3295, %v3291
    %v3297 = vmul.f32 1.0, %v3296
    %v3298 = vtanh.pop %v3240
    %v3299 = vmul.f32 %v3282, %v3176
    %v3300 = vmul.f32 %v3267, %v3298
    %v3301 = vadd.f32 %v3299, %v3300
    %v3302 = vtanh.pop %v3301
    %v3303 = vmul.f32 %v3297, %v3302
    %3304 = vst [vmem:[%s2029] sm:$0xff] %v3303
    %v3305 = vld [vmem:[#allocation3] sm:$0xff]
    %v3306 = vld [vmem:[#allocation3 + $0x8] sm:$0xff]
    %v3307 = vld [vmem:[#allocation3 + $0x10] sm:$0xff]
    %v3308 = vld [vmem:[#allocation3 + $0x18] sm:$0xff]
    %v3309 = vld [vmem:[#allocation3 + $0x20] sm:$0xff]
    %v3310 = vld [vmem:[#allocation3 + $0x28] sm:$0xff]
    %v3311 = vpack.c.bf16 %v3306, %v3305
    %v3312 = vpack.c.bf16 %v3308, %v3307
    %v3313 = vpack.c.bf16 %v3310, %v3309
    %s3314 = scalar_lea.vmem [#allocation9], 256
    %v3315 = vld [vmem:[%s3314] sm:$0xff]
    %v3316 = vld [vmem:[%s3314 + $0x8] sm:$0xff]
    %v3317 = vld [vmem:[%s3314 + $0x10] sm:$0xff]
    %v3318 = vld [vmem:[%s3314 + $0x18] sm:$0xff]
    %v3319 = vld [vmem:[%s3314 + $0x20] sm:$0xff]
    %v3320 = vld [vmem:[%s3314 + $0x28] sm:$0xff]
    %v3321 = vld [vmem:[%s3314 + $0x30] sm:$0xff]
    %v3322 = vld [vmem:[%s3314 + $0x38] sm:$0xff]
    %v3323 = vld [vmem:[%s3314 + $0x40] sm:$0xff]
    %v3324 = vld [vmem:[%s3314 + $0x48] sm:$0xff]
    %v3325 = vld [vmem:[%s3314 + $0x50] sm:$0xff]
    %v3326 = vld [vmem:[%s3314 + $0x58] sm:$0xff]
    %v3327 = vld [vmem:[%s3314 + $0x60] sm:$0xff]
    %v3328 = vld [vmem:[%s3314 + $0x68] sm:$0xff]
    %v3329 = vld [vmem:[%s3314 + $0x70] sm:$0xff]
    %v3330 = vld [vmem:[%s3314 + $0x78] sm:$0xff]
    %v3331 = vld [vmem:[%s3314 + $0x80] sm:$0xff]
    %v3332 = vld [vmem:[%s3314 + $0x88] sm:$0xff]
    %v3333 = vld [vmem:[%s3314 + $0x90] sm:$0xff]
    %v3334 = vld [vmem:[%s3314 + $0x98] sm:$0xff]
    %v3335 = vld [vmem:[%s3314 + $0xa0] sm:$0xff]
    %v3336 = vld [vmem:[%s3314 + $0xa8] sm:$0xff]
    %v3337 = vld [vmem:[%s3314 + $0xb0] sm:$0xff]
    %v3338 = vld [vmem:[%s3314 + $0xb8] sm:$0xff]
    %v3339 = vld [vmem:[%s3314 + $0xc0] sm:$0xff]
    %v3340 = vld [vmem:[%s3314 + $0xc8] sm:$0xff]
    %v3341 = vld [vmem:[%s3314 + $0xd0] sm:$0xff]
    %v3342 = vld [vmem:[%s3314 + $0xd8] sm:$0xff]
    %v3343 = vld [vmem:[%s3314 + $0xe0] sm:$0xff]
    %v3344 = vld [vmem:[%s3314 + $0xe8] sm:$0xff]
    %v3345 = vld [vmem:[%s3314 + $0xf0] sm:$0xff]
    %v3346 = vld [vmem:[%s3314 + $0xf8] sm:$0xff]
    %s3347 = scalar_lea.vmem [#allocation12], 8
    %v3348 = vld [vmem:[%s3347] sm:$0xf]
    %v3350 = vperm.slane %v3348, 0
    %v3351 = vperm.slane %v3348, 1
    %v3352 = vperm.slane %v3348, 2
    %v3353 = vperm.slane %v3348, 3
    %v3390 = vunpack.c.l.b16 %v3315
    %v3391 = vunpack.c.h.b16 %v3315
    %v3392 = vunpack.c.l.b16 %v3316
    %v3393 = vunpack.c.h.b16 %v3316
    %v3394 = vunpack.c.l.b16 %v3317
    %v3395 = vunpack.c.h.b16 %v3317
    %v3396 = vunpack.c.l.b16 %v3318
    %v3397 = vunpack.c.h.b16 %v3318
    %v3398 = vunpack.c.l.b16 %v3319
    %v3399 = vunpack.c.h.b16 %v3319
    %v3400 = vunpack.c.l.b16 %v3320
    %v3401 = vunpack.c.h.b16 %v3320
    %v3402 = vunpack.c.l.b16 %v3321
    %v3403 = vunpack.c.h.b16 %v3321
    %v3404 = vunpack.c.l.b16 %v3322
    %v3405 = vunpack.c.h.b16 %v3322
    %v3406 = vunpack.c.l.b16 %v3323
    %v3407 = vunpack.c.h.b16 %v3323
    %v3408 = vunpack.c.l.b16 %v3324
    %v3409 = vunpack.c.h.b16 %v3324
    %v3410 = vunpack.c.l.b16 %v3325
    %v3411 = vunpack.c.h.b16 %v3325
    %v3412 = vunpack.c.l.b16 %v3326
    %v3413 = vunpack.c.h.b16 %v3326
    %v3414 = vunpack.c.l.b16 %v3327
    %v3415 = vunpack.c.h.b16 %v3327
    %v3416 = vunpack.c.l.b16 %v3328
    %v3417 = vunpack.c.h.b16 %v3328
    %v3418 = vunpack.c.l.b16 %v3329
    %v3419 = vunpack.c.h.b16 %v3329
    %v3420 = vunpack.c.l.b16 %v3330
    %v3421 = vunpack.c.h.b16 %v3330
    %v3422 = vunpack.c.l.b16 %v3331
    %v3423 = vunpack.c.h.b16 %v3331
    %v3424 = vunpack.c.l.b16 %v3332
    %v3425 = vunpack.c.h.b16 %v3332
    %v3426 = vunpack.c.l.b16 %v3333
    %v3427 = vunpack.c.h.b16 %v3333
    %v3428 = vunpack.c.l.b16 %v3334
    %v3429 = vunpack.c.h.b16 %v3334
    %v3430 = vunpack.c.l.b16 %v3335
    %v3431 = vunpack.c.h.b16 %v3335
    %v3432 = vunpack.c.l.b16 %v3336
    %v3433 = vunpack.c.h.b16 %v3336
    %v3434 = vunpack.c.l.b16 %v3337
    %v3435 = vunpack.c.h.b16 %v3337
    %v3436 = vunpack.c.l.b16 %v3338
    %v3437 = vunpack.c.h.b16 %v3338
    %v3438 = vunpack.c.l.b16 %v3339
    %v3439 = vunpack.c.h.b16 %v3339
    %v3440 = vunpack.c.l.b16 %v3340
    %v3441 = vunpack.c.h.b16 %v3340
    %v3442 = vunpack.c.l.b16 %v3341
    %v3443 = vunpack.c.h.b16 %v3341
    %v3444 = vunpack.c.l.b16 %v3342
    %v3445 = vunpack.c.h.b16 %v3342
    %v3446 = vunpack.c.l.b16 %v3343
    %v3447 = vunpack.c.h.b16 %v3343
    %v3448 = vunpack.c.l.b16 %v3344
    %v3449 = vunpack.c.h.b16 %v3344
    %v3450 = vunpack.c.l.b16 %v3345
    %v3451 = vunpack.c.h.b16 %v3345
    %v3452 = vunpack.c.l.b16 %v3346
    %v3453 = vunpack.c.h.b16 %v3346
    %v3454 = vpack.c.b16 %v3394, %v3390
    %v3455 = vpack.c.b16 %v3395, %v3391
    %v3456 = vpack.c.b16 %v3396, %v3392
    %v3457 = vpack.c.b16 %v3397, %v3393
    %v3458 = vpack.c.b16 %v3402, %v3398
    %v3459 = vpack.c.b16 %v3403, %v3399
    %v3460 = vpack.c.b16 %v3404, %v3400
    %v3461 = vpack.c.b16 %v3405, %v3401
    %v3462 = vpack.c.b16 %v3410, %v3406
    %v3463 = vpack.c.b16 %v3411, %v3407
    %v3464 = vpack.c.b16 %v3412, %v3408
    %v3465 = vpack.c.b16 %v3413, %v3409
    %v3466 = vpack.c.b16 %v3418, %v3414
    %v3467 = vpack.c.b16 %v3419, %v3415
    %v3468 = vpack.c.b16 %v3420, %v3416
    %v3469 = vpack.c.b16 %v3421, %v3417
    %v3470 = vpack.c.b16 %v3426, %v3422
    %v3471 = vpack.c.b16 %v3427, %v3423
    %v3472 = vpack.c.b16 %v3428, %v3424
    %v3473 = vpack.c.b16 %v3429, %v3425
    %v3474 = vpack.c.b16 %v3434, %v3430
    %v3475 = vpack.c.b16 %v3435, %v3431
    %v3476 = vpack.c.b16 %v3436, %v3432
    %v3477 = vpack.c.b16 %v3437, %v3433
    %v3478 = vpack.c.b16 %v3442, %v3438
    %v3479 = vpack.c.b16 %v3443, %v3439
    %v3480 = vpack.c.b16 %v3444, %v3440
    %v3481 = vpack.c.b16 %v3445, %v3441
    %v3482 = vpack.c.b16 %v3450, %v3446
    %v3483 = vpack.c.b16 %v3451, %v3447
    %v3484 = vpack.c.b16 %v3452, %v3448
    %v3485 = vpack.c.b16 %v3453, %v3449
    %3518 = vmatpush.bf16.msra.mxu0 %v3482
    %3519 = vmatpush.bf16.msra.mxu0 %v3478
    %3520 = vmatpush.bf16.msra.mxu0 %v3474
    %3521 = vmatpush.bf16.msra.mxu0 %v3470
    %3522 = vmatpush.bf16.msra.mxu0 %v3466
    %3523 = vmatpush.bf16.msra.mxu0 %v3462
    %3524 = vmatpush.bf16.msra.mxu0 %v3458
    %3525 = vmatpush.bf16.msra.mxu0 %v3454
    %3526 = vmatmul.bf16.gmra.mxu0 %v3311
    %v3527 = vpop.f32.mrf.mxu0
    %v3528 = vadd.f32 %v3350, %v3527
    %v3529 = vpop.f32.mrf.mxu0
    %v3530 = vadd.f32 %v3350, %v3529
    %3531 = vmatmul.bf16.gmra.mxu0 %v3312
    %v3532 = vpop.f32.mrf.mxu0
    %v3533 = vadd.f32 %v3350, %v3532
    %v3534 = vpop.f32.mrf.mxu0
    %v3535 = vadd.f32 %v3350, %v3534
    %3536 = vmatmul.bf16.gmra.mxu0 %v3313
    %v3537 = vpop.f32.mrf.mxu0
    %v3538 = vadd.f32 %v3350, %v3537
    %v3539 = vpop.f32.mrf.mxu0
    %v3540 = vadd.f32 %v3350, %v3539
    %3541 = vdwg.mxu0
    %3542 = vmatpush.bf16.msra.mxu0 %v3483
    %3543 = vmatpush.bf16.msra.mxu0 %v3479
    %3544 = vmatpush.bf16.msra.mxu0 %v3475
    %3545 = vmatpush.bf16.msra.mxu0 %v3471
    %3546 = vmatpush.bf16.msra.mxu0 %v3467
    %3547 = vmatpush.bf16.msra.mxu0 %v3463
    %3548 = vmatpush.bf16.msra.mxu0 %v3459
    %3549 = vmatpush.bf16.msra.mxu0 %v3455
    %3550 = vmatmul.bf16.gmra.mxu0 %v3311
    %v3551 = vpop.f32.mrf.mxu0
    %v3552 = vadd.f32 %v3351, %v3551
    %v3553 = vpop.f32.mrf.mxu0
    %v3554 = vadd.f32 %v3351, %v3553
    %3555 = vmatmul.bf16.gmra.mxu0 %v3312
    %v3556 = vpop.f32.mrf.mxu0
    %v3557 = vadd.f32 %v3351, %v3556
    %v3558 = vpop.f32.mrf.mxu0
    %v3559 = vadd.f32 %v3351, %v3558
    %3560 = vmatmul.bf16.gmra.mxu0 %v3313
    %v3561 = vpop.f32.mrf.mxu0
    %v3562 = vadd.f32 %v3351, %v3561
    %v3563 = vpop.f32.mrf.mxu0
    %v3564 = vadd.f32 %v3351, %v3563
    %3565 = vdwg.mxu0
    %3566 = vmatpush.bf16.msra.mxu0 %v3484
    %3567 = vmatpush.bf16.msra.mxu0 %v3480
    %3568 = vmatpush.bf16.msra.mxu0 %v3476
    %3569 = vmatpush.bf16.msra.mxu0 %v3472
    %3570 = vmatpush.bf16.msra.mxu0 %v3468
    %3571 = vmatpush.bf16.msra.mxu0 %v3464
    %3572 = vmatpush.bf16.msra.mxu0 %v3460
    %3573 = vmatpush.bf16.msra.mxu0 %v3456
    %3574 = vmatmul.bf16.gmra.mxu0 %v3311
    %v3575 = vpop.f32.mrf.mxu0
    %v3576 = vadd.f32 %v3352, %v3575
    %v3577 = vpop.f32.mrf.mxu0
    %v3578 = vadd.f32 %v3352, %v3577
    %3579 = vmatmul.bf16.gmra.mxu0 %v3312
    %v3580 = vpop.f32.mrf.mxu0
    %v3581 = vadd.f32 %v3352, %v3580
    %v3582 = vpop.f32.mrf.mxu0
    %v3583 = vadd.f32 %v3352, %v3582
    %3584 = vmatmul.bf16.gmra.mxu0 %v3313
    %v3585 = vpop.f32.mrf.mxu0
    %v3586 = vadd.f32 %v3352, %v3585
    %v3587 = vpop.f32.mrf.mxu0
    %v3588 = vadd.f32 %v3352, %v3587
    %3589 = vdwg.mxu0
    %3590 = vmatpush.bf16.msra.mxu0 %v3485
    %3591 = vmatpush.bf16.msra.mxu0 %v3481
    %3592 = vmatpush.bf16.msra.mxu0 %v3477
    %3593 = vmatpush.bf16.msra.mxu0 %v3473
    %3594 = vmatpush.bf16.msra.mxu0 %v3469
    %3595 = vmatpush.bf16.msra.mxu0 %v3465
    %3596 = vmatpush.bf16.msra.mxu0 %v3461
    %3597 = vmatpush.bf16.msra.mxu0 %v3457
    %3598 = vmatmul.bf16.gmra.mxu0 %v3311
    %v3599 = vpop.f32.mrf.mxu0
    %v3600 = vadd.f32 %v3353, %v3599
    %v3601 = vpop.f32.mrf.mxu0
    %v3602 = vadd.f32 %v3353, %v3601
    %3603 = vmatmul.bf16.gmra.mxu0 %v3312
    %v3604 = vpop.f32.mrf.mxu0
    %v3605 = vadd.f32 %v3353, %v3604
    %v3606 = vpop.f32.mrf.mxu0
    %v3607 = vadd.f32 %v3353, %v3606
    %3608 = vmatmul.bf16.gmra.mxu0 %v3313
    %v3609 = vpop.f32.mrf.mxu0
    %v3610 = vadd.f32 %v3353, %v3609
    %v3611 = vpop.f32.mrf.mxu0
    %v3612 = vadd.f32 %v3353, %v3611
    %3613 = vdwg.mxu0
    %3614 = vst [vmem:[#allocation2] sm:$0xff] %v3528
    %3615 = vst [vmem:[#allocation2 + $0x8] sm:$0xff] %v3552
    %3616 = vst [vmem:[#allocation2 + $0x10] sm:$0xff] %v3576
    %3617 = vst [vmem:[#allocation2 + $0x18] sm:$0xff] %v3600
    %3618 = vst [vmem:[#allocation2 + $0x20] sm:$0xff] %v3530
    %3619 = vst [vmem:[#allocation2 + $0x28] sm:$0xff] %v3554
    %3620 = vst [vmem:[#allocation2 + $0x30] sm:$0xff] %v3578
    %3621 = vst [vmem:[#allocation2 + $0x38] sm:$0xff] %v3602
    %3622 = vst [vmem:[#allocation2 + $0x40] sm:$0xff] %v3533
    %3623 = vst [vmem:[#allocation2 + $0x48] sm:$0xff] %v3557
    %3624 = vst [vmem:[#allocation2 + $0x50] sm:$0xff] %v3581
    %3625 = vst [vmem:[#allocation2 + $0x58] sm:$0xff] %v3605
    %3626 = vst [vmem:[#allocation2 + $0x60] sm:$0xff] %v3535
    %3627 = vst [vmem:[#allocation2 + $0x68] sm:$0xff] %v3559
    %3628 = vst [vmem:[#allocation2 + $0x70] sm:$0xff] %v3583
    %3629 = vst [vmem:[#allocation2 + $0x78] sm:$0xff] %v3607
    %3630 = vst [vmem:[#allocation2 + $0x80] sm:$0xff] %v3538
    %3631 = vst [vmem:[#allocation2 + $0x88] sm:$0xff] %v3562
    %3632 = vst [vmem:[#allocation2 + $0x90] sm:$0xff] %v3586
    %3633 = vst [vmem:[#allocation2 + $0x98] sm:$0xff] %v3610
    %3634 = vst [vmem:[#allocation2 + $0xa0] sm:$0xff] %v3540
    %3635 = vst [vmem:[#allocation2 + $0xa8] sm:$0xff] %v3564
    %3636 = vst [vmem:[#allocation2 + $0xb0] sm:$0xff] %v3588
    %3637 = vst [vmem:[#allocation2 + $0xb8] sm:$0xff] %v3612
    %s3638 = scalar_lea.vmem [#allocation10], 512
    %v3639 = vld [vmem:[%s3638] sm:$0xff]
    %v3640 = vld [vmem:[%s3638 + $0x8] sm:$0xff]
    %v3641 = vld [vmem:[%s3638 + $0x10] sm:$0xff]
    %v3642 = vld [vmem:[%s3638 + $0x18] sm:$0xff]
    %v3643 = vld [vmem:[%s3638 + $0x20] sm:$0xff]
    %v3644 = vld [vmem:[%s3638 + $0x28] sm:$0xff]
    %v3645 = vld [vmem:[%s3638 + $0x30] sm:$0xff]
    %v3646 = vld [vmem:[%s3638 + $0x38] sm:$0xff]
    %v3647 = vld [vmem:[%s3638 + $0x40] sm:$0xff]
    %v3648 = vld [vmem:[%s3638 + $0x48] sm:$0xff]
    %v3649 = vld [vmem:[%s3638 + $0x50] sm:$0xff]
    %v3650 = vld [vmem:[%s3638 + $0x58] sm:$0xff]
    %v3651 = vld [vmem:[%s3638 + $0x60] sm:$0xff]
    %v3652 = vld [vmem:[%s3638 + $0x68] sm:$0xff]
    %v3653 = vld [vmem:[%s3638 + $0x70] sm:$0xff]
    %v3654 = vld [vmem:[%s3638 + $0x78] sm:$0xff]
    %v3655 = vld [vmem:[%s3638 + $0x80] sm:$0xff]
    %v3656 = vld [vmem:[%s3638 + $0x88] sm:$0xff]
    %v3657 = vld [vmem:[%s3638 + $0x90] sm:$0xff]
    %v3658 = vld [vmem:[%s3638 + $0x98] sm:$0xff]
    %v3659 = vld [vmem:[%s3638 + $0xa0] sm:$0xff]
    %v3660 = vld [vmem:[%s3638 + $0xa8] sm:$0xff]
    %v3661 = vld [vmem:[%s3638 + $0xb0] sm:$0xff]
    %v3662 = vld [vmem:[%s3638 + $0xb8] sm:$0xff]
    %v3663 = vld [vmem:[%s3638 + $0xc0] sm:$0xff]
    %v3664 = vld [vmem:[%s3638 + $0xc8] sm:$0xff]
    %v3665 = vld [vmem:[%s3638 + $0xd0] sm:$0xff]
    %v3666 = vld [vmem:[%s3638 + $0xd8] sm:$0xff]
    %v3667 = vld [vmem:[%s3638 + $0xe0] sm:$0xff]
    %v3668 = vld [vmem:[%s3638 + $0xe8] sm:$0xff]
    %v3669 = vld [vmem:[%s3638 + $0xf0] sm:$0xff]
    %v3670 = vld [vmem:[%s3638 + $0xf8] sm:$0xff]
    %v3671 = vld [vmem:[#allocation2] sm:$0xff]
    %v3672 = vld [vmem:[#allocation2 + $0x8] sm:$0xff]
    %v3673 = vld [vmem:[#allocation2 + $0x10] sm:$0xff]
    %v3674 = vld [vmem:[#allocation2 + $0x18] sm:$0xff]
    %v3707 = vunpack.c.l.b16 %v3639
    %v3708 = vunpack.c.h.b16 %v3639
    %v3709 = vunpack.c.l.b16 %v3640
    %v3710 = vunpack.c.h.b16 %v3640
    %v3711 = vunpack.c.l.b16 %v3641
    %v3712 = vunpack.c.h.b16 %v3641
    %v3713 = vunpack.c.l.b16 %v3642
    %v3714 = vunpack.c.h.b16 %v3642
    %v3715 = vunpack.c.l.b16 %v3643
    %v3716 = vunpack.c.h.b16 %v3643
    %v3717 = vunpack.c.l.b16 %v3644
    %v3718 = vunpack.c.h.b16 %v3644
    %v3719 = vunpack.c.l.b16 %v3645
    %v3720 = vunpack.c.h.b16 %v3645
    %v3721 = vunpack.c.l.b16 %v3646
    %v3722 = vunpack.c.h.b16 %v3646
    %v3723 = vunpack.c.l.b16 %v3647
    %v3724 = vunpack.c.h.b16 %v3647
    %v3725 = vunpack.c.l.b16 %v3648
    %v3726 = vunpack.c.h.b16 %v3648
    %v3727 = vunpack.c.l.b16 %v3649
    %v3728 = vunpack.c.h.b16 %v3649
    %v3729 = vunpack.c.l.b16 %v3650
    %v3730 = vunpack.c.h.b16 %v3650
    %v3731 = vunpack.c.l.b16 %v3651
    %v3732 = vunpack.c.h.b16 %v3651
    %v3733 = vunpack.c.l.b16 %v3652
    %v3734 = vunpack.c.h.b16 %v3652
    %v3735 = vunpack.c.l.b16 %v3653
    %v3736 = vunpack.c.h.b16 %v3653
    %v3737 = vunpack.c.l.b16 %v3654
    %v3738 = vunpack.c.h.b16 %v3654
    %v3739 = vunpack.c.l.b16 %v3655
    %v3740 = vunpack.c.h.b16 %v3655
    %v3741 = vunpack.c.l.b16 %v3656
    %v3742 = vunpack.c.h.b16 %v3656
    %v3743 = vunpack.c.l.b16 %v3657
    %v3744 = vunpack.c.h.b16 %v3657
    %v3745 = vunpack.c.l.b16 %v3658
    %v3746 = vunpack.c.h.b16 %v3658
    %v3747 = vunpack.c.l.b16 %v3659
    %v3748 = vunpack.c.h.b16 %v3659
    %v3749 = vunpack.c.l.b16 %v3660
    %v3750 = vunpack.c.h.b16 %v3660
    %v3751 = vunpack.c.l.b16 %v3661
    %v3752 = vunpack.c.h.b16 %v3661
    %v3753 = vunpack.c.l.b16 %v3662
    %v3754 = vunpack.c.h.b16 %v3662
    %v3755 = vunpack.c.l.b16 %v3663
    %v3756 = vunpack.c.h.b16 %v3663
    %v3757 = vunpack.c.l.b16 %v3664
    %v3758 = vunpack.c.h.b16 %v3664
    %v3759 = vunpack.c.l.b16 %v3665
    %v3760 = vunpack.c.h.b16 %v3665
    %v3761 = vunpack.c.l.b16 %v3666
    %v3762 = vunpack.c.h.b16 %v3666
    %v3763 = vunpack.c.l.b16 %v3667
    %v3764 = vunpack.c.h.b16 %v3667
    %v3765 = vunpack.c.l.b16 %v3668
    %v3766 = vunpack.c.h.b16 %v3668
    %v3767 = vunpack.c.l.b16 %v3669
    %v3768 = vunpack.c.h.b16 %v3669
    %v3769 = vunpack.c.l.b16 %v3670
    %v3770 = vunpack.c.h.b16 %v3670
    %v3771 = vpack.c.b16 %v3711, %v3707
    %v3772 = vpack.c.b16 %v3712, %v3708
    %v3773 = vpack.c.b16 %v3713, %v3709
    %v3774 = vpack.c.b16 %v3714, %v3710
    %v3775 = vpack.c.b16 %v3719, %v3715
    %v3776 = vpack.c.b16 %v3720, %v3716
    %v3777 = vpack.c.b16 %v3721, %v3717
    %v3778 = vpack.c.b16 %v3722, %v3718
    %v3779 = vpack.c.b16 %v3727, %v3723
    %v3780 = vpack.c.b16 %v3728, %v3724
    %v3781 = vpack.c.b16 %v3729, %v3725
    %v3782 = vpack.c.b16 %v3730, %v3726
    %v3783 = vpack.c.b16 %v3735, %v3731
    %v3784 = vpack.c.b16 %v3736, %v3732
    %v3785 = vpack.c.b16 %v3737, %v3733
    %v3786 = vpack.c.b16 %v3738, %v3734
    %v3787 = vpack.c.b16 %v3743, %v3739
    %v3788 = vpack.c.b16 %v3744, %v3740
    %v3789 = vpack.c.b16 %v3745, %v3741
    %v3790 = vpack.c.b16 %v3746, %v3742
    %v3791 = vpack.c.b16 %v3751, %v3747
    %v3792 = vpack.c.b16 %v3752, %v3748
    %v3793 = vpack.c.b16 %v3753, %v3749
    %v3794 = vpack.c.b16 %v3754, %v3750
    %v3795 = vpack.c.b16 %v3759, %v3755
    %v3796 = vpack.c.b16 %v3760, %v3756
    %v3797 = vpack.c.b16 %v3761, %v3757
    %v3798 = vpack.c.b16 %v3762, %v3758
    %v3799 = vpack.c.b16 %v3767, %v3763
    %v3800 = vpack.c.b16 %v3768, %v3764
    %v3801 = vpack.c.b16 %v3769, %v3765
    %v3802 = vpack.c.b16 %v3770, %v3766
    %3835 = vmatpush.bf16.msra.mxu0 %v3799
    %3836 = vmatpush.bf16.msra.mxu0 %v3795
    %3837 = vmatpush.bf16.msra.mxu0 %v3791
    %3838 = vmatpush.bf16.msra.mxu0 %v3787
    %3839 = vmatpush.bf16.msra.mxu0 %v3783
    %3840 = vmatpush.bf16.msra.mxu0 %v3779
    %3841 = vmatpush.bf16.msra.mxu0 %v3775
    %3842 = vmatpush.bf16.msra.mxu0 %v3771
    %3843 = vmatmul.bf16.gmra.mxu0 0
    %v3844 = vpop.f32.mrf.mxu0
    %v3845 = vadd.f32 0.0, %v3844
    %v3846 = vpop.f32.mrf.mxu0
    %3847 = vdwg.mxu0
    %3848 = vmatpush.bf16.msra.mxu0 %v3800
    %3849 = vmatpush.bf16.msra.mxu0 %v3796
    %3850 = vmatpush.bf16.msra.mxu0 %v3792
    %3851 = vmatpush.bf16.msra.mxu0 %v3788
    %3852 = vmatpush.bf16.msra.mxu0 %v3784
    %3853 = vmatpush.bf16.msra.mxu0 %v3780
    %3854 = vmatpush.bf16.msra.mxu0 %v3776
    %3855 = vmatpush.bf16.msra.mxu0 %v3772
    %3856 = vmatmul.bf16.gmra.mxu0 0
    %v3857 = vpop.f32.mrf.mxu0
    %v3858 = vadd.f32 0.0, %v3857
    %v3859 = vpop.f32.mrf.mxu0
    %3860 = vdwg.mxu0
    %3861 = vmatpush.bf16.msra.mxu0 %v3801
    %3862 = vmatpush.bf16.msra.mxu0 %v3797
    %3863 = vmatpush.bf16.msra.mxu0 %v3793
    %3864 = vmatpush.bf16.msra.mxu0 %v3789
    %3865 = vmatpush.bf16.msra.mxu0 %v3785
    %3866 = vmatpush.bf16.msra.mxu0 %v3781
    %3867 = vmatpush.bf16.msra.mxu0 %v3777
    %3868 = vmatpush.bf16.msra.mxu0 %v3773
    %3869 = vmatmul.bf16.gmra.mxu0 0
    %v3870 = vpop.f32.mrf.mxu0
    %v3871 = vadd.f32 0.0, %v3870
    %v3872 = vpop.f32.mrf.mxu0
    %3873 = vdwg.mxu0
    %3874 = vmatpush.bf16.msra.mxu0 %v3802
    %3875 = vmatpush.bf16.msra.mxu0 %v3798
    %3876 = vmatpush.bf16.msra.mxu0 %v3794
    %3877 = vmatpush.bf16.msra.mxu0 %v3790
    %3878 = vmatpush.bf16.msra.mxu0 %v3786
    %3879 = vmatpush.bf16.msra.mxu0 %v3782
    %3880 = vmatpush.bf16.msra.mxu0 %v3778
    %3881 = vmatpush.bf16.msra.mxu0 %v3774
    %3882 = vmatmul.bf16.gmra.mxu0 0
    %v3883 = vpop.f32.mrf.mxu0
    %v3884 = vadd.f32 0.0, %v3883
    %v3885 = vpop.f32.mrf.mxu0
    %3886 = vdwg.mxu0
    %v3887 = vadd.f32 %v3671, %v3845
    %v3888 = vadd.f32 %v3672, %v3858
    %v3889 = vadd.f32 %v3673, %v3871
    %v3890 = vadd.f32 %v3674, %v3884
    %v3891 = vxor.u32 %v3887, 2147483648
    %v3892 = vxor.u32 %v3888, 2147483648
    %v3893 = vxor.u32 %v3889, 2147483648
    %v3894 = vmul.f32 %v3891, 1.442695
    %v3895 = vpow.pop %v3894
    %v3896 = vmul.f32 %v3892, 1.442695
    %v3897 = vpow.pop %v3896
    %v3898 = vmul.f32 %v3893, 1.442695
    %v3899 = vpow.pop %v3898
    %v3900 = vadd.f32 %v3895, 1.0
    %v3901 = vadd.f32 %v3897, 1.0
    %v3902 = vadd.f32 %v3899, 1.0
    %v3903 = vrcp.pop %v3900
    %v3904 = vmul.f32 %v3900, %v3903
    %v3905 = vsub.f32 1.0, %v3904
    %v3906 = vmul.f32 %v3903, %v3905
    %v3907 = vadd.f32 %v3903, %v3906
    %vm3908 = vweird.f32 %v3900
    %vm3909 = vweird.f32 %v3903
    %vm3910 = vmor %vm3908, %vm3909
    %v3911 = vsel %vm3910, %v3903, %v3907
    %v3912 = vand.u32 2147483647, %v3900
    %vm3913 = vcmp.eq.f32.partialorder %v3912, 8.507059e+37
    %v3914 = vand.u32 %v3900, 2147483648
    %v3915 = vor.u32 1.1754944e-38, %v3914
    %v3916 = vsel %vm3913, %v3915, %v3911
    %v3917 = vmul.f32 1.0, %v3916
    %v3918 = vrcp.pop %v3901
    %v3919 = vmul.f32 %v3901, %v3918
    %v3920 = vsub.f32 1.0, %v3919
    %v3921 = vmul.f32 %v3918, %v3920
    %v3922 = vadd.f32 %v3918, %v3921
    %vm3923 = vweird.f32 %v3901
    %vm3924 = vweird.f32 %v3918
    %vm3925 = vmor %vm3923, %vm3924
    %v3926 = vsel %vm3925, %v3918, %v3922
    %v3927 = vand.u32 2147483647, %v3901
    %vm3928 = vcmp.eq.f32.partialorder %v3927, 8.507059e+37
    %v3929 = vand.u32 %v3901, 2147483648
    %v3930 = vor.u32 1.1754944e-38, %v3929
    %v3931 = vsel %vm3928, %v3930, %v3926
    %v3932 = vmul.f32 1.0, %v3931
    %v3933 = vrcp.pop %v3902
    %v3934 = vmul.f32 %v3902, %v3933
    %v3935 = vsub.f32 1.0, %v3934
    %v3936 = vmul.f32 %v3933, %v3935
    %v3937 = vadd.f32 %v3933, %v3936
    %vm3938 = vweird.f32 %v3902
    %vm3939 = vweird.f32 %v3933
    %vm3940 = vmor %vm3938, %vm3939
    %v3941 = vsel %vm3940, %v3933, %v3937
    %v3942 = vand.u32 2147483647, %v3902
    %vm3943 = vcmp.eq.f32.partialorder %v3942, 8.507059e+37
    %v3944 = vand.u32 %v3902, 2147483648
    %v3945 = vor.u32 1.1754944e-38, %v3944
    %v3946 = vsel %vm3943, %v3945, %v3941
    %v3947 = vmul.f32 1.0, %v3946
    %v3948 = vtanh.pop %v3890
    %v3949 = vmul.f32 %v3932, 0.0
    %v3950 = vmul.f32 %v3917, %v3948
    %v3951 = vadd.f32 %v3949, %v3950
    %v3952 = vtanh.pop %v3951
    %v3953 = vmul.f32 %v3947, %v3952
    %3954 = vst [vmem:[#allocation3] sm:$0xff] %v3953
    %v3955 = vld [vmem:[%s1396] sm:$0xff]
    %v3956 = vld [vmem:[%s1396 + $0x8] sm:$0xff]
    %v3957 = vld [vmem:[%s1396 + $0x10] sm:$0xff]
    %v3958 = vld [vmem:[%s1396 + $0x18] sm:$0xff]
    %v3959 = vpack.c.bf16 %v3953, %v3953
    %3960 = vmatpush.bf16.msra.mxu0 %v3799
    %3961 = vmatpush.bf16.msra.mxu0 %v3795
    %3962 = vmatpush.bf16.msra.mxu0 %v3791
    %3963 = vmatpush.bf16.msra.mxu0 %v3787
    %3964 = vmatpush.bf16.msra.mxu0 %v3783
    %3965 = vmatpush.bf16.msra.mxu0 %v3779
    %3966 = vmatpush.bf16.msra.mxu0 %v3775
    %3967 = vmatpush.bf16.msra.mxu0 %v3771
    %3968 = vmatmul.bf16.gmra.mxu0 %v3959
    %v3969 = vpop.f32.mrf.mxu0
    %v3970 = vadd.f32 0.0, %v3969
    %v3971 = vpop.f32.mrf.mxu0
    %3972 = vdwg.mxu0
    %3973 = vmatpush.bf16.msra.mxu0 %v3800
    %3974 = vmatpush.bf16.msra.mxu0 %v3796
    %3975 = vmatpush.bf16.msra.mxu0 %v3792
    %3976 = vmatpush.bf16.msra.mxu0 %v3788
    %3977 = vmatpush.bf16.msra.mxu0 %v3784
    %3978 = vmatpush.bf16.msra.mxu0 %v3780
    %3979 = vmatpush.bf16.msra.mxu0 %v3776
    %3980 = vmatpush.bf16.msra.mxu0 %v3772
    %3981 = vmatmul.bf16.gmra.mxu0 %v3959
    %v3982 = vpop.f32.mrf.mxu0
    %v3983 = vadd.f32 0.0, %v3982
    %v3984 = vpop.f32.mrf.mxu0
    %3985 = vdwg.mxu0
    %3986 = vmatpush.bf16.msra.mxu0 %v3801
    %3987 = vmatpush.bf16.msra.mxu0 %v3797
    %3988 = vmatpush.bf16.msra.mxu0 %v3793
    %3989 = vmatpush.bf16.msra.mxu0 %v3789
    %3990 = vmatpush.bf16.msra.mxu0 %v3785
    %3991 = vmatpush.bf16.msra.mxu0 %v3781
    %3992 = vmatpush.bf16.msra.mxu0 %v3777
    %3993 = vmatpush.bf16.msra.mxu0 %v3773
    %3994 = vmatmul.bf16.gmra.mxu0 %v3959
    %v3995 = vpop.f32.mrf.mxu0
    %v3996 = vadd.f32 0.0, %v3995
    %v3997 = vpop.f32.mrf.mxu0
    %3998 = vdwg.mxu0
    %3999 = vmatpush.bf16.msra.mxu0 %v3802
    %4000 = vmatpush.bf16.msra.mxu0 %v3798
    %4001 = vmatpush.bf16.msra.mxu0 %v3794
    %4002 = vmatpush.bf16.msra.mxu0 %v3790
    %4003 = vmatpush.bf16.msra.mxu0 %v3786
    %4004 = vmatpush.bf16.msra.mxu0 %v3782
    %4005 = vmatpush.bf16.msra.mxu0 %v3778
    %4006 = vmatpush.bf16.msra.mxu0 %v3774
    %4007 = vmatmul.bf16.gmra.mxu0 %v3959
    %v4008 = vpop.f32.mrf.mxu0
    %v4009 = vadd.f32 0.0, %v4008
    %v4010 = vpop.f32.mrf.mxu0
    %4011 = vdwg.mxu0
    %v4012 = vadd.f32 %v3955, %v3970
    %v4013 = vadd.f32 %v3956, %v3983
    %v4014 = vadd.f32 %v3957, %v3996
    %v4015 = vadd.f32 %v3958, %v4009
    %v4016 = vxor.u32 %v4012, 2147483648
    %v4017 = vxor.u32 %v4013, 2147483648
    %v4018 = vxor.u32 %v4014, 2147483648
    %v4019 = vmul.f32 %v4016, 1.442695
    %v4020 = vpow.pop %v4019
    %v4021 = vmul.f32 %v4017, 1.442695
    %v4022 = vpow.pop %v4021
    %v4023 = vmul.f32 %v4018, 1.442695
    %v4024 = vpow.pop %v4023
    %v4025 = vadd.f32 %v4020, 1.0
    %v4026 = vadd.f32 %v4022, 1.0
    %v4027 = vadd.f32 %v4024, 1.0
    %v4028 = vrcp.pop %v4025
    %v4029 = vmul.f32 %v4025, %v4028
    %v4030 = vsub.f32 1.0, %v4029
    %v4031 = vmul.f32 %v4028, %v4030
    %v4032 = vadd.f32 %v4028, %v4031
    %vm4033 = vweird.f32 %v4025
    %vm4034 = vweird.f32 %v4028
    %vm4035 = vmor %vm4033, %vm4034
    %v4036 = vsel %vm4035, %v4028, %v4032
    %v4037 = vand.u32 2147483647, %v4025
    %vm4038 = vcmp.eq.f32.partialorder %v4037, 8.507059e+37
    %v4039 = vand.u32 %v4025, 2147483648
    %v4040 = vor.u32 1.1754944e-38, %v4039
    %v4041 = vsel %vm4038, %v4040, %v4036
    %v4042 = vmul.f32 1.0, %v4041
    %v4043 = vrcp.pop %v4026
    %v4044 = vmul.f32 %v4026, %v4043
    %v4045 = vsub.f32 1.0, %v4044
    %v4046 = vmul.f32 %v4043, %v4045
    %v4047 = vadd.f32 %v4043, %v4046
    %vm4048 = vweird.f32 %v4026
    %vm4049 = vweird.f32 %v4043
    %vm4050 = vmor %vm4048, %vm4049
    %v4051 = vsel %vm4050, %v4043, %v4047
    %v4052 = vand.u32 2147483647, %v4026
    %vm4053 = vcmp.eq.f32.partialorder %v4052, 8.507059e+37
    %v4054 = vand.u32 %v4026, 2147483648
    %v4055 = vor.u32 1.1754944e-38, %v4054
    %v4056 = vsel %vm4053, %v4055, %v4051
    %v4057 = vmul.f32 1.0, %v4056
    %v4058 = vrcp.pop %v4027
    %v4059 = vmul.f32 %v4027, %v4058
    %v4060 = vsub.f32 1.0, %v4059
    %v4061 = vmul.f32 %v4058, %v4060
    %v4062 = vadd.f32 %v4058, %v4061
    %vm4063 = vweird.f32 %v4027
    %vm4064 = vweird.f32 %v4058
    %vm4065 = vmor %vm4063, %vm4064
    %v4066 = vsel %vm4065, %v4058, %v4062
    %v4067 = vand.u32 2147483647, %v4027
    %vm4068 = vcmp.eq.f32.partialorder %v4067, 8.507059e+37
    %v4069 = vand.u32 %v4027, 2147483648
    %v4070 = vor.u32 1.1754944e-38, %v4069
    %v4071 = vsel %vm4068, %v4070, %v4066
    %v4072 = vmul.f32 1.0, %v4071
    %v4073 = vtanh.pop %v4015
    %v4074 = vmul.f32 %v4057, %v3951
    %v4075 = vmul.f32 %v4042, %v4073
    %v4076 = vadd.f32 %v4074, %v4075
    %v4077 = vtanh.pop %v4076
    %v4078 = vmul.f32 %v4072, %v4077
    %4079 = vst [vmem:[%s1521] sm:$0xff] %v4078
    %v4080 = vld [vmem:[%s1523] sm:$0xff]
    %v4081 = vld [vmem:[%s1523 + $0x8] sm:$0xff]
    %v4082 = vld [vmem:[%s1523 + $0x10] sm:$0xff]
    %v4083 = vld [vmem:[%s1523 + $0x18] sm:$0xff]
    %v4084 = vpack.c.bf16 %v4078, %v4078
    %4085 = vmatpush.bf16.msra.mxu0 %v3799
    %4086 = vmatpush.bf16.msra.mxu0 %v3795
    %4087 = vmatpush.bf16.msra.mxu0 %v3791
    %4088 = vmatpush.bf16.msra.mxu0 %v3787
    %4089 = vmatpush.bf16.msra.mxu0 %v3783
    %4090 = vmatpush.bf16.msra.mxu0 %v3779
    %4091 = vmatpush.bf16.msra.mxu0 %v3775
    %4092 = vmatpush.bf16.msra.mxu0 %v3771
    %4093 = vmatmul.bf16.gmra.mxu0 %v4084
    %v4094 = vpop.f32.mrf.mxu0
    %v4095 = vadd.f32 0.0, %v4094
    %v4096 = vpop.f32.mrf.mxu0
    %4097 = vdwg.mxu0
    %4098 = vmatpush.bf16.msra.mxu0 %v3800
    %4099 = vmatpush.bf16.msra.mxu0 %v3796
    %4100 = vmatpush.bf16.msra.mxu0 %v3792
    %4101 = vmatpush.bf16.msra.mxu0 %v3788
    %4102 = vmatpush.bf16.msra.mxu0 %v3784
    %4103 = vmatpush.bf16.msra.mxu0 %v3780
    %4104 = vmatpush.bf16.msra.mxu0 %v3776
    %4105 = vmatpush.bf16.msra.mxu0 %v3772
    %4106 = vmatmul.bf16.gmra.mxu0 %v4084
    %v4107 = vpop.f32.mrf.mxu0
    %v4108 = vadd.f32 0.0, %v4107
    %v4109 = vpop.f32.mrf.mxu0
    %4110 = vdwg.mxu0
    %4111 = vmatpush.bf16.msra.mxu0 %v3801
    %4112 = vmatpush.bf16.msra.mxu0 %v3797
    %4113 = vmatpush.bf16.msra.mxu0 %v3793
    %4114 = vmatpush.bf16.msra.mxu0 %v3789
    %4115 = vmatpush.bf16.msra.mxu0 %v3785
    %4116 = vmatpush.bf16.msra.mxu0 %v3781
    %4117 = vmatpush.bf16.msra.mxu0 %v3777
    %4118 = vmatpush.bf16.msra.mxu0 %v3773
    %4119 = vmatmul.bf16.gmra.mxu0 %v4084
    %v4120 = vpop.f32.mrf.mxu0
    %v4121 = vadd.f32 0.0, %v4120
    %v4122 = vpop.f32.mrf.mxu0
    %4123 = vdwg.mxu0
    %4124 = vmatpush.bf16.msra.mxu0 %v3802
    %4125 = vmatpush.bf16.msra.mxu0 %v3798
    %4126 = vmatpush.bf16.msra.mxu0 %v3794
    %4127 = vmatpush.bf16.msra.mxu0 %v3790
    %4128 = vmatpush.bf16.msra.mxu0 %v3786
    %4129 = vmatpush.bf16.msra.mxu0 %v3782
    %4130 = vmatpush.bf16.msra.mxu0 %v3778
    %4131 = vmatpush.bf16.msra.mxu0 %v3774
    %4132 = vmatmul.bf16.gmra.mxu0 %v4084
    %v4133 = vpop.f32.mrf.mxu0
    %v4134 = vadd.f32 0.0, %v4133
    %v4135 = vpop.f32.mrf.mxu0
    %4136 = vdwg.mxu0
    %v4137 = vadd.f32 %v4080, %v4095
    %v4138 = vadd.f32 %v4081, %v4108
    %v4139 = vadd.f32 %v4082, %v4121
    %v4140 = vadd.f32 %v4083, %v4134
    %v4141 = vxor.u32 %v4137, 2147483648
    %v4142 = vxor.u32 %v4138, 2147483648
    %v4143 = vxor.u32 %v4139, 2147483648
    %v4144 = vmul.f32 %v4141, 1.442695
    %v4145 = vpow.pop %v4144
    %v4146 = vmul.f32 %v4142, 1.442695
    %v4147 = vpow.pop %v4146
    %v4148 = vmul.f32 %v4143, 1.442695
    %v4149 = vpow.pop %v4148
    %v4150 = vadd.f32 %v4145, 1.0
    %v4151 = vadd.f32 %v4147, 1.0
    %v4152 = vadd.f32 %v4149, 1.0
    %v4153 = vrcp.pop %v4150
    %v4154 = vmul.f32 %v4150, %v4153
    %v4155 = vsub.f32 1.0, %v4154
    %v4156 = vmul.f32 %v4153, %v4155
    %v4157 = vadd.f32 %v4153, %v4156
    %vm4158 = vweird.f32 %v4150
    %vm4159 = vweird.f32 %v4153
    %vm4160 = vmor %vm4158, %vm4159
    %v4161 = vsel %vm4160, %v4153, %v4157
    %v4162 = vand.u32 2147483647, %v4150
    %vm4163 = vcmp.eq.f32.partialorder %v4162, 8.507059e+37
    %v4164 = vand.u32 %v4150, 2147483648
    %v4165 = vor.u32 1.1754944e-38, %v4164
    %v4166 = vsel %vm4163, %v4165, %v4161
    %v4167 = vmul.f32 1.0, %v4166
    %v4168 = vrcp.pop %v4151
    %v4169 = vmul.f32 %v4151, %v4168
    %v4170 = vsub.f32 1.0, %v4169
    %v4171 = vmul.f32 %v4168, %v4170
    %v4172 = vadd.f32 %v4168, %v4171
    %vm4173 = vweird.f32 %v4151
    %vm4174 = vweird.f32 %v4168
    %vm4175 = vmor %vm4173, %vm4174
    %v4176 = vsel %vm4175, %v4168, %v4172
    %v4177 = vand.u32 2147483647, %v4151
    %vm4178 = vcmp.eq.f32.partialorder %v4177, 8.507059e+37
    %v4179 = vand.u32 %v4151, 2147483648
    %v4180 = vor.u32 1.1754944e-38, %v4179
    %v4181 = vsel %vm4178, %v4180, %v4176
    %v4182 = vmul.f32 1.0, %v4181
    %v4183 = vrcp.pop %v4152
    %v4184 = vmul.f32 %v4152, %v4183
    %v4185 = vsub.f32 1.0, %v4184
    %v4186 = vmul.f32 %v4183, %v4185
    %v4187 = vadd.f32 %v4183, %v4186
    %vm4188 = vweird.f32 %v4152
    %vm4189 = vweird.f32 %v4183
    %vm4190 = vmor %vm4188, %vm4189
    %v4191 = vsel %vm4190, %v4183, %v4187
    %v4192 = vand.u32 2147483647, %v4152
    %vm4193 = vcmp.eq.f32.partialorder %v4192, 8.507059e+37
    %v4194 = vand.u32 %v4152, 2147483648
    %v4195 = vor.u32 1.1754944e-38, %v4194
    %v4196 = vsel %vm4193, %v4195, %v4191
    %v4197 = vmul.f32 1.0, %v4196
    %v4198 = vtanh.pop %v4140
    %v4199 = vmul.f32 %v4182, %v4076
    %v4200 = vmul.f32 %v4167, %v4198
    %v4201 = vadd.f32 %v4199, %v4200
    %v4202 = vtanh.pop %v4201
    %v4203 = vmul.f32 %v4197, %v4202
    %4204 = vst [vmem:[%s1648] sm:$0xff] %v4203
    %v4205 = vld [vmem:[%s1650] sm:$0xff]
    %v4206 = vld [vmem:[%s1650 + $0x8] sm:$0xff]
    %v4207 = vld [vmem:[%s1650 + $0x10] sm:$0xff]
    %v4208 = vld [vmem:[%s1650 + $0x18] sm:$0xff]
    %v4209 = vpack.c.bf16 %v4203, %v4203
    %4210 = vmatpush.bf16.msra.mxu0 %v3799
    %4211 = vmatpush.bf16.msra.mxu0 %v3795
    %4212 = vmatpush.bf16.msra.mxu0 %v3791
    %4213 = vmatpush.bf16.msra.mxu0 %v3787
    %4214 = vmatpush.bf16.msra.mxu0 %v3783
    %4215 = vmatpush.bf16.msra.mxu0 %v3779
    %4216 = vmatpush.bf16.msra.mxu0 %v3775
    %4217 = vmatpush.bf16.msra.mxu0 %v3771
    %4218 = vmatmul.bf16.gmra.mxu0 %v4209
    %v4219 = vpop.f32.mrf.mxu0
    %v4220 = vadd.f32 0.0, %v4219
    %v4221 = vpop.f32.mrf.mxu0
    %4222 = vdwg.mxu0
    %4223 = vmatpush.bf16.msra.mxu0 %v3800
    %4224 = vmatpush.bf16.msra.mxu0 %v3796
    %4225 = vmatpush.bf16.msra.mxu0 %v3792
    %4226 = vmatpush.bf16.msra.mxu0 %v3788
    %4227 = vmatpush.bf16.msra.mxu0 %v3784
    %4228 = vmatpush.bf16.msra.mxu0 %v3780
    %4229 = vmatpush.bf16.msra.mxu0 %v3776
    %4230 = vmatpush.bf16.msra.mxu0 %v3772
    %4231 = vmatmul.bf16.gmra.mxu0 %v4209
    %v4232 = vpop.f32.mrf.mxu0
    %v4233 = vadd.f32 0.0, %v4232
    %v4234 = vpop.f32.mrf.mxu0
    %4235 = vdwg.mxu0
    %4236 = vmatpush.bf16.msra.mxu0 %v3801
    %4237 = vmatpush.bf16.msra.mxu0 %v3797
    %4238 = vmatpush.bf16.msra.mxu0 %v3793
    %4239 = vmatpush.bf16.msra.mxu0 %v3789
    %4240 = vmatpush.bf16.msra.mxu0 %v3785
    %4241 = vmatpush.bf16.msra.mxu0 %v3781
    %4242 = vmatpush.bf16.msra.mxu0 %v3777
    %4243 = vmatpush.bf16.msra.mxu0 %v3773
    %4244 = vmatmul.bf16.gmra.mxu0 %v4209
    %v4245 = vpop.f32.mrf.mxu0
    %v4246 = vadd.f32 0.0, %v4245
    %v4247 = vpop.f32.mrf.mxu0
    %4248 = vdwg.mxu0
    %4249 = vmatpush.bf16.msra.mxu0 %v3802
    %4250 = vmatpush.bf16.msra.mxu0 %v3798
    %4251 = vmatpush.bf16.msra.mxu0 %v3794
    %4252 = vmatpush.bf16.msra.mxu0 %v3790
    %4253 = vmatpush.bf16.msra.mxu0 %v3786
    %4254 = vmatpush.bf16.msra.mxu0 %v3782
    %4255 = vmatpush.bf16.msra.mxu0 %v3778
    %4256 = vmatpush.bf16.msra.mxu0 %v3774
    %4257 = vmatmul.bf16.gmra.mxu0 %v4209
    %v4258 = vpop.f32.mrf.mxu0
    %v4259 = vadd.f32 0.0, %v4258
    %v4260 = vpop.f32.mrf.mxu0
    %4261 = vdwg.mxu0
    %v4262 = vadd.f32 %v4205, %v4220
    %v4263 = vadd.f32 %v4206, %v4233
    %v4264 = vadd.f32 %v4207, %v4246
    %v4265 = vadd.f32 %v4208, %v4259
    %v4266 = vxor.u32 %v4262, 2147483648
    %v4267 = vxor.u32 %v4263, 2147483648
    %v4268 = vxor.u32 %v4264, 2147483648
    %v4269 = vmul.f32 %v4266, 1.442695
    %v4270 = vpow.pop %v4269
    %v4271 = vmul.f32 %v4267, 1.442695
    %v4272 = vpow.pop %v4271
    %v4273 = vmul.f32 %v4268, 1.442695
    %v4274 = vpow.pop %v4273
    %v4275 = vadd.f32 %v4270, 1.0
    %v4276 = vadd.f32 %v4272, 1.0
    %v4277 = vadd.f32 %v4274, 1.0
    %v4278 = vrcp.pop %v4275
    %v4279 = vmul.f32 %v4275, %v4278
    %v4280 = vsub.f32 1.0, %v4279
    %v4281 = vmul.f32 %v4278, %v4280
    %v4282 = vadd.f32 %v4278, %v4281
    %vm4283 = vweird.f32 %v4275
    %vm4284 = vweird.f32 %v4278
    %vm4285 = vmor %vm4283, %vm4284
    %v4286 = vsel %vm4285, %v4278, %v4282
    %v4287 = vand.u32 2147483647, %v4275
    %vm4288 = vcmp.eq.f32.partialorder %v4287, 8.507059e+37
    %v4289 = vand.u32 %v4275, 2147483648
    %v4290 = vor.u32 1.1754944e-38, %v4289
    %v4291 = vsel %vm4288, %v4290, %v4286
    %v4292 = vmul.f32 1.0, %v4291
    %v4293 = vrcp.pop %v4276
    %v4294 = vmul.f32 %v4276, %v4293
    %v4295 = vsub.f32 1.0, %v4294
    %v4296 = vmul.f32 %v4293, %v4295
    %v4297 = vadd.f32 %v4293, %v4296
    %vm4298 = vweird.f32 %v4276
    %vm4299 = vweird.f32 %v4293
    %vm4300 = vmor %vm4298, %vm4299
    %v4301 = vsel %vm4300, %v4293, %v4297
    %v4302 = vand.u32 2147483647, %v4276
    %vm4303 = vcmp.eq.f32.partialorder %v4302, 8.507059e+37
    %v4304 = vand.u32 %v4276, 2147483648
    %v4305 = vor.u32 1.1754944e-38, %v4304
    %v4306 = vsel %vm4303, %v4305, %v4301
    %v4307 = vmul.f32 1.0, %v4306
    %v4308 = vrcp.pop %v4277
    %v4309 = vmul.f32 %v4277, %v4308
    %v4310 = vsub.f32 1.0, %v4309
    %v4311 = vmul.f32 %v4308, %v4310
    %v4312 = vadd.f32 %v4308, %v4311
    %vm4313 = vweird.f32 %v4277
    %vm4314 = vweird.f32 %v4308
    %vm4315 = vmor %vm4313, %vm4314
    %v4316 = vsel %vm4315, %v4308, %v4312
    %v4317 = vand.u32 2147483647, %v4277
    %vm4318 = vcmp.eq.f32.partialorder %v4317, 8.507059e+37
    %v4319 = vand.u32 %v4277, 2147483648
    %v4320 = vor.u32 1.1754944e-38, %v4319
    %v4321 = vsel %vm4318, %v4320, %v4316
    %v4322 = vmul.f32 1.0, %v4321
    %v4323 = vtanh.pop %v4265
    %v4324 = vmul.f32 %v4307, %v4201
    %v4325 = vmul.f32 %v4292, %v4323
    %v4326 = vadd.f32 %v4324, %v4325
    %v4327 = vtanh.pop %v4326
    %v4328 = vmul.f32 %v4322, %v4327
    %4329 = vst [vmem:[%s1775] sm:$0xff] %v4328
    %v4330 = vld [vmem:[%s1777] sm:$0xff]
    %v4331 = vld [vmem:[%s1777 + $0x8] sm:$0xff]
    %v4332 = vld [vmem:[%s1777 + $0x10] sm:$0xff]
    %v4333 = vld [vmem:[%s1777 + $0x18] sm:$0xff]
    %v4334 = vpack.c.bf16 %v4328, %v4328
    %4335 = vmatpush.bf16.msra.mxu0 %v3799
    %4336 = vmatpush.bf16.msra.mxu0 %v3795
    %4337 = vmatpush.bf16.msra.mxu0 %v3791
    %4338 = vmatpush.bf16.msra.mxu0 %v3787
    %4339 = vmatpush.bf16.msra.mxu0 %v3783
    %4340 = vmatpush.bf16.msra.mxu0 %v3779
    %4341 = vmatpush.bf16.msra.mxu0 %v3775
    %4342 = vmatpush.bf16.msra.mxu0 %v3771
    %4343 = vmatmul.bf16.gmra.mxu0 %v4334
    %v4344 = vpop.f32.mrf.mxu0
    %v4345 = vadd.f32 0.0, %v4344
    %v4346 = vpop.f32.mrf.mxu0
    %4347 = vdwg.mxu0
    %4348 = vmatpush.bf16.msra.mxu0 %v3800
    %4349 = vmatpush.bf16.msra.mxu0 %v3796
    %4350 = vmatpush.bf16.msra.mxu0 %v3792
    %4351 = vmatpush.bf16.msra.mxu0 %v3788
    %4352 = vmatpush.bf16.msra.mxu0 %v3784
    %4353 = vmatpush.bf16.msra.mxu0 %v3780
    %4354 = vmatpush.bf16.msra.mxu0 %v3776
    %4355 = vmatpush.bf16.msra.mxu0 %v3772
    %4356 = vmatmul.bf16.gmra.mxu0 %v4334
    %v4357 = vpop.f32.mrf.mxu0
    %v4358 = vadd.f32 0.0, %v4357
    %v4359 = vpop.f32.mrf.mxu0
    %4360 = vdwg.mxu0
    %4361 = vmatpush.bf16.msra.mxu0 %v3801
    %4362 = vmatpush.bf16.msra.mxu0 %v3797
    %4363 = vmatpush.bf16.msra.mxu0 %v3793
    %4364 = vmatpush.bf16.msra.mxu0 %v3789
    %4365 = vmatpush.bf16.msra.mxu0 %v3785
    %4366 = vmatpush.bf16.msra.mxu0 %v3781
    %4367 = vmatpush.bf16.msra.mxu0 %v3777
    %4368 = vmatpush.bf16.msra.mxu0 %v3773
    %4369 = vmatmul.bf16.gmra.mxu0 %v4334
    %v4370 = vpop.f32.mrf.mxu0
    %v4371 = vadd.f32 0.0, %v4370
    %v4372 = vpop.f32.mrf.mxu0
    %4373 = vdwg.mxu0
    %4374 = vmatpush.bf16.msra.mxu0 %v3802
    %4375 = vmatpush.bf16.msra.mxu0 %v3798
    %4376 = vmatpush.bf16.msra.mxu0 %v3794
    %4377 = vmatpush.bf16.msra.mxu0 %v3790
    %4378 = vmatpush.bf16.msra.mxu0 %v3786
    %4379 = vmatpush.bf16.msra.mxu0 %v3782
    %4380 = vmatpush.bf16.msra.mxu0 %v3778
    %4381 = vmatpush.bf16.msra.mxu0 %v3774
    %4382 = vmatmul.bf16.gmra.mxu0 %v4334
    %v4383 = vpop.f32.mrf.mxu0
    %v4384 = vadd.f32 0.0, %v4383
    %v4385 = vpop.f32.mrf.mxu0
    %4386 = vdwg.mxu0
    %v4387 = vadd.f32 %v4330, %v4345
    %v4388 = vadd.f32 %v4331, %v4358
    %v4389 = vadd.f32 %v4332, %v4371
    %v4390 = vadd.f32 %v4333, %v4384
    %v4391 = vxor.u32 %v4387, 2147483648
    %v4392 = vxor.u32 %v4388, 2147483648
    %v4393 = vxor.u32 %v4389, 2147483648
    %v4394 = vmul.f32 %v4391, 1.442695
    %v4395 = vpow.pop %v4394
    %v4396 = vmul.f32 %v4392, 1.442695
    %v4397 = vpow.pop %v4396
    %v4398 = vmul.f32 %v4393, 1.442695
    %v4399 = vpow.pop %v4398
    %v4400 = vadd.f32 %v4395, 1.0
    %v4401 = vadd.f32 %v4397, 1.0
    %v4402 = vadd.f32 %v4399, 1.0
    %v4403 = vrcp.pop %v4400
    %v4404 = vmul.f32 %v4400, %v4403
    %v4405 = vsub.f32 1.0, %v4404
    %v4406 = vmul.f32 %v4403, %v4405
    %v4407 = vadd.f32 %v4403, %v4406
    %vm4408 = vweird.f32 %v4400
    %vm4409 = vweird.f32 %v4403
    %vm4410 = vmor %vm4408, %vm4409
    %v4411 = vsel %vm4410, %v4403, %v4407
    %v4412 = vand.u32 2147483647, %v4400
    %vm4413 = vcmp.eq.f32.partialorder %v4412, 8.507059e+37
    %v4414 = vand.u32 %v4400, 2147483648
    %v4415 = vor.u32 1.1754944e-38, %v4414
    %v4416 = vsel %vm4413, %v4415, %v4411
    %v4417 = vmul.f32 1.0, %v4416
    %v4418 = vrcp.pop %v4401
    %v4419 = vmul.f32 %v4401, %v4418
    %v4420 = vsub.f32 1.0, %v4419
    %v4421 = vmul.f32 %v4418, %v4420
    %v4422 = vadd.f32 %v4418, %v4421
    %vm4423 = vweird.f32 %v4401
    %vm4424 = vweird.f32 %v4418
    %vm4425 = vmor %vm4423, %vm4424
    %v4426 = vsel %vm4425, %v4418, %v4422
    %v4427 = vand.u32 2147483647, %v4401
    %vm4428 = vcmp.eq.f32.partialorder %v4427, 8.507059e+37
    %v4429 = vand.u32 %v4401, 2147483648
    %v4430 = vor.u32 1.1754944e-38, %v4429
    %v4431 = vsel %vm4428, %v4430, %v4426
    %v4432 = vmul.f32 1.0, %v4431
    %v4433 = vrcp.pop %v4402
    %v4434 = vmul.f32 %v4402, %v4433
    %v4435 = vsub.f32 1.0, %v4434
    %v4436 = vmul.f32 %v4433, %v4435
    %v4437 = vadd.f32 %v4433, %v4436
    %vm4438 = vweird.f32 %v4402
    %vm4439 = vweird.f32 %v4433
    %vm4440 = vmor %vm4438, %vm4439
    %v4441 = vsel %vm4440, %v4433, %v4437
    %v4442 = vand.u32 2147483647, %v4402
    %vm4443 = vcmp.eq.f32.partialorder %v4442, 8.507059e+37
    %v4444 = vand.u32 %v4402, 2147483648
    %v4445 = vor.u32 1.1754944e-38, %v4444
    %v4446 = vsel %vm4443, %v4445, %v4441
    %v4447 = vmul.f32 1.0, %v4446
    %v4448 = vtanh.pop %v4390
    %v4449 = vmul.f32 %v4432, %v4326
    %v4450 = vmul.f32 %v4417, %v4448
    %v4451 = vadd.f32 %v4449, %v4450
    %v4452 = vtanh.pop %v4451
    %v4453 = vmul.f32 %v4447, %v4452
    %4454 = vst [vmem:[%s1902] sm:$0xff] %v4453
    %v4455 = vld [vmem:[%s1904] sm:$0xff]
    %v4456 = vld [vmem:[%s1904 + $0x8] sm:$0xff]
    %v4457 = vld [vmem:[%s1904 + $0x10] sm:$0xff]
    %v4458 = vld [vmem:[%s1904 + $0x18] sm:$0xff]
    %v4459 = vpack.c.bf16 %v4453, %v4453
    %4460 = vmatpush.bf16.msra.mxu0 %v3799
    %4461 = vmatpush.bf16.msra.mxu0 %v3795
    %4462 = vmatpush.bf16.msra.mxu0 %v3791
    %4463 = vmatpush.bf16.msra.mxu0 %v3787
    %4464 = vmatpush.bf16.msra.mxu0 %v3783
    %4465 = vmatpush.bf16.msra.mxu0 %v3779
    %4466 = vmatpush.bf16.msra.mxu0 %v3775
    %4467 = vmatpush.bf16.msra.mxu0 %v3771
    %4468 = vmatmul.bf16.gmra.mxu0 %v4459
    %v4469 = vpop.f32.mrf.mxu0
    %v4470 = vadd.f32 0.0, %v4469
    %v4471 = vpop.f32.mrf.mxu0
    %4472 = vdwg.mxu0
    %4473 = vmatpush.bf16.msra.mxu0 %v3800
    %4474 = vmatpush.bf16.msra.mxu0 %v3796
    %4475 = vmatpush.bf16.msra.mxu0 %v3792
    %4476 = vmatpush.bf16.msra.mxu0 %v3788
    %4477 = vmatpush.bf16.msra.mxu0 %v3784
    %4478 = vmatpush.bf16.msra.mxu0 %v3780
    %4479 = vmatpush.bf16.msra.mxu0 %v3776
    %4480 = vmatpush.bf16.msra.mxu0 %v3772
    %4481 = vmatmul.bf16.gmra.mxu0 %v4459
    %v4482 = vpop.f32.mrf.mxu0
    %v4483 = vadd.f32 0.0, %v4482
    %v4484 = vpop.f32.mrf.mxu0
    %4485 = vdwg.mxu0
    %4486 = vmatpush.bf16.msra.mxu0 %v3801
    %4487 = vmatpush.bf16.msra.mxu0 %v3797
    %4488 = vmatpush.bf16.msra.mxu0 %v3793
    %4489 = vmatpush.bf16.msra.mxu0 %v3789
    %4490 = vmatpush.bf16.msra.mxu0 %v3785
    %4491 = vmatpush.bf16.msra.mxu0 %v3781
    %4492 = vmatpush.bf16.msra.mxu0 %v3777
    %4493 = vmatpush.bf16.msra.mxu0 %v3773
    %4494 = vmatmul.bf16.gmra.mxu0 %v4459
    %v4495 = vpop.f32.mrf.mxu0
    %v4496 = vadd.f32 0.0, %v4495
    %v4497 = vpop.f32.mrf.mxu0
    %4498 = vdwg.mxu0
    %4499 = vmatpush.bf16.msra.mxu0 %v3802
    %4500 = vmatpush.bf16.msra.mxu0 %v3798
    %4501 = vmatpush.bf16.msra.mxu0 %v3794
    %4502 = vmatpush.bf16.msra.mxu0 %v3790
    %4503 = vmatpush.bf16.msra.mxu0 %v3786
    %4504 = vmatpush.bf16.msra.mxu0 %v3782
    %4505 = vmatpush.bf16.msra.mxu0 %v3778
    %4506 = vmatpush.bf16.msra.mxu0 %v3774
    %4507 = vmatmul.bf16.gmra.mxu0 %v4459
    %v4508 = vpop.f32.mrf.mxu0
    %v4509 = vadd.f32 0.0, %v4508
    %v4510 = vpop.f32.mrf.mxu0
    %4511 = vdwg.mxu0
    %v4512 = vadd.f32 %v4455, %v4470
    %v4513 = vadd.f32 %v4456, %v4483
    %v4514 = vadd.f32 %v4457, %v4496
    %v4515 = vadd.f32 %v4458, %v4509
    %v4516 = vxor.u32 %v4512, 2147483648
    %v4517 = vxor.u32 %v4513, 2147483648
    %v4518 = vxor.u32 %v4514, 2147483648
    %v4519 = vmul.f32 %v4516, 1.442695
    %v4520 = vpow.pop %v4519
    %v4521 = vmul.f32 %v4517, 1.442695
    %v4522 = vpow.pop %v4521
    %v4523 = vmul.f32 %v4518, 1.442695
    %v4524 = vpow.pop %v4523
    %v4525 = vadd.f32 %v4520, 1.0
    %v4526 = vadd.f32 %v4522, 1.0
    %v4527 = vadd.f32 %v4524, 1.0
    %v4528 = vrcp.pop %v4525
    %v4529 = vmul.f32 %v4525, %v4528
    %v4530 = vsub.f32 1.0, %v4529
    %v4531 = vmul.f32 %v4528, %v4530
    %v4532 = vadd.f32 %v4528, %v4531
    %vm4533 = vweird.f32 %v4525
    %vm4534 = vweird.f32 %v4528
    %vm4535 = vmor %vm4533, %vm4534
    %v4536 = vsel %vm4535, %v4528, %v4532
    %v4537 = vand.u32 2147483647, %v4525
    %vm4538 = vcmp.eq.f32.partialorder %v4537, 8.507059e+37
    %v4539 = vand.u32 %v4525, 2147483648
    %v4540 = vor.u32 1.1754944e-38, %v4539
    %v4541 = vsel %vm4538, %v4540, %v4536
    %v4542 = vmul.f32 1.0, %v4541
    %v4543 = vrcp.pop %v4526
    %v4544 = vmul.f32 %v4526, %v4543
    %v4545 = vsub.f32 1.0, %v4544
    %v4546 = vmul.f32 %v4543, %v4545
    %v4547 = vadd.f32 %v4543, %v4546
    %vm4548 = vweird.f32 %v4526
    %vm4549 = vweird.f32 %v4543
    %vm4550 = vmor %vm4548, %vm4549
    %v4551 = vsel %vm4550, %v4543, %v4547
    %v4552 = vand.u32 2147483647, %v4526
    %vm4553 = vcmp.eq.f32.partialorder %v4552, 8.507059e+37
    %v4554 = vand.u32 %v4526, 2147483648
    %v4555 = vor.u32 1.1754944e-38, %v4554
    %v4556 = vsel %vm4553, %v4555, %v4551
    %v4557 = vmul.f32 1.0, %v4556
    %v4558 = vrcp.pop %v4527
    %v4559 = vmul.f32 %v4527, %v4558
    %v4560 = vsub.f32 1.0, %v4559
    %v4561 = vmul.f32 %v4558, %v4560
    %v4562 = vadd.f32 %v4558, %v4561
    %vm4563 = vweird.f32 %v4527
    %vm4564 = vweird.f32 %v4558
    %vm4565 = vmor %vm4563, %vm4564
    %v4566 = vsel %vm4565, %v4558, %v4562
    %v4567 = vand.u32 2147483647, %v4527
    %vm4568 = vcmp.eq.f32.partialorder %v4567, 8.507059e+37
    %v4569 = vand.u32 %v4527, 2147483648
    %v4570 = vor.u32 1.1754944e-38, %v4569
    %v4571 = vsel %vm4568, %v4570, %v4566
    %v4572 = vmul.f32 1.0, %v4571
    %v4573 = vtanh.pop %v4515
    %v4574 = vmul.f32 %v4557, %v4451
    %v4575 = vmul.f32 %v4542, %v4573
    %v4576 = vadd.f32 %v4574, %v4575
    %v4577 = vtanh.pop %v4576
    %v4578 = vmul.f32 %v4572, %v4577
    %4579 = vst [vmem:[%s2029] sm:$0xff] %v4578
    %v4580 = vld [vmem:[#allocation3] sm:$0xff]
    %v4581 = vld [vmem:[#allocation3 + $0x8] sm:$0xff]
    %v4582 = vld [vmem:[#allocation3 + $0x10] sm:$0xff]
    %v4583 = vld [vmem:[#allocation3 + $0x18] sm:$0xff]
    %v4584 = vld [vmem:[#allocation3 + $0x20] sm:$0xff]
    %v4585 = vld [vmem:[#allocation3 + $0x28] sm:$0xff]
    %v4586 = vpack.c.bf16 %v4581, %v4580
    %v4587 = vpack.c.bf16 %v4583, %v4582
    %v4588 = vpack.c.bf16 %v4585, %v4584
    %s4589 = scalar_lea.vmem [#allocation9], 512
    %v4590 = vld [vmem:[%s4589] sm:$0xff]
    %v4591 = vld [vmem:[%s4589 + $0x8] sm:$0xff]
    %v4592 = vld [vmem:[%s4589 + $0x10] sm:$0xff]
    %v4593 = vld [vmem:[%s4589 + $0x18] sm:$0xff]
    %v4594 = vld [vmem:[%s4589 + $0x20] sm:$0xff]
    %v4595 = vld [vmem:[%s4589 + $0x28] sm:$0xff]
    %v4596 = vld [vmem:[%s4589 + $0x30] sm:$0xff]
    %v4597 = vld [vmem:[%s4589 + $0x38] sm:$0xff]
    %v4598 = vld [vmem:[%s4589 + $0x40] sm:$0xff]
    %v4599 = vld [vmem:[%s4589 + $0x48] sm:$0xff]
    %v4600 = vld [vmem:[%s4589 + $0x50] sm:$0xff]
    %v4601 = vld [vmem:[%s4589 + $0x58] sm:$0xff]
    %v4602 = vld [vmem:[%s4589 + $0x60] sm:$0xff]
    %v4603 = vld [vmem:[%s4589 + $0x68] sm:$0xff]
    %v4604 = vld [vmem:[%s4589 + $0x70] sm:$0xff]
    %v4605 = vld [vmem:[%s4589 + $0x78] sm:$0xff]
    %v4606 = vld [vmem:[%s4589 + $0x80] sm:$0xff]
    %v4607 = vld [vmem:[%s4589 + $0x88] sm:$0xff]
    %v4608 = vld [vmem:[%s4589 + $0x90] sm:$0xff]
    %v4609 = vld [vmem:[%s4589 + $0x98] sm:$0xff]
    %v4610 = vld [vmem:[%s4589 + $0xa0] sm:$0xff]
    %v4611 = vld [vmem:[%s4589 + $0xa8] sm:$0xff]
    %v4612 = vld [vmem:[%s4589 + $0xb0] sm:$0xff]
    %v4613 = vld [vmem:[%s4589 + $0xb8] sm:$0xff]
    %v4614 = vld [vmem:[%s4589 + $0xc0] sm:$0xff]
    %v4615 = vld [vmem:[%s4589 + $0xc8] sm:$0xff]
    %v4616 = vld [vmem:[%s4589 + $0xd0] sm:$0xff]
    %v4617 = vld [vmem:[%s4589 + $0xd8] sm:$0xff]
    %v4618 = vld [vmem:[%s4589 + $0xe0] sm:$0xff]
    %v4619 = vld [vmem:[%s4589 + $0xe8] sm:$0xff]
    %v4620 = vld [vmem:[%s4589 + $0xf0] sm:$0xff]
    %v4621 = vld [vmem:[%s4589 + $0xf8] sm:$0xff]
    %s4622 = scalar_lea.vmem [#allocation12], 12
    %v4623 = vld [vmem:[%s4622] sm:$0xf]
    %v4625 = vperm.slane %v4623, 0
    %v4626 = vperm.slane %v4623, 1
    %v4627 = vperm.slane %v4623, 2
    %v4628 = vperm.slane %v4623, 3
    %v4665 = vunpack.c.l.b16 %v4590
    %v4666 = vunpack.c.h.b16 %v4590
    %v4667 = vunpack.c.l.b16 %v4591
    %v4668 = vunpack.c.h.b16 %v4591
    %v4669 = vunpack.c.l.b16 %v4592
    %v4670 = vunpack.c.h.b16 %v4592
    %v4671 = vunpack.c.l.b16 %v4593
    %v4672 = vunpack.c.h.b16 %v4593
    %v4673 = vunpack.c.l.b16 %v4594
    %v4674 = vunpack.c.h.b16 %v4594
    %v4675 = vunpack.c.l.b16 %v4595
    %v4676 = vunpack.c.h.b16 %v4595
    %v4677 = vunpack.c.l.b16 %v4596
    %v4678 = vunpack.c.h.b16 %v4596
    %v4679 = vunpack.c.l.b16 %v4597
    %v4680 = vunpack.c.h.b16 %v4597
    %v4681 = vunpack.c.l.b16 %v4598
    %v4682 = vunpack.c.h.b16 %v4598
    %v4683 = vunpack.c.l.b16 %v4599
    %v4684 = vunpack.c.h.b16 %v4599
    %v4685 = vunpack.c.l.b16 %v4600
    %v4686 = vunpack.c.h.b16 %v4600
    %v4687 = vunpack.c.l.b16 %v4601
    %v4688 = vunpack.c.h.b16 %v4601
    %v4689 = vunpack.c.l.b16 %v4602
    %v4690 = vunpack.c.h.b16 %v4602
    %v4691 = vunpack.c.l.b16 %v4603
    %v4692 = vunpack.c.h.b16 %v4603
    %v4693 = vunpack.c.l.b16 %v4604
    %v4694 = vunpack.c.h.b16 %v4604
    %v4695 = vunpack.c.l.b16 %v4605
    %v4696 = vunpack.c.h.b16 %v4605
    %v4697 = vunpack.c.l.b16 %v4606
    %v4698 = vunpack.c.h.b16 %v4606
    %v4699 = vunpack.c.l.b16 %v4607
    %v4700 = vunpack.c.h.b16 %v4607
    %v4701 = vunpack.c.l.b16 %v4608
    %v4702 = vunpack.c.h.b16 %v4608
    %v4703 = vunpack.c.l.b16 %v4609
    %v4704 = vunpack.c.h.b16 %v4609
    %v4705 = vunpack.c.l.b16 %v4610
    %v4706 = vunpack.c.h.b16 %v4610
    %v4707 = vunpack.c.l.b16 %v4611
    %v4708 = vunpack.c.h.b16 %v4611
    %v4709 = vunpack.c.l.b16 %v4612
    %v4710 = vunpack.c.h.b16 %v4612
    %v4711 = vunpack.c.l.b16 %v4613
    %v4712 = vunpack.c.h.b16 %v4613
    %v4713 = vunpack.c.l.b16 %v4614
    %v4714 = vunpack.c.h.b16 %v4614
    %v4715 = vunpack.c.l.b16 %v4615
    %v4716 = vunpack.c.h.b16 %v4615
    %v4717 = vunpack.c.l.b16 %v4616
    %v4718 = vunpack.c.h.b16 %v4616
    %v4719 = vunpack.c.l.b16 %v4617
    %v4720 = vunpack.c.h.b16 %v4617
    %v4721 = vunpack.c.l.b16 %v4618
    %v4722 = vunpack.c.h.b16 %v4618
    %v4723 = vunpack.c.l.b16 %v4619
    %v4724 = vunpack.c.h.b16 %v4619
    %v4725 = vunpack.c.l.b16 %v4620
    %v4726 = vunpack.c.h.b16 %v4620
    %v4727 = vunpack.c.l.b16 %v4621
    %v4728 = vunpack.c.h.b16 %v4621
    %v4729 = vpack.c.b16 %v4669, %v4665
    %v4730 = vpack.c.b16 %v4670, %v4666
    %v4731 = vpack.c.b16 %v4671, %v4667
    %v4732 = vpack.c.b16 %v4672, %v4668
    %v4733 = vpack.c.b16 %v4677, %v4673
    %v4734 = vpack.c.b16 %v4678, %v4674
    %v4735 = vpack.c.b16 %v4679, %v4675
    %v4736 = vpack.c.b16 %v4680, %v4676
    %v4737 = vpack.c.b16 %v4685, %v4681
    %v4738 = vpack.c.b16 %v4686, %v4682
    %v4739 = vpack.c.b16 %v4687, %v4683
    %v4740 = vpack.c.b16 %v4688, %v4684
    %v4741 = vpack.c.b16 %v4693, %v4689
    %v4742 = vpack.c.b16 %v4694, %v4690
    %v4743 = vpack.c.b16 %v4695, %v4691
    %v4744 = vpack.c.b16 %v4696, %v4692
    %v4745 = vpack.c.b16 %v4701, %v4697
    %v4746 = vpack.c.b16 %v4702, %v4698
    %v4747 = vpack.c.b16 %v4703, %v4699
    %v4748 = vpack.c.b16 %v4704, %v4700
    %v4749 = vpack.c.b16 %v4709, %v4705
    %v4750 = vpack.c.b16 %v4710, %v4706
    %v4751 = vpack.c.b16 %v4711, %v4707
    %v4752 = vpack.c.b16 %v4712, %v4708
    %v4753 = vpack.c.b16 %v4717, %v4713
    %v4754 = vpack.c.b16 %v4718, %v4714
    %v4755 = vpack.c.b16 %v4719, %v4715
    %v4756 = vpack.c.b16 %v4720, %v4716
    %v4757 = vpack.c.b16 %v4725, %v4721
    %v4758 = vpack.c.b16 %v4726, %v4722
    %v4759 = vpack.c.b16 %v4727, %v4723
    %v4760 = vpack.c.b16 %v4728, %v4724
    %4793 = vmatpush.bf16.msra.mxu0 %v4757
    %4794 = vmatpush.bf16.msra.mxu0 %v4753
    %4795 = vmatpush.bf16.msra.mxu0 %v4749
    %4796 = vmatpush.bf16.msra.mxu0 %v4745
    %4797 = vmatpush.bf16.msra.mxu0 %v4741
    %4798 = vmatpush.bf16.msra.mxu0 %v4737
    %4799 = vmatpush.bf16.msra.mxu0 %v4733
    %4800 = vmatpush.bf16.msra.mxu0 %v4729
    %4801 = vmatmul.bf16.gmra.mxu0 %v4586
    %v4802 = vpop.f32.mrf.mxu0
    %v4803 = vadd.f32 %v4625, %v4802
    %v4804 = vpop.f32.mrf.mxu0
    %v4805 = vadd.f32 %v4625, %v4804
    %4806 = vmatmul.bf16.gmra.mxu0 %v4587
    %v4807 = vpop.f32.mrf.mxu0
    %v4808 = vadd.f32 %v4625, %v4807
    %v4809 = vpop.f32.mrf.mxu0
    %v4810 = vadd.f32 %v4625, %v4809
    %4811 = vmatmul.bf16.gmra.mxu0 %v4588
    %v4812 = vpop.f32.mrf.mxu0
    %v4813 = vadd.f32 %v4625, %v4812
    %v4814 = vpop.f32.mrf.mxu0
    %v4815 = vadd.f32 %v4625, %v4814
    %4816 = vdwg.mxu0
    %4817 = vmatpush.bf16.msra.mxu0 %v4758
    %4818 = vmatpush.bf16.msra.mxu0 %v4754
    %4819 = vmatpush.bf16.msra.mxu0 %v4750
    %4820 = vmatpush.bf16.msra.mxu0 %v4746
    %4821 = vmatpush.bf16.msra.mxu0 %v4742
    %4822 = vmatpush.bf16.msra.mxu0 %v4738
    %4823 = vmatpush.bf16.msra.mxu0 %v4734
    %4824 = vmatpush.bf16.msra.mxu0 %v4730
    %4825 = vmatmul.bf16.gmra.mxu0 %v4586
    %v4826 = vpop.f32.mrf.mxu0
    %v4827 = vadd.f32 %v4626, %v4826
    %v4828 = vpop.f32.mrf.mxu0
    %v4829 = vadd.f32 %v4626, %v4828
    %4830 = vmatmul.bf16.gmra.mxu0 %v4587
    %v4831 = vpop.f32.mrf.mxu0
    %v4832 = vadd.f32 %v4626, %v4831
    %v4833 = vpop.f32.mrf.mxu0
    %v4834 = vadd.f32 %v4626, %v4833
    %4835 = vmatmul.bf16.gmra.mxu0 %v4588
    %v4836 = vpop.f32.mrf.mxu0
    %v4837 = vadd.f32 %v4626, %v4836
    %v4838 = vpop.f32.mrf.mxu0
    %v4839 = vadd.f32 %v4626, %v4838
    %4840 = vdwg.mxu0
    %4841 = vmatpush.bf16.msra.mxu0 %v4759
    %4842 = vmatpush.bf16.msra.mxu0 %v4755
    %4843 = vmatpush.bf16.msra.mxu0 %v4751
    %4844 = vmatpush.bf16.msra.mxu0 %v4747
    %4845 = vmatpush.bf16.msra.mxu0 %v4743
    %4846 = vmatpush.bf16.msra.mxu0 %v4739
    %4847 = vmatpush.bf16.msra.mxu0 %v4735
    %4848 = vmatpush.bf16.msra.mxu0 %v4731
    %4849 = vmatmul.bf16.gmra.mxu0 %v4586
    %v4850 = vpop.f32.mrf.mxu0
    %v4851 = vadd.f32 %v4627, %v4850
    %v4852 = vpop.f32.mrf.mxu0
    %v4853 = vadd.f32 %v4627, %v4852
    %4854 = vmatmul.bf16.gmra.mxu0 %v4587
    %v4855 = vpop.f32.mrf.mxu0
    %v4856 = vadd.f32 %v4627, %v4855
    %v4857 = vpop.f32.mrf.mxu0
    %v4858 = vadd.f32 %v4627, %v4857
    %4859 = vmatmul.bf16.gmra.mxu0 %v4588
    %v4860 = vpop.f32.mrf.mxu0
    %v4861 = vadd.f32 %v4627, %v4860
    %v4862 = vpop.f32.mrf.mxu0
    %v4863 = vadd.f32 %v4627, %v4862
    %4864 = vdwg.mxu0
    %4865 = vmatpush.bf16.msra.mxu0 %v4760
    %4866 = vmatpush.bf16.msra.mxu0 %v4756
    %4867 = vmatpush.bf16.msra.mxu0 %v4752
    %4868 = vmatpush.bf16.msra.mxu0 %v4748
    %4869 = vmatpush.bf16.msra.mxu0 %v4744
    %4870 = vmatpush.bf16.msra.mxu0 %v4740
    %4871 = vmatpush.bf16.msra.mxu0 %v4736
    %4872 = vmatpush.bf16.msra.mxu0 %v4732
    %4873 = vmatmul.bf16.gmra.mxu0 %v4586
    %v4874 = vpop.f32.mrf.mxu0
    %v4875 = vadd.f32 %v4628, %v4874
    %v4876 = vpop.f32.mrf.mxu0
    %v4877 = vadd.f32 %v4628, %v4876
    %4878 = vmatmul.bf16.gmra.mxu0 %v4587
    %v4879 = vpop.f32.mrf.mxu0
    %v4880 = vadd.f32 %v4628, %v4879
    %v4881 = vpop.f32.mrf.mxu0
    %v4882 = vadd.f32 %v4628, %v4881
    %4883 = vmatmul.bf16.gmra.mxu0 %v4588
    %v4884 = vpop.f32.mrf.mxu0
    %v4885 = vadd.f32 %v4628, %v4884
    %v4886 = vpop.f32.mrf.mxu0
    %v4887 = vadd.f32 %v4628, %v4886
    %4888 = vdwg.mxu0
    %4889 = vst [vmem:[#allocation2] sm:$0xff] %v4803
    %4890 = vst [vmem:[#allocation2 + $0x8] sm:$0xff] %v4827
    %4891 = vst [vmem:[#allocation2 + $0x10] sm:$0xff] %v4851
    %4892 = vst [vmem:[#allocation2 + $0x18] sm:$0xff] %v4875
    %4893 = vst [vmem:[#allocation2 + $0x20] sm:$0xff] %v4805
    %4894 = vst [vmem:[#allocation2 + $0x28] sm:$0xff] %v4829
    %4895 = vst [vmem:[#allocation2 + $0x30] sm:$0xff] %v4853
    %4896 = vst [vmem:[#allocation2 + $0x38] sm:$0xff] %v4877
    %4897 = vst [vmem:[#allocation2 + $0x40] sm:$0xff] %v4808
    %4898 = vst [vmem:[#allocation2 + $0x48] sm:$0xff] %v4832
    %4899 = vst [vmem:[#allocation2 + $0x50] sm:$0xff] %v4856
    %4900 = vst [vmem:[#allocation2 + $0x58] sm:$0xff] %v4880
    %4901 = vst [vmem:[#allocation2 + $0x60] sm:$0xff] %v4810
    %4902 = vst [vmem:[#allocation2 + $0x68] sm:$0xff] %v4834
    %4903 = vst [vmem:[#allocation2 + $0x70] sm:$0xff] %v4858
    %4904 = vst [vmem:[#allocation2 + $0x78] sm:$0xff] %v4882
    %4905 = vst [vmem:[#allocation2 + $0x80] sm:$0xff] %v4813
    %4906 = vst [vmem:[#allocation2 + $0x88] sm:$0xff] %v4837
    %4907 = vst [vmem:[#allocation2 + $0x90] sm:$0xff] %v4861
    %4908 = vst [vmem:[#allocation2 + $0x98] sm:$0xff] %v4885
    %4909 = vst [vmem:[#allocation2 + $0xa0] sm:$0xff] %v4815
    %4910 = vst [vmem:[#allocation2 + $0xa8] sm:$0xff] %v4839
    %4911 = vst [vmem:[#allocation2 + $0xb0] sm:$0xff] %v4863
    %4912 = vst [vmem:[#allocation2 + $0xb8] sm:$0xff] %v4887
    %s4913 = scalar_lea.vmem [#allocation10], 768
    %v4914 = vld [vmem:[%s4913] sm:$0xff]
    %v4915 = vld [vmem:[%s4913 + $0x8] sm:$0xff]
    %v4916 = vld [vmem:[%s4913 + $0x10] sm:$0xff]
    %v4917 = vld [vmem:[%s4913 + $0x18] sm:$0xff]
    %v4918 = vld [vmem:[%s4913 + $0x20] sm:$0xff]
    %v4919 = vld [vmem:[%s4913 + $0x28] sm:$0xff]
    %v4920 = vld [vmem:[%s4913 + $0x30] sm:$0xff]
    %v4921 = vld [vmem:[%s4913 + $0x38] sm:$0xff]
    %v4922 = vld [vmem:[%s4913 + $0x40] sm:$0xff]
    %v4923 = vld [vmem:[%s4913 + $0x48] sm:$0xff]
    %v4924 = vld [vmem:[%s4913 + $0x50] sm:$0xff]
    %v4925 = vld [vmem:[%s4913 + $0x58] sm:$0xff]
    %v4926 = vld [vmem:[%s4913 + $0x60] sm:$0xff]
    %v4927 = vld [vmem:[%s4913 + $0x68] sm:$0xff]
    %v4928 = vld [vmem:[%s4913 + $0x70] sm:$0xff]
    %v4929 = vld [vmem:[%s4913 + $0x78] sm:$0xff]
    %v4930 = vld [vmem:[%s4913 + $0x80] sm:$0xff]
    %v4931 = vld [vmem:[%s4913 + $0x88] sm:$0xff]
    %v4932 = vld [vmem:[%s4913 + $0x90] sm:$0xff]
    %v4933 = vld [vmem:[%s4913 + $0x98] sm:$0xff]
    %v4934 = vld [vmem:[%s4913 + $0xa0] sm:$0xff]
    %v4935 = vld [vmem:[%s4913 + $0xa8] sm:$0xff]
    %v4936 = vld [vmem:[%s4913 + $0xb0] sm:$0xff]
    %v4937 = vld [vmem:[%s4913 + $0xb8] sm:$0xff]
    %v4938 = vld [vmem:[%s4913 + $0xc0] sm:$0xff]
    %v4939 = vld [vmem:[%s4913 + $0xc8] sm:$0xff]
    %v4940 = vld [vmem:[%s4913 + $0xd0] sm:$0xff]
    %v4941 = vld [vmem:[%s4913 + $0xd8] sm:$0xff]
    %v4942 = vld [vmem:[%s4913 + $0xe0] sm:$0xff]
    %v4943 = vld [vmem:[%s4913 + $0xe8] sm:$0xff]
    %v4944 = vld [vmem:[%s4913 + $0xf0] sm:$0xff]
    %v4945 = vld [vmem:[%s4913 + $0xf8] sm:$0xff]
    %v4946 = vld [vmem:[#allocation2] sm:$0xff]
    %v4947 = vld [vmem:[#allocation2 + $0x8] sm:$0xff]
    %v4948 = vld [vmem:[#allocation2 + $0x10] sm:$0xff]
    %v4949 = vld [vmem:[#allocation2 + $0x18] sm:$0xff]
    %v4982 = vunpack.c.l.b16 %v4914
    %v4983 = vunpack.c.h.b16 %v4914
    %v4984 = vunpack.c.l.b16 %v4915
    %v4985 = vunpack.c.h.b16 %v4915
    %v4986 = vunpack.c.l.b16 %v4916
    %v4987 = vunpack.c.h.b16 %v4916
    %v4988 = vunpack.c.l.b16 %v4917
    %v4989 = vunpack.c.h.b16 %v4917
    %v4990 = vunpack.c.l.b16 %v4918
    %v4991 = vunpack.c.h.b16 %v4918
    %v4992 = vunpack.c.l.b16 %v4919
    %v4993 = vunpack.c.h.b16 %v4919
    %v4994 = vunpack.c.l.b16 %v4920
    %v4995 = vunpack.c.h.b16 %v4920
    %v4996 = vunpack.c.l.b16 %v4921
    %v4997 = vunpack.c.h.b16 %v4921
    %v4998 = vunpack.c.l.b16 %v4922
    %v4999 = vunpack.c.h.b16 %v4922
    %v5000 = vunpack.c.l.b16 %v4923
    %v5001 = vunpack.c.h.b16 %v4923
    %v5002 = vunpack.c.l.b16 %v4924
    %v5003 = vunpack.c.h.b16 %v4924
    %v5004 = vunpack.c.l.b16 %v4925
    %v5005 = vunpack.c.h.b16 %v4925
    %v5006 = vunpack.c.l.b16 %v4926
    %v5007 = vunpack.c.h.b16 %v4926
    %v5008 = vunpack.c.l.b16 %v4927
    %v5009 = vunpack.c.h.b16 %v4927
    %v5010 = vunpack.c.l.b16 %v4928
    %v5011 = vunpack.c.h.b16 %v4928
    %v5012 = vunpack.c.l.b16 %v4929
    %v5013 = vunpack.c.h.b16 %v4929
    %v5014 = vunpack.c.l.b16 %v4930
    %v5015 = vunpack.c.h.b16 %v4930
    %v5016 = vunpack.c.l.b16 %v4931
    %v5017 = vunpack.c.h.b16 %v4931
    %v5018 = vunpack.c.l.b16 %v4932
    %v5019 = vunpack.c.h.b16 %v4932
    %v5020 = vunpack.c.l.b16 %v4933
    %v5021 = vunpack.c.h.b16 %v4933
    %v5022 = vunpack.c.l.b16 %v4934
    %v5023 = vunpack.c.h.b16 %v4934
    %v5024 = vunpack.c.l.b16 %v4935
    %v5025 = vunpack.c.h.b16 %v4935
    %v5026 = vunpack.c.l.b16 %v4936
    %v5027 = vunpack.c.h.b16 %v4936
    %v5028 = vunpack.c.l.b16 %v4937
    %v5029 = vunpack.c.h.b16 %v4937
    %v5030 = vunpack.c.l.b16 %v4938
    %v5031 = vunpack.c.h.b16 %v4938
    %v5032 = vunpack.c.l.b16 %v4939
    %v5033 = vunpack.c.h.b16 %v4939
    %v5034 = vunpack.c.l.b16 %v4940
    %v5035 = vunpack.c.h.b16 %v4940
    %v5036 = vunpack.c.l.b16 %v4941
    %v5037 = vunpack.c.h.b16 %v4941
    %v5038 = vunpack.c.l.b16 %v4942
    %v5039 = vunpack.c.h.b16 %v4942
    %v5040 = vunpack.c.l.b16 %v4943
    %v5041 = vunpack.c.h.b16 %v4943
    %v5042 = vunpack.c.l.b16 %v4944
    %v5043 = vunpack.c.h.b16 %v4944
    %v5044 = vunpack.c.l.b16 %v4945
    %v5045 = vunpack.c.h.b16 %v4945
    %v5046 = vpack.c.b16 %v4986, %v4982
    %v5047 = vpack.c.b16 %v4987, %v4983
    %v5048 = vpack.c.b16 %v4988, %v4984
    %v5049 = vpack.c.b16 %v4989, %v4985
    %v5050 = vpack.c.b16 %v4994, %v4990
    %v5051 = vpack.c.b16 %v4995, %v4991
    %v5052 = vpack.c.b16 %v4996, %v4992
    %v5053 = vpack.c.b16 %v4997, %v4993
    %v5054 = vpack.c.b16 %v5002, %v4998
    %v5055 = vpack.c.b16 %v5003, %v4999
    %v5056 = vpack.c.b16 %v5004, %v5000
    %v5057 = vpack.c.b16 %v5005, %v5001
    %v5058 = vpack.c.b16 %v5010, %v5006
    %v5059 = vpack.c.b16 %v5011, %v5007
    %v5060 = vpack.c.b16 %v5012, %v5008
    %v5061 = vpack.c.b16 %v5013, %v5009
    %v5062 = vpack.c.b16 %v5018, %v5014
    %v5063 = vpack.c.b16 %v5019, %v5015
    %v5064 = vpack.c.b16 %v5020, %v5016
    %v5065 = vpack.c.b16 %v5021, %v5017
    %v5066 = vpack.c.b16 %v5026, %v5022
    %v5067 = vpack.c.b16 %v5027, %v5023
    %v5068 = vpack.c.b16 %v5028, %v5024
    %v5069 = vpack.c.b16 %v5029, %v5025
    %v5070 = vpack.c.b16 %v5034, %v5030
    %v5071 = vpack.c.b16 %v5035, %v5031
    %v5072 = vpack.c.b16 %v5036, %v5032
    %v5073 = vpack.c.b16 %v5037, %v5033
    %v5074 = vpack.c.b16 %v5042, %v5038
    %v5075 = vpack.c.b16 %v5043, %v5039
    %v5076 = vpack.c.b16 %v5044, %v5040
    %v5077 = vpack.c.b16 %v5045, %v5041
    %5110 = vmatpush.bf16.msra.mxu0 %v5074
    %5111 = vmatpush.bf16.msra.mxu0 %v5070
    %5112 = vmatpush.bf16.msra.mxu0 %v5066
    %5113 = vmatpush.bf16.msra.mxu0 %v5062
    %5114 = vmatpush.bf16.msra.mxu0 %v5058
    %5115 = vmatpush.bf16.msra.mxu0 %v5054
    %5116 = vmatpush.bf16.msra.mxu0 %v5050
    %5117 = vmatpush.bf16.msra.mxu0 %v5046
    %5118 = vmatmul.bf16.gmra.mxu0 0
    %v5119 = vpop.f32.mrf.mxu0
    %v5120 = vadd.f32 0.0, %v5119
    %v5121 = vpop.f32.mrf.mxu0
    %5122 = vdwg.mxu0
    %5123 = vmatpush.bf16.msra.mxu0 %v5075
    %5124 = vmatpush.bf16.msra.mxu0 %v5071
    %5125 = vmatpush.bf16.msra.mxu0 %v5067
    %5126 = vmatpush.bf16.msra.mxu0 %v5063
    %5127 = vmatpush.bf16.msra.mxu0 %v5059
    %5128 = vmatpush.bf16.msra.mxu0 %v5055
    %5129 = vmatpush.bf16.msra.mxu0 %v5051
    %5130 = vmatpush.bf16.msra.mxu0 %v5047
    %5131 = vmatmul.bf16.gmra.mxu0 0
    %v5132 = vpop.f32.mrf.mxu0
    %v5133 = vadd.f32 0.0, %v5132
    %v5134 = vpop.f32.mrf.mxu0
    %5135 = vdwg.mxu0
    %5136 = vmatpush.bf16.msra.mxu0 %v5076
    %5137 = vmatpush.bf16.msra.mxu0 %v5072
    %5138 = vmatpush.bf16.msra.mxu0 %v5068
    %5139 = vmatpush.bf16.msra.mxu0 %v5064
    %5140 = vmatpush.bf16.msra.mxu0 %v5060
    %5141 = vmatpush.bf16.msra.mxu0 %v5056
    %5142 = vmatpush.bf16.msra.mxu0 %v5052
    %5143 = vmatpush.bf16.msra.mxu0 %v5048
    %5144 = vmatmul.bf16.gmra.mxu0 0
    %v5145 = vpop.f32.mrf.mxu0
    %v5146 = vadd.f32 0.0, %v5145
    %v5147 = vpop.f32.mrf.mxu0
    %5148 = vdwg.mxu0
    %5149 = vmatpush.bf16.msra.mxu0 %v5077
    %5150 = vmatpush.bf16.msra.mxu0 %v5073
    %5151 = vmatpush.bf16.msra.mxu0 %v5069
    %5152 = vmatpush.bf16.msra.mxu0 %v5065
    %5153 = vmatpush.bf16.msra.mxu0 %v5061
    %5154 = vmatpush.bf16.msra.mxu0 %v5057
    %5155 = vmatpush.bf16.msra.mxu0 %v5053
    %5156 = vmatpush.bf16.msra.mxu0 %v5049
    %5157 = vmatmul.bf16.gmra.mxu0 0
    %v5158 = vpop.f32.mrf.mxu0
    %v5159 = vadd.f32 0.0, %v5158
    %v5160 = vpop.f32.mrf.mxu0
    %5161 = vdwg.mxu0
    %v5162 = vadd.f32 %v4946, %v5120
    %v5163 = vadd.f32 %v4947, %v5133
    %v5164 = vadd.f32 %v4948, %v5146
    %v5165 = vadd.f32 %v4949, %v5159
    %v5166 = vxor.u32 %v5162, 2147483648
    %v5167 = vxor.u32 %v5163, 2147483648
    %v5168 = vxor.u32 %v5164, 2147483648
    %v5169 = vmul.f32 %v5166, 1.442695
    %v5170 = vpow.pop %v5169
    %v5171 = vmul.f32 %v5167, 1.442695
    %v5172 = vpow.pop %v5171
    %v5173 = vmul.f32 %v5168, 1.442695
    %v5174 = vpow.pop %v5173
    %v5175 = vadd.f32 %v5170, 1.0
    %v5176 = vadd.f32 %v5172, 1.0
    %v5177 = vadd.f32 %v5174, 1.0
    %v5178 = vrcp.pop %v5175
    %v5179 = vmul.f32 %v5175, %v5178
    %v5180 = vsub.f32 1.0, %v5179
    %v5181 = vmul.f32 %v5178, %v5180
    %v5182 = vadd.f32 %v5178, %v5181
    %vm5183 = vweird.f32 %v5175
    %vm5184 = vweird.f32 %v5178
    %vm5185 = vmor %vm5183, %vm5184
    %v5186 = vsel %vm5185, %v5178, %v5182
    %v5187 = vand.u32 2147483647, %v5175
    %vm5188 = vcmp.eq.f32.partialorder %v5187, 8.507059e+37
    %v5189 = vand.u32 %v5175, 2147483648
    %v5190 = vor.u32 1.1754944e-38, %v5189
    %v5191 = vsel %vm5188, %v5190, %v5186
    %v5192 = vmul.f32 1.0, %v5191
    %v5193 = vrcp.pop %v5176
    %v5194 = vmul.f32 %v5176, %v5193
    %v5195 = vsub.f32 1.0, %v5194
    %v5196 = vmul.f32 %v5193, %v5195
    %v5197 = vadd.f32 %v5193, %v5196
    %vm5198 = vweird.f32 %v5176
    %vm5199 = vweird.f32 %v5193
    %vm5200 = vmor %vm5198, %vm5199
    %v5201 = vsel %vm5200, %v5193, %v5197
    %v5202 = vand.u32 2147483647, %v5176
    %vm5203 = vcmp.eq.f32.partialorder %v5202, 8.507059e+37
    %v5204 = vand.u32 %v5176, 2147483648
    %v5205 = vor.u32 1.1754944e-38, %v5204
    %v5206 = vsel %vm5203, %v5205, %v5201
    %v5207 = vmul.f32 1.0, %v5206
    %v5208 = vrcp.pop %v5177
    %v5209 = vmul.f32 %v5177, %v5208
    %v5210 = vsub.f32 1.0, %v5209
    %v5211 = vmul.f32 %v5208, %v5210
    %v5212 = vadd.f32 %v5208, %v5211
    %vm5213 = vweird.f32 %v5177
    %vm5214 = vweird.f32 %v5208
    %vm5215 = vmor %vm5213, %vm5214
    %v5216 = vsel %vm5215, %v5208, %v5212
    %v5217 = vand.u32 2147483647, %v5177
    %vm5218 = vcmp.eq.f32.partialorder %v5217, 8.507059e+37
    %v5219 = vand.u32 %v5177, 2147483648
    %v5220 = vor.u32 1.1754944e-38, %v5219
    %v5221 = vsel %vm5218, %v5220, %v5216
    %v5222 = vmul.f32 1.0, %v5221
    %v5223 = vtanh.pop %v5165
    %v5224 = vmul.f32 %v5207, 0.0
    %v5225 = vmul.f32 %v5192, %v5223
    %v5226 = vadd.f32 %v5224, %v5225
    %v5227 = vtanh.pop %v5226
    %v5228 = vmul.f32 %v5222, %v5227
    %5229 = vst [vmem:[#allocation3] sm:$0xff] %v5228
    %v5230 = vld [vmem:[%s1396] sm:$0xff]
    %v5231 = vld [vmem:[%s1396 + $0x8] sm:$0xff]
    %v5232 = vld [vmem:[%s1396 + $0x10] sm:$0xff]
    %v5233 = vld [vmem:[%s1396 + $0x18] sm:$0xff]
    %v5234 = vpack.c.bf16 %v5228, %v5228
    %5235 = vmatpush.bf16.msra.mxu0 %v5074
    %5236 = vmatpush.bf16.msra.mxu0 %v5070
    %5237 = vmatpush.bf16.msra.mxu0 %v5066
    %5238 = vmatpush.bf16.msra.mxu0 %v5062
    %5239 = vmatpush.bf16.msra.mxu0 %v5058
    %5240 = vmatpush.bf16.msra.mxu0 %v5054
    %5241 = vmatpush.bf16.msra.mxu0 %v5050
    %5242 = vmatpush.bf16.msra.mxu0 %v5046
    %5243 = vmatmul.bf16.gmra.mxu0 %v5234
    %v5244 = vpop.f32.mrf.mxu0
    %v5245 = vadd.f32 0.0, %v5244
    %v5246 = vpop.f32.mrf.mxu0
    %5247 = vdwg.mxu0
    %5248 = vmatpush.bf16.msra.mxu0 %v5075
    %5249 = vmatpush.bf16.msra.mxu0 %v5071
    %5250 = vmatpush.bf16.msra.mxu0 %v5067
    %5251 = vmatpush.bf16.msra.mxu0 %v5063
    %5252 = vmatpush.bf16.msra.mxu0 %v5059
    %5253 = vmatpush.bf16.msra.mxu0 %v5055
    %5254 = vmatpush.bf16.msra.mxu0 %v5051
    %5255 = vmatpush.bf16.msra.mxu0 %v5047
    %5256 = vmatmul.bf16.gmra.mxu0 %v5234
    %v5257 = vpop.f32.mrf.mxu0
    %v5258 = vadd.f32 0.0, %v5257
    %v5259 = vpop.f32.mrf.mxu0
    %5260 = vdwg.mxu0
    %5261 = vmatpush.bf16.msra.mxu0 %v5076
    %5262 = vmatpush.bf16.msra.mxu0 %v5072
    %5263 = vmatpush.bf16.msra.mxu0 %v5068
    %5264 = vmatpush.bf16.msra.mxu0 %v5064
    %5265 = vmatpush.bf16.msra.mxu0 %v5060
    %5266 = vmatpush.bf16.msra.mxu0 %v5056
    %5267 = vmatpush.bf16.msra.mxu0 %v5052
    %5268 = vmatpush.bf16.msra.mxu0 %v5048
    %5269 = vmatmul.bf16.gmra.mxu0 %v5234
    %v5270 = vpop.f32.mrf.mxu0
    %v5271 = vadd.f32 0.0, %v5270
    %v5272 = vpop.f32.mrf.mxu0
    %5273 = vdwg.mxu0
    %5274 = vmatpush.bf16.msra.mxu0 %v5077
    %5275 = vmatpush.bf16.msra.mxu0 %v5073
    %5276 = vmatpush.bf16.msra.mxu0 %v5069
    %5277 = vmatpush.bf16.msra.mxu0 %v5065
    %5278 = vmatpush.bf16.msra.mxu0 %v5061
    %5279 = vmatpush.bf16.msra.mxu0 %v5057
    %5280 = vmatpush.bf16.msra.mxu0 %v5053
    %5281 = vmatpush.bf16.msra.mxu0 %v5049
    %5282 = vmatmul.bf16.gmra.mxu0 %v5234
    %v5283 = vpop.f32.mrf.mxu0
    %v5284 = vadd.f32 0.0, %v5283
    %v5285 = vpop.f32.mrf.mxu0
    %5286 = vdwg.mxu0
    %v5287 = vadd.f32 %v5230, %v5245
    %v5288 = vadd.f32 %v5231, %v5258
    %v5289 = vadd.f32 %v5232, %v5271
    %v5290 = vadd.f32 %v5233, %v5284
    %v5291 = vxor.u32 %v5287, 2147483648
    %v5292 = vxor.u32 %v5288, 2147483648
    %v5293 = vxor.u32 %v5289, 2147483648
    %v5294 = vmul.f32 %v5291, 1.442695
    %v5295 = vpow.pop %v5294
    %v5296 = vmul.f32 %v5292, 1.442695
    %v5297 = vpow.pop %v5296
    %v5298 = vmul.f32 %v5293, 1.442695
    %v5299 = vpow.pop %v5298
    %v5300 = vadd.f32 %v5295, 1.0
    %v5301 = vadd.f32 %v5297, 1.0
    %v5302 = vadd.f32 %v5299, 1.0
    %v5303 = vrcp.pop %v5300
    %v5304 = vmul.f32 %v5300, %v5303
    %v5305 = vsub.f32 1.0, %v5304
    %v5306 = vmul.f32 %v5303, %v5305
    %v5307 = vadd.f32 %v5303, %v5306
    %vm5308 = vweird.f32 %v5300
    %vm5309 = vweird.f32 %v5303
    %vm5310 = vmor %vm5308, %vm5309
    %v5311 = vsel %vm5310, %v5303, %v5307
    %v5312 = vand.u32 2147483647, %v5300
    %vm5313 = vcmp.eq.f32.partialorder %v5312, 8.507059e+37
    %v5314 = vand.u32 %v5300, 2147483648
    %v5315 = vor.u32 1.1754944e-38, %v5314
    %v5316 = vsel %vm5313, %v5315, %v5311
    %v5317 = vmul.f32 1.0, %v5316
    %v5318 = vrcp.pop %v5301
    %v5319 = vmul.f32 %v5301, %v5318
    %v5320 = vsub.f32 1.0, %v5319
    %v5321 = vmul.f32 %v5318, %v5320
    %v5322 = vadd.f32 %v5318, %v5321
    %vm5323 = vweird.f32 %v5301
    %vm5324 = vweird.f32 %v5318
    %vm5325 = vmor %vm5323, %vm5324
    %v5326 = vsel %vm5325, %v5318, %v5322
    %v5327 = vand.u32 2147483647, %v5301
    %vm5328 = vcmp.eq.f32.partialorder %v5327, 8.507059e+37
    %v5329 = vand.u32 %v5301, 2147483648
    %v5330 = vor.u32 1.1754944e-38, %v5329
    %v5331 = vsel %vm5328, %v5330, %v5326
    %v5332 = vmul.f32 1.0, %v5331
    %v5333 = vrcp.pop %v5302
    %v5334 = vmul.f32 %v5302, %v5333
    %v5335 = vsub.f32 1.0, %v5334
    %v5336 = vmul.f32 %v5333, %v5335
    %v5337 = vadd.f32 %v5333, %v5336
    %vm5338 = vweird.f32 %v5302
    %vm5339 = vweird.f32 %v5333
    %vm5340 = vmor %vm5338, %vm5339
    %v5341 = vsel %vm5340, %v5333, %v5337
    %v5342 = vand.u32 2147483647, %v5302
    %vm5343 = vcmp.eq.f32.partialorder %v5342, 8.507059e+37
    %v5344 = vand.u32 %v5302, 2147483648
    %v5345 = vor.u32 1.1754944e-38, %v5344
    %v5346 = vsel %vm5343, %v5345, %v5341
    %v5347 = vmul.f32 1.0, %v5346
    %v5348 = vtanh.pop %v5290
    %v5349 = vmul.f32 %v5332, %v5226
    %v5350 = vmul.f32 %v5317, %v5348
    %v5351 = vadd.f32 %v5349, %v5350
    %v5352 = vtanh.pop %v5351
    %v5353 = vmul.f32 %v5347, %v5352
    %5354 = vst [vmem:[%s1521] sm:$0xff] %v5353
    %v5355 = vld [vmem:[%s1523] sm:$0xff]
    %v5356 = vld [vmem:[%s1523 + $0x8] sm:$0xff]
    %v5357 = vld [vmem:[%s1523 + $0x10] sm:$0xff]
    %v5358 = vld [vmem:[%s1523 + $0x18] sm:$0xff]
    %v5359 = vpack.c.bf16 %v5353, %v5353
    %5360 = vmatpush.bf16.msra.mxu0 %v5074
    %5361 = vmatpush.bf16.msra.mxu0 %v5070
    %5362 = vmatpush.bf16.msra.mxu0 %v5066
    %5363 = vmatpush.bf16.msra.mxu0 %v5062
    %5364 = vmatpush.bf16.msra.mxu0 %v5058
    %5365 = vmatpush.bf16.msra.mxu0 %v5054
    %5366 = vmatpush.bf16.msra.mxu0 %v5050
    %5367 = vmatpush.bf16.msra.mxu0 %v5046
    %5368 = vmatmul.bf16.gmra.mxu0 %v5359
    %v5369 = vpop.f32.mrf.mxu0
    %v5370 = vadd.f32 0.0, %v5369
    %v5371 = vpop.f32.mrf.mxu0
    %5372 = vdwg.mxu0
    %5373 = vmatpush.bf16.msra.mxu0 %v5075
    %5374 = vmatpush.bf16.msra.mxu0 %v5071
    %5375 = vmatpush.bf16.msra.mxu0 %v5067
    %5376 = vmatpush.bf16.msra.mxu0 %v5063
    %5377 = vmatpush.bf16.msra.mxu0 %v5059
    %5378 = vmatpush.bf16.msra.mxu0 %v5055
    %5379 = vmatpush.bf16.msra.mxu0 %v5051
    %5380 = vmatpush.bf16.msra.mxu0 %v5047
    %5381 = vmatmul.bf16.gmra.mxu0 %v5359
    %v5382 = vpop.f32.mrf.mxu0
    %v5383 = vadd.f32 0.0, %v5382
    %v5384 = vpop.f32.mrf.mxu0
    %5385 = vdwg.mxu0
    %5386 = vmatpush.bf16.msra.mxu0 %v5076
    %5387 = vmatpush.bf16.msra.mxu0 %v5072
    %5388 = vmatpush.bf16.msra.mxu0 %v5068
    %5389 = vmatpush.bf16.msra.mxu0 %v5064
    %5390 = vmatpush.bf16.msra.mxu0 %v5060
    %5391 = vmatpush.bf16.msra.mxu0 %v5056
    %5392 = vmatpush.bf16.msra.mxu0 %v5052
    %5393 = vmatpush.bf16.msra.mxu0 %v5048
    %5394 = vmatmul.bf16.gmra.mxu0 %v5359
    %v5395 = vpop.f32.mrf.mxu0
    %v5396 = vadd.f32 0.0, %v5395
    %v5397 = vpop.f32.mrf.mxu0
    %5398 = vdwg.mxu0
    %5399 = vmatpush.bf16.msra.mxu0 %v5077
    %5400 = vmatpush.bf16.msra.mxu0 %v5073
    %5401 = vmatpush.bf16.msra.mxu0 %v5069
    %5402 = vmatpush.bf16.msra.mxu0 %v5065
    %5403 = vmatpush.bf16.msra.mxu0 %v5061
    %5404 = vmatpush.bf16.msra.mxu0 %v5057
    %5405 = vmatpush.bf16.msra.mxu0 %v5053
    %5406 = vmatpush.bf16.msra.mxu0 %v5049
    %5407 = vmatmul.bf16.gmra.mxu0 %v5359
    %v5408 = vpop.f32.mrf.mxu0
    %v5409 = vadd.f32 0.0, %v5408
    %v5410 = vpop.f32.mrf.mxu0
    %5411 = vdwg.mxu0
    %v5412 = vadd.f32 %v5355, %v5370
    %v5413 = vadd.f32 %v5356, %v5383
    %v5414 = vadd.f32 %v5357, %v5396
    %v5415 = vadd.f32 %v5358, %v5409
    %v5416 = vxor.u32 %v5412, 2147483648
    %v5417 = vxor.u32 %v5413, 2147483648
    %v5418 = vxor.u32 %v5414, 2147483648
    %v5419 = vmul.f32 %v5416, 1.442695
    %v5420 = vpow.pop %v5419
    %v5421 = vmul.f32 %v5417, 1.442695
    %v5422 = vpow.pop %v5421
    %v5423 = vmul.f32 %v5418, 1.442695
    %v5424 = vpow.pop %v5423
    %v5425 = vadd.f32 %v5420, 1.0
    %v5426 = vadd.f32 %v5422, 1.0
    %v5427 = vadd.f32 %v5424, 1.0
    %v5428 = vrcp.pop %v5425
    %v5429 = vmul.f32 %v5425, %v5428
    %v5430 = vsub.f32 1.0, %v5429
    %v5431 = vmul.f32 %v5428, %v5430
    %v5432 = vadd.f32 %v5428, %v5431
    %vm5433 = vweird.f32 %v5425
    %vm5434 = vweird.f32 %v5428
    %vm5435 = vmor %vm5433, %vm5434
    %v5436 = vsel %vm5435, %v5428, %v5432
    %v5437 = vand.u32 2147483647, %v5425
    %vm5438 = vcmp.eq.f32.partialorder %v5437, 8.507059e+37
    %v5439 = vand.u32 %v5425, 2147483648
    %v5440 = vor.u32 1.1754944e-38, %v5439
    %v5441 = vsel %vm5438, %v5440, %v5436
    %v5442 = vmul.f32 1.0, %v5441
    %v5443 = vrcp.pop %v5426
    %v5444 = vmul.f32 %v5426, %v5443
    %v5445 = vsub.f32 1.0, %v5444
    %v5446 = vmul.f32 %v5443, %v5445
    %v5447 = vadd.f32 %v5443, %v5446
    %vm5448 = vweird.f32 %v5426
    %vm5449 = vweird.f32 %v5443
    %vm5450 = vmor %vm5448, %vm5449
    %v5451 = vsel %vm5450, %v5443, %v5447
    %v5452 = vand.u32 2147483647, %v5426
    %vm5453 = vcmp.eq.f32.partialorder %v5452, 8.507059e+37
    %v5454 = vand.u32 %v5426, 2147483648
    %v5455 = vor.u32 1.1754944e-38, %v5454
    %v5456 = vsel %vm5453, %v5455, %v5451
    %v5457 = vmul.f32 1.0, %v5456
    %v5458 = vrcp.pop %v5427
    %v5459 = vmul.f32 %v5427, %v5458
    %v5460 = vsub.f32 1.0, %v5459
    %v5461 = vmul.f32 %v5458, %v5460
    %v5462 = vadd.f32 %v5458, %v5461
    %vm5463 = vweird.f32 %v5427
    %vm5464 = vweird.f32 %v5458
    %vm5465 = vmor %vm5463, %vm5464
    %v5466 = vsel %vm5465, %v5458, %v5462
    %v5467 = vand.u32 2147483647, %v5427
    %vm5468 = vcmp.eq.f32.partialorder %v5467, 8.507059e+37
    %v5469 = vand.u32 %v5427, 2147483648
    %v5470 = vor.u32 1.1754944e-38, %v5469
    %v5471 = vsel %vm5468, %v5470, %v5466
    %v5472 = vmul.f32 1.0, %v5471
    %v5473 = vtanh.pop %v5415
    %v5474 = vmul.f32 %v5457, %v5351
    %v5475 = vmul.f32 %v5442, %v5473
    %v5476 = vadd.f32 %v5474, %v5475
    %v5477 = vtanh.pop %v5476
    %v5478 = vmul.f32 %v5472, %v5477
    %5479 = vst [vmem:[%s1648] sm:$0xff] %v5478
    %v5480 = vld [vmem:[%s1650] sm:$0xff]
    %v5481 = vld [vmem:[%s1650 + $0x8] sm:$0xff]
    %v5482 = vld [vmem:[%s1650 + $0x10] sm:$0xff]
    %v5483 = vld [vmem:[%s1650 + $0x18] sm:$0xff]
    %v5484 = vpack.c.bf16 %v5478, %v5478
    %5485 = vmatpush.bf16.msra.mxu0 %v5074
    %5486 = vmatpush.bf16.msra.mxu0 %v5070
    %5487 = vmatpush.bf16.msra.mxu0 %v5066
    %5488 = vmatpush.bf16.msra.mxu0 %v5062
    %5489 = vmatpush.bf16.msra.mxu0 %v5058
    %5490 = vmatpush.bf16.msra.mxu0 %v5054
    %5491 = vmatpush.bf16.msra.mxu0 %v5050
    %5492 = vmatpush.bf16.msra.mxu0 %v5046
    %5493 = vmatmul.bf16.gmra.mxu0 %v5484
    %v5494 = vpop.f32.mrf.mxu0
    %v5495 = vadd.f32 0.0, %v5494
    %v5496 = vpop.f32.mrf.mxu0
    %5497 = vdwg.mxu0
    %5498 = vmatpush.bf16.msra.mxu0 %v5075
    %5499 = vmatpush.bf16.msra.mxu0 %v5071
    %5500 = vmatpush.bf16.msra.mxu0 %v5067
    %5501 = vmatpush.bf16.msra.mxu0 %v5063
    %5502 = vmatpush.bf16.msra.mxu0 %v5059
    %5503 = vmatpush.bf16.msra.mxu0 %v5055
    %5504 = vmatpush.bf16.msra.mxu0 %v5051
    %5505 = vmatpush.bf16.msra.mxu0 %v5047
    %5506 = vmatmul.bf16.gmra.mxu0 %v5484
    %v5507 = vpop.f32.mrf.mxu0
    %v5508 = vadd.f32 0.0, %v5507
    %v5509 = vpop.f32.mrf.mxu0
    %5510 = vdwg.mxu0
    %5511 = vmatpush.bf16.msra.mxu0 %v5076
    %5512 = vmatpush.bf16.msra.mxu0 %v5072
    %5513 = vmatpush.bf16.msra.mxu0 %v5068
    %5514 = vmatpush.bf16.msra.mxu0 %v5064
    %5515 = vmatpush.bf16.msra.mxu0 %v5060
    %5516 = vmatpush.bf16.msra.mxu0 %v5056
    %5517 = vmatpush.bf16.msra.mxu0 %v5052
    %5518 = vmatpush.bf16.msra.mxu0 %v5048
    %5519 = vmatmul.bf16.gmra.mxu0 %v5484
    %v5520 = vpop.f32.mrf.mxu0
    %v5521 = vadd.f32 0.0, %v5520
    %v5522 = vpop.f32.mrf.mxu0
    %5523 = vdwg.mxu0
    %5524 = vmatpush.bf16.msra.mxu0 %v5077
    %5525 = vmatpush.bf16.msra.mxu0 %v5073
    %5526 = vmatpush.bf16.msra.mxu0 %v5069
    %5527 = vmatpush.bf16.msra.mxu0 %v5065
    %5528 = vmatpush.bf16.msra.mxu0 %v5061
    %5529 = vmatpush.bf16.msra.mxu0 %v5057
    %5530 = vmatpush.bf16.msra.mxu0 %v5053
    %5531 = vmatpush.bf16.msra.mxu0 %v5049
    %5532 = vmatmul.bf16.gmra.mxu0 %v5484
    %v5533 = vpop.f32.mrf.mxu0
    %v5534 = vadd.f32 0.0, %v5533
    %v5535 = vpop.f32.mrf.mxu0
    %5536 = vdwg.mxu0
    %v5537 = vadd.f32 %v5480, %v5495
    %v5538 = vadd.f32 %v5481, %v5508
    %v5539 = vadd.f32 %v5482, %v5521
    %v5540 = vadd.f32 %v5483, %v5534
    %v5541 = vxor.u32 %v5537, 2147483648
    %v5542 = vxor.u32 %v5538, 2147483648
    %v5543 = vxor.u32 %v5539, 2147483648
    %v5544 = vmul.f32 %v5541, 1.442695
    %v5545 = vpow.pop %v5544
    %v5546 = vmul.f32 %v5542, 1.442695
    %v5547 = vpow.pop %v5546
    %v5548 = vmul.f32 %v5543, 1.442695
    %v5549 = vpow.pop %v5548
    %v5550 = vadd.f32 %v5545, 1.0
    %v5551 = vadd.f32 %v5547, 1.0
    %v5552 = vadd.f32 %v5549, 1.0
    %v5553 = vrcp.pop %v5550
    %v5554 = vmul.f32 %v5550, %v5553
    %v5555 = vsub.f32 1.0, %v5554
    %v5556 = vmul.f32 %v5553, %v5555
    %v5557 = vadd.f32 %v5553, %v5556
    %vm5558 = vweird.f32 %v5550
    %vm5559 = vweird.f32 %v5553
    %vm5560 = vmor %vm5558, %vm5559
    %v5561 = vsel %vm5560, %v5553, %v5557
    %v5562 = vand.u32 2147483647, %v5550
    %vm5563 = vcmp.eq.f32.partialorder %v5562, 8.507059e+37
    %v5564 = vand.u32 %v5550, 2147483648
    %v5565 = vor.u32 1.1754944e-38, %v5564
    %v5566 = vsel %vm5563, %v5565, %v5561
    %v5567 = vmul.f32 1.0, %v5566
    %v5568 = vrcp.pop %v5551
    %v5569 = vmul.f32 %v5551, %v5568
    %v5570 = vsub.f32 1.0, %v5569
    %v5571 = vmul.f32 %v5568, %v5570
    %v5572 = vadd.f32 %v5568, %v5571
    %vm5573 = vweird.f32 %v5551
    %vm5574 = vweird.f32 %v5568
    %vm5575 = vmor %vm5573, %vm5574
    %v5576 = vsel %vm5575, %v5568, %v5572
    %v5577 = vand.u32 2147483647, %v5551
    %vm5578 = vcmp.eq.f32.partialorder %v5577, 8.507059e+37
    %v5579 = vand.u32 %v5551, 2147483648
    %v5580 = vor.u32 1.1754944e-38, %v5579
    %v5581 = vsel %vm5578, %v5580, %v5576
    %v5582 = vmul.f32 1.0, %v5581
    %v5583 = vrcp.pop %v5552
    %v5584 = vmul.f32 %v5552, %v5583
    %v5585 = vsub.f32 1.0, %v5584
    %v5586 = vmul.f32 %v5583, %v5585
    %v5587 = vadd.f32 %v5583, %v5586
    %vm5588 = vweird.f32 %v5552
    %vm5589 = vweird.f32 %v5583
    %vm5590 = vmor %vm5588, %vm5589
    %v5591 = vsel %vm5590, %v5583, %v5587
    %v5592 = vand.u32 2147483647, %v5552
    %vm5593 = vcmp.eq.f32.partialorder %v5592, 8.507059e+37
    %v5594 = vand.u32 %v5552, 2147483648
    %v5595 = vor.u32 1.1754944e-38, %v5594
    %v5596 = vsel %vm5593, %v5595, %v5591
    %v5597 = vmul.f32 1.0, %v5596
    %v5598 = vtanh.pop %v5540
    %v5599 = vmul.f32 %v5582, %v5476
    %v5600 = vmul.f32 %v5567, %v5598
    %v5601 = vadd.f32 %v5599, %v5600
    %v5602 = vtanh.pop %v5601
    %v5603 = vmul.f32 %v5597, %v5602
    %5604 = vst [vmem:[%s1775] sm:$0xff] %v5603
    %v5605 = vld [vmem:[%s1777] sm:$0xff]
    %v5606 = vld [vmem:[%s1777 + $0x8] sm:$0xff]
    %v5607 = vld [vmem:[%s1777 + $0x10] sm:$0xff]
    %v5608 = vld [vmem:[%s1777 + $0x18] sm:$0xff]
    %v5609 = vpack.c.bf16 %v5603, %v5603
    %5610 = vmatpush.bf16.msra.mxu0 %v5074
    %5611 = vmatpush.bf16.msra.mxu0 %v5070
    %5612 = vmatpush.bf16.msra.mxu0 %v5066
    %5613 = vmatpush.bf16.msra.mxu0 %v5062
    %5614 = vmatpush.bf16.msra.mxu0 %v5058
    %5615 = vmatpush.bf16.msra.mxu0 %v5054
    %5616 = vmatpush.bf16.msra.mxu0 %v5050
    %5617 = vmatpush.bf16.msra.mxu0 %v5046
    %5618 = vmatmul.bf16.gmra.mxu0 %v5609
    %v5619 = vpop.f32.mrf.mxu0
    %v5620 = vadd.f32 0.0, %v5619
    %v5621 = vpop.f32.mrf.mxu0
    %5622 = vdwg.mxu0
    %5623 = vmatpush.bf16.msra.mxu0 %v5075
    %5624 = vmatpush.bf16.msra.mxu0 %v5071
    %5625 = vmatpush.bf16.msra.mxu0 %v5067
    %5626 = vmatpush.bf16.msra.mxu0 %v5063
    %5627 = vmatpush.bf16.msra.mxu0 %v5059
    %5628 = vmatpush.bf16.msra.mxu0 %v5055
    %5629 = vmatpush.bf16.msra.mxu0 %v5051
    %5630 = vmatpush.bf16.msra.mxu0 %v5047
    %5631 = vmatmul.bf16.gmra.mxu0 %v5609
    %v5632 = vpop.f32.mrf.mxu0
    %v5633 = vadd.f32 0.0, %v5632
    %v5634 = vpop.f32.mrf.mxu0
    %5635 = vdwg.mxu0
    %5636 = vmatpush.bf16.msra.mxu0 %v5076
    %5637 = vmatpush.bf16.msra.mxu0 %v5072
    %5638 = vmatpush.bf16.msra.mxu0 %v5068
    %5639 = vmatpush.bf16.msra.mxu0 %v5064
    %5640 = vmatpush.bf16.msra.mxu0 %v5060
    %5641 = vmatpush.bf16.msra.mxu0 %v5056
    %5642 = vmatpush.bf16.msra.mxu0 %v5052
    %5643 = vmatpush.bf16.msra.mxu0 %v5048
    %5644 = vmatmul.bf16.gmra.mxu0 %v5609
    %v5645 = vpop.f32.mrf.mxu0
    %v5646 = vadd.f32 0.0, %v5645
    %v5647 = vpop.f32.mrf.mxu0
    %5648 = vdwg.mxu0
    %5649 = vmatpush.bf16.msra.mxu0 %v5077
    %5650 = vmatpush.bf16.msra.mxu0 %v5073
    %5651 = vmatpush.bf16.msra.mxu0 %v5069
    %5652 = vmatpush.bf16.msra.mxu0 %v5065
    %5653 = vmatpush.bf16.msra.mxu0 %v5061
    %5654 = vmatpush.bf16.msra.mxu0 %v5057
    %5655 = vmatpush.bf16.msra.mxu0 %v5053
    %5656 = vmatpush.bf16.msra.mxu0 %v5049
    %5657 = vmatmul.bf16.gmra.mxu0 %v5609
    %v5658 = vpop.f32.mrf.mxu0
    %v5659 = vadd.f32 0.0, %v5658
    %v5660 = vpop.f32.mrf.mxu0
    %5661 = vdwg.mxu0
    %v5662 = vadd.f32 %v5605, %v5620
    %v5663 = vadd.f32 %v5606, %v5633
    %v5664 = vadd.f32 %v5607, %v5646
    %v5665 = vadd.f32 %v5608, %v5659
    %v5666 = vxor.u32 %v5662, 2147483648
    %v5667 = vxor.u32 %v5663, 2147483648
    %v5668 = vxor.u32 %v5664, 2147483648
    %v5669 = vmul.f32 %v5666, 1.442695
    %v5670 = vpow.pop %v5669
    %v5671 = vmul.f32 %v5667, 1.442695
    %v5672 = vpow.pop %v5671
    %v5673 = vmul.f32 %v5668, 1.442695
    %v5674 = vpow.pop %v5673
    %v5675 = vadd.f32 %v5670, 1.0
    %v5676 = vadd.f32 %v5672, 1.0
    %v5677 = vadd.f32 %v5674, 1.0
    %v5678 = vrcp.pop %v5675
    %v5679 = vmul.f32 %v5675, %v5678
    %v5680 = vsub.f32 1.0, %v5679
    %v5681 = vmul.f32 %v5678, %v5680
    %v5682 = vadd.f32 %v5678, %v5681
    %vm5683 = vweird.f32 %v5675
    %vm5684 = vweird.f32 %v5678
    %vm5685 = vmor %vm5683, %vm5684
    %v5686 = vsel %vm5685, %v5678, %v5682
    %v5687 = vand.u32 2147483647, %v5675
    %vm5688 = vcmp.eq.f32.partialorder %v5687, 8.507059e+37
    %v5689 = vand.u32 %v5675, 2147483648
    %v5690 = vor.u32 1.1754944e-38, %v5689
    %v5691 = vsel %vm5688, %v5690, %v5686
    %v5692 = vmul.f32 1.0, %v5691
    %v5693 = vrcp.pop %v5676
    %v5694 = vmul.f32 %v5676, %v5693
    %v5695 = vsub.f32 1.0, %v5694
    %v5696 = vmul.f32 %v5693, %v5695
    %v5697 = vadd.f32 %v5693, %v5696
    %vm5698 = vweird.f32 %v5676
    %vm5699 = vweird.f32 %v5693
    %vm5700 = vmor %vm5698, %vm5699
    %v5701 = vsel %vm5700, %v5693, %v5697
    %v5702 = vand.u32 2147483647, %v5676
    %vm5703 = vcmp.eq.f32.partialorder %v5702, 8.507059e+37
    %v5704 = vand.u32 %v5676, 2147483648
    %v5705 = vor.u32 1.1754944e-38, %v5704
    %v5706 = vsel %vm5703, %v5705, %v5701
    %v5707 = vmul.f32 1.0, %v5706
    %v5708 = vrcp.pop %v5677
    %v5709 = vmul.f32 %v5677, %v5708
    %v5710 = vsub.f32 1.0, %v5709
    %v5711 = vmul.f32 %v5708, %v5710
    %v5712 = vadd.f32 %v5708, %v5711
    %vm5713 = vweird.f32 %v5677
    %vm5714 = vweird.f32 %v5708
    %vm5715 = vmor %vm5713, %vm5714
    %v5716 = vsel %vm5715, %v5708, %v5712
    %v5717 = vand.u32 2147483647, %v5677
    %vm5718 = vcmp.eq.f32.partialorder %v5717, 8.507059e+37
    %v5719 = vand.u32 %v5677, 2147483648
    %v5720 = vor.u32 1.1754944e-38, %v5719
    %v5721 = vsel %vm5718, %v5720, %v5716
    %v5722 = vmul.f32 1.0, %v5721
    %v5723 = vtanh.pop %v5665
    %v5724 = vmul.f32 %v5707, %v5601
    %v5725 = vmul.f32 %v5692, %v5723
    %v5726 = vadd.f32 %v5724, %v5725
    %v5727 = vtanh.pop %v5726
    %v5728 = vmul.f32 %v5722, %v5727
    %5729 = vst [vmem:[%s1902] sm:$0xff] %v5728
    %v5730 = vld [vmem:[%s1904] sm:$0xff]
    %v5731 = vld [vmem:[%s1904 + $0x8] sm:$0xff]
    %v5732 = vld [vmem:[%s1904 + $0x10] sm:$0xff]
    %v5733 = vld [vmem:[%s1904 + $0x18] sm:$0xff]
    %v5734 = vpack.c.bf16 %v5728, %v5728
    %5735 = vmatpush.bf16.msra.mxu0 %v5074
    %5736 = vmatpush.bf16.msra.mxu0 %v5070
    %5737 = vmatpush.bf16.msra.mxu0 %v5066
    %5738 = vmatpush.bf16.msra.mxu0 %v5062
    %5739 = vmatpush.bf16.msra.mxu0 %v5058
    %5740 = vmatpush.bf16.msra.mxu0 %v5054
    %5741 = vmatpush.bf16.msra.mxu0 %v5050
    %5742 = vmatpush.bf16.msra.mxu0 %v5046
    %5743 = vmatmul.bf16.gmra.mxu0 %v5734
    %v5744 = vpop.f32.mrf.mxu0
    %v5745 = vadd.f32 0.0, %v5744
    %v5746 = vpop.f32.mrf.mxu0
    %5747 = vdwg.mxu0
    %5748 = vmatpush.bf16.msra.mxu0 %v5075
    %5749 = vmatpush.bf16.msra.mxu0 %v5071
    %5750 = vmatpush.bf16.msra.mxu0 %v5067
    %5751 = vmatpush.bf16.msra.mxu0 %v5063
    %5752 = vmatpush.bf16.msra.mxu0 %v5059
    %5753 = vmatpush.bf16.msra.mxu0 %v5055
    %5754 = vmatpush.bf16.msra.mxu0 %v5051
    %5755 = vmatpush.bf16.msra.mxu0 %v5047
    %5756 = vmatmul.bf16.gmra.mxu0 %v5734
    %v5757 = vpop.f32.mrf.mxu0
    %v5758 = vadd.f32 0.0, %v5757
    %v5759 = vpop.f32.mrf.mxu0
    %5760 = vdwg.mxu0
    %5761 = vmatpush.bf16.msra.mxu0 %v5076
    %5762 = vmatpush.bf16.msra.mxu0 %v5072
    %5763 = vmatpush.bf16.msra.mxu0 %v5068
    %5764 = vmatpush.bf16.msra.mxu0 %v5064
    %5765 = vmatpush.bf16.msra.mxu0 %v5060
    %5766 = vmatpush.bf16.msra.mxu0 %v5056
    %5767 = vmatpush.bf16.msra.mxu0 %v5052
    %5768 = vmatpush.bf16.msra.mxu0 %v5048
    %5769 = vmatmul.bf16.gmra.mxu0 %v5734
    %v5770 = vpop.f32.mrf.mxu0
    %v5771 = vadd.f32 0.0, %v5770
    %v5772 = vpop.f32.mrf.mxu0
    %5773 = vdwg.mxu0
    %5774 = vmatpush.bf16.msra.mxu0 %v5077
    %5775 = vmatpush.bf16.msra.mxu0 %v5073
    %5776 = vmatpush.bf16.msra.mxu0 %v5069
    %5777 = vmatpush.bf16.msra.mxu0 %v5065
    %5778 = vmatpush.bf16.msra.mxu0 %v5061
    %5779 = vmatpush.bf16.msra.mxu0 %v5057
    %5780 = vmatpush.bf16.msra.mxu0 %v5053
    %5781 = vmatpush.bf16.msra.mxu0 %v5049
    %5782 = vmatmul.bf16.gmra.mxu0 %v5734
    %v5783 = vpop.f32.mrf.mxu0
    %v5784 = vadd.f32 0.0, %v5783
    %v5785 = vpop.f32.mrf.mxu0
    %5786 = vdwg.mxu0
    %v5787 = vadd.f32 %v5730, %v5745
    %v5788 = vadd.f32 %v5731, %v5758
    %v5789 = vadd.f32 %v5732, %v5771
    %v5790 = vadd.f32 %v5733, %v5784
    %v5791 = vxor.u32 %v5787, 2147483648
    %v5792 = vxor.u32 %v5788, 2147483648
    %v5793 = vxor.u32 %v5789, 2147483648
    %v5794 = vmul.f32 %v5791, 1.442695
    %v5795 = vpow.pop %v5794
    %v5796 = vmul.f32 %v5792, 1.442695
    %v5797 = vpow.pop %v5796
    %v5798 = vmul.f32 %v5793, 1.442695
    %v5799 = vpow.pop %v5798
    %v5800 = vadd.f32 %v5795, 1.0
    %v5801 = vadd.f32 %v5797, 1.0
    %v5802 = vadd.f32 %v5799, 1.0
    %v5803 = vrcp.pop %v5800
    %v5804 = vmul.f32 %v5800, %v5803
    %v5805 = vsub.f32 1.0, %v5804
    %v5806 = vmul.f32 %v5803, %v5805
    %v5807 = vadd.f32 %v5803, %v5806
    %vm5808 = vweird.f32 %v5800
    %vm5809 = vweird.f32 %v5803
    %vm5810 = vmor %vm5808, %vm5809
    %v5811 = vsel %vm5810, %v5803, %v5807
    %v5812 = vand.u32 2147483647, %v5800
    %vm5813 = vcmp.eq.f32.partialorder %v5812, 8.507059e+37
    %v5814 = vand.u32 %v5800, 2147483648
    %v5815 = vor.u32 1.1754944e-38, %v5814
    %v5816 = vsel %vm5813, %v5815, %v5811
    %v5817 = vmul.f32 1.0, %v5816
    %v5818 = vrcp.pop %v5801
    %v5819 = vmul.f32 %v5801, %v5818
    %v5820 = vsub.f32 1.0, %v5819
    %v5821 = vmul.f32 %v5818, %v5820
    %v5822 = vadd.f32 %v5818, %v5821
    %vm5823 = vweird.f32 %v5801
    %vm5824 = vweird.f32 %v5818
    %vm5825 = vmor %vm5823, %vm5824
    %v5826 = vsel %vm5825, %v5818, %v5822
    %v5827 = vand.u32 2147483647, %v5801
    %vm5828 = vcmp.eq.f32.partialorder %v5827, 8.507059e+37
    %v5829 = vand.u32 %v5801, 2147483648
    %v5830 = vor.u32 1.1754944e-38, %v5829
    %v5831 = vsel %vm5828, %v5830, %v5826
    %v5832 = vmul.f32 1.0, %v5831
    %v5833 = vrcp.pop %v5802
    %v5834 = vmul.f32 %v5802, %v5833
    %v5835 = vsub.f32 1.0, %v5834
    %v5836 = vmul.f32 %v5833, %v5835
    %v5837 = vadd.f32 %v5833, %v5836
    %vm5838 = vweird.f32 %v5802
    %vm5839 = vweird.f32 %v5833
    %vm5840 = vmor %vm5838, %vm5839
    %v5841 = vsel %vm5840, %v5833, %v5837
    %v5842 = vand.u32 2147483647, %v5802
    %vm5843 = vcmp.eq.f32.partialorder %v5842, 8.507059e+37
    %v5844 = vand.u32 %v5802, 2147483648
    %v5845 = vor.u32 1.1754944e-38, %v5844
    %v5846 = vsel %vm5843, %v5845, %v5841
    %v5847 = vmul.f32 1.0, %v5846
    %v5848 = vtanh.pop %v5790
    %v5849 = vmul.f32 %v5832, %v5726
    %v5850 = vmul.f32 %v5817, %v5848
    %v5851 = vadd.f32 %v5849, %v5850
    %v5852 = vtanh.pop %v5851
    %v5853 = vmul.f32 %v5847, %v5852
    %5854 = vst [vmem:[%s2029] sm:$0xff] %v5853
    %v5855 = vld [vmem:[#allocation3] sm:$0xff]
    %v5856 = vld [vmem:[#allocation3 + $0x8] sm:$0xff]
    %v5857 = vld [vmem:[#allocation3 + $0x10] sm:$0xff]
    %v5858 = vld [vmem:[#allocation3 + $0x18] sm:$0xff]
    %v5859 = vld [vmem:[#allocation3 + $0x20] sm:$0xff]
    %v5860 = vld [vmem:[#allocation3 + $0x28] sm:$0xff]
    %v5861 = vpack.c.bf16 %v5856, %v5855
    %v5862 = vpack.c.bf16 %v5858, %v5857
    %v5863 = vpack.c.bf16 %v5860, %v5859
    %s5864 = scalar_lea.vmem [#allocation9], 768
    %v5865 = vld [vmem:[%s5864] sm:$0xff]
    %v5866 = vld [vmem:[%s5864 + $0x8] sm:$0xff]
    %v5867 = vld [vmem:[%s5864 + $0x10] sm:$0xff]
    %v5868 = vld [vmem:[%s5864 + $0x18] sm:$0xff]
    %v5869 = vld [vmem:[%s5864 + $0x20] sm:$0xff]
    %v5870 = vld [vmem:[%s5864 + $0x28] sm:$0xff]
    %v5871 = vld [vmem:[%s5864 + $0x30] sm:$0xff]
    %v5872 = vld [vmem:[%s5864 + $0x38] sm:$0xff]
    %v5873 = vld [vmem:[%s5864 + $0x40] sm:$0xff]
    %v5874 = vld [vmem:[%s5864 + $0x48] sm:$0xff]
    %v5875 = vld [vmem:[%s5864 + $0x50] sm:$0xff]
    %v5876 = vld [vmem:[%s5864 + $0x58] sm:$0xff]
    %v5877 = vld [vmem:[%s5864 + $0x60] sm:$0xff]
    %v5878 = vld [vmem:[%s5864 + $0x68] sm:$0xff]
    %v5879 = vld [vmem:[%s5864 + $0x70] sm:$0xff]
    %v5880 = vld [vmem:[%s5864 + $0x78] sm:$0xff]
    %v5881 = vld [vmem:[%s5864 + $0x80] sm:$0xff]
    %v5882 = vld [vmem:[%s5864 + $0x88] sm:$0xff]
    %v5883 = vld [vmem:[%s5864 + $0x90] sm:$0xff]
    %v5884 = vld [vmem:[%s5864 + $0x98] sm:$0xff]
    %v5885 = vld [vmem:[%s5864 + $0xa0] sm:$0xff]
    %v5886 = vld [vmem:[%s5864 + $0xa8] sm:$0xff]
    %v5887 = vld [vmem:[%s5864 + $0xb0] sm:$0xff]
    %v5888 = vld [vmem:[%s5864 + $0xb8] sm:$0xff]
    %v5889 = vld [vmem:[%s5864 + $0xc0] sm:$0xff]
    %v5890 = vld [vmem:[%s5864 + $0xc8] sm:$0xff]
    %v5891 = vld [vmem:[%s5864 + $0xd0] sm:$0xff]
    %v5892 = vld [vmem:[%s5864 + $0xd8] sm:$0xff]
    %v5893 = vld [vmem:[%s5864 + $0xe0] sm:$0xff]
    %v5894 = vld [vmem:[%s5864 + $0xe8] sm:$0xff]
    %v5895 = vld [vmem:[%s5864 + $0xf0] sm:$0xff]
    %v5896 = vld [vmem:[%s5864 + $0xf8] sm:$0xff]
    %s5897 = scalar_lea.vmem [#allocation12], 16
    %v5898 = vld [vmem:[%s5897] sm:$0xf]
    %v5900 = vperm.slane %v5898, 0
    %v5901 = vperm.slane %v5898, 1
    %v5902 = vperm.slane %v5898, 2
    %v5903 = vperm.slane %v5898, 3
    %v5940 = vunpack.c.l.b16 %v5865
    %v5941 = vunpack.c.h.b16 %v5865
    %v5942 = vunpack.c.l.b16 %v5866
    %v5943 = vunpack.c.h.b16 %v5866
    %v5944 = vunpack.c.l.b16 %v5867
    %v5945 = vunpack.c.h.b16 %v5867
    %v5946 = vunpack.c.l.b16 %v5868
    %v5947 = vunpack.c.h.b16 %v5868
    %v5948 = vunpack.c.l.b16 %v5869
    %v5949 = vunpack.c.h.b16 %v5869
    %v5950 = vunpack.c.l.b16 %v5870
    %v5951 = vunpack.c.h.b16 %v5870
    %v5952 = vunpack.c.l.b16 %v5871
    %v5953 = vunpack.c.h.b16 %v5871
    %v5954 = vunpack.c.l.b16 %v5872
    %v5955 = vunpack.c.h.b16 %v5872
    %v5956 = vunpack.c.l.b16 %v5873
    %v5957 = vunpack.c.h.b16 %v5873
    %v5958 = vunpack.c.l.b16 %v5874
    %v5959 = vunpack.c.h.b16 %v5874
    %v5960 = vunpack.c.l.b16 %v5875
    %v5961 = vunpack.c.h.b16 %v5875
    %v5962 = vunpack.c.l.b16 %v5876
    %v5963 = vunpack.c.h.b16 %v5876
    %v5964 = vunpack.c.l.b16 %v5877
    %v5965 = vunpack.c.h.b16 %v5877
    %v5966 = vunpack.c.l.b16 %v5878
    %v5967 = vunpack.c.h.b16 %v5878
    %v5968 = vunpack.c.l.b16 %v5879
    %v5969 = vunpack.c.h.b16 %v5879
    %v5970 = vunpack.c.l.b16 %v5880
    %v5971 = vunpack.c.h.b16 %v5880
    %v5972 = vunpack.c.l.b16 %v5881
    %v5973 = vunpack.c.h.b16 %v5881
    %v5974 = vunpack.c.l.b16 %v5882
    %v5975 = vunpack.c.h.b16 %v5882
    %v5976 = vunpack.c.l.b16 %v5883
    %v5977 = vunpack.c.h.b16 %v5883
    %v5978 = vunpack.c.l.b16 %v5884
    %v5979 = vunpack.c.h.b16 %v5884
    %v5980 = vunpack.c.l.b16 %v5885
    %v5981 = vunpack.c.h.b16 %v5885
    %v5982 = vunpack.c.l.b16 %v5886
    %v5983 = vunpack.c.h.b16 %v5886
    %v5984 = vunpack.c.l.b16 %v5887
    %v5985 = vunpack.c.h.b16 %v5887
    %v5986 = vunpack.c.l.b16 %v5888
    %v5987 = vunpack.c.h.b16 %v5888
    %v5988 = vunpack.c.l.b16 %v5889
    %v5989 = vunpack.c.h.b16 %v5889
    %v5990 = vunpack.c.l.b16 %v5890
    %v5991 = vunpack.c.h.b16 %v5890
    %v5992 = vunpack.c.l.b16 %v5891
    %v5993 = vunpack.c.h.b16 %v5891
    %v5994 = vunpack.c.l.b16 %v5892
    %v5995 = vunpack.c.h.b16 %v5892
    %v5996 = vunpack.c.l.b16 %v5893
    %v5997 = vunpack.c.h.b16 %v5893
    %v5998 = vunpack.c.l.b16 %v5894
    %v5999 = vunpack.c.h.b16 %v5894
    %v6000 = vunpack.c.l.b16 %v5895
    %v6001 = vunpack.c.h.b16 %v5895
    %v6002 = vunpack.c.l.b16 %v5896
    %v6003 = vunpack.c.h.b16 %v5896
    %v6004 = vpack.c.b16 %v5944, %v5940
    %v6005 = vpack.c.b16 %v5945, %v5941
    %v6006 = vpack.c.b16 %v5946, %v5942
    %v6007 = vpack.c.b16 %v5947, %v5943
    %v6008 = vpack.c.b16 %v5952, %v5948
    %v6009 = vpack.c.b16 %v5953, %v5949
    %v6010 = vpack.c.b16 %v5954, %v5950
    %v6011 = vpack.c.b16 %v5955, %v5951
    %v6012 = vpack.c.b16 %v5960, %v5956
    %v6013 = vpack.c.b16 %v5961, %v5957
    %v6014 = vpack.c.b16 %v5962, %v5958
    %v6015 = vpack.c.b16 %v5963, %v5959
    %v6016 = vpack.c.b16 %v5968, %v5964
    %v6017 = vpack.c.b16 %v5969, %v5965
    %v6018 = vpack.c.b16 %v5970, %v5966
    %v6019 = vpack.c.b16 %v5971, %v5967
    %v6020 = vpack.c.b16 %v5976, %v5972
    %v6021 = vpack.c.b16 %v5977, %v5973
    %v6022 = vpack.c.b16 %v5978, %v5974
    %v6023 = vpack.c.b16 %v5979, %v5975
    %v6024 = vpack.c.b16 %v5984, %v5980
    %v6025 = vpack.c.b16 %v5985, %v5981
    %v6026 = vpack.c.b16 %v5986, %v5982
    %v6027 = vpack.c.b16 %v5987, %v5983
    %v6028 = vpack.c.b16 %v5992, %v5988
    %v6029 = vpack.c.b16 %v5993, %v5989
    %v6030 = vpack.c.b16 %v5994, %v5990
    %v6031 = vpack.c.b16 %v5995, %v5991
    %v6032 = vpack.c.b16 %v6000, %v5996
    %v6033 = vpack.c.b16 %v6001, %v5997
    %v6034 = vpack.c.b16 %v6002, %v5998
    %v6035 = vpack.c.b16 %v6003, %v5999
    %6068 = vmatpush.bf16.msra.mxu0 %v6032
    %6069 = vmatpush.bf16.msra.mxu0 %v6028
    %6070 = vmatpush.bf16.msra.mxu0 %v6024
    %6071 = vmatpush.bf16.msra.mxu0 %v6020
    %6072 = vmatpush.bf16.msra.mxu0 %v6016
    %6073 = vmatpush.bf16.msra.mxu0 %v6012
    %6074 = vmatpush.bf16.msra.mxu0 %v6008
    %6075 = vmatpush.bf16.msra.mxu0 %v6004
    %6076 = vmatmul.bf16.gmra.mxu0 %v5861
    %v6077 = vpop.f32.mrf.mxu0
    %v6078 = vadd.f32 %v5900, %v6077
    %v6079 = vpop.f32.mrf.mxu0
    %v6080 = vadd.f32 %v5900, %v6079
    %6081 = vmatmul.bf16.gmra.mxu0 %v5862
    %v6082 = vpop.f32.mrf.mxu0
    %v6083 = vadd.f32 %v5900, %v6082
    %v6084 = vpop.f32.mrf.mxu0
    %v6085 = vadd.f32 %v5900, %v6084
    %6086 = vmatmul.bf16.gmra.mxu0 %v5863
    %v6087 = vpop.f32.mrf.mxu0
    %v6088 = vadd.f32 %v5900, %v6087
    %v6089 = vpop.f32.mrf.mxu0
    %v6090 = vadd.f32 %v5900, %v6089
    %6091 = vdwg.mxu0
    %6092 = vmatpush.bf16.msra.mxu0 %v6033
    %6093 = vmatpush.bf16.msra.mxu0 %v6029
    %6094 = vmatpush.bf16.msra.mxu0 %v6025
    %6095 = vmatpush.bf16.msra.mxu0 %v6021
    %6096 = vmatpush.bf16.msra.mxu0 %v6017
    %6097 = vmatpush.bf16.msra.mxu0 %v6013
    %6098 = vmatpush.bf16.msra.mxu0 %v6009
    %6099 = vmatpush.bf16.msra.mxu0 %v6005
    %6100 = vmatmul.bf16.gmra.mxu0 %v5861
    %v6101 = vpop.f32.mrf.mxu0
    %v6102 = vadd.f32 %v5901, %v6101
    %v6103 = vpop.f32.mrf.mxu0
    %v6104 = vadd.f32 %v5901, %v6103
    %6105 = vmatmul.bf16.gmra.mxu0 %v5862
    %v6106 = vpop.f32.mrf.mxu0
    %v6107 = vadd.f32 %v5901, %v6106
    %v6108 = vpop.f32.mrf.mxu0
    %v6109 = vadd.f32 %v5901, %v6108
    %6110 = vmatmul.bf16.gmra.mxu0 %v5863
    %v6111 = vpop.f32.mrf.mxu0
    %v6112 = vadd.f32 %v5901, %v6111
    %v6113 = vpop.f32.mrf.mxu0
    %v6114 = vadd.f32 %v5901, %v6113
    %6115 = vdwg.mxu0
    %6116 = vmatpush.bf16.msra.mxu0 %v6034
    %6117 = vmatpush.bf16.msra.mxu0 %v6030
    %6118 = vmatpush.bf16.msra.mxu0 %v6026
    %6119 = vmatpush.bf16.msra.mxu0 %v6022
    %6120 = vmatpush.bf16.msra.mxu0 %v6018
    %6121 = vmatpush.bf16.msra.mxu0 %v6014
    %6122 = vmatpush.bf16.msra.mxu0 %v6010
    %6123 = vmatpush.bf16.msra.mxu0 %v6006
    %6124 = vmatmul.bf16.gmra.mxu0 %v5861
    %v6125 = vpop.f32.mrf.mxu0
    %v6126 = vadd.f32 %v5902, %v6125
    %v6127 = vpop.f32.mrf.mxu0
    %v6128 = vadd.f32 %v5902, %v6127
    %6129 = vmatmul.bf16.gmra.mxu0 %v5862
    %v6130 = vpop.f32.mrf.mxu0
    %v6131 = vadd.f32 %v5902, %v6130
    %v6132 = vpop.f32.mrf.mxu0
    %v6133 = vadd.f32 %v5902, %v6132
    %6134 = vmatmul.bf16.gmra.mxu0 %v5863
    %v6135 = vpop.f32.mrf.mxu0
    %v6136 = vadd.f32 %v5902, %v6135
    %v6137 = vpop.f32.mrf.mxu0
    %v6138 = vadd.f32 %v5902, %v6137
    %6139 = vdwg.mxu0
    %6140 = vmatpush.bf16.msra.mxu0 %v6035
    %6141 = vmatpush.bf16.msra.mxu0 %v6031
    %6142 = vmatpush.bf16.msra.mxu0 %v6027
    %6143 = vmatpush.bf16.msra.mxu0 %v6023
    %6144 = vmatpush.bf16.msra.mxu0 %v6019
    %6145 = vmatpush.bf16.msra.mxu0 %v6015
    %6146 = vmatpush.bf16.msra.mxu0 %v6011
    %6147 = vmatpush.bf16.msra.mxu0 %v6007
    %6148 = vmatmul.bf16.gmra.mxu0 %v5861
    %v6149 = vpop.f32.mrf.mxu0
    %v6150 = vadd.f32 %v5903, %v6149
    %v6151 = vpop.f32.mrf.mxu0
    %v6152 = vadd.f32 %v5903, %v6151
    %6153 = vmatmul.bf16.gmra.mxu0 %v5862
    %v6154 = vpop.f32.mrf.mxu0
    %v6155 = vadd.f32 %v5903, %v6154
    %v6156 = vpop.f32.mrf.mxu0
    %v6157 = vadd.f32 %v5903, %v6156
    %6158 = vmatmul.bf16.gmra.mxu0 %v5863
    %v6159 = vpop.f32.mrf.mxu0
    %v6160 = vadd.f32 %v5903, %v6159
    %v6161 = vpop.f32.mrf.mxu0
    %v6162 = vadd.f32 %v5903, %v6161
    %6163 = vdwg.mxu0
    %6164 = vst [vmem:[#allocation2] sm:$0xff] %v6078
    %6165 = vst [vmem:[#allocation2 + $0x8] sm:$0xff] %v6102
    %6166 = vst [vmem:[#allocation2 + $0x10] sm:$0xff] %v6126
    %6167 = vst [vmem:[#allocation2 + $0x18] sm:$0xff] %v6150
    %6168 = vst [vmem:[#allocation2 + $0x20] sm:$0xff] %v6080
    %6169 = vst [vmem:[#allocation2 + $0x28] sm:$0xff] %v6104
    %6170 = vst [vmem:[#allocation2 + $0x30] sm:$0xff] %v6128
    %6171 = vst [vmem:[#allocation2 + $0x38] sm:$0xff] %v6152
    %6172 = vst [vmem:[#allocation2 + $0x40] sm:$0xff] %v6083
    %6173 = vst [vmem:[#allocation2 + $0x48] sm:$0xff] %v6107
    %6174 = vst [vmem:[#allocation2 + $0x50] sm:$0xff] %v6131
    %6175 = vst [vmem:[#allocation2 + $0x58] sm:$0xff] %v6155
    %6176 = vst [vmem:[#allocation2 + $0x60] sm:$0xff] %v6085
    %6177 = vst [vmem:[#allocation2 + $0x68] sm:$0xff] %v6109
    %6178 = vst [vmem:[#allocation2 + $0x70] sm:$0xff] %v6133
    %6179 = vst [vmem:[#allocation2 + $0x78] sm:$0xff] %v6157
    %6180 = vst [vmem:[#allocation2 + $0x80] sm:$0xff] %v6088
    %6181 = vst [vmem:[#allocation2 + $0x88] sm:$0xff] %v6112
    %6182 = vst [vmem:[#allocation2 + $0x90] sm:$0xff] %v6136
    %6183 = vst [vmem:[#allocation2 + $0x98] sm:$0xff] %v6160
    %6184 = vst [vmem:[#allocation2 + $0xa0] sm:$0xff] %v6090
    %6185 = vst [vmem:[#allocation2 + $0xa8] sm:$0xff] %v6114
    %6186 = vst [vmem:[#allocation2 + $0xb0] sm:$0xff] %v6138
    %6187 = vst [vmem:[#allocation2 + $0xb8] sm:$0xff] %v6162
    %s6188 = scalar_lea.vmem [#allocation10], 1024
    %v6189 = vld [vmem:[%s6188] sm:$0xff]
    %v6190 = vld [vmem:[%s6188 + $0x8] sm:$0xff]
    %v6191 = vld [vmem:[%s6188 + $0x10] sm:$0xff]
    %v6192 = vld [vmem:[%s6188 + $0x18] sm:$0xff]
    %v6193 = vld [vmem:[%s6188 + $0x20] sm:$0xff]
    %v6194 = vld [vmem:[%s6188 + $0x28] sm:$0xff]
    %v6195 = vld [vmem:[%s6188 + $0x30] sm:$0xff]
    %v6196 = vld [vmem:[%s6188 + $0x38] sm:$0xff]
    %v6197 = vld [vmem:[%s6188 + $0x40] sm:$0xff]
    %v6198 = vld [vmem:[%s6188 + $0x48] sm:$0xff]
    %v6199 = vld [vmem:[%s6188 + $0x50] sm:$0xff]
    %v6200 = vld [vmem:[%s6188 + $0x58] sm:$0xff]
    %v6201 = vld [vmem:[%s6188 + $0x60] sm:$0xff]
    %v6202 = vld [vmem:[%s6188 + $0x68] sm:$0xff]
    %v6203 = vld [vmem:[%s6188 + $0x70] sm:$0xff]
    %v6204 = vld [vmem:[%s6188 + $0x78] sm:$0xff]
    %v6205 = vld [vmem:[%s6188 + $0x80] sm:$0xff]
    %v6206 = vld [vmem:[%s6188 + $0x88] sm:$0xff]
    %v6207 = vld [vmem:[%s6188 + $0x90] sm:$0xff]
    %v6208 = vld [vmem:[%s6188 + $0x98] sm:$0xff]
    %v6209 = vld [vmem:[%s6188 + $0xa0] sm:$0xff]
    %v6210 = vld [vmem:[%s6188 + $0xa8] sm:$0xff]
    %v6211 = vld [vmem:[%s6188 + $0xb0] sm:$0xff]
    %v6212 = vld [vmem:[%s6188 + $0xb8] sm:$0xff]
    %v6213 = vld [vmem:[%s6188 + $0xc0] sm:$0xff]
    %v6214 = vld [vmem:[%s6188 + $0xc8] sm:$0xff]
    %v6215 = vld [vmem:[%s6188 + $0xd0] sm:$0xff]
    %v6216 = vld [vmem:[%s6188 + $0xd8] sm:$0xff]
    %v6217 = vld [vmem:[%s6188 + $0xe0] sm:$0xff]
    %v6218 = vld [vmem:[%s6188 + $0xe8] sm:$0xff]
    %v6219 = vld [vmem:[%s6188 + $0xf0] sm:$0xff]
    %v6220 = vld [vmem:[%s6188 + $0xf8] sm:$0xff]
    %v6221 = vld [vmem:[#allocation2] sm:$0xff]
    %v6222 = vld [vmem:[#allocation2 + $0x8] sm:$0xff]
    %v6223 = vld [vmem:[#allocation2 + $0x10] sm:$0xff]
    %v6224 = vld [vmem:[#allocation2 + $0x18] sm:$0xff]
    %v6257 = vunpack.c.l.b16 %v6189
    %v6258 = vunpack.c.h.b16 %v6189
    %v6259 = vunpack.c.l.b16 %v6190
    %v6260 = vunpack.c.h.b16 %v6190
    %v6261 = vunpack.c.l.b16 %v6191
    %v6262 = vunpack.c.h.b16 %v6191
    %v6263 = vunpack.c.l.b16 %v6192
    %v6264 = vunpack.c.h.b16 %v6192
    %v6265 = vunpack.c.l.b16 %v6193
    %v6266 = vunpack.c.h.b16 %v6193
    %v6267 = vunpack.c.l.b16 %v6194
    %v6268 = vunpack.c.h.b16 %v6194
    %v6269 = vunpack.c.l.b16 %v6195
    %v6270 = vunpack.c.h.b16 %v6195
    %v6271 = vunpack.c.l.b16 %v6196
    %v6272 = vunpack.c.h.b16 %v6196
    %v6273 = vunpack.c.l.b16 %v6197
    %v6274 = vunpack.c.h.b16 %v6197
    %v6275 = vunpack.c.l.b16 %v6198
    %v6276 = vunpack.c.h.b16 %v6198
    %v6277 = vunpack.c.l.b16 %v6199
    %v6278 = vunpack.c.h.b16 %v6199
    %v6279 = vunpack.c.l.b16 %v6200
    %v6280 = vunpack.c.h.b16 %v6200
    %v6281 = vunpack.c.l.b16 %v6201
    %v6282 = vunpack.c.h.b16 %v6201
    %v6283 = vunpack.c.l.b16 %v6202
    %v6284 = vunpack.c.h.b16 %v6202
    %v6285 = vunpack.c.l.b16 %v6203
    %v6286 = vunpack.c.h.b16 %v6203
    %v6287 = vunpack.c.l.b16 %v6204
    %v6288 = vunpack.c.h.b16 %v6204
    %v6289 = vunpack.c.l.b16 %v6205
    %v6290 = vunpack.c.h.b16 %v6205
    %v6291 = vunpack.c.l.b16 %v6206
    %v6292 = vunpack.c.h.b16 %v6206
    %v6293 = vunpack.c.l.b16 %v6207
    %v6294 = vunpack.c.h.b16 %v6207
    %v6295 = vunpack.c.l.b16 %v6208
    %v6296 = vunpack.c.h.b16 %v6208
    %v6297 = vunpack.c.l.b16 %v6209
    %v6298 = vunpack.c.h.b16 %v6209
    %v6299 = vunpack.c.l.b16 %v6210
    %v6300 = vunpack.c.h.b16 %v6210
    %v6301 = vunpack.c.l.b16 %v6211
    %v6302 = vunpack.c.h.b16 %v6211
    %v6303 = vunpack.c.l.b16 %v6212
    %v6304 = vunpack.c.h.b16 %v6212
    %v6305 = vunpack.c.l.b16 %v6213
    %v6306 = vunpack.c.h.b16 %v6213
    %v6307 = vunpack.c.l.b16 %v6214
    %v6308 = vunpack.c.h.b16 %v6214
    %v6309 = vunpack.c.l.b16 %v6215
    %v6310 = vunpack.c.h.b16 %v6215
    %v6311 = vunpack.c.l.b16 %v6216
    %v6312 = vunpack.c.h.b16 %v6216
    %v6313 = vunpack.c.l.b16 %v6217
    %v6314 = vunpack.c.h.b16 %v6217
    %v6315 = vunpack.c.l.b16 %v6218
    %v6316 = vunpack.c.h.b16 %v6218
    %v6317 = vunpack.c.l.b16 %v6219
    %v6318 = vunpack.c.h.b16 %v6219
    %v6319 = vunpack.c.l.b16 %v6220
    %v6320 = vunpack.c.h.b16 %v6220
    %v6321 = vpack.c.b16 %v6261, %v6257
    %v6322 = vpack.c.b16 %v6262, %v6258
    %v6323 = vpack.c.b16 %v6263, %v6259
    %v6324 = vpack.c.b16 %v6264, %v6260
    %v6325 = vpack.c.b16 %v6269, %v6265
    %v6326 = vpack.c.b16 %v6270, %v6266
    %v6327 = vpack.c.b16 %v6271, %v6267
    %v6328 = vpack.c.b16 %v6272, %v6268
    %v6329 = vpack.c.b16 %v6277, %v6273
    %v6330 = vpack.c.b16 %v6278, %v6274
    %v6331 = vpack.c.b16 %v6279, %v6275
    %v6332 = vpack.c.b16 %v6280, %v6276
    %v6333 = vpack.c.b16 %v6285, %v6281
    %v6334 = vpack.c.b16 %v6286, %v6282
    %v6335 = vpack.c.b16 %v6287, %v6283
    %v6336 = vpack.c.b16 %v6288, %v6284
    %v6337 = vpack.c.b16 %v6293, %v6289
    %v6338 = vpack.c.b16 %v6294, %v6290
    %v6339 = vpack.c.b16 %v6295, %v6291
    %v6340 = vpack.c.b16 %v6296, %v6292
    %v6341 = vpack.c.b16 %v6301, %v6297
    %v6342 = vpack.c.b16 %v6302, %v6298
    %v6343 = vpack.c.b16 %v6303, %v6299
    %v6344 = vpack.c.b16 %v6304, %v6300
    %v6345 = vpack.c.b16 %v6309, %v6305
    %v6346 = vpack.c.b16 %v6310, %v6306
    %v6347 = vpack.c.b16 %v6311, %v6307
    %v6348 = vpack.c.b16 %v6312, %v6308
    %v6349 = vpack.c.b16 %v6317, %v6313
    %v6350 = vpack.c.b16 %v6318, %v6314
    %v6351 = vpack.c.b16 %v6319, %v6315
    %v6352 = vpack.c.b16 %v6320, %v6316
    %6385 = vmatpush.bf16.msra.mxu0 %v6349
    %6386 = vmatpush.bf16.msra.mxu0 %v6345
    %6387 = vmatpush.bf16.msra.mxu0 %v6341
    %6388 = vmatpush.bf16.msra.mxu0 %v6337
    %6389 = vmatpush.bf16.msra.mxu0 %v6333
    %6390 = vmatpush.bf16.msra.mxu0 %v6329
    %6391 = vmatpush.bf16.msra.mxu0 %v6325
    %6392 = vmatpush.bf16.msra.mxu0 %v6321
    %6393 = vmatmul.bf16.gmra.mxu0 0
    %v6394 = vpop.f32.mrf.mxu0
    %v6395 = vadd.f32 0.0, %v6394
    %v6396 = vpop.f32.mrf.mxu0
    %6397 = vdwg.mxu0
    %6398 = vmatpush.bf16.msra.mxu0 %v6350
    %6399 = vmatpush.bf16.msra.mxu0 %v6346
    %6400 = vmatpush.bf16.msra.mxu0 %v6342
    %6401 = vmatpush.bf16.msra.mxu0 %v6338
    %6402 = vmatpush.bf16.msra.mxu0 %v6334
    %6403 = vmatpush.bf16.msra.mxu0 %v6330
    %6404 = vmatpush.bf16.msra.mxu0 %v6326
    %6405 = vmatpush.bf16.msra.mxu0 %v6322
    %6406 = vmatmul.bf16.gmra.mxu0 0
    %v6407 = vpop.f32.mrf.mxu0
    %v6408 = vadd.f32 0.0, %v6407
    %v6409 = vpop.f32.mrf.mxu0
    %6410 = vdwg.mxu0
    %6411 = vmatpush.bf16.msra.mxu0 %v6351
    %6412 = vmatpush.bf16.msra.mxu0 %v6347
    %6413 = vmatpush.bf16.msra.mxu0 %v6343
    %6414 = vmatpush.bf16.msra.mxu0 %v6339
    %6415 = vmatpush.bf16.msra.mxu0 %v6335
    %6416 = vmatpush.bf16.msra.mxu0 %v6331
    %6417 = vmatpush.bf16.msra.mxu0 %v6327
    %6418 = vmatpush.bf16.msra.mxu0 %v6323
    %6419 = vmatmul.bf16.gmra.mxu0 0
    %v6420 = vpop.f32.mrf.mxu0
    %v6421 = vadd.f32 0.0, %v6420
    %v6422 = vpop.f32.mrf.mxu0
    %6423 = vdwg.mxu0
    %6424 = vmatpush.bf16.msra.mxu0 %v6352
    %6425 = vmatpush.bf16.msra.mxu0 %v6348
    %6426 = vmatpush.bf16.msra.mxu0 %v6344
    %6427 = vmatpush.bf16.msra.mxu0 %v6340
    %6428 = vmatpush.bf16.msra.mxu0 %v6336
    %6429 = vmatpush.bf16.msra.mxu0 %v6332
    %6430 = vmatpush.bf16.msra.mxu0 %v6328
    %6431 = vmatpush.bf16.msra.mxu0 %v6324
    %6432 = vmatmul.bf16.gmra.mxu0 0
    %v6433 = vpop.f32.mrf.mxu0
    %v6434 = vadd.f32 0.0, %v6433
    %v6435 = vpop.f32.mrf.mxu0
    %6436 = vdwg.mxu0
    %v6437 = vadd.f32 %v6221, %v6395
    %v6438 = vadd.f32 %v6222, %v6408
    %v6439 = vadd.f32 %v6223, %v6421
    %v6440 = vadd.f32 %v6224, %v6434
    %v6441 = vxor.u32 %v6437, 2147483648
    %v6442 = vxor.u32 %v6438, 2147483648
    %v6443 = vxor.u32 %v6439, 2147483648
    %v6444 = vmul.f32 %v6441, 1.442695
    %v6445 = vpow.pop %v6444
    %v6446 = vmul.f32 %v6442, 1.442695
    %v6447 = vpow.pop %v6446
    %v6448 = vmul.f32 %v6443, 1.442695
    %v6449 = vpow.pop %v6448
    %v6450 = vadd.f32 %v6445, 1.0
    %v6451 = vadd.f32 %v6447, 1.0
    %v6452 = vadd.f32 %v6449, 1.0
    %v6453 = vrcp.pop %v6450
    %v6454 = vmul.f32 %v6450, %v6453
    %v6455 = vsub.f32 1.0, %v6454
    %v6456 = vmul.f32 %v6453, %v6455
    %v6457 = vadd.f32 %v6453, %v6456
    %vm6458 = vweird.f32 %v6450
    %vm6459 = vweird.f32 %v6453
    %vm6460 = vmor %vm6458, %vm6459
    %v6461 = vsel %vm6460, %v6453, %v6457
    %v6462 = vand.u32 2147483647, %v6450
    %vm6463 = vcmp.eq.f32.partialorder %v6462, 8.507059e+37
    %v6464 = vand.u32 %v6450, 2147483648
    %v6465 = vor.u32 1.1754944e-38, %v6464
    %v6466 = vsel %vm6463, %v6465, %v6461
    %v6467 = vmul.f32 1.0, %v6466
    %v6468 = vrcp.pop %v6451
    %v6469 = vmul.f32 %v6451, %v6468
    %v6470 = vsub.f32 1.0, %v6469
    %v6471 = vmul.f32 %v6468, %v6470
    %v6472 = vadd.f32 %v6468, %v6471
    %vm6473 = vweird.f32 %v6451
    %vm6474 = vweird.f32 %v6468
    %vm6475 = vmor %vm6473, %vm6474
    %v6476 = vsel %vm6475, %v6468, %v6472
    %v6477 = vand.u32 2147483647, %v6451
    %vm6478 = vcmp.eq.f32.partialorder %v6477, 8.507059e+37
    %v6479 = vand.u32 %v6451, 2147483648
    %v6480 = vor.u32 1.1754944e-38, %v6479
    %v6481 = vsel %vm6478, %v6480, %v6476
    %v6482 = vmul.f32 1.0, %v6481
    %v6483 = vrcp.pop %v6452
    %v6484 = vmul.f32 %v6452, %v6483
    %v6485 = vsub.f32 1.0, %v6484
    %v6486 = vmul.f32 %v6483, %v6485
    %v6487 = vadd.f32 %v6483, %v6486
    %vm6488 = vweird.f32 %v6452
    %vm6489 = vweird.f32 %v6483
    %vm6490 = vmor %vm6488, %vm6489
    %v6491 = vsel %vm6490, %v6483, %v6487
    %v6492 = vand.u32 2147483647, %v6452
    %vm6493 = vcmp.eq.f32.partialorder %v6492, 8.507059e+37
    %v6494 = vand.u32 %v6452, 2147483648
    %v6495 = vor.u32 1.1754944e-38, %v6494
    %v6496 = vsel %vm6493, %v6495, %v6491
    %v6497 = vmul.f32 1.0, %v6496
    %v6498 = vtanh.pop %v6440
    %v6499 = vmul.f32 %v6482, 0.0
    %v6500 = vmul.f32 %v6467, %v6498
    %v6501 = vadd.f32 %v6499, %v6500
    %v6502 = vtanh.pop %v6501
    %v6503 = vmul.f32 %v6497, %v6502
    %6504 = vst [vmem:[#allocation3] sm:$0xff] %v6503
    %v6505 = vld [vmem:[%s1396] sm:$0xff]
    %v6506 = vld [vmem:[%s1396 + $0x8] sm:$0xff]
    %v6507 = vld [vmem:[%s1396 + $0x10] sm:$0xff]
    %v6508 = vld [vmem:[%s1396 + $0x18] sm:$0xff]
    %v6509 = vpack.c.bf16 %v6503, %v6503
    %6510 = vmatpush.bf16.msra.mxu0 %v6349
    %6511 = vmatpush.bf16.msra.mxu0 %v6345
    %6512 = vmatpush.bf16.msra.mxu0 %v6341
    %6513 = vmatpush.bf16.msra.mxu0 %v6337
    %6514 = vmatpush.bf16.msra.mxu0 %v6333
    %6515 = vmatpush.bf16.msra.mxu0 %v6329
    %6516 = vmatpush.bf16.msra.mxu0 %v6325
    %6517 = vmatpush.bf16.msra.mxu0 %v6321
    %6518 = vmatmul.bf16.gmra.mxu0 %v6509
    %v6519 = vpop.f32.mrf.mxu0
    %v6520 = vadd.f32 0.0, %v6519
    %v6521 = vpop.f32.mrf.mxu0
    %6522 = vdwg.mxu0
    %6523 = vmatpush.bf16.msra.mxu0 %v6350
    %6524 = vmatpush.bf16.msra.mxu0 %v6346
    %6525 = vmatpush.bf16.msra.mxu0 %v6342
    %6526 = vmatpush.bf16.msra.mxu0 %v6338
    %6527 = vmatpush.bf16.msra.mxu0 %v6334
    %6528 = vmatpush.bf16.msra.mxu0 %v6330
    %6529 = vmatpush.bf16.msra.mxu0 %v6326
    %6530 = vmatpush.bf16.msra.mxu0 %v6322
    %6531 = vmatmul.bf16.gmra.mxu0 %v6509
    %v6532 = vpop.f32.mrf.mxu0
    %v6533 = vadd.f32 0.0, %v6532
    %v6534 = vpop.f32.mrf.mxu0
    %6535 = vdwg.mxu0
    %6536 = vmatpush.bf16.msra.mxu0 %v6351
    %6537 = vmatpush.bf16.msra.mxu0 %v6347
    %6538 = vmatpush.bf16.msra.mxu0 %v6343
    %6539 = vmatpush.bf16.msra.mxu0 %v6339
    %6540 = vmatpush.bf16.msra.mxu0 %v6335
    %6541 = vmatpush.bf16.msra.mxu0 %v6331
    %6542 = vmatpush.bf16.msra.mxu0 %v6327
    %6543 = vmatpush.bf16.msra.mxu0 %v6323
    %6544 = vmatmul.bf16.gmra.mxu0 %v6509
    %v6545 = vpop.f32.mrf.mxu0
    %v6546 = vadd.f32 0.0, %v6545
    %v6547 = vpop.f32.mrf.mxu0
    %6548 = vdwg.mxu0
    %6549 = vmatpush.bf16.msra.mxu0 %v6352
    %6550 = vmatpush.bf16.msra.mxu0 %v6348
    %6551 = vmatpush.bf16.msra.mxu0 %v6344
    %6552 = vmatpush.bf16.msra.mxu0 %v6340
    %6553 = vmatpush.bf16.msra.mxu0 %v6336
    %6554 = vmatpush.bf16.msra.mxu0 %v6332
    %6555 = vmatpush.bf16.msra.mxu0 %v6328
    %6556 = vmatpush.bf16.msra.mxu0 %v6324
    %6557 = vmatmul.bf16.gmra.mxu0 %v6509
    %v6558 = vpop.f32.mrf.mxu0
    %v6559 = vadd.f32 0.0, %v6558
    %v6560 = vpop.f32.mrf.mxu0
    %6561 = vdwg.mxu0
    %v6562 = vadd.f32 %v6505, %v6520
    %v6563 = vadd.f32 %v6506, %v6533
    %v6564 = vadd.f32 %v6507, %v6546
    %v6565 = vadd.f32 %v6508, %v6559
    %v6566 = vxor.u32 %v6562, 2147483648
    %v6567 = vxor.u32 %v6563, 2147483648
    %v6568 = vxor.u32 %v6564, 2147483648
    %v6569 = vmul.f32 %v6566, 1.442695
    %v6570 = vpow.pop %v6569
    %v6571 = vmul.f32 %v6567, 1.442695
    %v6572 = vpow.pop %v6571
    %v6573 = vmul.f32 %v6568, 1.442695
    %v6574 = vpow.pop %v6573
    %v6575 = vadd.f32 %v6570, 1.0
    %v6576 = vadd.f32 %v6572, 1.0
    %v6577 = vadd.f32 %v6574, 1.0
    %v6578 = vrcp.pop %v6575
    %v6579 = vmul.f32 %v6575, %v6578
    %v6580 = vsub.f32 1.0, %v6579
    %v6581 = vmul.f32 %v6578, %v6580
    %v6582 = vadd.f32 %v6578, %v6581
    %vm6583 = vweird.f32 %v6575
    %vm6584 = vweird.f32 %v6578
    %vm6585 = vmor %vm6583, %vm6584
    %v6586 = vsel %vm6585, %v6578, %v6582
    %v6587 = vand.u32 2147483647, %v6575
    %vm6588 = vcmp.eq.f32.partialorder %v6587, 8.507059e+37
    %v6589 = vand.u32 %v6575, 2147483648
    %v6590 = vor.u32 1.1754944e-38, %v6589
    %v6591 = vsel %vm6588, %v6590, %v6586
    %v6592 = vmul.f32 1.0, %v6591
    %v6593 = vrcp.pop %v6576
    %v6594 = vmul.f32 %v6576, %v6593
    %v6595 = vsub.f32 1.0, %v6594
    %v6596 = vmul.f32 %v6593, %v6595
    %v6597 = vadd.f32 %v6593, %v6596
    %vm6598 = vweird.f32 %v6576
    %vm6599 = vweird.f32 %v6593
    %vm6600 = vmor %vm6598, %vm6599
    %v6601 = vsel %vm6600, %v6593, %v6597
    %v6602 = vand.u32 2147483647, %v6576
    %vm6603 = vcmp.eq.f32.partialorder %v6602, 8.507059e+37
    %v6604 = vand.u32 %v6576, 2147483648
    %v6605 = vor.u32 1.1754944e-38, %v6604
    %v6606 = vsel %vm6603, %v6605, %v6601
    %v6607 = vmul.f32 1.0, %v6606
    %v6608 = vrcp.pop %v6577
    %v6609 = vmul.f32 %v6577, %v6608
    %v6610 = vsub.f32 1.0, %v6609
    %v6611 = vmul.f32 %v6608, %v6610
    %v6612 = vadd.f32 %v6608, %v6611
    %vm6613 = vweird.f32 %v6577
    %vm6614 = vweird.f32 %v6608
    %vm6615 = vmor %vm6613, %vm6614
    %v6616 = vsel %vm6615, %v6608, %v6612
    %v6617 = vand.u32 2147483647, %v6577
    %vm6618 = vcmp.eq.f32.partialorder %v6617, 8.507059e+37
    %v6619 = vand.u32 %v6577, 2147483648
    %v6620 = vor.u32 1.1754944e-38, %v6619
    %v6621 = vsel %vm6618, %v6620, %v6616
    %v6622 = vmul.f32 1.0, %v6621
    %v6623 = vtanh.pop %v6565
    %v6624 = vmul.f32 %v6607, %v6501
    %v6625 = vmul.f32 %v6592, %v6623
    %v6626 = vadd.f32 %v6624, %v6625
    %v6627 = vtanh.pop %v6626
    %v6628 = vmul.f32 %v6622, %v6627
    %6629 = vst [vmem:[%s1521] sm:$0xff] %v6628
    %v6630 = vld [vmem:[%s1523] sm:$0xff]
    %v6631 = vld [vmem:[%s1523 + $0x8] sm:$0xff]
    %v6632 = vld [vmem:[%s1523 + $0x10] sm:$0xff]
    %v6633 = vld [vmem:[%s1523 + $0x18] sm:$0xff]
    %v6634 = vpack.c.bf16 %v6628, %v6628
    %6635 = vmatpush.bf16.msra.mxu0 %v6349
    %6636 = vmatpush.bf16.msra.mxu0 %v6345
    %6637 = vmatpush.bf16.msra.mxu0 %v6341
    %6638 = vmatpush.bf16.msra.mxu0 %v6337
    %6639 = vmatpush.bf16.msra.mxu0 %v6333
    %6640 = vmatpush.bf16.msra.mxu0 %v6329
    %6641 = vmatpush.bf16.msra.mxu0 %v6325
    %6642 = vmatpush.bf16.msra.mxu0 %v6321
    %6643 = vmatmul.bf16.gmra.mxu0 %v6634
    %v6644 = vpop.f32.mrf.mxu0
    %v6645 = vadd.f32 0.0, %v6644
    %v6646 = vpop.f32.mrf.mxu0
    %6647 = vdwg.mxu0
    %6648 = vmatpush.bf16.msra.mxu0 %v6350
    %6649 = vmatpush.bf16.msra.mxu0 %v6346
    %6650 = vmatpush.bf16.msra.mxu0 %v6342
    %6651 = vmatpush.bf16.msra.mxu0 %v6338
    %6652 = vmatpush.bf16.msra.mxu0 %v6334
    %6653 = vmatpush.bf16.msra.mxu0 %v6330
    %6654 = vmatpush.bf16.msra.mxu0 %v6326
    %6655 = vmatpush.bf16.msra.mxu0 %v6322
    %6656 = vmatmul.bf16.gmra.mxu0 %v6634
    %v6657 = vpop.f32.mrf.mxu0
    %v6658 = vadd.f32 0.0, %v6657
    %v6659 = vpop.f32.mrf.mxu0
    %6660 = vdwg.mxu0
    %6661 = vmatpush.bf16.msra.mxu0 %v6351
    %6662 = vmatpush.bf16.msra.mxu0 %v6347
    %6663 = vmatpush.bf16.msra.mxu0 %v6343
    %6664 = vmatpush.bf16.msra.mxu0 %v6339
    %6665 = vmatpush.bf16.msra.mxu0 %v6335
    %6666 = vmatpush.bf16.msra.mxu0 %v6331
    %6667 = vmatpush.bf16.msra.mxu0 %v6327
    %6668 = vmatpush.bf16.msra.mxu0 %v6323
    %6669 = vmatmul.bf16.gmra.mxu0 %v6634
    %v6670 = vpop.f32.mrf.mxu0
    %v6671 = vadd.f32 0.0, %v6670
    %v6672 = vpop.f32.mrf.mxu0
    %6673 = vdwg.mxu0
    %6674 = vmatpush.bf16.msra.mxu0 %v6352
    %6675 = vmatpush.bf16.msra.mxu0 %v6348
    %6676 = vmatpush.bf16.msra.mxu0 %v6344
    %6677 = vmatpush.bf16.msra.mxu0 %v6340
    %6678 = vmatpush.bf16.msra.mxu0 %v6336
    %6679 = vmatpush.bf16.msra.mxu0 %v6332
    %6680 = vmatpush.bf16.msra.mxu0 %v6328
    %6681 = vmatpush.bf16.msra.mxu0 %v6324
    %6682 = vmatmul.bf16.gmra.mxu0 %v6634
    %v6683 = vpop.f32.mrf.mxu0
    %v6684 = vadd.f32 0.0, %v6683
    %v6685 = vpop.f32.mrf.mxu0
    %6686 = vdwg.mxu0
    %v6687 = vadd.f32 %v6630, %v6645
    %v6688 = vadd.f32 %v6631, %v6658
    %v6689 = vadd.f32 %v6632, %v6671
    %v6690 = vadd.f32 %v6633, %v6684
    %v6691 = vxor.u32 %v6687, 2147483648
    %v6692 = vxor.u32 %v6688, 2147483648
    %v6693 = vxor.u32 %v6689, 2147483648
    %v6694 = vmul.f32 %v6691, 1.442695
    %v6695 = vpow.pop %v6694
    %v6696 = vmul.f32 %v6692, 1.442695
    %v6697 = vpow.pop %v6696
    %v6698 = vmul.f32 %v6693, 1.442695
    %v6699 = vpow.pop %v6698
    %v6700 = vadd.f32 %v6695, 1.0
    %v6701 = vadd.f32 %v6697, 1.0
    %v6702 = vadd.f32 %v6699, 1.0
    %v6703 = vrcp.pop %v6700
    %v6704 = vmul.f32 %v6700, %v6703
    %v6705 = vsub.f32 1.0, %v6704
    %v6706 = vmul.f32 %v6703, %v6705
    %v6707 = vadd.f32 %v6703, %v6706
    %vm6708 = vweird.f32 %v6700
    %vm6709 = vweird.f32 %v6703
    %vm6710 = vmor %vm6708, %vm6709
    %v6711 = vsel %vm6710, %v6703, %v6707
    %v6712 = vand.u32 2147483647, %v6700
    %vm6713 = vcmp.eq.f32.partialorder %v6712, 8.507059e+37
    %v6714 = vand.u32 %v6700, 2147483648
    %v6715 = vor.u32 1.1754944e-38, %v6714
    %v6716 = vsel %vm6713, %v6715, %v6711
    %v6717 = vmul.f32 1.0, %v6716
    %v6718 = vrcp.pop %v6701
    %v6719 = vmul.f32 %v6701, %v6718
    %v6720 = vsub.f32 1.0, %v6719
    %v6721 = vmul.f32 %v6718, %v6720
    %v6722 = vadd.f32 %v6718, %v6721
    %vm6723 = vweird.f32 %v6701
    %vm6724 = vweird.f32 %v6718
    %vm6725 = vmor %vm6723, %vm6724
    %v6726 = vsel %vm6725, %v6718, %v6722
    %v6727 = vand.u32 2147483647, %v6701
    %vm6728 = vcmp.eq.f32.partialorder %v6727, 8.507059e+37
    %v6729 = vand.u32 %v6701, 2147483648
    %v6730 = vor.u32 1.1754944e-38, %v6729
    %v6731 = vsel %vm6728, %v6730, %v6726
    %v6732 = vmul.f32 1.0, %v6731
    %v6733 = vrcp.pop %v6702
    %v6734 = vmul.f32 %v6702, %v6733
    %v6735 = vsub.f32 1.0, %v6734
    %v6736 = vmul.f32 %v6733, %v6735
    %v6737 = vadd.f32 %v6733, %v6736
    %vm6738 = vweird.f32 %v6702
    %vm6739 = vweird.f32 %v6733
    %vm6740 = vmor %vm6738, %vm6739
    %v6741 = vsel %vm6740, %v6733, %v6737
    %v6742 = vand.u32 2147483647, %v6702
    %vm6743 = vcmp.eq.f32.partialorder %v6742, 8.507059e+37
    %v6744 = vand.u32 %v6702, 2147483648
    %v6745 = vor.u32 1.1754944e-38, %v6744
    %v6746 = vsel %vm6743, %v6745, %v6741
    %v6747 = vmul.f32 1.0, %v6746
    %v6748 = vtanh.pop %v6690
    %v6749 = vmul.f32 %v6732, %v6626
    %v6750 = vmul.f32 %v6717, %v6748
    %v6751 = vadd.f32 %v6749, %v6750
    %v6752 = vtanh.pop %v6751
    %v6753 = vmul.f32 %v6747, %v6752
    %6754 = vst [vmem:[%s1648] sm:$0xff] %v6753
    %v6755 = vld [vmem:[%s1650] sm:$0xff]
    %v6756 = vld [vmem:[%s1650 + $0x8] sm:$0xff]
    %v6757 = vld [vmem:[%s1650 + $0x10] sm:$0xff]
    %v6758 = vld [vmem:[%s1650 + $0x18] sm:$0xff]
    %v6759 = vpack.c.bf16 %v6753, %v6753
    %6760 = vmatpush.bf16.msra.mxu0 %v6349
    %6761 = vmatpush.bf16.msra.mxu0 %v6345
    %6762 = vmatpush.bf16.msra.mxu0 %v6341
    %6763 = vmatpush.bf16.msra.mxu0 %v6337
    %6764 = vmatpush.bf16.msra.mxu0 %v6333
    %6765 = vmatpush.bf16.msra.mxu0 %v6329
    %6766 = vmatpush.bf16.msra.mxu0 %v6325
    %6767 = vmatpush.bf16.msra.mxu0 %v6321
    %6768 = vmatmul.bf16.gmra.mxu0 %v6759
    %v6769 = vpop.f32.mrf.mxu0
    %v6770 = vadd.f32 0.0, %v6769
    %v6771 = vpop.f32.mrf.mxu0
    %6772 = vdwg.mxu0
    %6773 = vmatpush.bf16.msra.mxu0 %v6350
    %6774 = vmatpush.bf16.msra.mxu0 %v6346
    %6775 = vmatpush.bf16.msra.mxu0 %v6342
    %6776 = vmatpush.bf16.msra.mxu0 %v6338
    %6777 = vmatpush.bf16.msra.mxu0 %v6334
    %6778 = vmatpush.bf16.msra.mxu0 %v6330
    %6779 = vmatpush.bf16.msra.mxu0 %v6326
    %6780 = vmatpush.bf16.msra.mxu0 %v6322
    %6781 = vmatmul.bf16.gmra.mxu0 %v6759
    %v6782 = vpop.f32.mrf.mxu0
    %v6783 = vadd.f32 0.0, %v6782
    %v6784 = vpop.f32.mrf.mxu0
    %6785 = vdwg.mxu0
    %6786 = vmatpush.bf16.msra.mxu0 %v6351
    %6787 = vmatpush.bf16.msra.mxu0 %v6347
    %6788 = vmatpush.bf16.msra.mxu0 %v6343
    %6789 = vmatpush.bf16.msra.mxu0 %v6339
    %6790 = vmatpush.bf16.msra.mxu0 %v6335
    %6791 = vmatpush.bf16.msra.mxu0 %v6331
    %6792 = vmatpush.bf16.msra.mxu0 %v6327
    %6793 = vmatpush.bf16.msra.mxu0 %v6323
    %6794 = vmatmul.bf16.gmra.mxu0 %v6759
    %v6795 = vpop.f32.mrf.mxu0
    %v6796 = vadd.f32 0.0, %v6795
    %v6797 = vpop.f32.mrf.mxu0
    %6798 = vdwg.mxu0
    %6799 = vmatpush.bf16.msra.mxu0 %v6352
    %6800 = vmatpush.bf16.msra.mxu0 %v6348
    %6801 = vmatpush.bf16.msra.mxu0 %v6344
    %6802 = vmatpush.bf16.msra.mxu0 %v6340
    %6803 = vmatpush.bf16.msra.mxu0 %v6336
    %6804 = vmatpush.bf16.msra.mxu0 %v6332
    %6805 = vmatpush.bf16.msra.mxu0 %v6328
    %6806 = vmatpush.bf16.msra.mxu0 %v6324
    %6807 = vmatmul.bf16.gmra.mxu0 %v6759
    %v6808 = vpop.f32.mrf.mxu0
    %v6809 = vadd.f32 0.0, %v6808
    %v6810 = vpop.f32.mrf.mxu0
    %6811 = vdwg.mxu0
    %v6812 = vadd.f32 %v6755, %v6770
    %v6813 = vadd.f32 %v6756, %v6783
    %v6814 = vadd.f32 %v6757, %v6796
    %v6815 = vadd.f32 %v6758, %v6809
    %v6816 = vxor.u32 %v6812, 2147483648
    %v6817 = vxor.u32 %v6813, 2147483648
    %v6818 = vxor.u32 %v6814, 2147483648
    %v6819 = vmul.f32 %v6816, 1.442695
    %v6820 = vpow.pop %v6819
    %v6821 = vmul.f32 %v6817, 1.442695
    %v6822 = vpow.pop %v6821
    %v6823 = vmul.f32 %v6818, 1.442695
    %v6824 = vpow.pop %v6823
    %v6825 = vadd.f32 %v6820, 1.0
    %v6826 = vadd.f32 %v6822, 1.0
    %v6827 = vadd.f32 %v6824, 1.0
    %v6828 = vrcp.pop %v6825
    %v6829 = vmul.f32 %v6825, %v6828
    %v6830 = vsub.f32 1.0, %v6829
    %v6831 = vmul.f32 %v6828, %v6830
    %v6832 = vadd.f32 %v6828, %v6831
    %vm6833 = vweird.f32 %v6825
    %vm6834 = vweird.f32 %v6828
    %vm6835 = vmor %vm6833, %vm6834
    %v6836 = vsel %vm6835, %v6828, %v6832
    %v6837 = vand.u32 2147483647, %v6825
    %vm6838 = vcmp.eq.f32.partialorder %v6837, 8.507059e+37
    %v6839 = vand.u32 %v6825, 2147483648
    %v6840 = vor.u32 1.1754944e-38, %v6839
    %v6841 = vsel %vm6838, %v6840, %v6836
    %v6842 = vmul.f32 1.0, %v6841
    %v6843 = vrcp.pop %v6826
    %v6844 = vmul.f32 %v6826, %v6843
    %v6845 = vsub.f32 1.0, %v6844
    %v6846 = vmul.f32 %v6843, %v6845
    %v6847 = vadd.f32 %v6843, %v6846
    %vm6848 = vweird.f32 %v6826
    %vm6849 = vweird.f32 %v6843
    %vm6850 = vmor %vm6848, %vm6849
    %v6851 = vsel %vm6850, %v6843, %v6847
    %v6852 = vand.u32 2147483647, %v6826
    %vm6853 = vcmp.eq.f32.partialorder %v6852, 8.507059e+37
    %v6854 = vand.u32 %v6826, 2147483648
    %v6855 = vor.u32 1.1754944e-38, %v6854
    %v6856 = vsel %vm6853, %v6855, %v6851
    %v6857 = vmul.f32 1.0, %v6856
    %v6858 = vrcp.pop %v6827
    %v6859 = vmul.f32 %v6827, %v6858
    %v6860 = vsub.f32 1.0, %v6859
    %v6861 = vmul.f32 %v6858, %v6860
    %v6862 = vadd.f32 %v6858, %v6861
    %vm6863 = vweird.f32 %v6827
    %vm6864 = vweird.f32 %v6858
    %vm6865 = vmor %vm6863, %vm6864
    %v6866 = vsel %vm6865, %v6858, %v6862
    %v6867 = vand.u32 2147483647, %v6827
    %vm6868 = vcmp.eq.f32.partialorder %v6867, 8.507059e+37
    %v6869 = vand.u32 %v6827, 2147483648
    %v6870 = vor.u32 1.1754944e-38, %v6869
    %v6871 = vsel %vm6868, %v6870, %v6866
    %v6872 = vmul.f32 1.0, %v6871
    %v6873 = vtanh.pop %v6815
    %v6874 = vmul.f32 %v6857, %v6751
    %v6875 = vmul.f32 %v6842, %v6873
    %v6876 = vadd.f32 %v6874, %v6875
    %v6877 = vtanh.pop %v6876
    %v6878 = vmul.f32 %v6872, %v6877
    %6879 = vst [vmem:[%s1775] sm:$0xff] %v6878
    %v6880 = vld [vmem:[%s1777] sm:$0xff]
    %v6881 = vld [vmem:[%s1777 + $0x8] sm:$0xff]
    %v6882 = vld [vmem:[%s1777 + $0x10] sm:$0xff]
    %v6883 = vld [vmem:[%s1777 + $0x18] sm:$0xff]
    %v6884 = vpack.c.bf16 %v6878, %v6878
    %6885 = vmatpush.bf16.msra.mxu0 %v6349
    %6886 = vmatpush.bf16.msra.mxu0 %v6345
    %6887 = vmatpush.bf16.msra.mxu0 %v6341
    %6888 = vmatpush.bf16.msra.mxu0 %v6337
    %6889 = vmatpush.bf16.msra.mxu0 %v6333
    %6890 = vmatpush.bf16.msra.mxu0 %v6329
    %6891 = vmatpush.bf16.msra.mxu0 %v6325
    %6892 = vmatpush.bf16.msra.mxu0 %v6321
    %6893 = vmatmul.bf16.gmra.mxu0 %v6884
    %v6894 = vpop.f32.mrf.mxu0
    %v6895 = vadd.f32 0.0, %v6894
    %v6896 = vpop.f32.mrf.mxu0
    %6897 = vdwg.mxu0
    %6898 = vmatpush.bf16.msra.mxu0 %v6350
    %6899 = vmatpush.bf16.msra.mxu0 %v6346
    %6900 = vmatpush.bf16.msra.mxu0 %v6342
    %6901 = vmatpush.bf16.msra.mxu0 %v6338
    %6902 = vmatpush.bf16.msra.mxu0 %v6334
    %6903 = vmatpush.bf16.msra.mxu0 %v6330
    %6904 = vmatpush.bf16.msra.mxu0 %v6326
    %6905 = vmatpush.bf16.msra.mxu0 %v6322
    %6906 = vmatmul.bf16.gmra.mxu0 %v6884
    %v6907 = vpop.f32.mrf.mxu0
    %v6908 = vadd.f32 0.0, %v6907
    %v6909 = vpop.f32.mrf.mxu0
    %6910 = vdwg.mxu0
    %6911 = vmatpush.bf16.msra.mxu0 %v6351
    %6912 = vmatpush.bf16.msra.mxu0 %v6347
    %6913 = vmatpush.bf16.msra.mxu0 %v6343
    %6914 = vmatpush.bf16.msra.mxu0 %v6339
    %6915 = vmatpush.bf16.msra.mxu0 %v6335
    %6916 = vmatpush.bf16.msra.mxu0 %v6331
    %6917 = vmatpush.bf16.msra.mxu0 %v6327
    %6918 = vmatpush.bf16.msra.mxu0 %v6323
    %6919 = vmatmul.bf16.gmra.mxu0 %v6884
    %v6920 = vpop.f32.mrf.mxu0
    %v6921 = vadd.f32 0.0, %v6920
    %v6922 = vpop.f32.mrf.mxu0
    %6923 = vdwg.mxu0
    %6924 = vmatpush.bf16.msra.mxu0 %v6352
    %6925 = vmatpush.bf16.msra.mxu0 %v6348
    %6926 = vmatpush.bf16.msra.mxu0 %v6344
    %6927 = vmatpush.bf16.msra.mxu0 %v6340
    %6928 = vmatpush.bf16.msra.mxu0 %v6336
    %6929 = vmatpush.bf16.msra.mxu0 %v6332
    %6930 = vmatpush.bf16.msra.mxu0 %v6328
    %6931 = vmatpush.bf16.msra.mxu0 %v6324
    %6932 = vmatmul.bf16.gmra.mxu0 %v6884
    %v6933 = vpop.f32.mrf.mxu0
    %v6934 = vadd.f32 0.0, %v6933
    %v6935 = vpop.f32.mrf.mxu0
    %6936 = vdwg.mxu0
    %v6937 = vadd.f32 %v6880, %v6895
    %v6938 = vadd.f32 %v6881, %v6908
    %v6939 = vadd.f32 %v6882, %v6921
    %v6940 = vadd.f32 %v6883, %v6934
    %v6941 = vxor.u32 %v6937, 2147483648
    %v6942 = vxor.u32 %v6938, 2147483648
    %v6943 = vxor.u32 %v6939, 2147483648
    %v6944 = vmul.f32 %v6941, 1.442695
    %v6945 = vpow.pop %v6944
    %v6946 = vmul.f32 %v6942, 1.442695
    %v6947 = vpow.pop %v6946
    %v6948 = vmul.f32 %v6943, 1.442695
    %v6949 = vpow.pop %v6948
    %v6950 = vadd.f32 %v6945, 1.0
    %v6951 = vadd.f32 %v6947, 1.0
    %v6952 = vadd.f32 %v6949, 1.0
    %v6953 = vrcp.pop %v6950
    %v6954 = vmul.f32 %v6950, %v6953
    %v6955 = vsub.f32 1.0, %v6954
    %v6956 = vmul.f32 %v6953, %v6955
    %v6957 = vadd.f32 %v6953, %v6956
    %vm6958 = vweird.f32 %v6950
    %vm6959 = vweird.f32 %v6953
    %vm6960 = vmor %vm6958, %vm6959
    %v6961 = vsel %vm6960, %v6953, %v6957
    %v6962 = vand.u32 2147483647, %v6950
    %vm6963 = vcmp.eq.f32.partialorder %v6962, 8.507059e+37
    %v6964 = vand.u32 %v6950, 2147483648
    %v6965 = vor.u32 1.1754944e-38, %v6964
    %v6966 = vsel %vm6963, %v6965, %v6961
    %v6967 = vmul.f32 1.0, %v6966
    %v6968 = vrcp.pop %v6951
    %v6969 = vmul.f32 %v6951, %v6968
    %v6970 = vsub.f32 1.0, %v6969
    %v6971 = vmul.f32 %v6968, %v6970
    %v6972 = vadd.f32 %v6968, %v6971
    %vm6973 = vweird.f32 %v6951
    %vm6974 = vweird.f32 %v6968
    %vm6975 = vmor %vm6973, %vm6974
    %v6976 = vsel %vm6975, %v6968, %v6972
    %v6977 = vand.u32 2147483647, %v6951
    %vm6978 = vcmp.eq.f32.partialorder %v6977, 8.507059e+37
    %v6979 = vand.u32 %v6951, 2147483648
    %v6980 = vor.u32 1.1754944e-38, %v6979
    %v6981 = vsel %vm6978, %v6980, %v6976
    %v6982 = vmul.f32 1.0, %v6981
    %v6983 = vrcp.pop %v6952
    %v6984 = vmul.f32 %v6952, %v6983
    %v6985 = vsub.f32 1.0, %v6984
    %v6986 = vmul.f32 %v6983, %v6985
    %v6987 = vadd.f32 %v6983, %v6986
    %vm6988 = vweird.f32 %v6952
    %vm6989 = vweird.f32 %v6983
    %vm6990 = vmor %vm6988, %vm6989
    %v6991 = vsel %vm6990, %v6983, %v6987
    %v6992 = vand.u32 2147483647, %v6952
    %vm6993 = vcmp.eq.f32.partialorder %v6992, 8.507059e+37
    %v6994 = vand.u32 %v6952, 2147483648
    %v6995 = vor.u32 1.1754944e-38, %v6994
    %v6996 = vsel %vm6993, %v6995, %v6991
    %v6997 = vmul.f32 1.0, %v6996
    %v6998 = vtanh.pop %v6940
    %v6999 = vmul.f32 %v6982, %v6876
    %v7000 = vmul.f32 %v6967, %v6998
    %v7001 = vadd.f32 %v6999, %v7000
    %v7002 = vtanh.pop %v7001
    %v7003 = vmul.f32 %v6997, %v7002
    %7004 = vst [vmem:[%s1902] sm:$0xff] %v7003
    %v7005 = vld [vmem:[%s1904] sm:$0xff]
    %v7006 = vld [vmem:[%s1904 + $0x8] sm:$0xff]
    %v7007 = vld [vmem:[%s1904 + $0x10] sm:$0xff]
    %v7008 = vld [vmem:[%s1904 + $0x18] sm:$0xff]
    %v7009 = vpack.c.bf16 %v7003, %v7003
    %7010 = vmatpush.bf16.msra.mxu0 %v6349
    %7011 = vmatpush.bf16.msra.mxu0 %v6345
    %7012 = vmatpush.bf16.msra.mxu0 %v6341
    %7013 = vmatpush.bf16.msra.mxu0 %v6337
    %7014 = vmatpush.bf16.msra.mxu0 %v6333
    %7015 = vmatpush.bf16.msra.mxu0 %v6329
    %7016 = vmatpush.bf16.msra.mxu0 %v6325
    %7017 = vmatpush.bf16.msra.mxu0 %v6321
    %7018 = vmatmul.bf16.gmra.mxu0 %v7009
    %v7019 = vpop.f32.mrf.mxu0
    %v7020 = vadd.f32 0.0, %v7019
    %v7021 = vpop.f32.mrf.mxu0
    %7022 = vdwg.mxu0
    %7023 = vmatpush.bf16.msra.mxu0 %v6350
    %7024 = vmatpush.bf16.msra.mxu0 %v6346
    %7025 = vmatpush.bf16.msra.mxu0 %v6342
    %7026 = vmatpush.bf16.msra.mxu0 %v6338
    %7027 = vmatpush.bf16.msra.mxu0 %v6334
    %7028 = vmatpush.bf16.msra.mxu0 %v6330
    %7029 = vmatpush.bf16.msra.mxu0 %v6326
    %7030 = vmatpush.bf16.msra.mxu0 %v6322
    %7031 = vmatmul.bf16.gmra.mxu0 %v7009
    %v7032 = vpop.f32.mrf.mxu0
    %v7033 = vadd.f32 0.0, %v7032
    %v7034 = vpop.f32.mrf.mxu0
    %7035 = vdwg.mxu0
    %7036 = vmatpush.bf16.msra.mxu0 %v6351
    %7037 = vmatpush.bf16.msra.mxu0 %v6347
    %7038 = vmatpush.bf16.msra.mxu0 %v6343
    %7039 = vmatpush.bf16.msra.mxu0 %v6339
    %7040 = vmatpush.bf16.msra.mxu0 %v6335
    %7041 = vmatpush.bf16.msra.mxu0 %v6331
    %7042 = vmatpush.bf16.msra.mxu0 %v6327
    %7043 = vmatpush.bf16.msra.mxu0 %v6323
    %7044 = vmatmul.bf16.gmra.mxu0 %v7009
    %v7045 = vpop.f32.mrf.mxu0
    %v7046 = vadd.f32 0.0, %v7045
    %v7047 = vpop.f32.mrf.mxu0
    %7048 = vdwg.mxu0
    %7049 = vmatpush.bf16.msra.mxu0 %v6352
    %7050 = vmatpush.bf16.msra.mxu0 %v6348
    %7051 = vmatpush.bf16.msra.mxu0 %v6344
    %7052 = vmatpush.bf16.msra.mxu0 %v6340
    %7053 = vmatpush.bf16.msra.mxu0 %v6336
    %7054 = vmatpush.bf16.msra.mxu0 %v6332
    %7055 = vmatpush.bf16.msra.mxu0 %v6328
    %7056 = vmatpush.bf16.msra.mxu0 %v6324
    %7057 = vmatmul.bf16.gmra.mxu0 %v7009
    %v7058 = vpop.f32.mrf.mxu0
    %v7059 = vadd.f32 0.0, %v7058
    %v7060 = vpop.f32.mrf.mxu0
    %7061 = vdwg.mxu0
    %v7062 = vadd.f32 %v7005, %v7020
    %v7063 = vadd.f32 %v7006, %v7033
    %v7064 = vadd.f32 %v7007, %v7046
    %v7065 = vadd.f32 %v7008, %v7059
    %v7066 = vxor.u32 %v7062, 2147483648
    %v7067 = vxor.u32 %v7063, 2147483648
    %v7068 = vxor.u32 %v7064, 2147483648
    %v7069 = vmul.f32 %v7066, 1.442695
    %v7070 = vpow.pop %v7069
    %v7071 = vmul.f32 %v7067, 1.442695
    %v7072 = vpow.pop %v7071
    %v7073 = vmul.f32 %v7068, 1.442695
    %v7074 = vpow.pop %v7073
    %v7075 = vadd.f32 %v7070, 1.0
    %v7076 = vadd.f32 %v7072, 1.0
    %v7077 = vadd.f32 %v7074, 1.0
    %v7078 = vrcp.pop %v7075
    %v7079 = vmul.f32 %v7075, %v7078
    %v7080 = vsub.f32 1.0, %v7079
    %v7081 = vmul.f32 %v7078, %v7080
    %v7082 = vadd.f32 %v7078, %v7081
    %vm7083 = vweird.f32 %v7075
    %vm7084 = vweird.f32 %v7078
    %vm7085 = vmor %vm7083, %vm7084
    %v7086 = vsel %vm7085, %v7078, %v7082
    %v7087 = vand.u32 2147483647, %v7075
    %vm7088 = vcmp.eq.f32.partialorder %v7087, 8.507059e+37
    %v7089 = vand.u32 %v7075, 2147483648
    %v7090 = vor.u32 1.1754944e-38, %v7089
    %v7091 = vsel %vm7088, %v7090, %v7086
    %v7092 = vmul.f32 1.0, %v7091
    %v7093 = vrcp.pop %v7076
    %v7094 = vmul.f32 %v7076, %v7093
    %v7095 = vsub.f32 1.0, %v7094
    %v7096 = vmul.f32 %v7093, %v7095
    %v7097 = vadd.f32 %v7093, %v7096
    %vm7098 = vweird.f32 %v7076
    %vm7099 = vweird.f32 %v7093
    %vm7100 = vmor %vm7098, %vm7099
    %v7101 = vsel %vm7100, %v7093, %v7097
    %v7102 = vand.u32 2147483647, %v7076
    %vm7103 = vcmp.eq.f32.partialorder %v7102, 8.507059e+37
    %v7104 = vand.u32 %v7076, 2147483648
    %v7105 = vor.u32 1.1754944e-38, %v7104
    %v7106 = vsel %vm7103, %v7105, %v7101
    %v7107 = vmul.f32 1.0, %v7106
    %v7108 = vrcp.pop %v7077
    %v7109 = vmul.f32 %v7077, %v7108
    %v7110 = vsub.f32 1.0, %v7109
    %v7111 = vmul.f32 %v7108, %v7110
    %v7112 = vadd.f32 %v7108, %v7111
    %vm7113 = vweird.f32 %v7077
    %vm7114 = vweird.f32 %v7108
    %vm7115 = vmor %vm7113, %vm7114
    %v7116 = vsel %vm7115, %v7108, %v7112
    %v7117 = vand.u32 2147483647, %v7077
    %vm7118 = vcmp.eq.f32.partialorder %v7117, 8.507059e+37
    %v7119 = vand.u32 %v7077, 2147483648
    %v7120 = vor.u32 1.1754944e-38, %v7119
    %v7121 = vsel %vm7118, %v7120, %v7116
    %v7122 = vmul.f32 1.0, %v7121
    %v7123 = vtanh.pop %v7065
    %v7124 = vmul.f32 %v7107, %v7001
    %v7125 = vmul.f32 %v7092, %v7123
    %v7126 = vadd.f32 %v7124, %v7125
    %v7127 = vtanh.pop %v7126
    %v7128 = vmul.f32 %v7122, %v7127
    %7129 = vst [vmem:[%s2029] sm:$0xff] %v7128
    %v7130 = vld [vmem:[#allocation3] sm:$0xff]
    %v7131 = vld [vmem:[#allocation3 + $0x8] sm:$0xff]
    %v7132 = vld [vmem:[#allocation3 + $0x10] sm:$0xff]
    %v7133 = vld [vmem:[#allocation3 + $0x18] sm:$0xff]
    %v7134 = vld [vmem:[#allocation3 + $0x20] sm:$0xff]
    %v7135 = vld [vmem:[#allocation3 + $0x28] sm:$0xff]
    %v7136 = vpack.c.bf16 %v7130, %v7130
    %v7137 = vpack.c.bf16 %v7131, %v7131
    %v7138 = vpack.c.bf16 %v7132, %v7132
    %v7139 = vpack.c.bf16 %v7133, %v7133
    %v7140 = vpack.c.bf16 %v7134, %v7134
    %v7141 = vpack.c.bf16 %v7135, %v7135
    %v7142 = vld [vmem:[#allocation13] sm:$0xf]
    %v7143 = vld [vmem:[#allocation13 + $0x4] sm:$0xf]
    %v7144 = vld [vmem:[#allocation13 + $0x8] sm:$0xf]
    %v7145 = vld [vmem:[#allocation13 + $0xc] sm:$0xf]
    %v7146 = vld [vmem:[#allocation13 + $0x10] sm:$0xf]
    %v7147 = vld [vmem:[#allocation13 + $0x14] sm:$0xf]
    %v7148 = vld [vmem:[#allocation13 + $0x18] sm:$0xf]
    %v7149 = vld [vmem:[#allocation13 + $0x1c] sm:$0xf]
    %v7150 = vld [vmem:[#allocation13 + $0x20] sm:$0xf]
    %v7151 = vld [vmem:[#allocation13 + $0x24] sm:$0xf]
    %v7152 = vld [vmem:[#allocation13 + $0x28] sm:$0xf]
    %v7153 = vld [vmem:[#allocation13 + $0x2c] sm:$0xf]
    %v7154 = vld [vmem:[#allocation13 + $0x30] sm:$0xf]
    %v7155 = vld [vmem:[#allocation13 + $0x34] sm:$0xf]
    %v7156 = vld [vmem:[#allocation13 + $0x38] sm:$0xf]
    %v7157 = vld [vmem:[#allocation13 + $0x3c] sm:$0xf]
    %v7158 = vld [vmem:[%s6] sm:$0x1]
    %v7160 = vperm.slane %v7158, 0
    %v7168 = vunpack.c.l.b16 %v7136
    %v7169 = vunpack.c.l.b16 %v7137
    %v7170 = vunpack.c.l.b16 %v7138
    %v7171 = vunpack.c.l.b16 %v7139
    %v7172 = vunpack.c.l.b16 %v7140
    %v7173 = vunpack.c.l.b16 %v7141
    %v7174 = vrot.slane %v7168, 1
    %vm7175 = vcmask 1041409
    %v7176 = vsel %vm7175, %v7169, %v7174
    %v7177 = vrot.slane %v7170, 7
    %vm7178 = vcmask 1042434
    %v7179 = vsel %vm7178, %v7177, %v7176
    %v7180 = vrot.slane %v7171, 6
    %vm7181 = vcmask 1043459
    %v7182 = vsel %vm7181, %v7180, %v7179
    %v7183 = vrot.slane %v7172, 5
    %vm7184 = vcmask 1044484
    %v7185 = vsel %vm7184, %v7183, %v7182
    %v7186 = vrot.slane %v7173, 4
    %vm7187 = vcmask 1045509
    %v7188 = vsel %vm7187, %v7186, %v7185
    %v7189 = vpack.c.b16 %v7188, %v7188
    %v7207 = vunpack.c.l.b16 %v7142
    %v7208 = vunpack.c.l.b16 %v7143
    %v7209 = vunpack.c.l.b16 %v7144
    %v7210 = vunpack.c.l.b16 %v7145
    %v7211 = vunpack.c.l.b16 %v7146
    %v7212 = vunpack.c.l.b16 %v7147
    %v7213 = vunpack.c.l.b16 %v7148
    %v7214 = vunpack.c.l.b16 %v7149
    %v7215 = vunpack.c.l.b16 %v7150
    %v7216 = vunpack.c.l.b16 %v7151
    %v7217 = vunpack.c.l.b16 %v7152
    %v7218 = vunpack.c.l.b16 %v7153
    %v7219 = vunpack.c.l.b16 %v7154
    %v7220 = vunpack.c.l.b16 %v7155
    %v7221 = vunpack.c.l.b16 %v7156
    %v7222 = vunpack.c.l.b16 %v7157
    %v7223 = vpack.c.b16 %v7208, %v7207
    %v7224 = vpack.c.b16 %v7210, %v7209
    %v7225 = vpack.c.b16 %v7212, %v7211
    %v7226 = vpack.c.b16 %v7214, %v7213
    %v7227 = vpack.c.b16 %v7216, %v7215
    %v7228 = vpack.c.b16 %v7218, %v7217
    %v7229 = vpack.c.b16 %v7220, %v7219
    %v7230 = vpack.c.b16 %v7222, %v7221
    %7239 = vmatpush.bf16.msra.mxu0 %v7230
    %7240 = vmatpush.bf16.msra.mxu0 %v7229
    %7241 = vmatpush.bf16.msra.mxu0 %v7228
    %7242 = vmatpush.bf16.msra.mxu0 %v7227
    %7243 = vmatpush.bf16.msra.mxu0 %v7226
    %7244 = vmatpush.bf16.msra.mxu0 %v7225
    %7245 = vmatpush.bf16.msra.mxu0 %v7224
    %7246 = vmatpush.bf16.msra.mxu0 %v7223
    %7247 = vmatmul.bf16.gmra.mxu0 %v7189
    %v7248 = vpop.f32.mrf.mxu0
    %v7249 = vadd.f32 %v7160, %v7248
    %v7250 = vpop.f32.mrf.mxu0
    %7251 = vdwg.mxu0
    %7252 = vst [vmem:[#allocation15] sm:$0x3f] %v7249
    // Predicated region
    $region54: #{tpu_custom_call.1} parent=1 // pred_check
      _
    $region55: #{tpu_custom_call.1} parent=1 // pred_check_branch
      %7254 = sbr.rel (0) target = $region57
    $region56: #{tpu_custom_call.1} parent=1 // pred_region
      %7256 = vsyncadd [#allocation6], 0
      %s7258 = sshll.u32 [#allocation15], 4
      %s7259 = int_to_ptr.vmem [resolvable:$true] %s7258
      %s7260 = sshll.u32 %s7, 4
      %s7261 = int_to_ptr.hbm [resolvable:$true] %s7260
      %7263 = dma.vmem_to_hbm [thread:$0]  %s7259, 128, %s7261, [#allocation6]
    $region57: #{tpu_custom_call.1} parent=1 // pred_fallthru
      _
    // Predicated region
    $region58: #{tpu_custom_call.1} parent=1 // pred_check
      _
    $region59: #{tpu_custom_call.1} parent=1 // pred_check_branch
      %7265 = sbr.rel (0) target = $region61
    $region60: #{tpu_custom_call.1} parent=1 // pred_region
      %7267 = dma.done [#allocation6], 128
    $region61: #{tpu_custom_call.1} parent=1 // pred_fallthru
      _
    %7268 = vsyncpa [#allocation5], 1
    %7269 = vsyncpa [#allocation8], 1
    %7270 = vsyncpa [#allocation11], 1
    %7271 = vsyncpa [#allocation14], 1
    %7272 = vsyncpa [#allocation6], 1

</llo_original>
